<compile_context>
chip_gen: v7x
topology: tpu7x:2x2x1
jax: 0.10.0
libtpu: 0.0.40
codegen_flags: <defaults>
</compile_context>

<pallas_src>
import math
import functools

import jax
import jax.numpy as jnp
from jax.experimental import pallas as pl
from jax.experimental.pallas import tpu as pltpu


# ----------------------------------------------------------------------------
# Fused Pallas kernel: one batch element per grid step, everything in VMEM.
# ----------------------------------------------------------------------------

def _satrot_kernel(xp_ref, we_ref, be_ref, cls_ref, pos_ref,
                   wqkv_ref, bqkv_ref, wo_ref, bo_ref, g1_ref, bt1_ref,
                   w1_ref, b1_ref, w2_ref, b2_ref, g2_ref, bt2_ref,
                   wh1_ref, bh1_ref, wh2_ref, bh2_ref,
                   out_ref, *, nhead, head_dim, num_layers):
    f32 = jnp.float32
    bf16 = jnp.bfloat16
    d = nhead * head_dim
    scale = 1.0 / math.sqrt(head_dim)

    def mm(a, w):
        # bf16 MXU operands, f32 accumulation; elementwise work stays f32.
        return jnp.dot(a.astype(bf16), w, preferred_element_type=f32)

    def layer_norm(v, g, b):
        mu = jnp.mean(v, axis=-1, keepdims=True)
        var = jnp.mean((v - mu) ** 2, axis=-1, keepdims=True)
        return (v - mu) * jax.lax.rsqrt(var + 1e-5) * g + b

    # --- patch embedding + CLS token + positional encoding (all in VMEM) ---
    patches = xp_ref[0]                                     # (n_patches, in_dim) f32
    emb = mm(patches, we_ref[...]) + be_ref[...]            # (n_patches, d)
    seq = jnp.concatenate([cls_ref[...], emb + pos_ref[...]], axis=0)   # (S, d) f32

    # --- transformer encoder (post-norm, ReLU FFN, dropout = identity / eval) ---
    # TODO(synk): dropout is stochastic in train mode; eval-mode identity is used here.
    for l in range(num_layers):
        qkv = mm(seq, wqkv_ref[l]) + bqkv_ref[l]            # (S, 3d) f32
        q_all = qkv[:, :d] * scale                          # pre-scale Q once
        head_outs = []
        for h in range(nhead):                              # static, nhead is small
            lo = h * head_dim
            qh = q_all[:, lo:lo + head_dim].astype(bf16)
            kh = qkv[:, d + lo:d + lo + head_dim].astype(bf16)
            vh = qkv[:, 2 * d + lo:2 * d + lo + head_dim].astype(bf16)
            s = jax.lax.dot_general(qh, kh, (((1,), (1,)), ((), ())),
                                    preferred_element_type=f32)          # (S, S)
            s = s - jnp.max(s, axis=-1, keepdims=True)
            p = jnp.exp(s)
            p = p * pl.reciprocal(jnp.sum(p, axis=-1, keepdims=True), approx=True)
            head_outs.append(jnp.dot(p.astype(bf16), vh,
                                     preferred_element_type=f32))        # (S, hd)
        attn = jnp.concatenate(head_outs, axis=-1)          # (S, d) — no eye scatter
        attn = mm(attn, wo_ref[l]) + bo_ref[l]

        y = layer_norm(seq + attn, g1_ref[l], bt1_ref[l])    # residual + LN1 (f32)
        h1 = jnp.maximum(mm(y, w1_ref[l]) + b1_ref[l], 0.0)  # FFN up (d -> dff)
        ff = mm(h1, w2_ref[l]) + b2_ref[l]                   # FFN down (dff -> d)
        seq = layer_norm(y + ff, g2_ref[l], bt2_ref[l])      # residual + LN2

    # --- merged rot / uv heads: one (d,2d) matmul + one block-diag (2d,8) matmul ---
    cls_feat = seq[0:1, :]                                  # (1, d)
    hh = jnp.maximum(mm(cls_feat, wh1_ref[...]) + bh1_ref[...], 0.0)    # (1, 2d)
    o8 = mm(hh, wh2_ref[...]) + bh2_ref[...]                            # (1, 8)
    col = jax.lax.broadcasted_iota(jnp.int32, o8.shape, 1)
    o8 = jnp.where(col >= 6, jax.nn.sigmoid(o8), o8)        # sigmoid on uv lanes only
    out_ref[0] = o8.astype(out_ref.dtype)


# ----------------------------------------------------------------------------
# Parameters / positional encoding (deterministic, in-script)
# ----------------------------------------------------------------------------

def make_pos_encoding(d_model, width):
    pos = jnp.arange(width, dtype=jnp.float32)[:, None]
    div = jnp.exp(jnp.arange(0, d_model, 2, dtype=jnp.float32)
                  * (-math.log(10000.0) / d_model))
    pe = jnp.zeros((width, d_model), jnp.float32)
    pe = pe.at[:, 0::2].set(jnp.sin(pos * div))
    pe = pe.at[:, 1::2].set(jnp.cos(pos * div))
    return pe[None]                                          # (1, width, d)


def make_params(key, img_height, img_width, patch_width, d_model, nhead,
                num_layers, dff=2048):
    n_patches = img_width // patch_width
    in_dim = patch_width * img_height * 3
    keys = iter(jax.random.split(key, 128))

    def w(shape, scale=0.02):
        return scale * jax.random.normal(next(keys), shape, jnp.float32)

    params = {
        "we": w((in_dim, d_model)),
        "be": w((1, d_model)),
        "cls_token": jax.random.normal(next(keys), (1, 1, d_model), jnp.float32),
        "pos_enc": make_pos_encoding(d_model, n_patches),
        "layers": [],
    }
    for _ in range(num_layers):
        params["layers"].append({
            "wqkv": w((d_model, 3 * d_model)),
            "bqkv": w((1, 3 * d_model)),
            "wo": w((d_model, d_model)),
            "bo": w((1, d_model)),
            "g1": jnp.ones((1, d_model), jnp.float32),
            "bt1": jnp.zeros((1, d_model), jnp.float32),
            "w1": w((d_model, dff)),
            "b1": w((1, dff)),
            "w2": w((dff, d_model)),
            "b2": w((1, d_model)),
            "g2": jnp.ones((1, d_model), jnp.float32),
            "bt2": jnp.zeros((1, d_model), jnp.float32),
        })
    params["heads"] = {
        "wr1": w((d_model, d_model)), "br1": w((1, d_model)),
        "wr2": w((d_model, 6)),       "br2": w((1, 6)),
        "wu1": w((d_model, d_model)), "bu1": w((1, d_model)),
        "wu2": w((d_model, 2)),       "bu2": w((1, 2)),
    }
    return params


def pack_params(params, d_model):
    """Stack per-layer weights, merge the two head MLPs, cast MXU weights to bf16."""
    bf16 = jnp.bfloat16
    layers = params["layers"]

    def stack(name):
        return jnp.stack([layer[name] for layer in layers], axis=0)

    d = d_model
    hp = params["heads"]
    wh1 = jnp.concatenate([hp["wr1"], hp["wu1"]], axis=1)            # (d, 2d)
    bh1 = jnp.concatenate([hp["br1"], hp["bu1"]], axis=1)            # (1, 2d)
    wh2 = jnp.zeros((2 * d, 8), jnp.float32)
    wh2 = wh2.at[:d, :6].set(hp["wr2"])
    wh2 = wh2.at[d:, 6:].set(hp["wu2"])                              # block-diagonal
    bh2 = jnp.concatenate([hp["br2"], hp["bu2"]], axis=1)            # (1, 8)

    return (
        params["we"].astype(bf16),
        params["be"],
        params["cls_token"].reshape(1, d),
        params["pos_enc"].reshape(-1, d),
        stack("wqkv").astype(bf16), stack("bqkv"),
        stack("wo").astype(bf16), stack("bo"),
        stack("g1"), stack("bt1"),
        stack("w1").astype(bf16), stack("b1"),
        stack("w2").astype(bf16), stack("b2"),
        stack("g2"), stack("bt2"),
        wh1.astype(bf16), bh1, wh2.astype(bf16), bh2,
    )


# ----------------------------------------------------------------------------
# Forward pass
# ----------------------------------------------------------------------------

def satrot_forward(x, packed, *, patch_width, d_model, nhead, num_layers):
    B, C, H, W = x.shape
    assert W % patch_width == 0
    assert d_model % nhead == 0
    n_patches = W // patch_width
    in_dim = patch_width * H * C

    # Patchify exactly as the reference: unfold(3,pw,pw) -> permute(0,2,1,3,4)
    # -> .contiguous().view(B, n_patches, -1)  (flat reinterpretation).
    xp = x.reshape(B, C, H, n_patches, patch_width)
    xp = jnp.transpose(xp, (0, 2, 1, 3, 4))
    xp = xp.reshape(B, n_patches, in_dim)

    def const_map(ndim):
        return lambda b: (0,) * ndim

    in_specs = ([pl.BlockSpec((1, n_patches, in_dim), lambda b: (b, 0, 0))]
                + [pl.BlockSpec(p.shape, const_map(p.ndim)) for p in packed])

    out = pl.pallas_call(
        functools.partial(_satrot_kernel, nhead=nhead,
                          head_dim=d_model // nhead, num_layers=num_layers),
        out_shape=jax.ShapeDtypeStruct((B, 1, 8), jnp.float32),
        grid=(B,),
        in_specs=in_specs,
        out_specs=pl.BlockSpec((1, 1, 8), lambda b: (b, 0, 0)),
        compiler_params=pltpu.CompilerParams(
            dimension_semantics=("parallel",),
            vmem_limit_bytes=64 * 1024 * 1024),
    )(xp, *packed)

    out = out.reshape(B, 8)
    r6 = out[:, :6]
    uv = out[:, 6:]

    # Gram-Schmidt + cross + normalize (tiny elementwise glue on (B, 3), plain JAX).
    # Matches the reference literally: projection uses the un-normalized r1.
    r1 = r6[:, :3]
    r2 = r6[:, 3:]
    r2 = r2 - jnp.sum(r1 * r2, axis=1, keepdims=True) * r1
    r3 = jnp.cross(r1, r2)

    def normalize(v):  # F.normalize(p=2, dim=1), eps=1e-12
        return v / jnp.maximum(jnp.linalg.norm(v, axis=1, keepdims=True), 1e-12)

    R = jnp.concatenate([normalize(r1), normalize(r2), normalize(r3)], axis=1)
    return uv, R


# ----------------------------------------------------------------------------
# Main
# ----------------------------------------------------------------------------

if __name__ == "__main__":
    IMG_H, IMG_W = 16, 16
    PATCH_W = 2
    D_MODEL = 32
    NHEAD = 4
    NUM_LAYERS = 2
    BATCH = 2

    key = jax.random.PRNGKey(0)
    kparams, kx = jax.random.split(key)
    params = make_params(kparams, IMG_H, IMG_W, PATCH_W, D_MODEL, NHEAD, NUM_LAYERS)
    packed = pack_params(params, D_MODEL)

    x = jax.random.normal(kx, (BATCH, 3, IMG_H, IMG_W), jnp.float32)

    fwd = jax.jit(functools.partial(satrot_forward, patch_width=PATCH_W,
                                    d_model=D_MODEL, nhead=NHEAD,
                                    num_layers=NUM_LAYERS))
    uv, R = fwd(x, packed)
    jax.block_until_ready((uv, R))

    assert uv.shape == (BATCH, 2) and R.shape == (BATCH, 9)
    assert bool(jnp.all(jnp.isfinite(uv))) and bool(jnp.all(jnp.isfinite(R)))
    assert bool(jnp.all(uv >= 0.0)) and bool(jnp.all(uv <= 1.0))
    print("KERNEL_OK")
</pallas_src>

<mosaic_0001>
module attributes {stable_mosaic.version = 11 : i64} {
  func.func @_satrot_kernel(%arg0: i32, %arg1: memref<1x8x96xf32, #tpu.memory_space<vmem>>, %arg2: memref<96x32xbf16, #tpu.memory_space<vmem>>, %arg3: memref<1x32xf32, #tpu.memory_space<vmem>>, %arg4: memref<1x32xf32, #tpu.memory_space<vmem>>, %arg5: memref<8x32xf32, #tpu.memory_space<vmem>>, %arg6: memref<2x32x96xbf16, #tpu.memory_space<vmem>>, %arg7: memref<2x1x96xf32, #tpu.memory_space<vmem>>, %arg8: memref<2x32x32xbf16, #tpu.memory_space<vmem>>, %arg9: memref<2x1x32xf32, #tpu.memory_space<vmem>>, %arg10: memref<2x1x32xf32, #tpu.memory_space<vmem>>, %arg11: memref<2x1x32xf32, #tpu.memory_space<vmem>>, %arg12: memref<2x32x2048xbf16, #tpu.memory_space<vmem>>, %arg13: memref<2x1x2048xf32, #tpu.memory_space<vmem>>, %arg14: memref<2x2048x32xbf16, #tpu.memory_space<vmem>>, %arg15: memref<2x1x32xf32, #tpu.memory_space<vmem>>, %arg16: memref<2x1x32xf32, #tpu.memory_space<vmem>>, %arg17: memref<2x1x32xf32, #tpu.memory_space<vmem>>, %arg18: memref<32x64xbf16, #tpu.memory_space<vmem>>, %arg19: memref<1x64xf32, #tpu.memory_space<vmem>>, %arg20: memref<64x8xbf16, #tpu.memory_space<vmem>>, %arg21: memref<1x8xf32, #tpu.memory_space<vmem>>, %arg22: memref<1x1x8xf32, #tpu.memory_space<vmem>>) attributes {dimension_semantics = [#tpu.dimension_semantics<parallel>], iteration_bounds = array<i64: 2>, scalar_prefetch = 0 : i64, scratch_operands = 0 : i64, tpu.core_type = #tpu.core_type<tc>, window_params = [{transform_indices = @transform_0, window_bounds = array<i64: 1, 8, 96>}, {pipeline_mode = #tpu.pipeline_mode<synchronous>, transform_indices = @transform_1, window_bounds = array<i64: 96, 32>}, {pipeline_mode = #tpu.pipeline_mode<synchronous>, transform_indices = @transform_2, window_bounds = array<i64: 1, 32>}, {pipeline_mode = #tpu.pipeline_mode<synchronous>, transform_indices = @transform_3, window_bounds = array<i64: 1, 32>}, {pipeline_mode = #tpu.pipeline_mode<synchronous>, transform_indices = @transform_4, window_bounds = array<i64: 8, 32>}, {pipeline_mode = #tpu.pipeline_mode<synchronous>, transform_indices = @transform_5, window_bounds = array<i64: 2, 32, 96>}, {pipeline_mode = #tpu.pipeline_mode<synchronous>, transform_indices = @transform_6, window_bounds = array<i64: 2, 1, 96>}, {pipeline_mode = #tpu.pipeline_mode<synchronous>, transform_indices = @transform_7, window_bounds = array<i64: 2, 32, 32>}, {pipeline_mode = #tpu.pipeline_mode<synchronous>, transform_indices = @transform_8, window_bounds = array<i64: 2, 1, 32>}, {pipeline_mode = #tpu.pipeline_mode<synchronous>, transform_indices = @transform_9, window_bounds = array<i64: 2, 1, 32>}, {pipeline_mode = #tpu.pipeline_mode<synchronous>, transform_indices = @transform_10, window_bounds = array<i64: 2, 1, 32>}, {pipeline_mode = #tpu.pipeline_mode<synchronous>, transform_indices = @transform_11, window_bounds = array<i64: 2, 32, 2048>}, {pipeline_mode = #tpu.pipeline_mode<synchronous>, transform_indices = @transform_12, window_bounds = array<i64: 2, 1, 2048>}, {pipeline_mode = #tpu.pipeline_mode<synchronous>, transform_indices = @transform_13, window_bounds = array<i64: 2, 2048, 32>}, {pipeline_mode = #tpu.pipeline_mode<synchronous>, transform_indices = @transform_14, window_bounds = array<i64: 2, 1, 32>}, {pipeline_mode = #tpu.pipeline_mode<synchronous>, transform_indices = @transform_15, window_bounds = array<i64: 2, 1, 32>}, {pipeline_mode = #tpu.pipeline_mode<synchronous>, transform_indices = @transform_16, window_bounds = array<i64: 2, 1, 32>}, {pipeline_mode = #tpu.pipeline_mode<synchronous>, transform_indices = @transform_17, window_bounds = array<i64: 32, 64>}, {pipeline_mode = #tpu.pipeline_mode<synchronous>, transform_indices = @transform_18, window_bounds = array<i64: 1, 64>}, {pipeline_mode = #tpu.pipeline_mode<synchronous>, transform_indices = @transform_19, window_bounds = array<i64: 64, 8>}, {pipeline_mode = #tpu.pipeline_mode<synchronous>, transform_indices = @transform_20, window_bounds = array<i64: 1, 8>}, {transform_indices = @transform_21, window_bounds = array<i64: 1, 1, 8>}]} {
    %c0 = arith.constant 0 : index
    %c0_0 = arith.constant 0 : index
    %c0_1 = arith.constant 0 : index
    %0 = vector.load %arg1[%c0, %c0_0, %c0_1] : memref<1x8x96xf32, #tpu.memory_space<vmem>>, vector<1x8x96xf32>
    %1 = vector.shape_cast %0 : vector<1x8x96xf32> to vector<8x96xf32>
    %c0_2 = arith.constant 0 : index
    %c0_3 = arith.constant 0 : index
    %2 = vector.load %arg2[%c0_2, %c0_3] : memref<96x32xbf16, #tpu.memory_space<vmem>>, vector<96x32xbf16>
    %3 = arith.truncf %1 : vector<8x96xf32> to vector<8x96xbf16>
    %cst = arith.constant dense<0.000000e+00> : vector<8x32xf32>
    %4 = tpu.matmul %3, %2, %cst {dimension_numbers = #tpu.dot_dimension_numbers<[1], [0], [0], [1], [0, 0, 1, 1], [], []>} : vector<8x96xbf16>, vector<96x32xbf16>, vector<8x32xf32> -> vector<8x32xf32>
    %c0_4 = arith.constant 0 : index
    %c0_5 = arith.constant 0 : index
    %5 = vector.load %arg3[%c0_4, %c0_5] : memref<1x32xf32, #tpu.memory_space<vmem>>, vector<1x32xf32>
    %6 = vector.broadcast %5 : vector<1x32xf32> to vector<8x32xf32>
    %7 = arith.addf %4, %6 : vector<8x32xf32>
    %c0_6 = arith.constant 0 : index
    %c0_7 = arith.constant 0 : index
    %8 = vector.load %arg4[%c0_6, %c0_7] : memref<1x32xf32, #tpu.memory_space<vmem>>, vector<1x32xf32>
    %c0_8 = arith.constant 0 : index
    %c0_9 = arith.constant 0 : index
    %9 = vector.load %arg5[%c0_8, %c0_9] : memref<8x32xf32, #tpu.memory_space<vmem>>, vector<8x32xf32>
    %10 = arith.addf %7, %9 : vector<8x32xf32>
    %11 = tpu.concatenate %8, %10 in 0 : vector<1x32xf32>, vector<8x32xf32> -> vector<9x32xf32>
    %c0_10 = arith.constant 0 : index
    %c0_11 = arith.constant 0 : index
    %c0_12 = arith.constant 0 : index
    %12 = vector.load %arg6[%c0_10, %c0_11, %c0_12] : memref<2x32x96xbf16, #tpu.memory_space<vmem>>, vector<1x32x96xbf16>
    %13 = vector.shape_cast %12 : vector<1x32x96xbf16> to vector<32x96xbf16>
    %14 = arith.truncf %11 : vector<9x32xf32> to vector<9x32xbf16>
    %cst_13 = arith.constant dense<0.000000e+00> : vector<9x96xf32>
    %15 = tpu.matmul %14, %13, %cst_13 {dimension_numbers = #tpu.dot_dimension_numbers<[1], [0], [0], [1], [0, 0, 1, 1], [], []>} : vector<9x32xbf16>, vector<32x96xbf16>, vector<9x96xf32> -> vector<9x96xf32>
    %c0_14 = arith.constant 0 : index
    %c0_15 = arith.constant 0 : index
    %c0_16 = arith.constant 0 : index
    %16 = vector.load %arg7[%c0_14, %c0_15, %c0_16] : memref<2x1x96xf32, #tpu.memory_space<vmem>>, vector<1x1x96xf32>
    %17 = vector.shape_cast %16 : vector<1x1x96xf32> to vector<1x96xf32>
    %18 = vector.broadcast %17 : vector<1x96xf32> to vector<9x96xf32>
    %19 = arith.addf %15, %18 : vector<9x96xf32>
    %20 = vector.extract_strided_slice %19 {offsets = [0, 0], sizes = [9, 32], strides = [1, 1]} : vector<9x96xf32> to vector<9x32xf32>
    %cst_17 = arith.constant 0.353553385 : f32
    %21 = vector.broadcast %cst_17 : f32 to vector<9x32xf32>
    %22 = arith.mulf %20, %21 : vector<9x32xf32>
    %23 = vector.extract_strided_slice %22 {offsets = [0, 0], sizes = [9, 8], strides = [1, 1]} : vector<9x32xf32> to vector<9x8xf32>
    %24 = arith.truncf %23 : vector<9x8xf32> to vector<9x8xbf16>
    %25 = vector.extract_strided_slice %19 {offsets = [0, 32], sizes = [9, 8], strides = [1, 1]} : vector<9x96xf32> to vector<9x8xf32>
    %26 = arith.truncf %25 : vector<9x8xf32> to vector<9x8xbf16>
    %27 = vector.extract_strided_slice %19 {offsets = [0, 64], sizes = [9, 8], strides = [1, 1]} : vector<9x96xf32> to vector<9x8xf32>
    %28 = arith.truncf %27 : vector<9x8xf32> to vector<9x8xbf16>
    %cst_18 = arith.constant dense<0.000000e+00> : vector<9x9xf32>
    %29 = tpu.matmul %24, %26, %cst_18 {dimension_numbers = #tpu.dot_dimension_numbers<[1], [1], [0], [0], [0, 0, 1, 0], [], []>} : vector<9x8xbf16>, vector<9x8xbf16>, vector<9x9xf32> -> vector<9x9xf32>
    %cst_19 = arith.constant dense<0xFF800000> : vector<9xf32>
    %30 = vector.multi_reduction <maximumf>, %29, %cst_19 [1] : vector<9x9xf32> to vector<9xf32>
    %31 = vector.shape_cast %30 : vector<9xf32> to vector<9x1xf32>
    %32 = vector.broadcast %31 : vector<9x1xf32> to vector<9x9xf32>
    %33 = arith.subf %29, %32 : vector<9x9xf32>
    %34 = math.exp %33 : vector<9x9xf32>
    %cst_20 = arith.constant dense<0.000000e+00> : vector<9xf32>
    %35 = vector.multi_reduction <add>, %34, %cst_20 [1] : vector<9x9xf32> to vector<9xf32>
    %36 = vector.shape_cast %35 : vector<9xf32> to vector<9x1xf32>
    %37 = tpu.reciprocal %36 {approx = true} : vector<9x1xf32> -> vector<9x1xf32>
    %38 = vector.broadcast %37 : vector<9x1xf32> to vector<9x9xf32>
    %39 = arith.mulf %34, %38 : vector<9x9xf32>
    %40 = arith.truncf %39 : vector<9x9xf32> to vector<9x9xbf16>
    %cst_21 = arith.constant dense<0.000000e+00> : vector<9x8xf32>
    %41 = tpu.matmul %40, %28, %cst_21 {dimension_numbers = #tpu.dot_dimension_numbers<[1], [0], [0], [1], [0, 0, 1, 1], [], []>} : vector<9x9xbf16>, vector<9x8xbf16>, vector<9x8xf32> -> vector<9x8xf32>
    %42 = vector.extract_strided_slice %22 {offsets = [0, 8], sizes = [9, 8], strides = [1, 1]} : vector<9x32xf32> to vector<9x8xf32>
    %43 = arith.truncf %42 : vector<9x8xf32> to vector<9x8xbf16>
    %44 = vector.extract_strided_slice %19 {offsets = [0, 40], sizes = [9, 8], strides = [1, 1]} : vector<9x96xf32> to vector<9x8xf32>
    %45 = arith.truncf %44 : vector<9x8xf32> to vector<9x8xbf16>
    %46 = vector.extract_strided_slice %19 {offsets = [0, 72], sizes = [9, 8], strides = [1, 1]} : vector<9x96xf32> to vector<9x8xf32>
    %47 = arith.truncf %46 : vector<9x8xf32> to vector<9x8xbf16>
    %cst_22 = arith.constant dense<0.000000e+00> : vector<9x9xf32>
    %48 = tpu.matmul %43, %45, %cst_22 {dimension_numbers = #tpu.dot_dimension_numbers<[1], [1], [0], [0], [0, 0, 1, 0], [], []>} : vector<9x8xbf16>, vector<9x8xbf16>, vector<9x9xf32> -> vector<9x9xf32>
    %cst_23 = arith.constant dense<0xFF800000> : vector<9xf32>
    %49 = vector.multi_reduction <maximumf>, %48, %cst_23 [1] : vector<9x9xf32> to vector<9xf32>
    %50 = vector.shape_cast %49 : vector<9xf32> to vector<9x1xf32>
    %51 = vector.broadcast %50 : vector<9x1xf32> to vector<9x9xf32>
    %52 = arith.subf %48, %51 : vector<9x9xf32>
    %53 = math.exp %52 : vector<9x9xf32>
    %cst_24 = arith.constant dense<0.000000e+00> : vector<9xf32>
    %54 = vector.multi_reduction <add>, %53, %cst_24 [1] : vector<9x9xf32> to vector<9xf32>
    %55 = vector.shape_cast %54 : vector<9xf32> to vector<9x1xf32>
    %56 = tpu.reciprocal %55 {approx = true} : vector<9x1xf32> -> vector<9x1xf32>
    %57 = vector.broadcast %56 : vector<9x1xf32> to vector<9x9xf32>
    %58 = arith.mulf %53, %57 : vector<9x9xf32>
    %59 = arith.truncf %58 : vector<9x9xf32> to vector<9x9xbf16>
    %cst_25 = arith.constant dense<0.000000e+00> : vector<9x8xf32>
    %60 = tpu.matmul %59, %47, %cst_25 {dimension_numbers = #tpu.dot_dimension_numbers<[1], [0], [0], [1], [0, 0, 1, 1], [], []>} : vector<9x9xbf16>, vector<9x8xbf16>, vector<9x8xf32> -> vector<9x8xf32>
    %61 = vector.extract_strided_slice %22 {offsets = [0, 16], sizes = [9, 8], strides = [1, 1]} : vector<9x32xf32> to vector<9x8xf32>
    %62 = arith.truncf %61 : vector<9x8xf32> to vector<9x8xbf16>
    %63 = vector.extract_strided_slice %19 {offsets = [0, 48], sizes = [9, 8], strides = [1, 1]} : vector<9x96xf32> to vector<9x8xf32>
    %64 = arith.truncf %63 : vector<9x8xf32> to vector<9x8xbf16>
    %65 = vector.extract_strided_slice %19 {offsets = [0, 80], sizes = [9, 8], strides = [1, 1]} : vector<9x96xf32> to vector<9x8xf32>
    %66 = arith.truncf %65 : vector<9x8xf32> to vector<9x8xbf16>
    %cst_26 = arith.constant dense<0.000000e+00> : vector<9x9xf32>
    %67 = tpu.matmul %62, %64, %cst_26 {dimension_numbers = #tpu.dot_dimension_numbers<[1], [1], [0], [0], [0, 0, 1, 0], [], []>} : vector<9x8xbf16>, vector<9x8xbf16>, vector<9x9xf32> -> vector<9x9xf32>
    %cst_27 = arith.constant dense<0xFF800000> : vector<9xf32>
    %68 = vector.multi_reduction <maximumf>, %67, %cst_27 [1] : vector<9x9xf32> to vector<9xf32>
    %69 = vector.shape_cast %68 : vector<9xf32> to vector<9x1xf32>
    %70 = vector.broadcast %69 : vector<9x1xf32> to vector<9x9xf32>
    %71 = arith.subf %67, %70 : vector<9x9xf32>
    %72 = math.exp %71 : vector<9x9xf32>
    %cst_28 = arith.constant dense<0.000000e+00> : vector<9xf32>
    %73 = vector.multi_reduction <add>, %72, %cst_28 [1] : vector<9x9xf32> to vector<9xf32>
    %74 = vector.shape_cast %73 : vector<9xf32> to vector<9x1xf32>
    %75 = tpu.reciprocal %74 {approx = true} : vector<9x1xf32> -> vector<9x1xf32>
    %76 = vector.broadcast %75 : vector<9x1xf32> to vector<9x9xf32>
    %77 = arith.mulf %72, %76 : vector<9x9xf32>
    %78 = arith.truncf %77 : vector<9x9xf32> to vector<9x9xbf16>
    %cst_29 = arith.constant dense<0.000000e+00> : vector<9x8xf32>
    %79 = tpu.matmul %78, %66, %cst_29 {dimension_numbers = #tpu.dot_dimension_numbers<[1], [0], [0], [1], [0, 0, 1, 1], [], []>} : vector<9x9xbf16>, vector<9x8xbf16>, vector<9x8xf32> -> vector<9x8xf32>
    %80 = vector.extract_strided_slice %22 {offsets = [0, 24], sizes = [9, 8], strides = [1, 1]} : vector<9x32xf32> to vector<9x8xf32>
    %81 = arith.truncf %80 : vector<9x8xf32> to vector<9x8xbf16>
    %82 = vector.extract_strided_slice %19 {offsets = [0, 56], sizes = [9, 8], strides = [1, 1]} : vector<9x96xf32> to vector<9x8xf32>
    %83 = arith.truncf %82 : vector<9x8xf32> to vector<9x8xbf16>
    %84 = vector.extract_strided_slice %19 {offsets = [0, 88], sizes = [9, 8], strides = [1, 1]} : vector<9x96xf32> to vector<9x8xf32>
    %85 = arith.truncf %84 : vector<9x8xf32> to vector<9x8xbf16>
    %cst_30 = arith.constant dense<0.000000e+00> : vector<9x9xf32>
    %86 = tpu.matmul %81, %83, %cst_30 {dimension_numbers = #tpu.dot_dimension_numbers<[1], [1], [0], [0], [0, 0, 1, 0], [], []>} : vector<9x8xbf16>, vector<9x8xbf16>, vector<9x9xf32> -> vector<9x9xf32>
    %cst_31 = arith.constant dense<0xFF800000> : vector<9xf32>
    %87 = vector.multi_reduction <maximumf>, %86, %cst_31 [1] : vector<9x9xf32> to vector<9xf32>
    %88 = vector.shape_cast %87 : vector<9xf32> to vector<9x1xf32>
    %89 = vector.broadcast %88 : vector<9x1xf32> to vector<9x9xf32>
    %90 = arith.subf %86, %89 : vector<9x9xf32>
    %91 = math.exp %90 : vector<9x9xf32>
    %cst_32 = arith.constant dense<0.000000e+00> : vector<9xf32>
    %92 = vector.multi_reduction <add>, %91, %cst_32 [1] : vector<9x9xf32> to vector<9xf32>
    %93 = vector.shape_cast %92 : vector<9xf32> to vector<9x1xf32>
    %94 = tpu.reciprocal %93 {approx = true} : vector<9x1xf32> -> vector<9x1xf32>
    %95 = vector.broadcast %94 : vector<9x1xf32> to vector<9x9xf32>
    %96 = arith.mulf %91, %95 : vector<9x9xf32>
    %97 = arith.truncf %96 : vector<9x9xf32> to vector<9x9xbf16>
    %cst_33 = arith.constant dense<0.000000e+00> : vector<9x8xf32>
    %98 = tpu.matmul %97, %85, %cst_33 {dimension_numbers = #tpu.dot_dimension_numbers<[1], [0], [0], [1], [0, 0, 1, 1], [], []>} : vector<9x9xbf16>, vector<9x8xbf16>, vector<9x8xf32> -> vector<9x8xf32>
    %99 = tpu.concatenate %41, %60, %79, %98 in 1 : vector<9x8xf32>, vector<9x8xf32>, vector<9x8xf32>, vector<9x8xf32> -> vector<9x32xf32>
    %c0_34 = arith.constant 0 : index
    %c0_35 = arith.constant 0 : index
    %c0_36 = arith.constant 0 : index
    %100 = vector.load %arg8[%c0_34, %c0_35, %c0_36] : memref<2x32x32xbf16, #tpu.memory_space<vmem>>, vector<1x32x32xbf16>
    %101 = vector.shape_cast %100 : vector<1x32x32xbf16> to vector<32x32xbf16>
    %102 = arith.truncf %99 : vector<9x32xf32> to vector<9x32xbf16>
    %cst_37 = arith.constant dense<0.000000e+00> : vector<9x32xf32>
    %103 = tpu.matmul %102, %101, %cst_37 {dimension_numbers = #tpu.dot_dimension_numbers<[1], [0], [0], [1], [0, 0, 1, 1], [], []>} : vector<9x32xbf16>, vector<32x32xbf16>, vector<9x32xf32> -> vector<9x32xf32>
    %c0_38 = arith.constant 0 : index
    %c0_39 = arith.constant 0 : index
    %c0_40 = arith.constant 0 : index
    %104 = vector.load %arg9[%c0_38, %c0_39, %c0_40] : memref<2x1x32xf32, #tpu.memory_space<vmem>>, vector<1x1x32xf32>
    %105 = vector.shape_cast %104 : vector<1x1x32xf32> to vector<1x32xf32>
    %106 = vector.broadcast %105 : vector<1x32xf32> to vector<9x32xf32>
    %107 = arith.addf %103, %106 : vector<9x32xf32>
    %108 = arith.addf %11, %107 : vector<9x32xf32>
    %c0_41 = arith.constant 0 : index
    %c0_42 = arith.constant 0 : index
    %c0_43 = arith.constant 0 : index
    %109 = vector.load %arg10[%c0_41, %c0_42, %c0_43] : memref<2x1x32xf32, #tpu.memory_space<vmem>>, vector<1x1x32xf32>
    %110 = vector.shape_cast %109 : vector<1x1x32xf32> to vector<1x32xf32>
    %c0_44 = arith.constant 0 : index
    %c0_45 = arith.constant 0 : index
    %c0_46 = arith.constant 0 : index
    %111 = vector.load %arg11[%c0_44, %c0_45, %c0_46] : memref<2x1x32xf32, #tpu.memory_space<vmem>>, vector<1x1x32xf32>
    %112 = vector.shape_cast %111 : vector<1x1x32xf32> to vector<1x32xf32>
    %cst_47 = arith.constant dense<0.000000e+00> : vector<9xf32>
    %113 = vector.multi_reduction <add>, %108, %cst_47 [1] : vector<9x32xf32> to vector<9xf32>
    %114 = vector.shape_cast %113 : vector<9xf32> to vector<9x1xf32>
    %cst_48 = arith.constant 3.200000e+01 : f32
    %115 = vector.broadcast %cst_48 : f32 to vector<9x1xf32>
    %116 = arith.divf %114, %115 : vector<9x1xf32>
    %117 = vector.broadcast %116 : vector<9x1xf32> to vector<9x32xf32>
    %118 = arith.subf %108, %117 : vector<9x32xf32>
    %119 = arith.mulf %118, %118 : vector<9x32xf32>
    %cst_49 = arith.constant dense<0.000000e+00> : vector<9xf32>
    %120 = vector.multi_reduction <add>, %119, %cst_49 [1] : vector<9x32xf32> to vector<9xf32>
    %121 = vector.shape_cast %120 : vector<9xf32> to vector<9x1xf32>
    %cst_50 = arith.constant 3.200000e+01 : f32
    %122 = vector.broadcast %cst_50 : f32 to vector<9x1xf32>
    %123 = arith.divf %121, %122 : vector<9x1xf32>
    %124 = vector.broadcast %116 : vector<9x1xf32> to vector<9x32xf32>
    %125 = arith.subf %108, %124 : vector<9x32xf32>
    %cst_51 = arith.constant 9.99999974E-6 : f32
    %126 = vector.broadcast %cst_51 : f32 to vector<9x1xf32>
    %127 = arith.addf %123, %126 : vector<9x1xf32>
    %128 = math.rsqrt %127 : vector<9x1xf32>
    %129 = vector.broadcast %128 : vector<9x1xf32> to vector<9x32xf32>
    %130 = arith.mulf %125, %129 : vector<9x32xf32>
    %131 = vector.broadcast %110 : vector<1x32xf32> to vector<9x32xf32>
    %132 = arith.mulf %130, %131 : vector<9x32xf32>
    %133 = vector.broadcast %112 : vector<1x32xf32> to vector<9x32xf32>
    %134 = arith.addf %132, %133 : vector<9x32xf32>
    %c0_52 = arith.constant 0 : index
    %c0_53 = arith.constant 0 : index
    %c0_54 = arith.constant 0 : index
    %135 = vector.load %arg12[%c0_52, %c0_53, %c0_54] : memref<2x32x2048xbf16, #tpu.memory_space<vmem>>, vector<1x32x2048xbf16>
    %136 = vector.shape_cast %135 : vector<1x32x2048xbf16> to vector<32x2048xbf16>
    %137 = arith.truncf %134 : vector<9x32xf32> to vector<9x32xbf16>
    %cst_55 = arith.constant dense<0.000000e+00> : vector<9x2048xf32>
    %138 = tpu.matmul %137, %136, %cst_55 {dimension_numbers = #tpu.dot_dimension_numbers<[1], [0], [0], [1], [0, 0, 1, 1], [], []>} : vector<9x32xbf16>, vector<32x2048xbf16>, vector<9x2048xf32> -> vector<9x2048xf32>
    %c0_56 = arith.constant 0 : index
    %c0_57 = arith.constant 0 : index
    %c0_58 = arith.constant 0 : index
    %139 = vector.load %arg13[%c0_56, %c0_57, %c0_58] : memref<2x1x2048xf32, #tpu.memory_space<vmem>>, vector<1x1x2048xf32>
    %140 = vector.shape_cast %139 : vector<1x1x2048xf32> to vector<1x2048xf32>
    %141 = vector.broadcast %140 : vector<1x2048xf32> to vector<9x2048xf32>
    %142 = arith.addf %138, %141 : vector<9x2048xf32>
    %cst_59 = arith.constant 0.000000e+00 : f32
    %143 = vector.broadcast %cst_59 : f32 to vector<9x2048xf32>
    %144 = arith.maximumf %142, %143 : vector<9x2048xf32>
    %c0_60 = arith.constant 0 : index
    %c0_61 = arith.constant 0 : index
    %c0_62 = arith.constant 0 : index
    %145 = vector.load %arg14[%c0_60, %c0_61, %c0_62] : memref<2x2048x32xbf16, #tpu.memory_space<vmem>>, vector<1x2048x32xbf16>
    %146 = vector.shape_cast %145 : vector<1x2048x32xbf16> to vector<2048x32xbf16>
    %147 = arith.truncf %144 : vector<9x2048xf32> to vector<9x2048xbf16>
    %cst_63 = arith.constant dense<0.000000e+00> : vector<9x32xf32>
    %148 = tpu.matmul %147, %146, %cst_63 {dimension_numbers = #tpu.dot_dimension_numbers<[1], [0], [0], [1], [0, 0, 1, 1], [], []>} : vector<9x2048xbf16>, vector<2048x32xbf16>, vector<9x32xf32> -> vector<9x32xf32>
    %c0_64 = arith.constant 0 : index
    %c0_65 = arith.constant 0 : index
    %c0_66 = arith.constant 0 : index
    %149 = vector.load %arg15[%c0_64, %c0_65, %c0_66] : memref<2x1x32xf32, #tpu.memory_space<vmem>>, vector<1x1x32xf32>
    %150 = vector.shape_cast %149 : vector<1x1x32xf32> to vector<1x32xf32>
    %151 = vector.broadcast %150 : vector<1x32xf32> to vector<9x32xf32>
    %152 = arith.addf %148, %151 : vector<9x32xf32>
    %153 = arith.addf %134, %152 : vector<9x32xf32>
    %c0_67 = arith.constant 0 : index
    %c0_68 = arith.constant 0 : index
    %c0_69 = arith.constant 0 : index
    %154 = vector.load %arg16[%c0_67, %c0_68, %c0_69] : memref<2x1x32xf32, #tpu.memory_space<vmem>>, vector<1x1x32xf32>
    %155 = vector.shape_cast %154 : vector<1x1x32xf32> to vector<1x32xf32>
    %c0_70 = arith.constant 0 : index
    %c0_71 = arith.constant 0 : index
    %c0_72 = arith.constant 0 : index
    %156 = vector.load %arg17[%c0_70, %c0_71, %c0_72] : memref<2x1x32xf32, #tpu.memory_space<vmem>>, vector<1x1x32xf32>
    %157 = vector.shape_cast %156 : vector<1x1x32xf32> to vector<1x32xf32>
    %cst_73 = arith.constant dense<0.000000e+00> : vector<9xf32>
    %158 = vector.multi_reduction <add>, %153, %cst_73 [1] : vector<9x32xf32> to vector<9xf32>
    %159 = vector.shape_cast %158 : vector<9xf32> to vector<9x1xf32>
    %cst_74 = arith.constant 3.200000e+01 : f32
    %160 = vector.broadcast %cst_74 : f32 to vector<9x1xf32>
    %161 = arith.divf %159, %160 : vector<9x1xf32>
    %162 = vector.broadcast %161 : vector<9x1xf32> to vector<9x32xf32>
    %163 = arith.subf %153, %162 : vector<9x32xf32>
    %164 = arith.mulf %163, %163 : vector<9x32xf32>
    %cst_75 = arith.constant dense<0.000000e+00> : vector<9xf32>
    %165 = vector.multi_reduction <add>, %164, %cst_75 [1] : vector<9x32xf32> to vector<9xf32>
    %166 = vector.shape_cast %165 : vector<9xf32> to vector<9x1xf32>
    %cst_76 = arith.constant 3.200000e+01 : f32
    %167 = vector.broadcast %cst_76 : f32 to vector<9x1xf32>
    %168 = arith.divf %166, %167 : vector<9x1xf32>
    %169 = vector.broadcast %161 : vector<9x1xf32> to vector<9x32xf32>
    %170 = arith.subf %153, %169 : vector<9x32xf32>
    %cst_77 = arith.constant 9.99999974E-6 : f32
    %171 = vector.broadcast %cst_77 : f32 to vector<9x1xf32>
    %172 = arith.addf %168, %171 : vector<9x1xf32>
    %173 = math.rsqrt %172 : vector<9x1xf32>
    %174 = vector.broadcast %173 : vector<9x1xf32> to vector<9x32xf32>
    %175 = arith.mulf %170, %174 : vector<9x32xf32>
    %176 = vector.broadcast %155 : vector<1x32xf32> to vector<9x32xf32>
    %177 = arith.mulf %175, %176 : vector<9x32xf32>
    %178 = vector.broadcast %157 : vector<1x32xf32> to vector<9x32xf32>
    %179 = arith.addf %177, %178 : vector<9x32xf32>
    %c1 = arith.constant 1 : index
    %c0_78 = arith.constant 0 : index
    %c0_79 = arith.constant 0 : index
    %180 = vector.load %arg6[%c1, %c0_78, %c0_79] : memref<2x32x96xbf16, #tpu.memory_space<vmem>>, vector<1x32x96xbf16>
    %181 = vector.shape_cast %180 : vector<1x32x96xbf16> to vector<32x96xbf16>
    %182 = arith.truncf %179 : vector<9x32xf32> to vector<9x32xbf16>
    %cst_80 = arith.constant dense<0.000000e+00> : vector<9x96xf32>
    %183 = tpu.matmul %182, %181, %cst_80 {dimension_numbers = #tpu.dot_dimension_numbers<[1], [0], [0], [1], [0, 0, 1, 1], [], []>} : vector<9x32xbf16>, vector<32x96xbf16>, vector<9x96xf32> -> vector<9x96xf32>
    %c1_81 = arith.constant 1 : index
    %c0_82 = arith.constant 0 : index
    %c0_83 = arith.constant 0 : index
    %184 = vector.load %arg7[%c1_81, %c0_82, %c0_83] : memref<2x1x96xf32, #tpu.memory_space<vmem>>, vector<1x1x96xf32>
    %185 = vector.shape_cast %184 : vector<1x1x96xf32> to vector<1x96xf32>
    %186 = vector.broadcast %185 : vector<1x96xf32> to vector<9x96xf32>
    %187 = arith.addf %183, %186 : vector<9x96xf32>
    %188 = vector.extract_strided_slice %187 {offsets = [0, 0], sizes = [9, 32], strides = [1, 1]} : vector<9x96xf32> to vector<9x32xf32>
    %cst_84 = arith.constant 0.353553385 : f32
    %189 = vector.broadcast %cst_84 : f32 to vector<9x32xf32>
    %190 = arith.mulf %188, %189 : vector<9x32xf32>
    %191 = vector.extract_strided_slice %190 {offsets = [0, 0], sizes = [9, 8], strides = [1, 1]} : vector<9x32xf32> to vector<9x8xf32>
    %192 = arith.truncf %191 : vector<9x8xf32> to vector<9x8xbf16>
    %193 = vector.extract_strided_slice %187 {offsets = [0, 32], sizes = [9, 8], strides = [1, 1]} : vector<9x96xf32> to vector<9x8xf32>
    %194 = arith.truncf %193 : vector<9x8xf32> to vector<9x8xbf16>
    %195 = vector.extract_strided_slice %187 {offsets = [0, 64], sizes = [9, 8], strides = [1, 1]} : vector<9x96xf32> to vector<9x8xf32>
    %196 = arith.truncf %195 : vector<9x8xf32> to vector<9x8xbf16>
    %cst_85 = arith.constant dense<0.000000e+00> : vector<9x9xf32>
    %197 = tpu.matmul %192, %194, %cst_85 {dimension_numbers = #tpu.dot_dimension_numbers<[1], [1], [0], [0], [0, 0, 1, 0], [], []>} : vector<9x8xbf16>, vector<9x8xbf16>, vector<9x9xf32> -> vector<9x9xf32>
    %cst_86 = arith.constant dense<0xFF800000> : vector<9xf32>
    %198 = vector.multi_reduction <maximumf>, %197, %cst_86 [1] : vector<9x9xf32> to vector<9xf32>
    %199 = vector.shape_cast %198 : vector<9xf32> to vector<9x1xf32>
    %200 = vector.broadcast %199 : vector<9x1xf32> to vector<9x9xf32>
    %201 = arith.subf %197, %200 : vector<9x9xf32>
    %202 = math.exp %201 : vector<9x9xf32>
    %cst_87 = arith.constant dense<0.000000e+00> : vector<9xf32>
    %203 = vector.multi_reduction <add>, %202, %cst_87 [1] : vector<9x9xf32> to vector<9xf32>
    %204 = vector.shape_cast %203 : vector<9xf32> to vector<9x1xf32>
    %205 = tpu.reciprocal %204 {approx = true} : vector<9x1xf32> -> vector<9x1xf32>
    %206 = vector.broadcast %205 : vector<9x1xf32> to vector<9x9xf32>
    %207 = arith.mulf %202, %206 : vector<9x9xf32>
    %208 = arith.truncf %207 : vector<9x9xf32> to vector<9x9xbf16>
    %cst_88 = arith.constant dense<0.000000e+00> : vector<9x8xf32>
    %209 = tpu.matmul %208, %196, %cst_88 {dimension_numbers = #tpu.dot_dimension_numbers<[1], [0], [0], [1], [0, 0, 1, 1], [], []>} : vector<9x9xbf16>, vector<9x8xbf16>, vector<9x8xf32> -> vector<9x8xf32>
    %210 = vector.extract_strided_slice %190 {offsets = [0, 8], sizes = [9, 8], strides = [1, 1]} : vector<9x32xf32> to vector<9x8xf32>
    %211 = arith.truncf %210 : vector<9x8xf32> to vector<9x8xbf16>
    %212 = vector.extract_strided_slice %187 {offsets = [0, 40], sizes = [9, 8], strides = [1, 1]} : vector<9x96xf32> to vector<9x8xf32>
    %213 = arith.truncf %212 : vector<9x8xf32> to vector<9x8xbf16>
    %214 = vector.extract_strided_slice %187 {offsets = [0, 72], sizes = [9, 8], strides = [1, 1]} : vector<9x96xf32> to vector<9x8xf32>
    %215 = arith.truncf %214 : vector<9x8xf32> to vector<9x8xbf16>
    %cst_89 = arith.constant dense<0.000000e+00> : vector<9x9xf32>
    %216 = tpu.matmul %211, %213, %cst_89 {dimension_numbers = #tpu.dot_dimension_numbers<[1], [1], [0], [0], [0, 0, 1, 0], [], []>} : vector<9x8xbf16>, vector<9x8xbf16>, vector<9x9xf32> -> vector<9x9xf32>
    %cst_90 = arith.constant dense<0xFF800000> : vector<9xf32>
    %217 = vector.multi_reduction <maximumf>, %216, %cst_90 [1] : vector<9x9xf32> to vector<9xf32>
    %218 = vector.shape_cast %217 : vector<9xf32> to vector<9x1xf32>
    %219 = vector.broadcast %218 : vector<9x1xf32> to vector<9x9xf32>
    %220 = arith.subf %216, %219 : vector<9x9xf32>
    %221 = math.exp %220 : vector<9x9xf32>
    %cst_91 = arith.constant dense<0.000000e+00> : vector<9xf32>
    %222 = vector.multi_reduction <add>, %221, %cst_91 [1] : vector<9x9xf32> to vector<9xf32>
    %223 = vector.shape_cast %222 : vector<9xf32> to vector<9x1xf32>
    %224 = tpu.reciprocal %223 {approx = true} : vector<9x1xf32> -> vector<9x1xf32>
    %225 = vector.broadcast %224 : vector<9x1xf32> to vector<9x9xf32>
    %226 = arith.mulf %221, %225 : vector<9x9xf32>
    %227 = arith.truncf %226 : vector<9x9xf32> to vector<9x9xbf16>
    %cst_92 = arith.constant dense<0.000000e+00> : vector<9x8xf32>
    %228 = tpu.matmul %227, %215, %cst_92 {dimension_numbers = #tpu.dot_dimension_numbers<[1], [0], [0], [1], [0, 0, 1, 1], [], []>} : vector<9x9xbf16>, vector<9x8xbf16>, vector<9x8xf32> -> vector<9x8xf32>
    %229 = vector.extract_strided_slice %190 {offsets = [0, 16], sizes = [9, 8], strides = [1, 1]} : vector<9x32xf32> to vector<9x8xf32>
    %230 = arith.truncf %229 : vector<9x8xf32> to vector<9x8xbf16>
    %231 = vector.extract_strided_slice %187 {offsets = [0, 48], sizes = [9, 8], strides = [1, 1]} : vector<9x96xf32> to vector<9x8xf32>
    %232 = arith.truncf %231 : vector<9x8xf32> to vector<9x8xbf16>
    %233 = vector.extract_strided_slice %187 {offsets = [0, 80], sizes = [9, 8], strides = [1, 1]} : vector<9x96xf32> to vector<9x8xf32>
    %234 = arith.truncf %233 : vector<9x8xf32> to vector<9x8xbf16>
    %cst_93 = arith.constant dense<0.000000e+00> : vector<9x9xf32>
    %235 = tpu.matmul %230, %232, %cst_93 {dimension_numbers = #tpu.dot_dimension_numbers<[1], [1], [0], [0], [0, 0, 1, 0], [], []>} : vector<9x8xbf16>, vector<9x8xbf16>, vector<9x9xf32> -> vector<9x9xf32>
    %cst_94 = arith.constant dense<0xFF800000> : vector<9xf32>
    %236 = vector.multi_reduction <maximumf>, %235, %cst_94 [1] : vector<9x9xf32> to vector<9xf32>
    %237 = vector.shape_cast %236 : vector<9xf32> to vector<9x1xf32>
    %238 = vector.broadcast %237 : vector<9x1xf32> to vector<9x9xf32>
    %239 = arith.subf %235, %238 : vector<9x9xf32>
    %240 = math.exp %239 : vector<9x9xf32>
    %cst_95 = arith.constant dense<0.000000e+00> : vector<9xf32>
    %241 = vector.multi_reduction <add>, %240, %cst_95 [1] : vector<9x9xf32> to vector<9xf32>
    %242 = vector.shape_cast %241 : vector<9xf32> to vector<9x1xf32>
    %243 = tpu.reciprocal %242 {approx = true} : vector<9x1xf32> -> vector<9x1xf32>
    %244 = vector.broadcast %243 : vector<9x1xf32> to vector<9x9xf32>
    %245 = arith.mulf %240, %244 : vector<9x9xf32>
    %246 = arith.truncf %245 : vector<9x9xf32> to vector<9x9xbf16>
    %cst_96 = arith.constant dense<0.000000e+00> : vector<9x8xf32>
    %247 = tpu.matmul %246, %234, %cst_96 {dimension_numbers = #tpu.dot_dimension_numbers<[1], [0], [0], [1], [0, 0, 1, 1], [], []>} : vector<9x9xbf16>, vector<9x8xbf16>, vector<9x8xf32> -> vector<9x8xf32>
    %248 = vector.extract_strided_slice %190 {offsets = [0, 24], sizes = [9, 8], strides = [1, 1]} : vector<9x32xf32> to vector<9x8xf32>
    %249 = arith.truncf %248 : vector<9x8xf32> to vector<9x8xbf16>
    %250 = vector.extract_strided_slice %187 {offsets = [0, 56], sizes = [9, 8], strides = [1, 1]} : vector<9x96xf32> to vector<9x8xf32>
    %251 = arith.truncf %250 : vector<9x8xf32> to vector<9x8xbf16>
    %252 = vector.extract_strided_slice %187 {offsets = [0, 88], sizes = [9, 8], strides = [1, 1]} : vector<9x96xf32> to vector<9x8xf32>
    %253 = arith.truncf %252 : vector<9x8xf32> to vector<9x8xbf16>
    %cst_97 = arith.constant dense<0.000000e+00> : vector<9x9xf32>
    %254 = tpu.matmul %249, %251, %cst_97 {dimension_numbers = #tpu.dot_dimension_numbers<[1], [1], [0], [0], [0, 0, 1, 0], [], []>} : vector<9x8xbf16>, vector<9x8xbf16>, vector<9x9xf32> -> vector<9x9xf32>
    %cst_98 = arith.constant dense<0xFF800000> : vector<9xf32>
    %255 = vector.multi_reduction <maximumf>, %254, %cst_98 [1] : vector<9x9xf32> to vector<9xf32>
    %256 = vector.shape_cast %255 : vector<9xf32> to vector<9x1xf32>
    %257 = vector.broadcast %256 : vector<9x1xf32> to vector<9x9xf32>
    %258 = arith.subf %254, %257 : vector<9x9xf32>
    %259 = math.exp %258 : vector<9x9xf32>
    %cst_99 = arith.constant dense<0.000000e+00> : vector<9xf32>
    %260 = vector.multi_reduction <add>, %259, %cst_99 [1] : vector<9x9xf32> to vector<9xf32>
    %261 = vector.shape_cast %260 : vector<9xf32> to vector<9x1xf32>
    %262 = tpu.reciprocal %261 {approx = true} : vector<9x1xf32> -> vector<9x1xf32>
    %263 = vector.broadcast %262 : vector<9x1xf32> to vector<9x9xf32>
    %264 = arith.mulf %259, %263 : vector<9x9xf32>
    %265 = arith.truncf %264 : vector<9x9xf32> to vector<9x9xbf16>
    %cst_100 = arith.constant dense<0.000000e+00> : vector<9x8xf32>
    %266 = tpu.matmul %265, %253, %cst_100 {dimension_numbers = #tpu.dot_dimension_numbers<[1], [0], [0], [1], [0, 0, 1, 1], [], []>} : vector<9x9xbf16>, vector<9x8xbf16>, vector<9x8xf32> -> vector<9x8xf32>
    %267 = tpu.concatenate %209, %228, %247, %266 in 1 : vector<9x8xf32>, vector<9x8xf32>, vector<9x8xf32>, vector<9x8xf32> -> vector<9x32xf32>
    %c1_101 = arith.constant 1 : index
    %c0_102 = arith.constant 0 : index
    %c0_103 = arith.constant 0 : index
    %268 = vector.load %arg8[%c1_101, %c0_102, %c0_103] : memref<2x32x32xbf16, #tpu.memory_space<vmem>>, vector<1x32x32xbf16>
    %269 = vector.shape_cast %268 : vector<1x32x32xbf16> to vector<32x32xbf16>
    %270 = arith.truncf %267 : vector<9x32xf32> to vector<9x32xbf16>
    %cst_104 = arith.constant dense<0.000000e+00> : vector<9x32xf32>
    %271 = tpu.matmul %270, %269, %cst_104 {dimension_numbers = #tpu.dot_dimension_numbers<[1], [0], [0], [1], [0, 0, 1, 1], [], []>} : vector<9x32xbf16>, vector<32x32xbf16>, vector<9x32xf32> -> vector<9x32xf32>
    %c1_105 = arith.constant 1 : index
    %c0_106 = arith.constant 0 : index
    %c0_107 = arith.constant 0 : index
    %272 = vector.load %arg9[%c1_105, %c0_106, %c0_107] : memref<2x1x32xf32, #tpu.memory_space<vmem>>, vector<1x1x32xf32>
    %273 = vector.shape_cast %272 : vector<1x1x32xf32> to vector<1x32xf32>
    %274 = vector.broadcast %273 : vector<1x32xf32> to vector<9x32xf32>
    %275 = arith.addf %271, %274 : vector<9x32xf32>
    %276 = arith.addf %179, %275 : vector<9x32xf32>
    %c1_108 = arith.constant 1 : index
    %c0_109 = arith.constant 0 : index
    %c0_110 = arith.constant 0 : index
    %277 = vector.load %arg10[%c1_108, %c0_109, %c0_110] : memref<2x1x32xf32, #tpu.memory_space<vmem>>, vector<1x1x32xf32>
    %278 = vector.shape_cast %277 : vector<1x1x32xf32> to vector<1x32xf32>
    %c1_111 = arith.constant 1 : index
    %c0_112 = arith.constant 0 : index
    %c0_113 = arith.constant 0 : index
    %279 = vector.load %arg11[%c1_111, %c0_112, %c0_113] : memref<2x1x32xf32, #tpu.memory_space<vmem>>, vector<1x1x32xf32>
    %280 = vector.shape_cast %279 : vector<1x1x32xf32> to vector<1x32xf32>
    %cst_114 = arith.constant dense<0.000000e+00> : vector<9xf32>
    %281 = vector.multi_reduction <add>, %276, %cst_114 [1] : vector<9x32xf32> to vector<9xf32>
    %282 = vector.shape_cast %281 : vector<9xf32> to vector<9x1xf32>
    %cst_115 = arith.constant 3.200000e+01 : f32
    %283 = vector.broadcast %cst_115 : f32 to vector<9x1xf32>
    %284 = arith.divf %282, %283 : vector<9x1xf32>
    %285 = vector.broadcast %284 : vector<9x1xf32> to vector<9x32xf32>
    %286 = arith.subf %276, %285 : vector<9x32xf32>
    %287 = arith.mulf %286, %286 : vector<9x32xf32>
    %cst_116 = arith.constant dense<0.000000e+00> : vector<9xf32>
    %288 = vector.multi_reduction <add>, %287, %cst_116 [1] : vector<9x32xf32> to vector<9xf32>
    %289 = vector.shape_cast %288 : vector<9xf32> to vector<9x1xf32>
    %cst_117 = arith.constant 3.200000e+01 : f32
    %290 = vector.broadcast %cst_117 : f32 to vector<9x1xf32>
    %291 = arith.divf %289, %290 : vector<9x1xf32>
    %292 = vector.broadcast %284 : vector<9x1xf32> to vector<9x32xf32>
    %293 = arith.subf %276, %292 : vector<9x32xf32>
    %cst_118 = arith.constant 9.99999974E-6 : f32
    %294 = vector.broadcast %cst_118 : f32 to vector<9x1xf32>
    %295 = arith.addf %291, %294 : vector<9x1xf32>
    %296 = math.rsqrt %295 : vector<9x1xf32>
    %297 = vector.broadcast %296 : vector<9x1xf32> to vector<9x32xf32>
    %298 = arith.mulf %293, %297 : vector<9x32xf32>
    %299 = vector.broadcast %278 : vector<1x32xf32> to vector<9x32xf32>
    %300 = arith.mulf %298, %299 : vector<9x32xf32>
    %301 = vector.broadcast %280 : vector<1x32xf32> to vector<9x32xf32>
    %302 = arith.addf %300, %301 : vector<9x32xf32>
    %c1_119 = arith.constant 1 : index
    %c0_120 = arith.constant 0 : index
    %c0_121 = arith.constant 0 : index
    %303 = vector.load %arg12[%c1_119, %c0_120, %c0_121] : memref<2x32x2048xbf16, #tpu.memory_space<vmem>>, vector<1x32x2048xbf16>
    %304 = vector.shape_cast %303 : vector<1x32x2048xbf16> to vector<32x2048xbf16>
    %305 = arith.truncf %302 : vector<9x32xf32> to vector<9x32xbf16>
    %cst_122 = arith.constant dense<0.000000e+00> : vector<9x2048xf32>
    %306 = tpu.matmul %305, %304, %cst_122 {dimension_numbers = #tpu.dot_dimension_numbers<[1], [0], [0], [1], [0, 0, 1, 1], [], []>} : vector<9x32xbf16>, vector<32x2048xbf16>, vector<9x2048xf32> -> vector<9x2048xf32>
    %c1_123 = arith.constant 1 : index
    %c0_124 = arith.constant 0 : index
    %c0_125 = arith.constant 0 : index
    %307 = vector.load %arg13[%c1_123, %c0_124, %c0_125] : memref<2x1x2048xf32, #tpu.memory_space<vmem>>, vector<1x1x2048xf32>
    %308 = vector.shape_cast %307 : vector<1x1x2048xf32> to vector<1x2048xf32>
    %309 = vector.broadcast %308 : vector<1x2048xf32> to vector<9x2048xf32>
    %310 = arith.addf %306, %309 : vector<9x2048xf32>
    %cst_126 = arith.constant 0.000000e+00 : f32
    %311 = vector.broadcast %cst_126 : f32 to vector<9x2048xf32>
    %312 = arith.maximumf %310, %311 : vector<9x2048xf32>
    %c1_127 = arith.constant 1 : index
    %c0_128 = arith.constant 0 : index
    %c0_129 = arith.constant 0 : index
    %313 = vector.load %arg14[%c1_127, %c0_128, %c0_129] : memref<2x2048x32xbf16, #tpu.memory_space<vmem>>, vector<1x2048x32xbf16>
    %314 = vector.shape_cast %313 : vector<1x2048x32xbf16> to vector<2048x32xbf16>
    %315 = arith.truncf %312 : vector<9x2048xf32> to vector<9x2048xbf16>
    %cst_130 = arith.constant dense<0.000000e+00> : vector<9x32xf32>
    %316 = tpu.matmul %315, %314, %cst_130 {dimension_numbers = #tpu.dot_dimension_numbers<[1], [0], [0], [1], [0, 0, 1, 1], [], []>} : vector<9x2048xbf16>, vector<2048x32xbf16>, vector<9x32xf32> -> vector<9x32xf32>
    %c1_131 = arith.constant 1 : index
    %c0_132 = arith.constant 0 : index
    %c0_133 = arith.constant 0 : index
    %317 = vector.load %arg15[%c1_131, %c0_132, %c0_133] : memref<2x1x32xf32, #tpu.memory_space<vmem>>, vector<1x1x32xf32>
    %318 = vector.shape_cast %317 : vector<1x1x32xf32> to vector<1x32xf32>
    %319 = vector.broadcast %318 : vector<1x32xf32> to vector<9x32xf32>
    %320 = arith.addf %316, %319 : vector<9x32xf32>
    %321 = arith.addf %302, %320 : vector<9x32xf32>
    %c1_134 = arith.constant 1 : index
    %c0_135 = arith.constant 0 : index
    %c0_136 = arith.constant 0 : index
    %322 = vector.load %arg16[%c1_134, %c0_135, %c0_136] : memref<2x1x32xf32, #tpu.memory_space<vmem>>, vector<1x1x32xf32>
    %323 = vector.shape_cast %322 : vector<1x1x32xf32> to vector<1x32xf32>
    %c1_137 = arith.constant 1 : index
    %c0_138 = arith.constant 0 : index
    %c0_139 = arith.constant 0 : index
    %324 = vector.load %arg17[%c1_137, %c0_138, %c0_139] : memref<2x1x32xf32, #tpu.memory_space<vmem>>, vector<1x1x32xf32>
    %325 = vector.shape_cast %324 : vector<1x1x32xf32> to vector<1x32xf32>
    %cst_140 = arith.constant dense<0.000000e+00> : vector<9xf32>
    %326 = vector.multi_reduction <add>, %321, %cst_140 [1] : vector<9x32xf32> to vector<9xf32>
    %327 = vector.shape_cast %326 : vector<9xf32> to vector<9x1xf32>
    %cst_141 = arith.constant 3.200000e+01 : f32
    %328 = vector.broadcast %cst_141 : f32 to vector<9x1xf32>
    %329 = arith.divf %327, %328 : vector<9x1xf32>
    %330 = vector.broadcast %329 : vector<9x1xf32> to vector<9x32xf32>
    %331 = arith.subf %321, %330 : vector<9x32xf32>
    %332 = arith.mulf %331, %331 : vector<9x32xf32>
    %cst_142 = arith.constant dense<0.000000e+00> : vector<9xf32>
    %333 = vector.multi_reduction <add>, %332, %cst_142 [1] : vector<9x32xf32> to vector<9xf32>
    %334 = vector.shape_cast %333 : vector<9xf32> to vector<9x1xf32>
    %cst_143 = arith.constant 3.200000e+01 : f32
    %335 = vector.broadcast %cst_143 : f32 to vector<9x1xf32>
    %336 = arith.divf %334, %335 : vector<9x1xf32>
    %337 = vector.broadcast %329 : vector<9x1xf32> to vector<9x32xf32>
    %338 = arith.subf %321, %337 : vector<9x32xf32>
    %cst_144 = arith.constant 9.99999974E-6 : f32
    %339 = vector.broadcast %cst_144 : f32 to vector<9x1xf32>
    %340 = arith.addf %336, %339 : vector<9x1xf32>
    %341 = math.rsqrt %340 : vector<9x1xf32>
    %342 = vector.broadcast %341 : vector<9x1xf32> to vector<9x32xf32>
    %343 = arith.mulf %338, %342 : vector<9x32xf32>
    %344 = vector.broadcast %323 : vector<1x32xf32> to vector<9x32xf32>
    %345 = arith.mulf %343, %344 : vector<9x32xf32>
    %346 = vector.broadcast %325 : vector<1x32xf32> to vector<9x32xf32>
    %347 = arith.addf %345, %346 : vector<9x32xf32>
    %348 = vector.extract_strided_slice %347 {offsets = [0, 0], sizes = [1, 32], strides = [1, 1]} : vector<9x32xf32> to vector<1x32xf32>
    %c0_145 = arith.constant 0 : index
    %c0_146 = arith.constant 0 : index
    %349 = vector.load %arg18[%c0_145, %c0_146] : memref<32x64xbf16, #tpu.memory_space<vmem>>, vector<32x64xbf16>
    %350 = arith.truncf %348 : vector<1x32xf32> to vector<1x32xbf16>
    %cst_147 = arith.constant dense<0.000000e+00> : vector<1x64xf32>
    %351 = tpu.matmul %350, %349, %cst_147 {dimension_numbers = #tpu.dot_dimension_numbers<[1], [0], [0], [1], [0, 0, 1, 1], [], []>} : vector<1x32xbf16>, vector<32x64xbf16>, vector<1x64xf32> -> vector<1x64xf32>
    %c0_148 = arith.constant 0 : index
    %c0_149 = arith.constant 0 : index
    %352 = vector.load %arg19[%c0_148, %c0_149] : memref<1x64xf32, #tpu.memory_space<vmem>>, vector<1x64xf32>
    %353 = arith.addf %351, %352 : vector<1x64xf32>
    %cst_150 = arith.constant 0.000000e+00 : f32
    %354 = vector.broadcast %cst_150 : f32 to vector<1x64xf32>
    %355 = arith.maximumf %353, %354 : vector<1x64xf32>
    %c0_151 = arith.constant 0 : index
    %c0_152 = arith.constant 0 : index
    %356 = vector.load %arg20[%c0_151, %c0_152] : memref<64x8xbf16, #tpu.memory_space<vmem>>, vector<64x8xbf16>
    %357 = arith.truncf %355 : vector<1x64xf32> to vector<1x64xbf16>
    %cst_153 = arith.constant dense<0.000000e+00> : vector<1x8xf32>
    %358 = tpu.matmul %357, %356, %cst_153 {dimension_numbers = #tpu.dot_dimension_numbers<[1], [0], [0], [1], [0, 0, 1, 1], [], []>} : vector<1x64xbf16>, vector<64x8xbf16>, vector<1x8xf32> -> vector<1x8xf32>
    %c0_154 = arith.constant 0 : index
    %c0_155 = arith.constant 0 : index
    %359 = vector.load %arg21[%c0_154, %c0_155] : memref<1x8xf32, #tpu.memory_space<vmem>>, vector<1x8xf32>
    %360 = arith.addf %358, %359 : vector<1x8xf32>
    %361 = tpu.iota {dimensions = array<i32: 1>} : vector<1x8xi32>
    %c6_i32 = arith.constant 6 : i32
    %362 = vector.broadcast %c6_i32 : i32 to vector<1x8xi32>
    %363 = arith.cmpi sge, %361, %362 : vector<1x8xi32>
    %364 = arith.negf %360 : vector<1x8xf32>
    %365 = math.exp %364 : vector<1x8xf32>
    %cst_156 = arith.constant 1.000000e+00 : f32
    %366 = vector.broadcast %cst_156 : f32 to vector<1x8xf32>
    %367 = arith.addf %366, %365 : vector<1x8xf32>
    %368 = arith.divf %366, %367 : vector<1x8xf32>
    %369 = arith.select %363, %368, %360 : vector<1x8xi1>, vector<1x8xf32>
    %c0_157 = arith.constant 0 : index
    %c0_158 = arith.constant 0 : index
    %c0_159 = arith.constant 0 : index
    %370 = vector.load %arg22[%c0_157, %c0_158, %c0_159] : memref<1x1x8xf32, #tpu.memory_space<vmem>>, vector<1x1x8xf32>
    %371 = vector.shape_cast %370 : vector<1x1x8xf32> to vector<1x8xf32>
    %372 = vector.shape_cast %369 : vector<1x8xf32> to vector<1x1x8xf32>
    tpu.vector_store %arg22[%c0_157, %c0_158, %c0_159], %372 {strides = array<i32>} : memref<1x1x8xf32, #tpu.memory_space<vmem>>, vector<1x1x8xf32>,
    return
  }
  func.func @transform_0(%arg0: i32) -> (i32, i32, i32) {
    %c0_i32 = arith.constant 0 : i32
    %c0_i32_0 = arith.constant 0 : i32
    %c0_i32_1 = arith.constant 0 : i32
    return %arg0, %c0_i32, %c0_i32_0 : i32, i32, i32
  }
  func.func @transform_1(%arg0: i32) -> (i32, i32) {
    %c0_i32 = arith.constant 0 : i32
    %c0_i32_0 = arith.constant 0 : i32
    %c0_i32_1 = arith.constant 0 : i32
    return %c0_i32, %c0_i32_0 : i32, i32
  }
  func.func @transform_2(%arg0: i32) -> (i32, i32) {
    %c0_i32 = arith.constant 0 : i32
    %c0_i32_0 = arith.constant 0 : i32
    %c0_i32_1 = arith.constant 0 : i32
    return %c0_i32, %c0_i32_0 : i32, i32
  }
  func.func @transform_3(%arg0: i32) -> (i32, i32) {
    %c0_i32 = arith.constant 0 : i32
    %c0_i32_0 = arith.constant 0 : i32
    %c0_i32_1 = arith.constant 0 : i32
    return %c0_i32, %c0_i32_0 : i32, i32
  }
  func.func @transform_4(%arg0: i32) -> (i32, i32) {
    %c0_i32 = arith.constant 0 : i32
    %c0_i32_0 = arith.constant 0 : i32
    %c0_i32_1 = arith.constant 0 : i32
    return %c0_i32, %c0_i32_0 : i32, i32
  }
  func.func @transform_5(%arg0: i32) -> (i32, i32, i32) {
    %c0_i32 = arith.constant 0 : i32
    %c0_i32_0 = arith.constant 0 : i32
    %c0_i32_1 = arith.constant 0 : i32
    %c0_i32_2 = arith.constant 0 : i32
    return %c0_i32, %c0_i32_0, %c0_i32_1 : i32, i32, i32
  }
  func.func @transform_6(%arg0: i32) -> (i32, i32, i32) {
    %c0_i32 = arith.constant 0 : i32
    %c0_i32_0 = arith.constant 0 : i32
    %c0_i32_1 = arith.constant 0 : i32
    %c0_i32_2 = arith.constant 0 : i32
    return %c0_i32, %c0_i32_0, %c0_i32_1 : i32, i32, i32
  }
  func.func @transform_7(%arg0: i32) -> (i32, i32, i32) {
    %c0_i32 = arith.constant 0 : i32
    %c0_i32_0 = arith.constant 0 : i32
    %c0_i32_1 = arith.constant 0 : i32
    %c0_i32_2 = arith.constant 0 : i32
    return %c0_i32, %c0_i32_0, %c0_i32_1 : i32, i32, i32
  }
  func.func @transform_8(%arg0: i32) -> (i32, i32, i32) {
    %c0_i32 = arith.constant 0 : i32
    %c0_i32_0 = arith.constant 0 : i32
    %c0_i32_1 = arith.constant 0 : i32
    %c0_i32_2 = arith.constant 0 : i32
    return %c0_i32, %c0_i32_0, %c0_i32_1 : i32, i32, i32
  }
  func.func @transform_9(%arg0: i32) -> (i32, i32, i32) {
    %c0_i32 = arith.constant 0 : i32
    %c0_i32_0 = arith.constant 0 : i32
    %c0_i32_1 = arith.constant 0 : i32
    %c0_i32_2 = arith.constant 0 : i32
    return %c0_i32, %c0_i32_0, %c0_i32_1 : i32, i32, i32
  }
  func.func @transform_10(%arg0: i32) -> (i32, i32, i32) {
    %c0_i32 = arith.constant 0 : i32
    %c0_i32_0 = arith.constant 0 : i32
    %c0_i32_1 = arith.constant 0 : i32
    %c0_i32_2 = arith.constant 0 : i32
    return %c0_i32, %c0_i32_0, %c0_i32_1 : i32, i32, i32
  }
  func.func @transform_11(%arg0: i32) -> (i32, i32, i32) {
    %c0_i32 = arith.constant 0 : i32
    %c0_i32_0 = arith.constant 0 : i32
    %c0_i32_1 = arith.constant 0 : i32
    %c0_i32_2 = arith.constant 0 : i32
    return %c0_i32, %c0_i32_0, %c0_i32_1 : i32, i32, i32
  }
  func.func @transform_12(%arg0: i32) -> (i32, i32, i32) {
    %c0_i32 = arith.constant 0 : i32
    %c0_i32_0 = arith.constant 0 : i32
    %c0_i32_1 = arith.constant 0 : i32
    %c0_i32_2 = arith.constant 0 : i32
    return %c0_i32, %c0_i32_0, %c0_i32_1 : i32, i32, i32
  }
  func.func @transform_13(%arg0: i32) -> (i32, i32, i32) {
    %c0_i32 = arith.constant 0 : i32
    %c0_i32_0 = arith.constant 0 : i32
    %c0_i32_1 = arith.constant 0 : i32
    %c0_i32_2 = arith.constant 0 : i32
    return %c0_i32, %c0_i32_0, %c0_i32_1 : i32, i32, i32
  }
  func.func @transform_14(%arg0: i32) -> (i32, i32, i32) {
    %c0_i32 = arith.constant 0 : i32
    %c0_i32_0 = arith.constant 0 : i32
    %c0_i32_1 = arith.constant 0 : i32
    %c0_i32_2 = arith.constant 0 : i32
    return %c0_i32, %c0_i32_0, %c0_i32_1 : i32, i32, i32
  }
  func.func @transform_15(%arg0: i32) -> (i32, i32, i32) {
    %c0_i32 = arith.constant 0 : i32
    %c0_i32_0 = arith.constant 0 : i32
    %c0_i32_1 = arith.constant 0 : i32
    %c0_i32_2 = arith.constant 0 : i32
    return %c0_i32, %c0_i32_0, %c0_i32_1 : i32, i32, i32
  }
  func.func @transform_16(%arg0: i32) -> (i32, i32, i32) {
    %c0_i32 = arith.constant 0 : i32
    %c0_i32_0 = arith.constant 0 : i32
    %c0_i32_1 = arith.constant 0 : i32
    %c0_i32_2 = arith.constant 0 : i32
    return %c0_i32, %c0_i32_0, %c0_i32_1 : i32, i32, i32
  }
  func.func @transform_17(%arg0: i32) -> (i32, i32) {
    %c0_i32 = arith.constant 0 : i32
    %c0_i32_0 = arith.constant 0 : i32
    %c0_i32_1 = arith.constant 0 : i32
    return %c0_i32, %c0_i32_0 : i32, i32
  }
  func.func @transform_18(%arg0: i32) -> (i32, i32) {
    %c0_i32 = arith.constant 0 : i32
    %c0_i32_0 = arith.constant 0 : i32
    %c0_i32_1 = arith.constant 0 : i32
    return %c0_i32, %c0_i32_0 : i32, i32
  }
  func.func @transform_19(%arg0: i32) -> (i32, i32) {
    %c0_i32 = arith.constant 0 : i32
    %c0_i32_0 = arith.constant 0 : i32
    %c0_i32_1 = arith.constant 0 : i32
    return %c0_i32, %c0_i32_0 : i32, i32
  }
  func.func @transform_20(%arg0: i32) -> (i32, i32) {
    %c0_i32 = arith.constant 0 : i32
    %c0_i32_0 = arith.constant 0 : i32
    %c0_i32_1 = arith.constant 0 : i32
    return %c0_i32, %c0_i32_0 : i32, i32
  }
  func.func @transform_21(%arg0: i32) -> (i32, i32, i32) {
    %c0_i32 = arith.constant 0 : i32
    %c0_i32_0 = arith.constant 0 : i32
    %c0_i32_1 = arith.constant 0 : i32
    return %arg0, %c0_i32, %c0_i32_0 : i32, i32, i32
  }
}

</mosaic_0001>

<llo_original>
// kernel: satrot_forward.1
$region0: #{satrot_forward.1}
  #allocation0 [shape = 'u32[]', space=smem, size = 0x4, offset = 0x4, fixed_abs, tag = 'smem constant byte address 0x4 - core index']
  #allocation1 [shape = 'u32[144,128]{1,0:T(1,128)}', space=vmem, size = 0x12000, scoped, tag = 'internal scratch']
  %s0 = inlined_call_operand.hbm [shape: f32[2,8,96], index: 0, kind: input, shape index: {}]
  %s1 = inlined_call_operand.hbm [shape: bf16[96,32], index: 1, kind: input, shape index: {}]
  %s2 = inlined_call_operand.hbm [shape: f32[1,32], index: 2, kind: input, shape index: {}]
  %s3 = inlined_call_operand.hbm [shape: f32[1,32], index: 3, kind: input, shape index: {}]
  %s4 = inlined_call_operand.hbm [shape: f32[8,32], index: 4, kind: input, shape index: {}]
  %s5 = inlined_call_operand.hbm [shape: bf16[2,32,96], index: 5, kind: input, shape index: {}]
  %s6 = inlined_call_operand.hbm [shape: f32[2,1,96], index: 6, kind: input, shape index: {}]
  %s7 = inlined_call_operand.hbm [shape: bf16[2,32,32], index: 7, kind: input, shape index: {}]
  %s8 = inlined_call_operand.hbm [shape: f32[2,1,32], index: 8, kind: input, shape index: {}]
  %s9 = inlined_call_operand.hbm [shape: f32[2,1,32], index: 9, kind: input, shape index: {}]
  %s10 = inlined_call_operand.hbm [shape: f32[2,1,32], index: 10, kind: input, shape index: {}]
  %s11 = inlined_call_operand.hbm [shape: bf16[2,32,2048], index: 11, kind: input, shape index: {}]
  %s12 = inlined_call_operand.hbm [shape: f32[2,1,2048], index: 12, kind: input, shape index: {}]
  %s13 = inlined_call_operand.hbm [shape: bf16[2,2048,32], index: 13, kind: input, shape index: {}]
  %s14 = inlined_call_operand.hbm [shape: f32[2,1,32], index: 14, kind: input, shape index: {}]
  %s15 = inlined_call_operand.hbm [shape: f32[2,1,32], index: 15, kind: input, shape index: {}]
  %s16 = inlined_call_operand.hbm [shape: f32[2,1,32], index: 16, kind: input, shape index: {}]
  %s17 = inlined_call_operand.hbm [shape: bf16[32,64], index: 17, kind: input, shape index: {}]
  %s18 = inlined_call_operand.hbm [shape: f32[1,64], index: 18, kind: input, shape index: {}]
  %s19 = inlined_call_operand.hbm [shape: bf16[64,8], index: 19, kind: input, shape index: {}]
  %s20 = inlined_call_operand.hbm [shape: f32[1,8], index: 20, kind: input, shape index: {}]
  %s21 = inlined_call_operand.hbm [shape: f32[2,1,8], index: 21, kind: output, shape index: {}]
  %s22 = sld [smem:[#allocation0]]
  $region201: #{satrot_forward.1} parent=0
    _
  %s24 = ssub.s32 1, %s22
  %s25 = scalar_select 0, %s24, %s22
  $region1: #{satrot_forward.1} parent=0
    #allocation2 [shape = 'u8[8192]{0}', space=vmem, size = 0x2000, scoped, tag = 'input window, operand 0']
    #allocation3 [shape = 's32[2]{0}', space=sflag, size = 0x8, scoped, tag = 'scoped memory for satrot_forward.1']
    #allocation4 [shape = 's32[2]{0}', space=sflag, size = 0x8, scoped, tag = 'scoped memory for satrot_forward.1']
    #allocation5 [shape = 'u8[24576]{0}', space=vmem, size = 0x6000, scoped, tag = 'input window, operand 1, single buffered']
    #allocation6 [shape = 's32[1]{0}', space=sflag, size = 0x4, scoped, tag = 'scoped memory for satrot_forward.1']
    #allocation7 [shape = 'u8[512]{0}', space=vmem, size = 0x400, scoped, tag = 'input window, operand 2, single buffered']
    #allocation8 [shape = 'u8[512]{0}', space=vmem, size = 0x400, scoped, tag = 'input window, operand 3, single buffered']
    #allocation9 [shape = 's32[1]{0}', space=sflag, size = 0x4, scoped, tag = 'scoped memory for satrot_forward.1']
    #allocation10 [shape = 'u8[4096]{0}', space=vmem, size = 0x1000, scoped, tag = 'input window, operand 4, single buffered']
    #allocation11 [shape = 'u8[16384]{0}', space=vmem, size = 0x4000, scoped, tag = 'input window, operand 5, single buffered']
    #allocation12 [shape = 's32[1]{0}', space=sflag, size = 0x4, scoped, tag = 'scoped memory for satrot_forward.1']
    #allocation13 [shape = 'u8[1024]{0}', space=vmem, size = 0x400, scoped, tag = 'input window, operand 6, single buffered']
    #allocation14 [shape = 'u8[16384]{0}', space=vmem, size = 0x4000, scoped, tag = 'input window, operand 7, single buffered']
    #allocation15 [shape = 's32[1]{0}', space=sflag, size = 0x4, scoped, tag = 'scoped memory for satrot_forward.1']
    #allocation16 [shape = 'u8[1024]{0}', space=vmem, size = 0x400, scoped, tag = 'input window, operand 8, single buffered']
    #allocation17 [shape = 'u8[1024]{0}', space=vmem, size = 0x400, scoped, tag = 'input window, operand 9, single buffered']
    #allocation18 [shape = 's32[1]{0}', space=sflag, size = 0x4, scoped, tag = 'scoped memory for satrot_forward.1']
    #allocation19 [shape = 'u8[1024]{0}', space=vmem, size = 0x400, scoped, tag = 'input window, operand 10, single buffered']
    #allocation20 [shape = 'u8[262144]{0}', space=vmem, size = 0x40000, scoped, tag = 'input window, operand 11, single buffered']
    #allocation21 [shape = 's32[1]{0}', space=sflag, size = 0x4, scoped, tag = 'scoped memory for satrot_forward.1']
    #allocation22 [shape = 'u8[16384]{0}', space=vmem, size = 0x4000, scoped, tag = 'input window, operand 12, single buffered']
    #allocation23 [shape = 'u8[1048576]{0}', space=vmem, size = 0x100000, scoped, tag = 'input window, operand 13, single buffered']
    #allocation24 [shape = 's32[1]{0}', space=sflag, size = 0x4, scoped, tag = 'scoped memory for satrot_forward.1']
    #allocation25 [shape = 'u8[1024]{0}', space=vmem, size = 0x400, scoped, tag = 'input window, operand 14, single buffered']
    #allocation26 [shape = 'u8[1024]{0}', space=vmem, size = 0x400, scoped, tag = 'input window, operand 15, single buffered']
    #allocation27 [shape = 's32[1]{0}', space=sflag, size = 0x4, scoped, tag = 'scoped memory for satrot_forward.1']
    #allocation28 [shape = 'u8[1024]{0}', space=vmem, size = 0x400, scoped, tag = 'input window, operand 16, single buffered']
    #allocation29 [shape = 'u8[8192]{0}', space=vmem, size = 0x2000, scoped, tag = 'input window, operand 17, single buffered']
    #allocation30 [shape = 's32[1]{0}', space=sflag, size = 0x4, scoped, tag = 'scoped memory for satrot_forward.1']
    #allocation31 [shape = 'u8[512]{0}', space=vmem, size = 0x400, scoped, tag = 'input window, operand 18, single buffered']
    #allocation32 [shape = 'u8[16384]{0}', space=vmem, size = 0x4000, scoped, tag = 'input window, operand 19, single buffered']
    #allocation33 [shape = 's32[1]{0}', space=sflag, size = 0x4, scoped, tag = 'scoped memory for satrot_forward.1']
    #allocation34 [shape = 'u8[512]{0}', space=vmem, size = 0x400, scoped, tag = 'input window, operand 20, single buffered']
    #allocation35 [shape = 'u8[1024]{0}', space=vmem, size = 0x400, scoped, tag = 'output window, operand 0']
    %26 = vsyncpa [#allocation3], 0
    %s27 = scalar_lea.sflag [#allocation3], 1
    %28 = vsyncpa %s27, 0
    %29 = vsyncpa [#allocation6], 0
    %30 = vsyncpa [#allocation9], 0
    %31 = vsyncpa [#allocation12], 0
    %32 = vsyncpa [#allocation15], 0
    %33 = vsyncpa [#allocation18], 0
    %34 = vsyncpa [#allocation21], 0
    %35 = vsyncpa [#allocation24], 0
    %36 = vsyncpa [#allocation27], 0
    %37 = vsyncpa [#allocation30], 0
    %38 = vsyncpa [#allocation33], 0
    %39 = vsyncpa [#allocation4], 0
    %s40 = scalar_lea.sflag [#allocation4], 1
    %41 = vsyncpa %s40, 0
    loop: start=0, step=1, limit=4
    $region2: #{satrot_forward.1} parent=1 // loop_pre_header
      _
    $region3: #{satrot_forward.1} parent=1 // loop_header
      %s43 = sphi 0, %s47
      %p44 = scmp.ge.s32.totalorder %s43, 4
      %s53 = sphi 0, %s55
      %s56 = sphi 0, %s53
      %s57 = sphi 0, %s56
      %s73 = sphi 0, %s57
      %s77 = sphi 0, %s77
      %s79 = sphi 0, %s77
      %s80 = sphi 0, %s79
      %s94 = sphi 0, %s80
      %s98 = sphi 0, %s98
      %s100 = sphi 0, %s98
      %s101 = sphi 0, %s100
      %s115 = sphi 0, %s101
      %s119 = sphi 0, %s119
      %s121 = sphi 0, %s119
      %s122 = sphi 0, %s121
      %s136 = sphi 0, %s122
      %s140 = sphi 0, %s140
      %s142 = sphi 0, %s140
      %s143 = sphi 0, %s142
      %s157 = sphi 0, %s143
      %s161 = sphi 0, %s161
      %s163 = sphi 0, %s161
      %s164 = sphi 0, %s163
      %s178 = sphi 0, %s164
      %s182 = sphi 0, %s182
      %s184 = sphi 0, %s182
      %s185 = sphi 0, %s184
      %s199 = sphi 0, %s185
      %s203 = sphi 0, %s203
      %s205 = sphi 0, %s203
      %s206 = sphi 0, %s205
      %s220 = sphi 0, %s206
      %s224 = sphi 0, %s224
      %s226 = sphi 0, %s224
      %s227 = sphi 0, %s226
      %s241 = sphi 0, %s227
      %s245 = sphi 0, %s245
      %s247 = sphi 0, %s245
      %s248 = sphi 0, %s247
      %s262 = sphi 0, %s248
      %s266 = sphi 0, %s266
      %s268 = sphi 0, %s266
      %s269 = sphi 0, %s268
      %s283 = sphi 0, %s269
      %s287 = sphi 0, %s287
      %s289 = sphi 0, %s287
      %s290 = sphi 0, %s289
      %s304 = sphi 0, %s290
      %s308 = sphi 0, %s308
      %s310 = sphi 0, %s308
      %s311 = sphi 0, %s310
      %s325 = sphi 0, %s311
      %s329 = sphi 0, %s329
      %s331 = sphi 0, %s329
      %s332 = sphi 0, %s331
      %s346 = sphi 0, %s332
      %s350 = sphi 0, %s350
      %s352 = sphi 0, %s350
      %s353 = sphi 0, %s352
      %s367 = sphi 0, %s353
      %s371 = sphi 0, %s371
      %s373 = sphi 0, %s371
      %s374 = sphi 0, %s373
      %s388 = sphi 0, %s374
      %s392 = sphi 0, %s392
      %s394 = sphi 0, %s392
      %s395 = sphi 0, %s394
      %s409 = sphi 0, %s395
      %s413 = sphi 0, %s413
      %s415 = sphi 0, %s413
      %s416 = sphi 0, %s415
      %s430 = sphi 0, %s416
      %s434 = sphi 0, %s434
      %s436 = sphi 0, %s434
      %s437 = sphi 0, %s436
      %s451 = sphi 0, %s437
      %s455 = sphi 0, %s455
      %s457 = sphi 0, %s455
      %s458 = sphi 0, %s457
      %s472 = sphi 0, %s458
      %s476 = sphi 0, %s476
      %s478 = sphi 0, %s476
      %s479 = sphi 0, %s478
      %s493 = sphi 0, %s479
      %s499 = sphi 0, %s501
      %s502 = sphi 0, %s499
      %s503 = sphi 0, %s502
      %s519 = sphi 0, %s503
    $region4: #{satrot_forward.1} parent=1 // loop_header_branch
      %46 = sbr.rel (%p44) target = $region8
    $region5: #{satrot_forward.1} parent=1 // loop_body
      %s48 = ssub.s32 %s43, 1
      %s49 = ssub.s32 %s43, 2
      %s50 = sadd.s32 %s43, 1
      %s51 = ssub.s32 %s43, %s50
      %p52 = scmp.eq.s32.totalorder %s51, 0
      %s54 = sadd.s32 %s53, 1
      %s55 = scalar_select %p52, %s53, %s54
      %p58 = pneg %p52
      %p59 = scmp.eq.s32.totalorder %s43, 1
      %p60 = por %p58, %p59
      %p61 = scmp.ne.s32.totalorder %s53, %s56
      %p62 = scmp.eq.s32.totalorder %s43, 0
      %p63 = por %p61, %p62
      %p64 = scmp.ne.s32.totalorder %s53, %s56
      %p65 = scmp.eq.s32.totalorder %s48, 1
      %p66 = por %p64, %p65
      %p67 = scmp.ne.s32.totalorder %s56, %s57
      %p68 = scmp.eq.s32.totalorder %s48, 0
      %p69 = por %p67, %p68
      %p70 = scmp.ne.s32.totalorder %s56, %s57
      %p71 = scmp.eq.s32.totalorder %s49, 1
      %p72 = por %p70, %p71
      %p74 = scmp.ne.s32.totalorder %s57, %s73
      %p75 = scmp.eq.s32.totalorder %s49, 0
      %p76 = por %p74, %p75
      %s78 = sadd.s32 %s77, 1
      %p81 = scmp.eq.s32.totalorder %s43, 1
      %p82 = scmp.ne.s32.totalorder %s77, %s79
      %p83 = scmp.eq.s32.totalorder %s43, 0
      %p84 = por %p82, %p83
      %p85 = scmp.ne.s32.totalorder %s77, %s79
      %p86 = scmp.eq.s32.totalorder %s48, 1
      %p87 = por %p85, %p86
      %p88 = scmp.ne.s32.totalorder %s79, %s80
      %p89 = scmp.eq.s32.totalorder %s48, 0
      %p90 = por %p88, %p89
      %p91 = scmp.ne.s32.totalorder %s79, %s80
      %p92 = scmp.eq.s32.totalorder %s49, 1
      %p93 = por %p91, %p92
      %p95 = scmp.ne.s32.totalorder %s80, %s94
      %p96 = scmp.eq.s32.totalorder %s49, 0
      %p97 = por %p95, %p96
      %s99 = sadd.s32 %s98, 1
      %p102 = scmp.eq.s32.totalorder %s43, 1
      %p103 = scmp.ne.s32.totalorder %s98, %s100
      %p104 = scmp.eq.s32.totalorder %s43, 0
      %p105 = por %p103, %p104
      %p106 = scmp.ne.s32.totalorder %s98, %s100
      %p107 = scmp.eq.s32.totalorder %s48, 1
      %p108 = por %p106, %p107
      %p109 = scmp.ne.s32.totalorder %s100, %s101
      %p110 = scmp.eq.s32.totalorder %s48, 0
      %p111 = por %p109, %p110
      %p112 = scmp.ne.s32.totalorder %s100, %s101
      %p113 = scmp.eq.s32.totalorder %s49, 1
      %p114 = por %p112, %p113
      %p116 = scmp.ne.s32.totalorder %s101, %s115
      %p117 = scmp.eq.s32.totalorder %s49, 0
      %p118 = por %p116, %p117
      %s120 = sadd.s32 %s119, 1
      %p123 = scmp.eq.s32.totalorder %s43, 1
      %p124 = scmp.ne.s32.totalorder %s119, %s121
      %p125 = scmp.eq.s32.totalorder %s43, 0
      %p126 = por %p124, %p125
      %p127 = scmp.ne.s32.totalorder %s119, %s121
      %p128 = scmp.eq.s32.totalorder %s48, 1
      %p129 = por %p127, %p128
      %p130 = scmp.ne.s32.totalorder %s121, %s122
      %p131 = scmp.eq.s32.totalorder %s48, 0
      %p132 = por %p130, %p131
      %p133 = scmp.ne.s32.totalorder %s121, %s122
      %p134 = scmp.eq.s32.totalorder %s49, 1
      %p135 = por %p133, %p134
      %p137 = scmp.ne.s32.totalorder %s122, %s136
      %p138 = scmp.eq.s32.totalorder %s49, 0
      %p139 = por %p137, %p138
      %s141 = sadd.s32 %s140, 1
      %p144 = scmp.eq.s32.totalorder %s43, 1
      %p145 = scmp.ne.s32.totalorder %s140, %s142
      %p146 = scmp.eq.s32.totalorder %s43, 0
      %p147 = por %p145, %p146
      %p148 = scmp.ne.s32.totalorder %s140, %s142
      %p149 = scmp.eq.s32.totalorder %s48, 1
      %p150 = por %p148, %p149
      %p151 = scmp.ne.s32.totalorder %s142, %s143
      %p152 = scmp.eq.s32.totalorder %s48, 0
      %p153 = por %p151, %p152
      %p154 = scmp.ne.s32.totalorder %s142, %s143
      %p155 = scmp.eq.s32.totalorder %s49, 1
      %p156 = por %p154, %p155
      %p158 = scmp.ne.s32.totalorder %s143, %s157
      %p159 = scmp.eq.s32.totalorder %s49, 0
      %p160 = por %p158, %p159
      %s162 = sadd.s32 %s161, 1
      %p165 = scmp.eq.s32.totalorder %s43, 1
      %p166 = scmp.ne.s32.totalorder %s161, %s163
      %p167 = scmp.eq.s32.totalorder %s43, 0
      %p168 = por %p166, %p167
      %p169 = scmp.ne.s32.totalorder %s161, %s163
      %p170 = scmp.eq.s32.totalorder %s48, 1
      %p171 = por %p169, %p170
      %p172 = scmp.ne.s32.totalorder %s163, %s164
      %p173 = scmp.eq.s32.totalorder %s48, 0
      %p174 = por %p172, %p173
      %p175 = scmp.ne.s32.totalorder %s163, %s164
      %p176 = scmp.eq.s32.totalorder %s49, 1
      %p177 = por %p175, %p176
      %p179 = scmp.ne.s32.totalorder %s164, %s178
      %p180 = scmp.eq.s32.totalorder %s49, 0
      %p181 = por %p179, %p180
      %s183 = sadd.s32 %s182, 1
      %p186 = scmp.eq.s32.totalorder %s43, 1
      %p187 = scmp.ne.s32.totalorder %s182, %s184
      %p188 = scmp.eq.s32.totalorder %s43, 0
      %p189 = por %p187, %p188
      %p190 = scmp.ne.s32.totalorder %s182, %s184
      %p191 = scmp.eq.s32.totalorder %s48, 1
      %p192 = por %p190, %p191
      %p193 = scmp.ne.s32.totalorder %s184, %s185
      %p194 = scmp.eq.s32.totalorder %s48, 0
      %p195 = por %p193, %p194
      %p196 = scmp.ne.s32.totalorder %s184, %s185
      %p197 = scmp.eq.s32.totalorder %s49, 1
      %p198 = por %p196, %p197
      %p200 = scmp.ne.s32.totalorder %s185, %s199
      %p201 = scmp.eq.s32.totalorder %s49, 0
      %p202 = por %p200, %p201
      %s204 = sadd.s32 %s203, 1
      %p207 = scmp.eq.s32.totalorder %s43, 1
      %p208 = scmp.ne.s32.totalorder %s203, %s205
      %p209 = scmp.eq.s32.totalorder %s43, 0
      %p210 = por %p208, %p209
      %p211 = scmp.ne.s32.totalorder %s203, %s205
      %p212 = scmp.eq.s32.totalorder %s48, 1
      %p213 = por %p211, %p212
      %p214 = scmp.ne.s32.totalorder %s205, %s206
      %p215 = scmp.eq.s32.totalorder %s48, 0
      %p216 = por %p214, %p215
      %p217 = scmp.ne.s32.totalorder %s205, %s206
      %p218 = scmp.eq.s32.totalorder %s49, 1
      %p219 = por %p217, %p218
      %p221 = scmp.ne.s32.totalorder %s206, %s220
      %p222 = scmp.eq.s32.totalorder %s49, 0
      %p223 = por %p221, %p222
      %s225 = sadd.s32 %s224, 1
      %p228 = scmp.eq.s32.totalorder %s43, 1
      %p229 = scmp.ne.s32.totalorder %s224, %s226
      %p230 = scmp.eq.s32.totalorder %s43, 0
      %p231 = por %p229, %p230
      %p232 = scmp.ne.s32.totalorder %s224, %s226
      %p233 = scmp.eq.s32.totalorder %s48, 1
      %p234 = por %p232, %p233
      %p235 = scmp.ne.s32.totalorder %s226, %s227
      %p236 = scmp.eq.s32.totalorder %s48, 0
      %p237 = por %p235, %p236
      %p238 = scmp.ne.s32.totalorder %s226, %s227
      %p239 = scmp.eq.s32.totalorder %s49, 1
      %p240 = por %p238, %p239
      %p242 = scmp.ne.s32.totalorder %s227, %s241
      %p243 = scmp.eq.s32.totalorder %s49, 0
      %p244 = por %p242, %p243
      %s246 = sadd.s32 %s245, 1
      %p249 = scmp.eq.s32.totalorder %s43, 1
      %p250 = scmp.ne.s32.totalorder %s245, %s247
      %p251 = scmp.eq.s32.totalorder %s43, 0
      %p252 = por %p250, %p251
      %p253 = scmp.ne.s32.totalorder %s245, %s247
      %p254 = scmp.eq.s32.totalorder %s48, 1
      %p255 = por %p253, %p254
      %p256 = scmp.ne.s32.totalorder %s247, %s248
      %p257 = scmp.eq.s32.totalorder %s48, 0
      %p258 = por %p256, %p257
      %p259 = scmp.ne.s32.totalorder %s247, %s248
      %p260 = scmp.eq.s32.totalorder %s49, 1
      %p261 = por %p259, %p260
      %p263 = scmp.ne.s32.totalorder %s248, %s262
      %p264 = scmp.eq.s32.totalorder %s49, 0
      %p265 = por %p263, %p264
      %s267 = sadd.s32 %s266, 1
      %p270 = scmp.eq.s32.totalorder %s43, 1
      %p271 = scmp.ne.s32.totalorder %s266, %s268
      %p272 = scmp.eq.s32.totalorder %s43, 0
      %p273 = por %p271, %p272
      %p274 = scmp.ne.s32.totalorder %s266, %s268
      %p275 = scmp.eq.s32.totalorder %s48, 1
      %p276 = por %p274, %p275
      %p277 = scmp.ne.s32.totalorder %s268, %s269
      %p278 = scmp.eq.s32.totalorder %s48, 0
      %p279 = por %p277, %p278
      %p280 = scmp.ne.s32.totalorder %s268, %s269
      %p281 = scmp.eq.s32.totalorder %s49, 1
      %p282 = por %p280, %p281
      %p284 = scmp.ne.s32.totalorder %s269, %s283
      %p285 = scmp.eq.s32.totalorder %s49, 0
      %p286 = por %p284, %p285
      %s288 = sadd.s32 %s287, 1
      %p291 = scmp.eq.s32.totalorder %s43, 1
      %p292 = scmp.ne.s32.totalorder %s287, %s289
      %p293 = scmp.eq.s32.totalorder %s43, 0
      %p294 = por %p292, %p293
      %p295 = scmp.ne.s32.totalorder %s287, %s289
      %p296 = scmp.eq.s32.totalorder %s48, 1
      %p297 = por %p295, %p296
      %p298 = scmp.ne.s32.totalorder %s289, %s290
      %p299 = scmp.eq.s32.totalorder %s48, 0
      %p300 = por %p298, %p299
      %p301 = scmp.ne.s32.totalorder %s289, %s290
      %p302 = scmp.eq.s32.totalorder %s49, 1
      %p303 = por %p301, %p302
      %p305 = scmp.ne.s32.totalorder %s290, %s304
      %p306 = scmp.eq.s32.totalorder %s49, 0
      %p307 = por %p305, %p306
      %s309 = sadd.s32 %s308, 1
      %p312 = scmp.eq.s32.totalorder %s43, 1
      %p313 = scmp.ne.s32.totalorder %s308, %s310
      %p314 = scmp.eq.s32.totalorder %s43, 0
      %p315 = por %p313, %p314
      %p316 = scmp.ne.s32.totalorder %s308, %s310
      %p317 = scmp.eq.s32.totalorder %s48, 1
      %p318 = por %p316, %p317
      %p319 = scmp.ne.s32.totalorder %s310, %s311
      %p320 = scmp.eq.s32.totalorder %s48, 0
      %p321 = por %p319, %p320
      %p322 = scmp.ne.s32.totalorder %s310, %s311
      %p323 = scmp.eq.s32.totalorder %s49, 1
      %p324 = por %p322, %p323
      %p326 = scmp.ne.s32.totalorder %s311, %s325
      %p327 = scmp.eq.s32.totalorder %s49, 0
      %p328 = por %p326, %p327
      %s330 = sadd.s32 %s329, 1
      %p333 = scmp.eq.s32.totalorder %s43, 1
      %p334 = scmp.ne.s32.totalorder %s329, %s331
      %p335 = scmp.eq.s32.totalorder %s43, 0
      %p336 = por %p334, %p335
      %p337 = scmp.ne.s32.totalorder %s329, %s331
      %p338 = scmp.eq.s32.totalorder %s48, 1
      %p339 = por %p337, %p338
      %p340 = scmp.ne.s32.totalorder %s331, %s332
      %p341 = scmp.eq.s32.totalorder %s48, 0
      %p342 = por %p340, %p341
      %p343 = scmp.ne.s32.totalorder %s331, %s332
      %p344 = scmp.eq.s32.totalorder %s49, 1
      %p345 = por %p343, %p344
      %p347 = scmp.ne.s32.totalorder %s332, %s346
      %p348 = scmp.eq.s32.totalorder %s49, 0
      %p349 = por %p347, %p348
      %s351 = sadd.s32 %s350, 1
      %p354 = scmp.eq.s32.totalorder %s43, 1
      %p355 = scmp.ne.s32.totalorder %s350, %s352
      %p356 = scmp.eq.s32.totalorder %s43, 0
      %p357 = por %p355, %p356
      %p358 = scmp.ne.s32.totalorder %s350, %s352
      %p359 = scmp.eq.s32.totalorder %s48, 1
      %p360 = por %p358, %p359
      %p361 = scmp.ne.s32.totalorder %s352, %s353
      %p362 = scmp.eq.s32.totalorder %s48, 0
      %p363 = por %p361, %p362
      %p364 = scmp.ne.s32.totalorder %s352, %s353
      %p365 = scmp.eq.s32.totalorder %s49, 1
      %p366 = por %p364, %p365
      %p368 = scmp.ne.s32.totalorder %s353, %s367
      %p369 = scmp.eq.s32.totalorder %s49, 0
      %p370 = por %p368, %p369
      %s372 = sadd.s32 %s371, 1
      %p375 = scmp.eq.s32.totalorder %s43, 1
      %p376 = scmp.ne.s32.totalorder %s371, %s373
      %p377 = scmp.eq.s32.totalorder %s43, 0
      %p378 = por %p376, %p377
      %p379 = scmp.ne.s32.totalorder %s371, %s373
      %p380 = scmp.eq.s32.totalorder %s48, 1
      %p381 = por %p379, %p380
      %p382 = scmp.ne.s32.totalorder %s373, %s374
      %p383 = scmp.eq.s32.totalorder %s48, 0
      %p384 = por %p382, %p383
      %p385 = scmp.ne.s32.totalorder %s373, %s374
      %p386 = scmp.eq.s32.totalorder %s49, 1
      %p387 = por %p385, %p386
      %p389 = scmp.ne.s32.totalorder %s374, %s388
      %p390 = scmp.eq.s32.totalorder %s49, 0
      %p391 = por %p389, %p390
      %s393 = sadd.s32 %s392, 1
      %p396 = scmp.eq.s32.totalorder %s43, 1
      %p397 = scmp.ne.s32.totalorder %s392, %s394
      %p398 = scmp.eq.s32.totalorder %s43, 0
      %p399 = por %p397, %p398
      %p400 = scmp.ne.s32.totalorder %s392, %s394
      %p401 = scmp.eq.s32.totalorder %s48, 1
      %p402 = por %p400, %p401
      %p403 = scmp.ne.s32.totalorder %s394, %s395
      %p404 = scmp.eq.s32.totalorder %s48, 0
      %p405 = por %p403, %p404
      %p406 = scmp.ne.s32.totalorder %s394, %s395
      %p407 = scmp.eq.s32.totalorder %s49, 1
      %p408 = por %p406, %p407
      %p410 = scmp.ne.s32.totalorder %s395, %s409
      %p411 = scmp.eq.s32.totalorder %s49, 0
      %p412 = por %p410, %p411
      %s414 = sadd.s32 %s413, 1
      %p417 = scmp.eq.s32.totalorder %s43, 1
      %p418 = scmp.ne.s32.totalorder %s413, %s415
      %p419 = scmp.eq.s32.totalorder %s43, 0
      %p420 = por %p418, %p419
      %p421 = scmp.ne.s32.totalorder %s413, %s415
      %p422 = scmp.eq.s32.totalorder %s48, 1
      %p423 = por %p421, %p422
      %p424 = scmp.ne.s32.totalorder %s415, %s416
      %p425 = scmp.eq.s32.totalorder %s48, 0
      %p426 = por %p424, %p425
      %p427 = scmp.ne.s32.totalorder %s415, %s416
      %p428 = scmp.eq.s32.totalorder %s49, 1
      %p429 = por %p427, %p428
      %p431 = scmp.ne.s32.totalorder %s416, %s430
      %p432 = scmp.eq.s32.totalorder %s49, 0
      %p433 = por %p431, %p432
      %s435 = sadd.s32 %s434, 1
      %p438 = scmp.eq.s32.totalorder %s43, 1
      %p439 = scmp.ne.s32.totalorder %s434, %s436
      %p440 = scmp.eq.s32.totalorder %s43, 0
      %p441 = por %p439, %p440
      %p442 = scmp.ne.s32.totalorder %s434, %s436
      %p443 = scmp.eq.s32.totalorder %s48, 1
      %p444 = por %p442, %p443
      %p445 = scmp.ne.s32.totalorder %s436, %s437
      %p446 = scmp.eq.s32.totalorder %s48, 0
      %p447 = por %p445, %p446
      %p448 = scmp.ne.s32.totalorder %s436, %s437
      %p449 = scmp.eq.s32.totalorder %s49, 1
      %p450 = por %p448, %p449
      %p452 = scmp.ne.s32.totalorder %s437, %s451
      %p453 = scmp.eq.s32.totalorder %s49, 0
      %p454 = por %p452, %p453
      %s456 = sadd.s32 %s455, 1
      %p459 = scmp.eq.s32.totalorder %s43, 1
      %p460 = scmp.ne.s32.totalorder %s455, %s457
      %p461 = scmp.eq.s32.totalorder %s43, 0
      %p462 = por %p460, %p461
      %p463 = scmp.ne.s32.totalorder %s455, %s457
      %p464 = scmp.eq.s32.totalorder %s48, 1
      %p465 = por %p463, %p464
      %p466 = scmp.ne.s32.totalorder %s457, %s458
      %p467 = scmp.eq.s32.totalorder %s48, 0
      %p468 = por %p466, %p467
      %p469 = scmp.ne.s32.totalorder %s457, %s458
      %p470 = scmp.eq.s32.totalorder %s49, 1
      %p471 = por %p469, %p470
      %p473 = scmp.ne.s32.totalorder %s458, %s472
      %p474 = scmp.eq.s32.totalorder %s49, 0
      %p475 = por %p473, %p474
      %s477 = sadd.s32 %s476, 1
      %p480 = scmp.eq.s32.totalorder %s43, 1
      %p481 = scmp.ne.s32.totalorder %s476, %s478
      %p482 = scmp.eq.s32.totalorder %s43, 0
      %p483 = por %p481, %p482
      %p484 = scmp.ne.s32.totalorder %s476, %s478
      %p485 = scmp.eq.s32.totalorder %s48, 1
      %p486 = por %p484, %p485
      %p487 = scmp.ne.s32.totalorder %s478, %s479
      %p488 = scmp.eq.s32.totalorder %s48, 0
      %p489 = por %p487, %p488
      %p490 = scmp.ne.s32.totalorder %s478, %s479
      %p491 = scmp.eq.s32.totalorder %s49, 1
      %p492 = por %p490, %p491
      %p494 = scmp.ne.s32.totalorder %s479, %s493
      %p495 = scmp.eq.s32.totalorder %s49, 0
      %p496 = por %p494, %p495
      %s497 = ssub.s32 %s43, %s50
      %p498 = scmp.eq.s32.totalorder %s497, 0
      %s500 = sadd.s32 %s499, 1
      %s501 = scalar_select %p498, %s499, %s500
      %p504 = pneg %p498
      %p505 = scmp.eq.s32.totalorder %s43, 1
      %p506 = por %p504, %p505
      %p507 = scmp.ne.s32.totalorder %s499, %s502
      %p508 = scmp.eq.s32.totalorder %s43, 0
      %p509 = por %p507, %p508
      %p510 = scmp.ne.s32.totalorder %s499, %s502
      %p511 = scmp.eq.s32.totalorder %s48, 1
      %p512 = por %p510, %p511
      %p513 = scmp.ne.s32.totalorder %s502, %s503
      %p514 = scmp.eq.s32.totalorder %s48, 0
      %p515 = por %p513, %p514
      %p516 = scmp.ne.s32.totalorder %s502, %s503
      %p517 = scmp.eq.s32.totalorder %s49, 1
      %p518 = por %p516, %p517
      %p520 = scmp.ne.s32.totalorder %s503, %s519
      %p521 = scmp.eq.s32.totalorder %s49, 0
      %p522 = por %p520, %p521
      %p523 = scmp.le.s32.totalorder 1, %s43
      %p524 = scmp.lt.s32.totalorder %s43, 3
      %p525 = pnand %p523, %p524
      %p526 = pneg %p525
      // Predicated region
      $region9: #{satrot_forward.1} parent=5 // pred_check
        _
      $region10: #{satrot_forward.1} parent=5 // pred_check_branch
        %528 = sbr.rel (%p525) target = $region12
      $region11: #{satrot_forward.1} parent=5 // pred_region
        %s529 = ssub.s32 %s43, 1
        // Predicated region
        $region13: #{satrot_forward.1} parent=11 // pred_check
          %p530 = pneg %p90
        $region14: #{satrot_forward.1} parent=11 // pred_check_branch
          %532 = sbr.rel (%p530) target = $region16
        $region15: #{satrot_forward.1} parent=11 // pred_region
          %s534 = ssub.s32 768, 768
          %535 = vsyncadd [#allocation6], %s534
          %s536 = sshll.u32 [#allocation5], 4
          %s537 = int_to_ptr.vmem [resolvable:$true] %s536
          %542 = dma.hbm_to_vmem [thread:$0]  %s1, 768, %s537, [#allocation6], 64, 64, 4
        $region16: #{satrot_forward.1} parent=11 // pred_fallthru
          _
        // Predicated region
        $region17: #{satrot_forward.1} parent=11 // pred_check
          %p543 = pneg %p111
        $region18: #{satrot_forward.1} parent=11 // pred_check_branch
          %545 = sbr.rel (%p543) target = $region20
        $region19: #{satrot_forward.1} parent=11 // pred_region
          %s547 = ssub.s32 16, 16
          %548 = vsyncadd [#allocation6], %s547
          %s550 = sshll.u32 [#allocation7], 4
          %s551 = int_to_ptr.vmem [resolvable:$true] %s550
          %553 = dma.hbm_to_vmem [thread:$0]  %s2, 16, %s551, [#allocation6]
        $region20: #{satrot_forward.1} parent=11 // pred_fallthru
          _
        // Predicated region
        $region21: #{satrot_forward.1} parent=11 // pred_check
          %p554 = pneg %p132
        $region22: #{satrot_forward.1} parent=11 // pred_check_branch
          %556 = sbr.rel (%p554) target = $region24
        $region23: #{satrot_forward.1} parent=11 // pred_region
          %s558 = ssub.s32 16, 16
          %559 = vsyncadd [#allocation9], %s558
          %s561 = sshll.u32 [#allocation8], 4
          %s562 = int_to_ptr.vmem [resolvable:$true] %s561
          %564 = dma.hbm_to_vmem [thread:$0]  %s3, 16, %s562, [#allocation9]
        $region24: #{satrot_forward.1} parent=11 // pred_fallthru
          _
        // Predicated region
        $region25: #{satrot_forward.1} parent=11 // pred_check
          %p565 = pneg %p153
        $region26: #{satrot_forward.1} parent=11 // pred_check_branch
          %567 = sbr.rel (%p565) target = $region28
        $region27: #{satrot_forward.1} parent=11 // pred_region
          %s569 = ssub.s32 128, 128
          %570 = vsyncadd [#allocation9], %s569
          %s572 = sshll.u32 [#allocation10], 4
          %s573 = int_to_ptr.vmem [resolvable:$true] %s572
          %575 = dma.hbm_to_vmem [thread:$0]  %s4, 128, %s573, [#allocation9]
        $region28: #{satrot_forward.1} parent=11 // pred_fallthru
          _
        // Predicated region
        $region29: #{satrot_forward.1} parent=11 // pred_check
          %p576 = pneg %p174
        $region30: #{satrot_forward.1} parent=11 // pred_check_branch
          %578 = sbr.rel (%p576) target = $region32
        $region31: #{satrot_forward.1} parent=11 // pred_region
          %s580 = ssub.s32 512, 512
          %581 = vsyncadd [#allocation12], %s580
          %s582 = sshll.u32 [#allocation11], 4
          %s583 = int_to_ptr.vmem [resolvable:$true] %s582
          %588 = dma.hbm_to_vmem [thread:$0]  %s5, 512, %s583, [#allocation12], 64, 64, 4
        $region32: #{satrot_forward.1} parent=11 // pred_fallthru
          _
        // Predicated region
        $region33: #{satrot_forward.1} parent=11 // pred_check
          %p589 = pneg %p195
        $region34: #{satrot_forward.1} parent=11 // pred_check_branch
          %591 = sbr.rel (%p589) target = $region36
        $region35: #{satrot_forward.1} parent=11 // pred_region
          %s593 = ssub.s32 32, 32
          %594 = vsyncadd [#allocation12], %s593
          %s595 = sshll.u32 [#allocation13], 4
          %s596 = int_to_ptr.vmem [resolvable:$true] %s595
          %601 = dma.hbm_to_vmem [thread:$0]  %s6, 32, %s596, [#allocation12], 16, 16, 1
        $region36: #{satrot_forward.1} parent=11 // pred_fallthru
          _
        // Predicated region
        $region37: #{satrot_forward.1} parent=11 // pred_check
          %p602 = pneg %p216
        $region38: #{satrot_forward.1} parent=11 // pred_check_branch
          %604 = sbr.rel (%p602) target = $region40
        $region39: #{satrot_forward.1} parent=11 // pred_region
          %s606 = ssub.s32 512, 512
          %607 = vsyncadd [#allocation15], %s606
          %s608 = sshll.u32 [#allocation14], 4
          %s609 = int_to_ptr.vmem [resolvable:$true] %s608
          %614 = dma.hbm_to_vmem [thread:$0]  %s7, 512, %s609, [#allocation15], 64, 64, 4
        $region40: #{satrot_forward.1} parent=11 // pred_fallthru
          _
        // Predicated region
        $region41: #{satrot_forward.1} parent=11 // pred_check
          %p615 = pneg %p237
        $region42: #{satrot_forward.1} parent=11 // pred_check_branch
          %617 = sbr.rel (%p615) target = $region44
        $region43: #{satrot_forward.1} parent=11 // pred_region
          %s619 = ssub.s32 32, 32
          %620 = vsyncadd [#allocation15], %s619
          %s621 = sshll.u32 [#allocation16], 4
          %s622 = int_to_ptr.vmem [resolvable:$true] %s621
          %627 = dma.hbm_to_vmem [thread:$0]  %s8, 32, %s622, [#allocation15], 16, 16, 1
        $region44: #{satrot_forward.1} parent=11 // pred_fallthru
          _
        // Predicated region
        $region45: #{satrot_forward.1} parent=11 // pred_check
          %p628 = pneg %p258
        $region46: #{satrot_forward.1} parent=11 // pred_check_branch
          %630 = sbr.rel (%p628) target = $region48
        $region47: #{satrot_forward.1} parent=11 // pred_region
          %s632 = ssub.s32 32, 32
          %633 = vsyncadd [#allocation18], %s632
          %s634 = sshll.u32 [#allocation17], 4
          %s635 = int_to_ptr.vmem [resolvable:$true] %s634
          %640 = dma.hbm_to_vmem [thread:$0]  %s9, 32, %s635, [#allocation18], 16, 16, 1
        $region48: #{satrot_forward.1} parent=11 // pred_fallthru
          _
        // Predicated region
        $region49: #{satrot_forward.1} parent=11 // pred_check
          %p641 = pneg %p279
        $region50: #{satrot_forward.1} parent=11 // pred_check_branch
          %643 = sbr.rel (%p641) target = $region52
        $region51: #{satrot_forward.1} parent=11 // pred_region
          %s645 = ssub.s32 32, 32
          %646 = vsyncadd [#allocation18], %s645
          %s647 = sshll.u32 [#allocation19], 4
          %s648 = int_to_ptr.vmem [resolvable:$true] %s647
          %653 = dma.hbm_to_vmem [thread:$0]  %s10, 32, %s648, [#allocation18], 16, 16, 1
        $region52: #{satrot_forward.1} parent=11 // pred_fallthru
          _
        // Predicated region
        $region53: #{satrot_forward.1} parent=11 // pred_check
          %p654 = pneg %p300
        $region54: #{satrot_forward.1} parent=11 // pred_check_branch
          %656 = sbr.rel (%p654) target = $region56
        $region55: #{satrot_forward.1} parent=11 // pred_region
          %s658 = ssub.s32 8192, 8192
          %659 = vsyncadd [#allocation21], %s658
          %s660 = sshll.u32 [#allocation20], 4
          %s661 = int_to_ptr.vmem [resolvable:$true] %s660
          %666 = dma.hbm_to_vmem [thread:$0]  %s11, 8192, %s661, [#allocation21], 1024, 1024, 64
        $region56: #{satrot_forward.1} parent=11 // pred_fallthru
          _
        // Predicated region
        $region57: #{satrot_forward.1} parent=11 // pred_check
          %p667 = pneg %p321
        $region58: #{satrot_forward.1} parent=11 // pred_check_branch
          %669 = sbr.rel (%p667) target = $region60
        $region59: #{satrot_forward.1} parent=11 // pred_region
          %s671 = ssub.s32 512, 512
          %672 = vsyncadd [#allocation21], %s671
          %s673 = sshll.u32 [#allocation22], 4
          %s674 = int_to_ptr.vmem [resolvable:$true] %s673
          %679 = dma.hbm_to_vmem [thread:$0]  %s12, 512, %s674, [#allocation21], 256, 256, 16
        $region60: #{satrot_forward.1} parent=11 // pred_fallthru
          _
        // Predicated region
        $region61: #{satrot_forward.1} parent=11 // pred_check
          %p680 = pneg %p342
        $region62: #{satrot_forward.1} parent=11 // pred_check_branch
          %682 = sbr.rel (%p680) target = $region64
        $region63: #{satrot_forward.1} parent=11 // pred_region
          %s684 = ssub.s32 32768, 32768
          %685 = vsyncadd [#allocation24], %s684
          %s686 = sshll.u32 [#allocation23], 4
          %s687 = int_to_ptr.vmem [resolvable:$true] %s686
          %692 = dma.hbm_to_vmem [thread:$0]  %s13, 32768, %s687, [#allocation24], 64, 64, 4
        $region64: #{satrot_forward.1} parent=11 // pred_fallthru
          _
        // Predicated region
        $region65: #{satrot_forward.1} parent=11 // pred_check
          %p693 = pneg %p363
        $region66: #{satrot_forward.1} parent=11 // pred_check_branch
          %695 = sbr.rel (%p693) target = $region68
        $region67: #{satrot_forward.1} parent=11 // pred_region
          %s697 = ssub.s32 32, 32
          %698 = vsyncadd [#allocation24], %s697
          %s699 = sshll.u32 [#allocation25], 4
          %s700 = int_to_ptr.vmem [resolvable:$true] %s699
          %705 = dma.hbm_to_vmem [thread:$0]  %s14, 32, %s700, [#allocation24], 16, 16, 1
        $region68: #{satrot_forward.1} parent=11 // pred_fallthru
          _
        // Predicated region
        $region69: #{satrot_forward.1} parent=11 // pred_check
          %p706 = pneg %p384
        $region70: #{satrot_forward.1} parent=11 // pred_check_branch
          %708 = sbr.rel (%p706) target = $region72
        $region71: #{satrot_forward.1} parent=11 // pred_region
          %s710 = ssub.s32 32, 32
          %711 = vsyncadd [#allocation27], %s710
          %s712 = sshll.u32 [#allocation26], 4
          %s713 = int_to_ptr.vmem [resolvable:$true] %s712
          %718 = dma.hbm_to_vmem [thread:$0]  %s15, 32, %s713, [#allocation27], 16, 16, 1
        $region72: #{satrot_forward.1} parent=11 // pred_fallthru
          _
        // Predicated region
        $region73: #{satrot_forward.1} parent=11 // pred_check
          %p719 = pneg %p405
        $region74: #{satrot_forward.1} parent=11 // pred_check_branch
          %721 = sbr.rel (%p719) target = $region76
        $region75: #{satrot_forward.1} parent=11 // pred_region
          %s723 = ssub.s32 32, 32
          %724 = vsyncadd [#allocation27], %s723
          %s725 = sshll.u32 [#allocation28], 4
          %s726 = int_to_ptr.vmem [resolvable:$true] %s725
          %731 = dma.hbm_to_vmem [thread:$0]  %s16, 32, %s726, [#allocation27], 16, 16, 1
        $region76: #{satrot_forward.1} parent=11 // pred_fallthru
          _
        // Predicated region
        $region77: #{satrot_forward.1} parent=11 // pred_check
          %p732 = pneg %p426
        $region78: #{satrot_forward.1} parent=11 // pred_check_branch
          %734 = sbr.rel (%p732) target = $region80
        $region79: #{satrot_forward.1} parent=11 // pred_region
          %s736 = ssub.s32 256, 256
          %737 = vsyncadd [#allocation30], %s736
          %s738 = sshll.u32 [#allocation29], 4
          %s739 = int_to_ptr.vmem [resolvable:$true] %s738
          %744 = dma.hbm_to_vmem [thread:$0]  %s17, 256, %s739, [#allocation30], 64, 64, 4
        $region80: #{satrot_forward.1} parent=11 // pred_fallthru
          _
        // Predicated region
        $region81: #{satrot_forward.1} parent=11 // pred_check
          %p745 = pneg %p447
        $region82: #{satrot_forward.1} parent=11 // pred_check_branch
          %747 = sbr.rel (%p745) target = $region84
        $region83: #{satrot_forward.1} parent=11 // pred_region
          %s749 = ssub.s32 16, 16
          %750 = vsyncadd [#allocation30], %s749
          %s752 = sshll.u32 [#allocation31], 4
          %s753 = int_to_ptr.vmem [resolvable:$true] %s752
          %755 = dma.hbm_to_vmem [thread:$0]  %s18, 16, %s753, [#allocation30]
        $region84: #{satrot_forward.1} parent=11 // pred_fallthru
          _
        // Predicated region
        $region85: #{satrot_forward.1} parent=11 // pred_check
          %p756 = pneg %p468
        $region86: #{satrot_forward.1} parent=11 // pred_check_branch
          %758 = sbr.rel (%p756) target = $region88
        $region87: #{satrot_forward.1} parent=11 // pred_region
          %s760 = ssub.s32 512, 512
          %761 = vsyncadd [#allocation33], %s760
          %s762 = sshll.u32 [#allocation32], 4
          %s763 = int_to_ptr.vmem [resolvable:$true] %s762
          %768 = dma.hbm_to_vmem [thread:$0]  %s19, 512, %s763, [#allocation33], 64, 64, 4
        $region88: #{satrot_forward.1} parent=11 // pred_fallthru
          _
        // Predicated region
        $region89: #{satrot_forward.1} parent=11 // pred_check
          %p769 = pneg %p489
        $region90: #{satrot_forward.1} parent=11 // pred_check_branch
          %771 = sbr.rel (%p769) target = $region92
        $region91: #{satrot_forward.1} parent=11 // pred_region
          %s773 = ssub.s32 16, 16
          %774 = vsyncadd [#allocation33], %s773
          %s776 = sshll.u32 [#allocation34], 4
          %s777 = int_to_ptr.vmem [resolvable:$true] %s776
          %779 = dma.hbm_to_vmem [thread:$0]  %s20, 16, %s777, [#allocation33]
        $region92: #{satrot_forward.1} parent=11 // pred_fallthru
          _
      $region12: #{satrot_forward.1} parent=5 // pred_fallthru
        _
      %p780 = scmp.lt.s32.totalorder %s43, 2
      // Predicated region
      $region93: #{satrot_forward.1} parent=5 // pred_check
        %p781 = pneg %p780
      $region94: #{satrot_forward.1} parent=5 // pred_check_branch
        %783 = sbr.rel (%p781) target = $region96
      $region95: #{satrot_forward.1} parent=5 // pred_region
        // Predicated region
        $region97: #{satrot_forward.1} parent=95 // pred_check
          %p784 = pneg %p63
        $region98: #{satrot_forward.1} parent=95 // pred_check_branch
          %786 = sbr.rel (%p784) target = $region100
        $region99: #{satrot_forward.1} parent=95 // pred_region
          %s787 = sand.u32 %s53, 1
          %s788 = scalar_lea.sflag [#allocation3], %s787
          %s789 = sand.u32 %s53, 1
          %s790 = smul.addr %s789, 8
          %s791 = scalar_lea.vmem [#allocation2], %s790
          %s793 = ssub.s32 128, 128
          %794 = vsyncadd %s788, %s793
          %s795 = smul.addr %s43, 128
          %s796 = scalar_lea.hbm %s0, %s795
          %s798 = sshll.u32 %s791, 4
          %s799 = int_to_ptr.vmem [resolvable:$true] %s798
          %801 = dma.hbm_to_vmem [thread:$0]  %s796, 128, %s799, %s788
        $region100: #{satrot_forward.1} parent=95 // pred_fallthru
          _
      $region96: #{satrot_forward.1} parent=5 // pred_fallthru
        _
      %p802 = scmp.le.s32.totalorder 1, %s43
      %p803 = scmp.lt.s32.totalorder %s43, 3
      %p804 = pnand %p802, %p803
      %p805 = pneg %p804
      // Predicated region
      $region101: #{satrot_forward.1} parent=5 // pred_check
        _
      $region102: #{satrot_forward.1} parent=5 // pred_check_branch
        %807 = sbr.rel (%p804) target = $region104
      $region103: #{satrot_forward.1} parent=5 // pred_region
        %s808 = ssub.s32 %s43, 1
        %s809 = sand.u32 %s56, 1
        %s810 = scalar_lea.sflag [#allocation3], %s809
        %s811 = sand.u32 %s56, 1
        %s812 = smul.addr %s811, 8
        %s813 = scalar_lea.vmem [#allocation2], %s812
        // Predicated region
        $region105: #{satrot_forward.1} parent=103 // pred_check
          %p814 = pneg %p69
        $region106: #{satrot_forward.1} parent=103 // pred_check_branch
          %816 = sbr.rel (%p814) target = $region108
        $region107: #{satrot_forward.1} parent=103 // pred_region
          %817 = dma.done %s810, 128
        $region108: #{satrot_forward.1} parent=103 // pred_fallthru
          _
        // Predicated region
        $region109: #{satrot_forward.1} parent=103 // pred_check
          %p818 = pneg %p90
        $region110: #{satrot_forward.1} parent=103 // pred_check_branch
          %820 = sbr.rel (%p818) target = $region112
        $region111: #{satrot_forward.1} parent=103 // pred_region
          %821 = dma.done [#allocation6], 768
        $region112: #{satrot_forward.1} parent=103 // pred_fallthru
          _
        // Predicated region
        $region113: #{satrot_forward.1} parent=103 // pred_check
          %p822 = pneg %p111
        $region114: #{satrot_forward.1} parent=103 // pred_check_branch
          %824 = sbr.rel (%p822) target = $region116
        $region115: #{satrot_forward.1} parent=103 // pred_region
          %825 = dma.done [#allocation6], 16
        $region116: #{satrot_forward.1} parent=103 // pred_fallthru
          _
        // Predicated region
        $region117: #{satrot_forward.1} parent=103 // pred_check
          %p826 = pneg %p132
        $region118: #{satrot_forward.1} parent=103 // pred_check_branch
          %828 = sbr.rel (%p826) target = $region120
        $region119: #{satrot_forward.1} parent=103 // pred_region
          %829 = dma.done [#allocation9], 16
        $region120: #{satrot_forward.1} parent=103 // pred_fallthru
          _
        // Predicated region
        $region121: #{satrot_forward.1} parent=103 // pred_check
          %p830 = pneg %p153
        $region122: #{satrot_forward.1} parent=103 // pred_check_branch
          %832 = sbr.rel (%p830) target = $region124
        $region123: #{satrot_forward.1} parent=103 // pred_region
          %833 = dma.done [#allocation9], 128
        $region124: #{satrot_forward.1} parent=103 // pred_fallthru
          _
        // Predicated region
        $region125: #{satrot_forward.1} parent=103 // pred_check
          %p834 = pneg %p174
        $region126: #{satrot_forward.1} parent=103 // pred_check_branch
          %836 = sbr.rel (%p834) target = $region128
        $region127: #{satrot_forward.1} parent=103 // pred_region
          %837 = dma.done [#allocation12], 512
        $region128: #{satrot_forward.1} parent=103 // pred_fallthru
          _
        // Predicated region
        $region129: #{satrot_forward.1} parent=103 // pred_check
          %p838 = pneg %p195
        $region130: #{satrot_forward.1} parent=103 // pred_check_branch
          %840 = sbr.rel (%p838) target = $region132
        $region131: #{satrot_forward.1} parent=103 // pred_region
          %841 = dma.done [#allocation12], 32
        $region132: #{satrot_forward.1} parent=103 // pred_fallthru
          _
        // Predicated region
        $region133: #{satrot_forward.1} parent=103 // pred_check
          %p842 = pneg %p216
        $region134: #{satrot_forward.1} parent=103 // pred_check_branch
          %844 = sbr.rel (%p842) target = $region136
        $region135: #{satrot_forward.1} parent=103 // pred_region
          %845 = dma.done [#allocation15], 512
        $region136: #{satrot_forward.1} parent=103 // pred_fallthru
          _
        // Predicated region
        $region137: #{satrot_forward.1} parent=103 // pred_check
          %p846 = pneg %p237
        $region138: #{satrot_forward.1} parent=103 // pred_check_branch
          %848 = sbr.rel (%p846) target = $region140
        $region139: #{satrot_forward.1} parent=103 // pred_region
          %849 = dma.done [#allocation15], 32
        $region140: #{satrot_forward.1} parent=103 // pred_fallthru
          _
        // Predicated region
        $region141: #{satrot_forward.1} parent=103 // pred_check
          %p850 = pneg %p258
        $region142: #{satrot_forward.1} parent=103 // pred_check_branch
          %852 = sbr.rel (%p850) target = $region144
        $region143: #{satrot_forward.1} parent=103 // pred_region
          %853 = dma.done [#allocation18], 32
        $region144: #{satrot_forward.1} parent=103 // pred_fallthru
          _
        // Predicated region
        $region145: #{satrot_forward.1} parent=103 // pred_check
          %p854 = pneg %p279
        $region146: #{satrot_forward.1} parent=103 // pred_check_branch
          %856 = sbr.rel (%p854) target = $region148
        $region147: #{satrot_forward.1} parent=103 // pred_region
          %857 = dma.done [#allocation18], 32
        $region148: #{satrot_forward.1} parent=103 // pred_fallthru
          _
        // Predicated region
        $region149: #{satrot_forward.1} parent=103 // pred_check
          %p858 = pneg %p300
        $region150: #{satrot_forward.1} parent=103 // pred_check_branch
          %860 = sbr.rel (%p858) target = $region152
        $region151: #{satrot_forward.1} parent=103 // pred_region
          %861 = dma.done [#allocation21], 8192
        $region152: #{satrot_forward.1} parent=103 // pred_fallthru
          _
        // Predicated region
        $region153: #{satrot_forward.1} parent=103 // pred_check
          %p862 = pneg %p321
        $region154: #{satrot_forward.1} parent=103 // pred_check_branch
          %864 = sbr.rel (%p862) target = $region156
        $region155: #{satrot_forward.1} parent=103 // pred_region
          %865 = dma.done [#allocation21], 512
        $region156: #{satrot_forward.1} parent=103 // pred_fallthru
          _
        // Predicated region
        $region157: #{satrot_forward.1} parent=103 // pred_check
          %p866 = pneg %p342
        $region158: #{satrot_forward.1} parent=103 // pred_check_branch
          %868 = sbr.rel (%p866) target = $region160
        $region159: #{satrot_forward.1} parent=103 // pred_region
          %869 = dma.done [#allocation24], 32768
        $region160: #{satrot_forward.1} parent=103 // pred_fallthru
          _
        // Predicated region
        $region161: #{satrot_forward.1} parent=103 // pred_check
          %p870 = pneg %p363
        $region162: #{satrot_forward.1} parent=103 // pred_check_branch
          %872 = sbr.rel (%p870) target = $region164
        $region163: #{satrot_forward.1} parent=103 // pred_region
          %873 = dma.done [#allocation24], 32
        $region164: #{satrot_forward.1} parent=103 // pred_fallthru
          _
        // Predicated region
        $region165: #{satrot_forward.1} parent=103 // pred_check
          %p874 = pneg %p384
        $region166: #{satrot_forward.1} parent=103 // pred_check_branch
          %876 = sbr.rel (%p874) target = $region168
        $region167: #{satrot_forward.1} parent=103 // pred_region
          %877 = dma.done [#allocation27], 32
        $region168: #{satrot_forward.1} parent=103 // pred_fallthru
          _
        // Predicated region
        $region169: #{satrot_forward.1} parent=103 // pred_check
          %p878 = pneg %p405
        $region170: #{satrot_forward.1} parent=103 // pred_check_branch
          %880 = sbr.rel (%p878) target = $region172
        $region171: #{satrot_forward.1} parent=103 // pred_region
          %881 = dma.done [#allocation27], 32
        $region172: #{satrot_forward.1} parent=103 // pred_fallthru
          _
        // Predicated region
        $region173: #{satrot_forward.1} parent=103 // pred_check
          %p882 = pneg %p426
        $region174: #{satrot_forward.1} parent=103 // pred_check_branch
          %884 = sbr.rel (%p882) target = $region176
        $region175: #{satrot_forward.1} parent=103 // pred_region
          %885 = dma.done [#allocation30], 256
        $region176: #{satrot_forward.1} parent=103 // pred_fallthru
          _
        // Predicated region
        $region177: #{satrot_forward.1} parent=103 // pred_check
          %p886 = pneg %p447
        $region178: #{satrot_forward.1} parent=103 // pred_check_branch
          %888 = sbr.rel (%p886) target = $region180
        $region179: #{satrot_forward.1} parent=103 // pred_region
          %889 = dma.done [#allocation30], 16
        $region180: #{satrot_forward.1} parent=103 // pred_fallthru
          _
        // Predicated region
        $region181: #{satrot_forward.1} parent=103 // pred_check
          %p890 = pneg %p468
        $region182: #{satrot_forward.1} parent=103 // pred_check_branch
          %892 = sbr.rel (%p890) target = $region184
        $region183: #{satrot_forward.1} parent=103 // pred_region
          %893 = dma.done [#allocation33], 512
        $region184: #{satrot_forward.1} parent=103 // pred_fallthru
          _
        // Predicated region
        $region185: #{satrot_forward.1} parent=103 // pred_check
          %p894 = pneg %p489
        $region186: #{satrot_forward.1} parent=103 // pred_check_branch
          %896 = sbr.rel (%p894) target = $region188
        $region187: #{satrot_forward.1} parent=103 // pred_region
          %897 = dma.done [#allocation33], 16
        $region188: #{satrot_forward.1} parent=103 // pred_fallthru
          _
        %s898 = sand.u32 %s56, 1
        %s899 = scalar_lea.sflag [#allocation3], %s898
        %s900 = sand.u32 %s56, 1
        %s901 = smul.addr %s900, 8
        %s902 = scalar_lea.vmem [#allocation2], %s901
        %p903 = pneg %p69
        %p904 = pneg %p66
        %p905 = pneg %p90
        %p906 = pneg %p87
        %p907 = pneg %p111
        %p908 = pneg %p108
        %p909 = pneg %p132
        %p910 = pneg %p129
        %p911 = pneg %p153
        %p912 = pneg %p150
        %p913 = pneg %p174
        %p914 = pneg %p171
        %p915 = pneg %p195
        %p916 = pneg %p192
        %p917 = pneg %p216
        %p918 = pneg %p213
        %p919 = pneg %p237
        %p920 = pneg %p234
        %p921 = pneg %p258
        %p922 = pneg %p255
        %p923 = pneg %p279
        %p924 = pneg %p276
        %p925 = pneg %p300
        %p926 = pneg %p297
        %p927 = pneg %p321
        %p928 = pneg %p318
        %p929 = pneg %p342
        %p930 = pneg %p339
        %p931 = pneg %p363
        %p932 = pneg %p360
        %p933 = pneg %p384
        %p934 = pneg %p381
        %p935 = pneg %p405
        %p936 = pneg %p402
        %p937 = pneg %p426
        %p938 = pneg %p423
        %p939 = pneg %p447
        %p940 = pneg %p444
        %p941 = pneg %p468
        %p942 = pneg %p465
        %p943 = pneg %p489
        %p944 = pneg %p486
        %p945 = pneg %p515
        %p946 = pneg %p512
        %s947 = sand.u32 %s502, 1
        %s948 = scalar_lea.sflag [#allocation4], %s947
        %s949 = sand.u32 %s502, 1
        %s950 = scalar_lea.vmem [#allocation35], %s949
        %v952 = vld [vmem:[%s813] sm:$0xff]
        %v953 = vld [vmem:[#allocation5] sm:$0xf]
        %v954 = vld [vmem:[#allocation5 + $0x4] sm:$0xf]
        %v955 = vld [vmem:[#allocation5 + $0x8] sm:$0xf]
        %v956 = vld [vmem:[#allocation5 + $0xc] sm:$0xf]
        %v957 = vld [vmem:[#allocation5 + $0x10] sm:$0xf]
        %v958 = vld [vmem:[#allocation5 + $0x14] sm:$0xf]
        %v959 = vld [vmem:[#allocation5 + $0x18] sm:$0xf]
        %v960 = vld [vmem:[#allocation5 + $0x1c] sm:$0xf]
        %v961 = vld [vmem:[#allocation5 + $0x20] sm:$0xf]
        %v962 = vld [vmem:[#allocation5 + $0x24] sm:$0xf]
        %v963 = vld [vmem:[#allocation5 + $0x28] sm:$0xf]
        %v964 = vld [vmem:[#allocation5 + $0x2c] sm:$0xf]
        %v965 = vpack.c.bf16 %v952, %v952
        %v966 = vld [vmem:[#allocation7] sm:$0x1]
        %v968 = vlaneseq
        %v969 = vshrl.u32 %v968, 7
        %v970 = vsub.s32 0, %v969
        %v971 = vrot.slane %v966, %v970
        %v985 = vunpack.c.l.b16 %v953
        %v986 = vunpack.c.l.b16 %v954
        %v987 = vunpack.c.l.b16 %v955
        %v988 = vunpack.c.l.b16 %v956
        %v989 = vunpack.c.l.b16 %v957
        %v990 = vunpack.c.l.b16 %v958
        %v991 = vunpack.c.l.b16 %v959
        %v992 = vunpack.c.l.b16 %v960
        %v993 = vunpack.c.l.b16 %v961
        %v994 = vunpack.c.l.b16 %v962
        %v995 = vunpack.c.l.b16 %v963
        %v996 = vunpack.c.l.b16 %v964
        %v997 = vpack.c.b16 %v986, %v985
        %v998 = vpack.c.b16 %v988, %v987
        %v999 = vpack.c.b16 %v990, %v989
        %v1000 = vpack.c.b16 %v992, %v991
        %v1001 = vpack.c.b16 %v994, %v993
        %v1002 = vpack.c.b16 %v996, %v995
        %vm1009 = vcmask 785408
        %v1011 = vsel %vm1009, %v965, 0
        %1013 = vmatprep.subr.bf16.mxu0 0
        %1014 = vmatpush1.bf16.msra.mxu0 %v997
        %1015 = vmatprep.subr.bf16.mxu0 0
        %1016 = vmatpush1.bf16.msra.mxu0 %v998
        %1017 = vmatprep.subr.bf16.mxu0 0
        %1018 = vmatpush1.bf16.msra.mxu0 %v999
        %1019 = vmatprep.subr.bf16.mxu0 0
        %1020 = vmatpush1.bf16.msra.mxu0 %v1000
        %1021 = vmatprep.subr.bf16.mxu0 0
        %1022 = vmatpush1.bf16.msra.mxu0 %v1001
        %1023 = vmatprep.subr.bf16.mxu0 0
        %1024 = vmatpush1.bf16.msra.mxu0 %v1002
        %1025 = vmatprep.subr.bf16.mxu0 0
        %1026 = vmatpush1.bf16.msra.mxu0 0
        %1027 = vmatprep.subr.bf16.mxu0 0
        %1028 = vmatpush1.bf16.msra.mxu0 0
        %1029 = vmatprep.subr.bf16.mxu0 0
        %1030 = vmatpush1.bf16.msra.mxu0 0
        %1031 = vmatprep.subr.bf16.mxu0 0
        %1032 = vmatpush1.bf16.msra.mxu0 0
        %1033 = vmatprep.subr.bf16.mxu0 0
        %1034 = vmatpush1.bf16.msra.mxu0 0
        %1035 = vmatprep.subr.bf16.mxu0 0
        %1036 = vmatpush1.bf16.msra.mxu0 0
        %1037 = vmatprep.subr.bf16.mxu0 0
        %1038 = vmatpush1.bf16.msra.mxu0 0
        %1039 = vmatprep.subr.bf16.mxu0 0
        %1040 = vmatpush1.bf16.msra.mxu0 0
        %1041 = vmatprep.subr.bf16.mxu0 0
        %1042 = vmatpush1.bf16.msra.mxu0 0
        %1043 = vmatprep.subr.bf16.mxu0 0
        %1044 = vmatpush1.bf16.msra.mxu0 0
        %1045 = vmatprep.mubr.bf16.mxu0 0
        %1046 = vmatmul.mubr.bf16.gmra.mrb[0].mxu0 %v1011
        %v1047 = vpop.f32.mrb[0].mxu0
        %v1048 = vadd.f32 %v971, %v1047
        %v1049 = vpop.f32.mrb[0].mxu0
        %v1050 = vpop.f32.mrb[0].mxu0
        %v1051 = vpop.f32.mrb[0].mxu0
        %1052 = vdwg.mxu0
        %v1053 = vld [vmem:[#allocation8] sm:$0x1]
        %v1054 = vld [vmem:[#allocation10] sm:$0xff]
        %v1055 = vadd.f32 %v1048, %v1054
        %v1057 = vrot.slane %v1055, 7
        %vm1059 = vcmask 1040384
        %v1060 = vsel %vm1059, %v1053, %v1057
        %v1061 = vld [vmem:[#allocation11] sm:$0xf]
        %v1062 = vld [vmem:[#allocation11 + $0x4] sm:$0xf]
        %v1063 = vld [vmem:[#allocation11 + $0x8] sm:$0xf]
        %v1064 = vld [vmem:[#allocation11 + $0xc] sm:$0xf]
        %v1065 = vpack.c.bf16 %v1057, %v1060
        %v1066 = vld [vmem:[#allocation13] sm:$0x1]
        %v1068 = vlaneseq
        %v1069 = vshrl.u32 %v1068, 7
        %v1070 = vsub.s32 0, %v1069
        %v1071 = vrot.slane %v1066, %v1070
        %v1077 = vunpack.c.l.b16 %v1061
        %v1078 = vunpack.c.l.b16 %v1062
        %v1079 = vunpack.c.l.b16 %v1063
        %v1080 = vunpack.c.l.b16 %v1064
        %v1081 = vpack.c.b16 %v1078, %v1077
        %v1082 = vpack.c.b16 %v1080, %v1079
        %vm1085 = vcmask 261120
        %v1087 = vsel %vm1085, %v1065, 0
        %1089 = vmatprep.subr.bf16.mxu0 0
        %1090 = vmatpush1.bf16.msra.mxu0 %v1081
        %1091 = vmatprep.subr.bf16.mxu0 0
        %1092 = vmatpush1.bf16.msra.mxu0 %v1082
        %1093 = vmatprep.subr.bf16.mxu0 0
        %1094 = vmatpush1.bf16.msra.mxu0 0
        %1095 = vmatprep.subr.bf16.mxu0 0
        %1096 = vmatpush1.bf16.msra.mxu0 0
        %1097 = vmatprep.subr.bf16.mxu0 0
        %1098 = vmatpush1.bf16.msra.mxu0 0
        %1099 = vmatprep.subr.bf16.mxu0 0
        %1100 = vmatpush1.bf16.msra.mxu0 0
        %1101 = vmatprep.subr.bf16.mxu0 0
        %1102 = vmatpush1.bf16.msra.mxu0 0
        %1103 = vmatprep.subr.bf16.mxu0 0
        %1104 = vmatpush1.bf16.msra.mxu0 0
        %1105 = vmatprep.subr.bf16.mxu0 0
        %1106 = vmatpush1.bf16.msra.mxu0 0
        %1107 = vmatprep.subr.bf16.mxu0 0
        %1108 = vmatpush1.bf16.msra.mxu0 0
        %1109 = vmatprep.subr.bf16.mxu0 0
        %1110 = vmatpush1.bf16.msra.mxu0 0
        %1111 = vmatprep.subr.bf16.mxu0 0
        %1112 = vmatpush1.bf16.msra.mxu0 0
        %1113 = vmatprep.subr.bf16.mxu0 0
        %1114 = vmatpush1.bf16.msra.mxu0 0
        %1115 = vmatprep.subr.bf16.mxu0 0
        %1116 = vmatpush1.bf16.msra.mxu0 0
        %1117 = vmatprep.subr.bf16.mxu0 0
        %1118 = vmatpush1.bf16.msra.mxu0 0
        %1119 = vmatprep.subr.bf16.mxu0 0
        %1120 = vmatpush1.bf16.msra.mxu0 0
        %1121 = vmatprep.mubr.bf16.mxu0 0
        %1122 = vmatmul.mubr.bf16.gmra.mrb[0].mxu0 %v1087
        %v1123 = vpop.f32.mrb[0].mxu0
        %v1124 = vadd.f32 %v1071, %v1123
        %v1125 = vpop.f32.mrb[0].mxu0
        %v1126 = vpop.f32.mrb[0].mxu0
        %v1127 = vadd.f32 %v1071, %v1126
        %v1128 = vpop.f32.mrb[0].mxu0
        %1129 = vdwg.mxu0
        %v1130 = vmul.f32 %v1124, 0.35355338
        %v1131 = vmul.f32 %v1127, 0.35355338
        %v1132 = vpack.c.bf16 %v1131, %v1130
        %v1133 = vpack.c.bf16 %v1127, %v1124
        %1135 = vrot.lane.b32.xlu0 %v1133, 96
        %v1136 = vpop.permute.xlu0 %1135
        %vm1137 = vcmask 64512
        %v1139 = vsel %vm1137, %v1132, 0
        %v1142 = vsel %vm1137, %v1136, 0
        %1144 = vmatprep.subr.bf16.mxu0 0
        %1145 = vmatpush1.bf16.xpose.msra.mxu0 %v1142
        %1146 = vmatprep.subr.bf16.mxu0 0
        %1147 = vmatpush1.bf16.xpose.msra.mxu0 0
        %1148 = vmatprep.subr.bf16.mxu0 0
        %1149 = vmatpush1.bf16.xpose.msra.mxu0 0
        %1150 = vmatprep.subr.bf16.mxu0 0
        %1151 = vmatpush1.bf16.xpose.msra.mxu0 0
        %1152 = vmatprep.subr.bf16.mxu0 0
        %1153 = vmatpush1.bf16.xpose.msra.mxu0 0
        %1154 = vmatprep.subr.bf16.mxu0 0
        %1155 = vmatpush1.bf16.xpose.msra.mxu0 0
        %1156 = vmatprep.subr.bf16.mxu0 0
        %1157 = vmatpush1.bf16.xpose.msra.mxu0 0
        %1158 = vmatprep.subr.bf16.mxu0 0
        %1159 = vmatpush1.bf16.xpose.msra.mxu0 0
        %1160 = vmatprep.subr.bf16.mxu0 0
        %1161 = vmatpush1.bf16.xpose.msra.mxu0 0
        %1162 = vmatprep.subr.bf16.mxu0 0
        %1163 = vmatpush1.bf16.xpose.msra.mxu0 0
        %1164 = vmatprep.subr.bf16.mxu0 0
        %1165 = vmatpush1.bf16.xpose.msra.mxu0 0
        %1166 = vmatprep.subr.bf16.mxu0 0
        %1167 = vmatpush1.bf16.xpose.msra.mxu0 0
        %1168 = vmatprep.subr.bf16.mxu0 0
        %1169 = vmatpush1.bf16.xpose.msra.mxu0 0
        %1170 = vmatprep.subr.bf16.mxu0 0
        %1171 = vmatpush1.bf16.xpose.msra.mxu0 0
        %1172 = vmatprep.subr.bf16.mxu0 0
        %1173 = vmatpush1.bf16.xpose.msra.mxu0 0
        %1174 = vmatprep.subr.bf16.mxu0 0
        %1175 = vmatpush1.bf16.xpose.msra.mxu0 0
        %1176 = vmatprep.mubr.bf16.mxu0 0
        %1177 = vmatmul.mubr.bf16.gmra.mrb[0].mxu0 %v1139
        %v1178 = vpop.f32.mrb[0].mxu0
        %v1179 = vadd.f32 0.0, %v1178
        %v1180 = vpop.f32.mrb[0].mxu0
        %v1181 = vpop.f32.mrb[0].mxu0
        %v1182 = vadd.f32 0.0, %v1181
        %v1183 = vpop.f32.mrb[0].mxu0
        %1184 = vdwg.mxu0
        %vm1185 = vcmask 72704
        %v1186 = vsel %vm1185, %v1179, -inf
        %1187 = vmax.xlane.f32.xlu0 %v1186
        %v1188 = vpop.xlane.xlu0 %1187
        %vm1189 = vcmask 65536
        %v1190 = vsel %vm1189, %v1182, -inf
        %1191 = vmax.xlane.f32.xlu0 %v1190
        %v1192 = vpop.xlane.xlu0 %1191
        %v1193 = vsub.f32 %v1179, %v1188
        %v1194 = vsub.f32 %v1182, %v1192
        %v1195 = vmul.f32 %v1193, 1.442695
        %v1196 = vpow.pop %v1195
        %v1197 = vmul.f32 %v1194, 1.442695
        %v1198 = vpow.pop %v1197
        %v1199 = vsel %vm1185, %v1196, 0.0
        %1200 = vadd.xlane.f32.xlu0 %v1199
        %v1201 = vpop.xlane.xlu0 %1200
        %v1202 = vsel %vm1189, %v1198, 0.0
        %1203 = vadd.xlane.f32.xlu0 %v1202
        %v1204 = vpop.xlane.xlu0 %1203
        %v1205 = vrcp.pop %v1201
        %v1206 = vrcp.pop %v1204
        %v1207 = vmul.f32 %v1196, %v1205
        %v1208 = vmul.f32 %v1198, %v1206
        %v1209 = vpack.c.bf16 %v1208, %v1207
        %1210 = vrot.lane.b32.xlu0 %v1133, 64
        %v1211 = vpop.permute.xlu0 %1210
        %v1213 = vsel %vm1185, %v1209, 0
        %vm1215 = vcmask 1043456
        %vm1216 = vcmask 1044480
        %v1217 = vsel %vm1215, 4294967295, 65535
        %v1218 = vsel %vm1216, %v1217, 0
        %v1220 = vand.u32 %v1211, %v1218
        %1222 = vmatprep.subr.bf16.mxu0 0
        %1223 = vmatpush1.bf16.msra.mxu0 %v1220
        %1224 = vmatprep.subr.bf16.mxu0 0
        %1225 = vmatpush1.bf16.msra.mxu0 0
        %1226 = vmatprep.subr.bf16.mxu0 0
        %1227 = vmatpush1.bf16.msra.mxu0 0
        %1228 = vmatprep.subr.bf16.mxu0 0
        %1229 = vmatpush1.bf16.msra.mxu0 0
        %1230 = vmatprep.subr.bf16.mxu0 0
        %1231 = vmatpush1.bf16.msra.mxu0 0
        %1232 = vmatprep.subr.bf16.mxu0 0
        %1233 = vmatpush1.bf16.msra.mxu0 0
        %1234 = vmatprep.subr.bf16.mxu0 0
        %1235 = vmatpush1.bf16.msra.mxu0 0
        %1236 = vmatprep.subr.bf16.mxu0 0
        %1237 = vmatpush1.bf16.msra.mxu0 0
        %1238 = vmatprep.subr.bf16.mxu0 0
        %1239 = vmatpush1.bf16.msra.mxu0 0
        %1240 = vmatprep.subr.bf16.mxu0 0
        %1241 = vmatpush1.bf16.msra.mxu0 0
        %1242 = vmatprep.subr.bf16.mxu0 0
        %1243 = vmatpush1.bf16.msra.mxu0 0
        %1244 = vmatprep.subr.bf16.mxu0 0
        %1245 = vmatpush1.bf16.msra.mxu0 0
        %1246 = vmatprep.subr.bf16.mxu0 0
        %1247 = vmatpush1.bf16.msra.mxu0 0
        %1248 = vmatprep.subr.bf16.mxu0 0
        %1249 = vmatpush1.bf16.msra.mxu0 0
        %1250 = vmatprep.subr.bf16.mxu0 0
        %1251 = vmatpush1.bf16.msra.mxu0 0
        %1252 = vmatprep.subr.bf16.mxu0 0
        %1253 = vmatpush1.bf16.msra.mxu0 0
        %1254 = vmatprep.mubr.bf16.mxu0 0
        %1255 = vmatmul.mubr.bf16.gmra.mrb[0].mxu0 %v1213
        %v1256 = vpop.f32.mrb[0].mxu0
        %v1257 = vadd.f32 0.0, %v1256
        %v1258 = vpop.f32.mrb[0].mxu0
        %v1259 = vpop.f32.mrb[0].mxu0
        %v1260 = vadd.f32 0.0, %v1259
        %v1261 = vpop.f32.mrb[0].mxu0
        %1262 = vdwg.mxu0
        %1264 = vrot.lane.b32.xlu0 %v1132, 120
        %v1265 = vpop.permute.xlu0 %1264
        %1266 = vrot.lane.b32.xlu0 %v1133, 88
        %v1267 = vpop.permute.xlu0 %1266
        %v1269 = vsel %vm1137, %v1265, 0
        %v1272 = vsel %vm1137, %v1267, 0
        %1274 = vmatprep.subr.bf16.mxu0 0
        %1275 = vmatpush1.bf16.xpose.msra.mxu0 %v1272
        %1276 = vmatprep.subr.bf16.mxu0 0
        %1277 = vmatpush1.bf16.xpose.msra.mxu0 0
        %1278 = vmatprep.subr.bf16.mxu0 0
        %1279 = vmatpush1.bf16.xpose.msra.mxu0 0
        %1280 = vmatprep.subr.bf16.mxu0 0
        %1281 = vmatpush1.bf16.xpose.msra.mxu0 0
        %1282 = vmatprep.subr.bf16.mxu0 0
        %1283 = vmatpush1.bf16.xpose.msra.mxu0 0
        %1284 = vmatprep.subr.bf16.mxu0 0
        %1285 = vmatpush1.bf16.xpose.msra.mxu0 0
        %1286 = vmatprep.subr.bf16.mxu0 0
        %1287 = vmatpush1.bf16.xpose.msra.mxu0 0
        %1288 = vmatprep.subr.bf16.mxu0 0
        %1289 = vmatpush1.bf16.xpose.msra.mxu0 0
        %1290 = vmatprep.subr.bf16.mxu0 0
        %1291 = vmatpush1.bf16.xpose.msra.mxu0 0
        %1292 = vmatprep.subr.bf16.mxu0 0
        %1293 = vmatpush1.bf16.xpose.msra.mxu0 0
        %1294 = vmatprep.subr.bf16.mxu0 0
        %1295 = vmatpush1.bf16.xpose.msra.mxu0 0
        %1296 = vmatprep.subr.bf16.mxu0 0
        %1297 = vmatpush1.bf16.xpose.msra.mxu0 0
        %1298 = vmatprep.subr.bf16.mxu0 0
        %1299 = vmatpush1.bf16.xpose.msra.mxu0 0
        %1300 = vmatprep.subr.bf16.mxu0 0
        %1301 = vmatpush1.bf16.xpose.msra.mxu0 0
        %1302 = vmatprep.subr.bf16.mxu0 0
        %1303 = vmatpush1.bf16.xpose.msra.mxu0 0
        %1304 = vmatprep.subr.bf16.mxu0 0
        %1305 = vmatpush1.bf16.xpose.msra.mxu0 0
        %1306 = vmatprep.mubr.bf16.mxu0 0
        %1307 = vmatmul.mubr.bf16.gmra.mrb[0].mxu0 %v1269
        %v1308 = vpop.f32.mrb[0].mxu0
        %v1309 = vadd.f32 0.0, %v1308
        %v1310 = vpop.f32.mrb[0].mxu0
        %v1311 = vpop.f32.mrb[0].mxu0
        %v1312 = vadd.f32 0.0, %v1311
        %v1313 = vpop.f32.mrb[0].mxu0
        %1314 = vdwg.mxu0
        %v1315 = vsel %vm1185, %v1309, -inf
        %1316 = vmax.xlane.f32.xlu0 %v1315
        %v1317 = vpop.xlane.xlu0 %1316
        %v1318 = vsel %vm1189, %v1312, -inf
        %1319 = vmax.xlane.f32.xlu0 %v1318
        %v1320 = vpop.xlane.xlu0 %1319
        %v1321 = vsub.f32 %v1309, %v1317
        %v1322 = vsub.f32 %v1312, %v1320
        %v1323 = vmul.f32 %v1321, 1.442695
        %v1324 = vpow.pop %v1323
        %v1325 = vmul.f32 %v1322, 1.442695
        %v1326 = vpow.pop %v1325
        %v1327 = vsel %vm1185, %v1324, 0.0
        %1328 = vadd.xlane.f32.xlu0 %v1327
        %v1329 = vpop.xlane.xlu0 %1328
        %v1330 = vsel %vm1189, %v1326, 0.0
        %1331 = vadd.xlane.f32.xlu0 %v1330
        %v1332 = vpop.xlane.xlu0 %1331
        %v1333 = vrcp.pop %v1329
        %v1334 = vrcp.pop %v1332
        %v1335 = vmul.f32 %v1324, %v1333
        %v1336 = vmul.f32 %v1326, %v1334
        %v1337 = vpack.c.bf16 %v1336, %v1335
        %1338 = vrot.lane.b32.xlu0 %v1133, 56
        %v1339 = vpop.permute.xlu0 %1338
        %v1341 = vsel %vm1185, %v1337, 0
        %v1344 = vand.u32 %v1339, %v1218
        %1346 = vmatprep.subr.bf16.mxu0 0
        %1347 = vmatpush1.bf16.msra.mxu0 %v1344
        %1348 = vmatprep.subr.bf16.mxu0 0
        %1349 = vmatpush1.bf16.msra.mxu0 0
        %1350 = vmatprep.subr.bf16.mxu0 0
        %1351 = vmatpush1.bf16.msra.mxu0 0
        %1352 = vmatprep.subr.bf16.mxu0 0
        %1353 = vmatpush1.bf16.msra.mxu0 0
        %1354 = vmatprep.subr.bf16.mxu0 0
        %1355 = vmatpush1.bf16.msra.mxu0 0
        %1356 = vmatprep.subr.bf16.mxu0 0
        %1357 = vmatpush1.bf16.msra.mxu0 0
        %1358 = vmatprep.subr.bf16.mxu0 0
        %1359 = vmatpush1.bf16.msra.mxu0 0
        %1360 = vmatprep.subr.bf16.mxu0 0
        %1361 = vmatpush1.bf16.msra.mxu0 0
        %1362 = vmatprep.subr.bf16.mxu0 0
        %1363 = vmatpush1.bf16.msra.mxu0 0
        %1364 = vmatprep.subr.bf16.mxu0 0
        %1365 = vmatpush1.bf16.msra.mxu0 0
        %1366 = vmatprep.subr.bf16.mxu0 0
        %1367 = vmatpush1.bf16.msra.mxu0 0
        %1368 = vmatprep.subr.bf16.mxu0 0
        %1369 = vmatpush1.bf16.msra.mxu0 0
        %1370 = vmatprep.subr.bf16.mxu0 0
        %1371 = vmatpush1.bf16.msra.mxu0 0
        %1372 = vmatprep.subr.bf16.mxu0 0
        %1373 = vmatpush1.bf16.msra.mxu0 0
        %1374 = vmatprep.subr.bf16.mxu0 0
        %1375 = vmatpush1.bf16.msra.mxu0 0
        %1376 = vmatprep.subr.bf16.mxu0 0
        %1377 = vmatpush1.bf16.msra.mxu0 0
        %1378 = vmatprep.mubr.bf16.mxu0 0
        %1379 = vmatmul.mubr.bf16.gmra.mrb[0].mxu0 %v1341
        %v1380 = vpop.f32.mrb[0].mxu0
        %v1381 = vadd.f32 0.0, %v1380
        %v1382 = vpop.f32.mrb[0].mxu0
        %v1383 = vpop.f32.mrb[0].mxu0
        %v1384 = vadd.f32 0.0, %v1383
        %v1385 = vpop.f32.mrb[0].mxu0
        %1386 = vdwg.mxu0
        %1387 = vrot.lane.b32.xlu0 %v1132, 112
        %v1388 = vpop.permute.xlu0 %1387
        %1389 = vrot.lane.b32.xlu0 %v1133, 80
        %v1390 = vpop.permute.xlu0 %1389
        %v1392 = vsel %vm1137, %v1388, 0
        %v1395 = vsel %vm1137, %v1390, 0
        %1397 = vmatprep.subr.bf16.mxu0 0
        %1398 = vmatpush1.bf16.xpose.msra.mxu0 %v1395
        %1399 = vmatprep.subr.bf16.mxu0 0
        %1400 = vmatpush1.bf16.xpose.msra.mxu0 0
        %1401 = vmatprep.subr.bf16.mxu0 0
        %1402 = vmatpush1.bf16.xpose.msra.mxu0 0
        %1403 = vmatprep.subr.bf16.mxu0 0
        %1404 = vmatpush1.bf16.xpose.msra.mxu0 0
        %1405 = vmatprep.subr.bf16.mxu0 0
        %1406 = vmatpush1.bf16.xpose.msra.mxu0 0
        %1407 = vmatprep.subr.bf16.mxu0 0
        %1408 = vmatpush1.bf16.xpose.msra.mxu0 0
        %1409 = vmatprep.subr.bf16.mxu0 0
        %1410 = vmatpush1.bf16.xpose.msra.mxu0 0
        %1411 = vmatprep.subr.bf16.mxu0 0
        %1412 = vmatpush1.bf16.xpose.msra.mxu0 0
        %1413 = vmatprep.subr.bf16.mxu0 0
        %1414 = vmatpush1.bf16.xpose.msra.mxu0 0
        %1415 = vmatprep.subr.bf16.mxu0 0
        %1416 = vmatpush1.bf16.xpose.msra.mxu0 0
        %1417 = vmatprep.subr.bf16.mxu0 0
        %1418 = vmatpush1.bf16.xpose.msra.mxu0 0
        %1419 = vmatprep.subr.bf16.mxu0 0
        %1420 = vmatpush1.bf16.xpose.msra.mxu0 0
        %1421 = vmatprep.subr.bf16.mxu0 0
        %1422 = vmatpush1.bf16.xpose.msra.mxu0 0
        %1423 = vmatprep.subr.bf16.mxu0 0
        %1424 = vmatpush1.bf16.xpose.msra.mxu0 0
        %1425 = vmatprep.subr.bf16.mxu0 0
        %1426 = vmatpush1.bf16.xpose.msra.mxu0 0
        %1427 = vmatprep.subr.bf16.mxu0 0
        %1428 = vmatpush1.bf16.xpose.msra.mxu0 0
        %1429 = vmatprep.mubr.bf16.mxu0 0
        %1430 = vmatmul.mubr.bf16.gmra.mrb[0].mxu0 %v1392
        %v1431 = vpop.f32.mrb[0].mxu0
        %v1432 = vadd.f32 0.0, %v1431
        %v1433 = vpop.f32.mrb[0].mxu0
        %v1434 = vpop.f32.mrb[0].mxu0
        %v1435 = vadd.f32 0.0, %v1434
        %v1436 = vpop.f32.mrb[0].mxu0
        %1437 = vdwg.mxu0
        %v1438 = vsel %vm1185, %v1432, -inf
        %1439 = vmax.xlane.f32.xlu0 %v1438
        %v1440 = vpop.xlane.xlu0 %1439
        %v1441 = vsel %vm1189, %v1435, -inf
        %1442 = vmax.xlane.f32.xlu0 %v1441
        %v1443 = vpop.xlane.xlu0 %1442
        %v1444 = vsub.f32 %v1432, %v1440
        %v1445 = vsub.f32 %v1435, %v1443
        %v1446 = vmul.f32 %v1444, 1.442695
        %v1447 = vpow.pop %v1446
        %v1448 = vmul.f32 %v1445, 1.442695
        %v1449 = vpow.pop %v1448
        %v1450 = vsel %vm1185, %v1447, 0.0
        %1451 = vadd.xlane.f32.xlu0 %v1450
        %v1452 = vpop.xlane.xlu0 %1451
        %v1453 = vsel %vm1189, %v1449, 0.0
        %1454 = vadd.xlane.f32.xlu0 %v1453
        %v1455 = vpop.xlane.xlu0 %1454
        %v1456 = vrcp.pop %v1452
        %v1457 = vrcp.pop %v1455
        %v1458 = vmul.f32 %v1447, %v1456
        %v1459 = vmul.f32 %v1449, %v1457
        %v1460 = vpack.c.bf16 %v1459, %v1458
        %1461 = vrot.lane.b32.xlu0 %v1133, 48
        %v1462 = vpop.permute.xlu0 %1461
        %v1464 = vsel %vm1185, %v1460, 0
        %v1467 = vand.u32 %v1462, %v1218
        %1469 = vmatprep.subr.bf16.mxu0 0
        %1470 = vmatpush1.bf16.msra.mxu0 %v1467
        %1471 = vmatprep.subr.bf16.mxu0 0
        %1472 = vmatpush1.bf16.msra.mxu0 0
        %1473 = vmatprep.subr.bf16.mxu0 0
        %1474 = vmatpush1.bf16.msra.mxu0 0
        %1475 = vmatprep.subr.bf16.mxu0 0
        %1476 = vmatpush1.bf16.msra.mxu0 0
        %1477 = vmatprep.subr.bf16.mxu0 0
        %1478 = vmatpush1.bf16.msra.mxu0 0
        %1479 = vmatprep.subr.bf16.mxu0 0
        %1480 = vmatpush1.bf16.msra.mxu0 0
        %1481 = vmatprep.subr.bf16.mxu0 0
        %1482 = vmatpush1.bf16.msra.mxu0 0
        %1483 = vmatprep.subr.bf16.mxu0 0
        %1484 = vmatpush1.bf16.msra.mxu0 0
        %1485 = vmatprep.subr.bf16.mxu0 0
        %1486 = vmatpush1.bf16.msra.mxu0 0
        %1487 = vmatprep.subr.bf16.mxu0 0
        %1488 = vmatpush1.bf16.msra.mxu0 0
        %1489 = vmatprep.subr.bf16.mxu0 0
        %1490 = vmatpush1.bf16.msra.mxu0 0
        %1491 = vmatprep.subr.bf16.mxu0 0
        %1492 = vmatpush1.bf16.msra.mxu0 0
        %1493 = vmatprep.subr.bf16.mxu0 0
        %1494 = vmatpush1.bf16.msra.mxu0 0
        %1495 = vmatprep.subr.bf16.mxu0 0
        %1496 = vmatpush1.bf16.msra.mxu0 0
        %1497 = vmatprep.subr.bf16.mxu0 0
        %1498 = vmatpush1.bf16.msra.mxu0 0
        %1499 = vmatprep.subr.bf16.mxu0 0
        %1500 = vmatpush1.bf16.msra.mxu0 0
        %1501 = vmatprep.mubr.bf16.mxu0 0
        %1502 = vmatmul.mubr.bf16.gmra.mrb[0].mxu0 %v1464
        %v1503 = vpop.f32.mrb[0].mxu0
        %v1504 = vadd.f32 0.0, %v1503
        %v1505 = vpop.f32.mrb[0].mxu0
        %v1506 = vpop.f32.mrb[0].mxu0
        %v1507 = vadd.f32 0.0, %v1506
        %v1508 = vpop.f32.mrb[0].mxu0
        %1509 = vdwg.mxu0
        %1510 = vrot.lane.b32.xlu0 %v1132, 104
        %v1511 = vpop.permute.xlu0 %1510
        %1512 = vrot.lane.b32.xlu0 %v1133, 72
        %v1513 = vpop.permute.xlu0 %1512
        %v1515 = vsel %vm1137, %v1511, 0
        %v1518 = vsel %vm1137, %v1513, 0
        %1520 = vmatprep.subr.bf16.mxu0 0
        %1521 = vmatpush1.bf16.xpose.msra.mxu0 %v1518
        %1522 = vmatprep.subr.bf16.mxu0 0
        %1523 = vmatpush1.bf16.xpose.msra.mxu0 0
        %1524 = vmatprep.subr.bf16.mxu0 0
        %1525 = vmatpush1.bf16.xpose.msra.mxu0 0
        %1526 = vmatprep.subr.bf16.mxu0 0
        %1527 = vmatpush1.bf16.xpose.msra.mxu0 0
        %1528 = vmatprep.subr.bf16.mxu0 0
        %1529 = vmatpush1.bf16.xpose.msra.mxu0 0
        %1530 = vmatprep.subr.bf16.mxu0 0
        %1531 = vmatpush1.bf16.xpose.msra.mxu0 0
        %1532 = vmatprep.subr.bf16.mxu0 0
        %1533 = vmatpush1.bf16.xpose.msra.mxu0 0
        %1534 = vmatprep.subr.bf16.mxu0 0
        %1535 = vmatpush1.bf16.xpose.msra.mxu0 0
        %1536 = vmatprep.subr.bf16.mxu0 0
        %1537 = vmatpush1.bf16.xpose.msra.mxu0 0
        %1538 = vmatprep.subr.bf16.mxu0 0
        %1539 = vmatpush1.bf16.xpose.msra.mxu0 0
        %1540 = vmatprep.subr.bf16.mxu0 0
        %1541 = vmatpush1.bf16.xpose.msra.mxu0 0
        %1542 = vmatprep.subr.bf16.mxu0 0
        %1543 = vmatpush1.bf16.xpose.msra.mxu0 0
        %1544 = vmatprep.subr.bf16.mxu0 0
        %1545 = vmatpush1.bf16.xpose.msra.mxu0 0
        %1546 = vmatprep.subr.bf16.mxu0 0
        %1547 = vmatpush1.bf16.xpose.msra.mxu0 0
        %1548 = vmatprep.subr.bf16.mxu0 0
        %1549 = vmatpush1.bf16.xpose.msra.mxu0 0
        %1550 = vmatprep.subr.bf16.mxu0 0
        %1551 = vmatpush1.bf16.xpose.msra.mxu0 0
        %1552 = vmatprep.mubr.bf16.mxu0 0
        %1553 = vmatmul.mubr.bf16.gmra.mrb[0].mxu0 %v1515
        %v1554 = vpop.f32.mrb[0].mxu0
        %v1555 = vadd.f32 0.0, %v1554
        %v1556 = vpop.f32.mrb[0].mxu0
        %v1557 = vpop.f32.mrb[0].mxu0
        %v1558 = vadd.f32 0.0, %v1557
        %v1559 = vpop.f32.mrb[0].mxu0
        %1560 = vdwg.mxu0
        %v1561 = vsel %vm1185, %v1555, -inf
        %1562 = vmax.xlane.f32.xlu0 %v1561
        %v1563 = vpop.xlane.xlu0 %1562
        %v1564 = vsel %vm1189, %v1558, -inf
        %1565 = vmax.xlane.f32.xlu0 %v1564
        %v1566 = vpop.xlane.xlu0 %1565
        %v1567 = vsub.f32 %v1555, %v1563
        %v1568 = vsub.f32 %v1558, %v1566
        %v1569 = vmul.f32 %v1567, 1.442695
        %v1570 = vpow.pop %v1569
        %v1571 = vmul.f32 %v1568, 1.442695
        %v1572 = vpow.pop %v1571
        %v1573 = vsel %vm1185, %v1570, 0.0
        %1574 = vadd.xlane.f32.xlu0 %v1573
        %v1575 = vpop.xlane.xlu0 %1574
        %v1576 = vsel %vm1189, %v1572, 0.0
        %1577 = vadd.xlane.f32.xlu0 %v1576
        %v1578 = vpop.xlane.xlu0 %1577
        %v1579 = vrcp.pop %v1575
        %v1580 = vrcp.pop %v1578
        %v1581 = vmul.f32 %v1570, %v1579
        %v1582 = vmul.f32 %v1572, %v1580
        %v1583 = vpack.c.bf16 %v1582, %v1581
        %1584 = vrot.lane.b32.xlu0 %v1133, 40
        %v1585 = vpop.permute.xlu0 %1584
        %v1587 = vsel %vm1185, %v1583, 0
        %v1590 = vand.u32 %v1585, %v1218
        %1592 = vmatprep.subr.bf16.mxu0 0
        %1593 = vmatpush1.bf16.msra.mxu0 %v1590
        %1594 = vmatprep.subr.bf16.mxu0 0
        %1595 = vmatpush1.bf16.msra.mxu0 0
        %1596 = vmatprep.subr.bf16.mxu0 0
        %1597 = vmatpush1.bf16.msra.mxu0 0
        %1598 = vmatprep.subr.bf16.mxu0 0
        %1599 = vmatpush1.bf16.msra.mxu0 0
        %1600 = vmatprep.subr.bf16.mxu0 0
        %1601 = vmatpush1.bf16.msra.mxu0 0
        %1602 = vmatprep.subr.bf16.mxu0 0
        %1603 = vmatpush1.bf16.msra.mxu0 0
        %1604 = vmatprep.subr.bf16.mxu0 0
        %1605 = vmatpush1.bf16.msra.mxu0 0
        %1606 = vmatprep.subr.bf16.mxu0 0
        %1607 = vmatpush1.bf16.msra.mxu0 0
        %1608 = vmatprep.subr.bf16.mxu0 0
        %1609 = vmatpush1.bf16.msra.mxu0 0
        %1610 = vmatprep.subr.bf16.mxu0 0
        %1611 = vmatpush1.bf16.msra.mxu0 0
        %1612 = vmatprep.subr.bf16.mxu0 0
        %1613 = vmatpush1.bf16.msra.mxu0 0
        %1614 = vmatprep.subr.bf16.mxu0 0
        %1615 = vmatpush1.bf16.msra.mxu0 0
        %1616 = vmatprep.subr.bf16.mxu0 0
        %1617 = vmatpush1.bf16.msra.mxu0 0
        %1618 = vmatprep.subr.bf16.mxu0 0
        %1619 = vmatpush1.bf16.msra.mxu0 0
        %1620 = vmatprep.subr.bf16.mxu0 0
        %1621 = vmatpush1.bf16.msra.mxu0 0
        %1622 = vmatprep.subr.bf16.mxu0 0
        %1623 = vmatpush1.bf16.msra.mxu0 0
        %1624 = vmatprep.mubr.bf16.mxu0 0
        %1625 = vmatmul.mubr.bf16.gmra.mrb[0].mxu0 %v1587
        %v1626 = vpop.f32.mrb[0].mxu0
        %v1627 = vadd.f32 0.0, %v1626
        %v1628 = vpop.f32.mrb[0].mxu0
        %v1629 = vpop.f32.mrb[0].mxu0
        %v1630 = vadd.f32 0.0, %v1629
        %v1631 = vpop.f32.mrb[0].mxu0
        %1632 = vdwg.mxu0
        %1635 = vrot.lane.b32.xlu0 %v1381, 8
        %v1636 = vpop.permute.xlu0 %1635
        %1637 = vrot.lane.b32.xlu0 %v1384, 8
        %v1638 = vpop.permute.xlu0 %1637
        %1643 = vrot.lane.b32.xlu0 %v1504, 16
        %v1644 = vpop.permute.xlu0 %1643
        %1645 = vrot.lane.b32.xlu0 %v1507, 16
        %v1646 = vpop.permute.xlu0 %1645
        %1651 = vrot.lane.b32.xlu0 %v1627, 24
        %v1652 = vpop.permute.xlu0 %1651
        %1653 = vrot.lane.b32.xlu0 %v1630, 24
        %v1654 = vpop.permute.xlu0 %1653
        %v1657 = vsel %vm1137, %v1257, %v1636
        %v1658 = vsel %vm1137, %v1260, %v1638
        %vm1659 = vcmask 130048
        %v1660 = vsel %vm1659, %v1657, %v1644
        %v1661 = vsel %vm1659, %v1658, %v1646
        %vm1662 = vcmask 195584
        %v1663 = vsel %vm1662, %v1660, %v1652
        %v1664 = vsel %vm1662, %v1661, %v1654
        %v1665 = vld [vmem:[#allocation14] sm:$0xf]
        %v1666 = vld [vmem:[#allocation14 + $0x4] sm:$0xf]
        %v1667 = vld [vmem:[#allocation14 + $0x8] sm:$0xf]
        %v1668 = vld [vmem:[#allocation14 + $0xc] sm:$0xf]
        %v1669 = vpack.c.bf16 %v1664, %v1663
        %v1670 = vld [vmem:[#allocation16] sm:$0x1]
        %v1672 = vlaneseq
        %v1673 = vshrl.u32 %v1672, 7
        %v1674 = vsub.s32 0, %v1673
        %v1675 = vrot.slane %v1670, %v1674
        %v1681 = vunpack.c.l.b16 %v1665
        %v1682 = vunpack.c.l.b16 %v1666
        %v1683 = vunpack.c.l.b16 %v1667
        %v1684 = vunpack.c.l.b16 %v1668
        %v1685 = vpack.c.b16 %v1682, %v1681
        %v1686 = vpack.c.b16 %v1684, %v1683
        %v1690 = vsel %vm1085, %v1669, 0
        %1692 = vmatprep.subr.bf16.mxu0 0
        %1693 = vmatpush1.bf16.msra.mxu0 %v1685
        %1694 = vmatprep.subr.bf16.mxu0 0
        %1695 = vmatpush1.bf16.msra.mxu0 %v1686
        %1696 = vmatprep.subr.bf16.mxu0 0
        %1697 = vmatpush1.bf16.msra.mxu0 0
        %1698 = vmatprep.subr.bf16.mxu0 0
        %1699 = vmatpush1.bf16.msra.mxu0 0
        %1700 = vmatprep.subr.bf16.mxu0 0
        %1701 = vmatpush1.bf16.msra.mxu0 0
        %1702 = vmatprep.subr.bf16.mxu0 0
        %1703 = vmatpush1.bf16.msra.mxu0 0
        %1704 = vmatprep.subr.bf16.mxu0 0
        %1705 = vmatpush1.bf16.msra.mxu0 0
        %1706 = vmatprep.subr.bf16.mxu0 0
        %1707 = vmatpush1.bf16.msra.mxu0 0
        %1708 = vmatprep.subr.bf16.mxu0 0
        %1709 = vmatpush1.bf16.msra.mxu0 0
        %1710 = vmatprep.subr.bf16.mxu0 0
        %1711 = vmatpush1.bf16.msra.mxu0 0
        %1712 = vmatprep.subr.bf16.mxu0 0
        %1713 = vmatpush1.bf16.msra.mxu0 0
        %1714 = vmatprep.subr.bf16.mxu0 0
        %1715 = vmatpush1.bf16.msra.mxu0 0
        %1716 = vmatprep.subr.bf16.mxu0 0
        %1717 = vmatpush1.bf16.msra.mxu0 0
        %1718 = vmatprep.subr.bf16.mxu0 0
        %1719 = vmatpush1.bf16.msra.mxu0 0
        %1720 = vmatprep.subr.bf16.mxu0 0
        %1721 = vmatpush1.bf16.msra.mxu0 0
        %1722 = vmatprep.subr.bf16.mxu0 0
        %1723 = vmatpush1.bf16.msra.mxu0 0
        %1724 = vmatprep.mubr.bf16.mxu0 0
        %1725 = vmatmul.mubr.bf16.gmra.mrb[0].mxu0 %v1690
        %v1726 = vpop.f32.mrb[0].mxu0
        %v1727 = vadd.f32 %v1675, %v1726
        %v1728 = vpop.f32.mrb[0].mxu0
        %v1729 = vpop.f32.mrb[0].mxu0
        %v1730 = vadd.f32 %v1675, %v1729
        %v1731 = vpop.f32.mrb[0].mxu0
        %1732 = vdwg.mxu0
        %v1733 = vadd.f32 %v1060, %v1727
        %v1734 = vadd.f32 %v1057, %v1730
        %v1735 = vld [vmem:[#allocation17] sm:$0x1]
        %v1736 = vld [vmem:[#allocation19] sm:$0x1]
        %v1737 = vsel %vm1085, %v1733, 0.0
        %1738 = vadd.xlane.f32.xlu0 %v1737
        %v1739 = vpop.xlane.xlu0 %1738
        %vm1740 = vcmask 253952
        %v1741 = vsel %vm1740, %v1734, 0.0
        %1742 = vadd.xlane.f32.xlu0 %v1741
        %v1743 = vpop.xlane.xlu0 %1742
        %v1744 = vrcp.pop 32.0
        %v1745 = vmul.f32 %v1739, %v1744
        %v1746 = vmul.f32 %v1743, %v1744
        %v1747 = vsub.f32 %v1733, %v1745
        %v1748 = vsub.f32 %v1734, %v1746
        %v1749 = vmul.f32 %v1747, %v1747
        %v1750 = vmul.f32 %v1748, %v1748
        %v1751 = vsel %vm1085, %v1749, 0.0
        %1752 = vadd.xlane.f32.xlu0 %v1751
        %v1753 = vpop.xlane.xlu0 %1752
        %v1754 = vsel %vm1740, %v1750, 0.0
        %1755 = vadd.xlane.f32.xlu0 %v1754
        %v1756 = vpop.xlane.xlu0 %1755
        %v1757 = vmul.f32 %v1753, %v1744
        %v1758 = vmul.f32 %v1756, %v1744
        %v1759 = vadd.f32 %v1757, 1e-05
        %v1760 = vadd.f32 %v1758, 1e-05
        %v1761 = vrsqrt.pop %v1759
        %v1762 = vrsqrt.pop %v1760
        %v1763 = vmul.f32 %v1747, %v1761
        %v1764 = vmul.f32 %v1748, %v1762
        %v1766 = vlaneseq
        %v1767 = vshrl.u32 %v1766, 7
        %v1768 = vsub.s32 0, %v1767
        %v1769 = vrot.slane %v1735, %v1768
        %v1771 = vmul.f32 %v1763, %v1769
        %v1772 = vmul.f32 %v1764, %v1769
        %v1774 = vlaneseq
        %v1775 = vshrl.u32 %v1774, 7
        %v1776 = vsub.s32 0, %v1775
        %v1777 = vrot.slane %v1736, %v1776
        %v1779 = vadd.f32 %v1771, %v1777
        %v1780 = vadd.f32 %v1772, %v1777
        %v1781 = vld [vmem:[#allocation20] sm:$0xff]
        %v1782 = vld [vmem:[#allocation20 + $0x8] sm:$0xff]
        %v1783 = vld [vmem:[#allocation20 + $0x10] sm:$0xff]
        %v1784 = vld [vmem:[#allocation20 + $0x18] sm:$0xff]
        %v1785 = vld [vmem:[#allocation20 + $0x20] sm:$0xff]
        %v1786 = vld [vmem:[#allocation20 + $0x28] sm:$0xff]
        %v1787 = vld [vmem:[#allocation20 + $0x30] sm:$0xff]
        %v1788 = vld [vmem:[#allocation20 + $0x38] sm:$0xff]
        %v1789 = vld [vmem:[#allocation20 + $0x40] sm:$0xff]
        %v1790 = vld [vmem:[#allocation20 + $0x48] sm:$0xff]
        %v1791 = vld [vmem:[#allocation20 + $0x50] sm:$0xff]
        %v1792 = vld [vmem:[#allocation20 + $0x58] sm:$0xff]
        %v1793 = vld [vmem:[#allocation20 + $0x60] sm:$0xff]
        %v1794 = vld [vmem:[#allocation20 + $0x68] sm:$0xff]
        %v1795 = vld [vmem:[#allocation20 + $0x70] sm:$0xff]
        %v1796 = vld [vmem:[#allocation20 + $0x78] sm:$0xff]
        %v1797 = vld [vmem:[#allocation20 + $0x80] sm:$0xff]
        %v1798 = vld [vmem:[#allocation20 + $0x88] sm:$0xff]
        %v1799 = vld [vmem:[#allocation20 + $0x90] sm:$0xff]
        %v1800 = vld [vmem:[#allocation20 + $0x98] sm:$0xff]
        %v1801 = vld [vmem:[#allocation20 + $0xa0] sm:$0xff]
        %v1802 = vld [vmem:[#allocation20 + $0xa8] sm:$0xff]
        %v1803 = vld [vmem:[#allocation20 + $0xb0] sm:$0xff]
        %v1804 = vld [vmem:[#allocation20 + $0xb8] sm:$0xff]
        %v1805 = vld [vmem:[#allocation20 + $0xc0] sm:$0xff]
        %v1806 = vld [vmem:[#allocation20 + $0xc8] sm:$0xff]
        %v1807 = vld [vmem:[#allocation20 + $0xd0] sm:$0xff]
        %v1808 = vld [vmem:[#allocation20 + $0xd8] sm:$0xff]
        %v1809 = vld [vmem:[#allocation20 + $0xe0] sm:$0xff]
        %v1810 = vld [vmem:[#allocation20 + $0xe8] sm:$0xff]
        %v1811 = vld [vmem:[#allocation20 + $0xf0] sm:$0xff]
        %v1812 = vld [vmem:[#allocation20 + $0xf8] sm:$0xff]
        %v1813 = vpack.c.bf16 %v1780, %v1779
        %v1814 = vld [vmem:[#allocation22] sm:$0xff]
        %v1815 = vld [vmem:[#allocation22 + $0x8] sm:$0xff]
        %v1818 = vlaneseq
        %v1819 = vshrl.u32 %v1818, 7
        %v1820 = vsub.s32 0, %v1819
        %v1821 = vrot.slane %v1814, %v1820
        %v1822 = vlaneseq
        %v1823 = vshrl.u32 %v1822, 7
        %v1824 = vsub.s32 1, %v1823
        %v1825 = vrot.slane %v1814, %v1824
        %v1826 = vlaneseq
        %v1827 = vshrl.u32 %v1826, 7
        %v1828 = vsub.s32 2, %v1827
        %v1829 = vrot.slane %v1814, %v1828
        %v1830 = vlaneseq
        %v1831 = vshrl.u32 %v1830, 7
        %v1832 = vsub.s32 3, %v1831
        %v1833 = vrot.slane %v1814, %v1832
        %v1834 = vlaneseq
        %v1835 = vshrl.u32 %v1834, 7
        %v1836 = vsub.s32 4, %v1835
        %v1837 = vrot.slane %v1814, %v1836
        %v1838 = vlaneseq
        %v1839 = vshrl.u32 %v1838, 7
        %v1840 = vsub.s32 5, %v1839
        %v1841 = vrot.slane %v1814, %v1840
        %v1842 = vlaneseq
        %v1843 = vshrl.u32 %v1842, 7
        %v1844 = vsub.s32 6, %v1843
        %v1845 = vrot.slane %v1814, %v1844
        %v1846 = vlaneseq
        %v1847 = vshrl.u32 %v1846, 7
        %v1848 = vsub.s32 7, %v1847
        %v1849 = vrot.slane %v1814, %v1848
        %v1850 = vlaneseq
        %v1851 = vshrl.u32 %v1850, 7
        %v1852 = vsub.s32 0, %v1851
        %v1853 = vrot.slane %v1815, %v1852
        %v1854 = vlaneseq
        %v1855 = vshrl.u32 %v1854, 7
        %v1856 = vsub.s32 1, %v1855
        %v1857 = vrot.slane %v1815, %v1856
        %v1858 = vlaneseq
        %v1859 = vshrl.u32 %v1858, 7
        %v1860 = vsub.s32 2, %v1859
        %v1861 = vrot.slane %v1815, %v1860
        %v1862 = vlaneseq
        %v1863 = vshrl.u32 %v1862, 7
        %v1864 = vsub.s32 3, %v1863
        %v1865 = vrot.slane %v1815, %v1864
        %v1866 = vlaneseq
        %v1867 = vshrl.u32 %v1866, 7
        %v1868 = vsub.s32 4, %v1867
        %v1869 = vrot.slane %v1815, %v1868
        %v1870 = vlaneseq
        %v1871 = vshrl.u32 %v1870, 7
        %v1872 = vsub.s32 5, %v1871
        %v1873 = vrot.slane %v1815, %v1872
        %v1874 = vlaneseq
        %v1875 = vshrl.u32 %v1874, 7
        %v1876 = vsub.s32 6, %v1875
        %v1877 = vrot.slane %v1815, %v1876
        %v1878 = vlaneseq
        %v1879 = vshrl.u32 %v1878, 7
        %v1880 = vsub.s32 7, %v1879
        %v1881 = vrot.slane %v1815, %v1880
        %v1930 = vunpack.c.l.b16 %v1781
        %v1931 = vunpack.c.h.b16 %v1781
        %v1932 = vunpack.c.l.b16 %v1782
        %v1933 = vunpack.c.h.b16 %v1782
        %v1934 = vunpack.c.l.b16 %v1783
        %v1935 = vunpack.c.h.b16 %v1783
        %v1936 = vunpack.c.l.b16 %v1784
        %v1937 = vunpack.c.h.b16 %v1784
        %v1938 = vunpack.c.l.b16 %v1785
        %v1939 = vunpack.c.h.b16 %v1785
        %v1940 = vunpack.c.l.b16 %v1786
        %v1941 = vunpack.c.h.b16 %v1786
        %v1942 = vunpack.c.l.b16 %v1787
        %v1943 = vunpack.c.h.b16 %v1787
        %v1944 = vunpack.c.l.b16 %v1788
        %v1945 = vunpack.c.h.b16 %v1788
        %v1946 = vunpack.c.l.b16 %v1789
        %v1947 = vunpack.c.h.b16 %v1789
        %v1948 = vunpack.c.l.b16 %v1790
        %v1949 = vunpack.c.h.b16 %v1790
        %v1950 = vunpack.c.l.b16 %v1791
        %v1951 = vunpack.c.h.b16 %v1791
        %v1952 = vunpack.c.l.b16 %v1792
        %v1953 = vunpack.c.h.b16 %v1792
        %v1954 = vunpack.c.l.b16 %v1793
        %v1955 = vunpack.c.h.b16 %v1793
        %v1956 = vunpack.c.l.b16 %v1794
        %v1957 = vunpack.c.h.b16 %v1794
        %v1958 = vunpack.c.l.b16 %v1795
        %v1959 = vunpack.c.h.b16 %v1795
        %v1960 = vunpack.c.l.b16 %v1796
        %v1961 = vunpack.c.h.b16 %v1796
        %v1962 = vunpack.c.l.b16 %v1797
        %v1963 = vunpack.c.h.b16 %v1797
        %v1964 = vunpack.c.l.b16 %v1798
        %v1965 = vunpack.c.h.b16 %v1798
        %v1966 = vunpack.c.l.b16 %v1799
        %v1967 = vunpack.c.h.b16 %v1799
        %v1968 = vunpack.c.l.b16 %v1800
        %v1969 = vunpack.c.h.b16 %v1800
        %v1970 = vunpack.c.l.b16 %v1801
        %v1971 = vunpack.c.h.b16 %v1801
        %v1972 = vunpack.c.l.b16 %v1802
        %v1973 = vunpack.c.h.b16 %v1802
        %v1974 = vunpack.c.l.b16 %v1803
        %v1975 = vunpack.c.h.b16 %v1803
        %v1976 = vunpack.c.l.b16 %v1804
        %v1977 = vunpack.c.h.b16 %v1804
        %v1978 = vunpack.c.l.b16 %v1805
        %v1979 = vunpack.c.h.b16 %v1805
        %v1980 = vunpack.c.l.b16 %v1806
        %v1981 = vunpack.c.h.b16 %v1806
        %v1982 = vunpack.c.l.b16 %v1807
        %v1983 = vunpack.c.h.b16 %v1807
        %v1984 = vunpack.c.l.b16 %v1808
        %v1985 = vunpack.c.h.b16 %v1808
        %v1986 = vunpack.c.l.b16 %v1809
        %v1987 = vunpack.c.h.b16 %v1809
        %v1988 = vunpack.c.l.b16 %v1810
        %v1989 = vunpack.c.h.b16 %v1810
        %v1990 = vunpack.c.l.b16 %v1811
        %v1991 = vunpack.c.h.b16 %v1811
        %v1992 = vunpack.c.l.b16 %v1812
        %v1993 = vunpack.c.h.b16 %v1812
        %v1994 = vpack.c.b16 %v1946, %v1930
        %v1995 = vpack.c.b16 %v1947, %v1931
        %v1996 = vpack.c.b16 %v1948, %v1932
        %v1997 = vpack.c.b16 %v1949, %v1933
        %v1998 = vpack.c.b16 %v1950, %v1934
        %v1999 = vpack.c.b16 %v1951, %v1935
        %v2000 = vpack.c.b16 %v1952, %v1936
        %v2001 = vpack.c.b16 %v1953, %v1937
        %v2002 = vpack.c.b16 %v1954, %v1938
        %v2003 = vpack.c.b16 %v1955, %v1939
        %v2004 = vpack.c.b16 %v1956, %v1940
        %v2005 = vpack.c.b16 %v1957, %v1941
        %v2006 = vpack.c.b16 %v1958, %v1942
        %v2007 = vpack.c.b16 %v1959, %v1943
        %v2008 = vpack.c.b16 %v1960, %v1944
        %v2009 = vpack.c.b16 %v1961, %v1945
        %v2010 = vpack.c.b16 %v1978, %v1962
        %v2011 = vpack.c.b16 %v1979, %v1963
        %v2012 = vpack.c.b16 %v1980, %v1964
        %v2013 = vpack.c.b16 %v1981, %v1965
        %v2014 = vpack.c.b16 %v1982, %v1966
        %v2015 = vpack.c.b16 %v1983, %v1967
        %v2016 = vpack.c.b16 %v1984, %v1968
        %v2017 = vpack.c.b16 %v1985, %v1969
        %v2018 = vpack.c.b16 %v1986, %v1970
        %v2019 = vpack.c.b16 %v1987, %v1971
        %v2020 = vpack.c.b16 %v1988, %v1972
        %v2021 = vpack.c.b16 %v1989, %v1973
        %v2022 = vpack.c.b16 %v1990, %v1974
        %v2023 = vpack.c.b16 %v1991, %v1975
        %v2024 = vpack.c.b16 %v1992, %v1976
        %v2025 = vpack.c.b16 %v1993, %v1977
        %v2059 = vsel %vm1085, %v1813, 0
        %2061 = vmatprep.subr.bf16.mxu0 %v1995
        %2062 = vmatpush1.bf16.msra.mxu0 %v1994
        %2063 = vmatprep.subr.bf16.mxu0 %v2011
        %2064 = vmatpush1.bf16.msra.mxu0 %v2010
        %2065 = vmatprep.subr.bf16.mxu0 0
        %2066 = vmatpush1.bf16.msra.mxu0 0
        %2067 = vmatprep.subr.bf16.mxu0 0
        %2068 = vmatpush1.bf16.msra.mxu0 0
        %2069 = vmatprep.subr.bf16.mxu0 0
        %2070 = vmatpush1.bf16.msra.mxu0 0
        %2071 = vmatprep.subr.bf16.mxu0 0
        %2072 = vmatpush1.bf16.msra.mxu0 0
        %2073 = vmatprep.subr.bf16.mxu0 0
        %2074 = vmatpush1.bf16.msra.mxu0 0
        %2075 = vmatprep.subr.bf16.mxu0 0
        %2076 = vmatpush1.bf16.msra.mxu0 0
        %2077 = vmatprep.subr.bf16.mxu0 0
        %2078 = vmatpush1.bf16.msra.mxu0 0
        %2079 = vmatprep.subr.bf16.mxu0 0
        %2080 = vmatpush1.bf16.msra.mxu0 0
        %2081 = vmatprep.subr.bf16.mxu0 0
        %2082 = vmatpush1.bf16.msra.mxu0 0
        %2083 = vmatprep.subr.bf16.mxu0 0
        %2084 = vmatpush1.bf16.msra.mxu0 0
        %2085 = vmatprep.subr.bf16.mxu0 0
        %2086 = vmatpush1.bf16.msra.mxu0 0
        %2087 = vmatprep.subr.bf16.mxu0 0
        %2088 = vmatpush1.bf16.msra.mxu0 0
        %2089 = vmatprep.subr.bf16.mxu0 0
        %2090 = vmatpush1.bf16.msra.mxu0 0
        %2091 = vmatprep.subr.bf16.mxu0 0
        %2092 = vmatpush1.bf16.msra.mxu0 0
        %2093 = vmatprep.mubr.bf16.mxu0 0
        %2094 = vmatmul.mubr.bf16.gmra.mrb[0].mxu0 %v2059
        %v2095 = vpop.f32.mrb[0].mxu0
        %v2096 = vadd.f32 %v1821, %v2095
        %v2097 = vpop.f32.mrb[0].mxu0
        %v2098 = vadd.f32 %v1825, %v2097
        %v2099 = vpop.f32.mrb[0].mxu0
        %v2100 = vadd.f32 %v1821, %v2099
        %v2101 = vpop.f32.mrb[0].mxu0
        %v2102 = vadd.f32 %v1825, %v2101
        %2103 = vdwg.mxu0
        %2104 = vmatprep.subr.bf16.mxu0 %v1997
        %2105 = vmatpush1.bf16.msra.mxu0 %v1996
        %2106 = vmatprep.subr.bf16.mxu0 %v2013
        %2107 = vmatpush1.bf16.msra.mxu0 %v2012
        %2108 = vmatprep.subr.bf16.mxu0 0
        %2109 = vmatpush1.bf16.msra.mxu0 0
        %2110 = vmatprep.subr.bf16.mxu0 0
        %2111 = vmatpush1.bf16.msra.mxu0 0
        %2112 = vmatprep.subr.bf16.mxu0 0
        %2113 = vmatpush1.bf16.msra.mxu0 0
        %2114 = vmatprep.subr.bf16.mxu0 0
        %2115 = vmatpush1.bf16.msra.mxu0 0
        %2116 = vmatprep.subr.bf16.mxu0 0
        %2117 = vmatpush1.bf16.msra.mxu0 0
        %2118 = vmatprep.subr.bf16.mxu0 0
        %2119 = vmatpush1.bf16.msra.mxu0 0
        %2120 = vmatprep.subr.bf16.mxu0 0
        %2121 = vmatpush1.bf16.msra.mxu0 0
        %2122 = vmatprep.subr.bf16.mxu0 0
        %2123 = vmatpush1.bf16.msra.mxu0 0
        %2124 = vmatprep.subr.bf16.mxu0 0
        %2125 = vmatpush1.bf16.msra.mxu0 0
        %2126 = vmatprep.subr.bf16.mxu0 0
        %2127 = vmatpush1.bf16.msra.mxu0 0
        %2128 = vmatprep.subr.bf16.mxu0 0
        %2129 = vmatpush1.bf16.msra.mxu0 0
        %2130 = vmatprep.subr.bf16.mxu0 0
        %2131 = vmatpush1.bf16.msra.mxu0 0
        %2132 = vmatprep.subr.bf16.mxu0 0
        %2133 = vmatpush1.bf16.msra.mxu0 0
        %2134 = vmatprep.subr.bf16.mxu0 0
        %2135 = vmatpush1.bf16.msra.mxu0 0
        %2136 = vmatprep.mubr.bf16.mxu0 0
        %2137 = vmatmul.mubr.bf16.gmra.mrb[0].mxu0 %v2059
        %v2138 = vpop.f32.mrb[0].mxu0
        %v2139 = vadd.f32 %v1829, %v2138
        %v2140 = vpop.f32.mrb[0].mxu0
        %v2141 = vadd.f32 %v1833, %v2140
        %v2142 = vpop.f32.mrb[0].mxu0
        %v2143 = vadd.f32 %v1829, %v2142
        %v2144 = vpop.f32.mrb[0].mxu0
        %v2145 = vadd.f32 %v1833, %v2144
        %2146 = vdwg.mxu0
        %2147 = vmatprep.subr.bf16.mxu0 %v1999
        %2148 = vmatpush1.bf16.msra.mxu0 %v1998
        %2149 = vmatprep.subr.bf16.mxu0 %v2015
        %2150 = vmatpush1.bf16.msra.mxu0 %v2014
        %2151 = vmatprep.subr.bf16.mxu0 0
        %2152 = vmatpush1.bf16.msra.mxu0 0
        %2153 = vmatprep.subr.bf16.mxu0 0
        %2154 = vmatpush1.bf16.msra.mxu0 0
        %2155 = vmatprep.subr.bf16.mxu0 0
        %2156 = vmatpush1.bf16.msra.mxu0 0
        %2157 = vmatprep.subr.bf16.mxu0 0
        %2158 = vmatpush1.bf16.msra.mxu0 0
        %2159 = vmatprep.subr.bf16.mxu0 0
        %2160 = vmatpush1.bf16.msra.mxu0 0
        %2161 = vmatprep.subr.bf16.mxu0 0
        %2162 = vmatpush1.bf16.msra.mxu0 0
        %2163 = vmatprep.subr.bf16.mxu0 0
        %2164 = vmatpush1.bf16.msra.mxu0 0
        %2165 = vmatprep.subr.bf16.mxu0 0
        %2166 = vmatpush1.bf16.msra.mxu0 0
        %2167 = vmatprep.subr.bf16.mxu0 0
        %2168 = vmatpush1.bf16.msra.mxu0 0
        %2169 = vmatprep.subr.bf16.mxu0 0
        %2170 = vmatpush1.bf16.msra.mxu0 0
        %2171 = vmatprep.subr.bf16.mxu0 0
        %2172 = vmatpush1.bf16.msra.mxu0 0
        %2173 = vmatprep.subr.bf16.mxu0 0
        %2174 = vmatpush1.bf16.msra.mxu0 0
        %2175 = vmatprep.subr.bf16.mxu0 0
        %2176 = vmatpush1.bf16.msra.mxu0 0
        %2177 = vmatprep.subr.bf16.mxu0 0
        %2178 = vmatpush1.bf16.msra.mxu0 0
        %2179 = vmatprep.mubr.bf16.mxu0 0
        %2180 = vmatmul.mubr.bf16.gmra.mrb[0].mxu0 %v2059
        %v2181 = vpop.f32.mrb[0].mxu0
        %v2182 = vadd.f32 %v1837, %v2181
        %v2183 = vpop.f32.mrb[0].mxu0
        %v2184 = vadd.f32 %v1841, %v2183
        %v2185 = vpop.f32.mrb[0].mxu0
        %v2186 = vadd.f32 %v1837, %v2185
        %v2187 = vpop.f32.mrb[0].mxu0
        %v2188 = vadd.f32 %v1841, %v2187
        %2189 = vdwg.mxu0
        %2190 = vmatprep.subr.bf16.mxu0 %v2001
        %2191 = vmatpush1.bf16.msra.mxu0 %v2000
        %2192 = vmatprep.subr.bf16.mxu0 %v2017
        %2193 = vmatpush1.bf16.msra.mxu0 %v2016
        %2194 = vmatprep.subr.bf16.mxu0 0
        %2195 = vmatpush1.bf16.msra.mxu0 0
        %2196 = vmatprep.subr.bf16.mxu0 0
        %2197 = vmatpush1.bf16.msra.mxu0 0
        %2198 = vmatprep.subr.bf16.mxu0 0
        %2199 = vmatpush1.bf16.msra.mxu0 0
        %2200 = vmatprep.subr.bf16.mxu0 0
        %2201 = vmatpush1.bf16.msra.mxu0 0
        %2202 = vmatprep.subr.bf16.mxu0 0
        %2203 = vmatpush1.bf16.msra.mxu0 0
        %2204 = vmatprep.subr.bf16.mxu0 0
        %2205 = vmatpush1.bf16.msra.mxu0 0
        %2206 = vmatprep.subr.bf16.mxu0 0
        %2207 = vmatpush1.bf16.msra.mxu0 0
        %2208 = vmatprep.subr.bf16.mxu0 0
        %2209 = vmatpush1.bf16.msra.mxu0 0
        %2210 = vmatprep.subr.bf16.mxu0 0
        %2211 = vmatpush1.bf16.msra.mxu0 0
        %2212 = vmatprep.subr.bf16.mxu0 0
        %2213 = vmatpush1.bf16.msra.mxu0 0
        %2214 = vmatprep.subr.bf16.mxu0 0
        %2215 = vmatpush1.bf16.msra.mxu0 0
        %2216 = vmatprep.subr.bf16.mxu0 0
        %2217 = vmatpush1.bf16.msra.mxu0 0
        %2218 = vmatprep.subr.bf16.mxu0 0
        %2219 = vmatpush1.bf16.msra.mxu0 0
        %2220 = vmatprep.subr.bf16.mxu0 0
        %2221 = vmatpush1.bf16.msra.mxu0 0
        %2222 = vmatprep.mubr.bf16.mxu0 0
        %2223 = vmatmul.mubr.bf16.gmra.mrb[0].mxu0 %v2059
        %v2224 = vpop.f32.mrb[0].mxu0
        %v2225 = vadd.f32 %v1845, %v2224
        %v2226 = vpop.f32.mrb[0].mxu0
        %v2227 = vadd.f32 %v1849, %v2226
        %v2228 = vpop.f32.mrb[0].mxu0
        %v2229 = vadd.f32 %v1845, %v2228
        %v2230 = vpop.f32.mrb[0].mxu0
        %v2231 = vadd.f32 %v1849, %v2230
        %2232 = vdwg.mxu0
        %2233 = vmatprep.subr.bf16.mxu0 %v2003
        %2234 = vmatpush1.bf16.msra.mxu0 %v2002
        %2235 = vmatprep.subr.bf16.mxu0 %v2019
        %2236 = vmatpush1.bf16.msra.mxu0 %v2018
        %2237 = vmatprep.subr.bf16.mxu0 0
        %2238 = vmatpush1.bf16.msra.mxu0 0
        %2239 = vmatprep.subr.bf16.mxu0 0
        %2240 = vmatpush1.bf16.msra.mxu0 0
        %2241 = vmatprep.subr.bf16.mxu0 0
        %2242 = vmatpush1.bf16.msra.mxu0 0
        %2243 = vmatprep.subr.bf16.mxu0 0
        %2244 = vmatpush1.bf16.msra.mxu0 0
        %2245 = vmatprep.subr.bf16.mxu0 0
        %2246 = vmatpush1.bf16.msra.mxu0 0
        %2247 = vmatprep.subr.bf16.mxu0 0
        %2248 = vmatpush1.bf16.msra.mxu0 0
        %2249 = vmatprep.subr.bf16.mxu0 0
        %2250 = vmatpush1.bf16.msra.mxu0 0
        %2251 = vmatprep.subr.bf16.mxu0 0
        %2252 = vmatpush1.bf16.msra.mxu0 0
        %2253 = vmatprep.subr.bf16.mxu0 0
        %2254 = vmatpush1.bf16.msra.mxu0 0
        %2255 = vmatprep.subr.bf16.mxu0 0
        %2256 = vmatpush1.bf16.msra.mxu0 0
        %2257 = vmatprep.subr.bf16.mxu0 0
        %2258 = vmatpush1.bf16.msra.mxu0 0
        %2259 = vmatprep.subr.bf16.mxu0 0
        %2260 = vmatpush1.bf16.msra.mxu0 0
        %2261 = vmatprep.subr.bf16.mxu0 0
        %2262 = vmatpush1.bf16.msra.mxu0 0
        %2263 = vmatprep.subr.bf16.mxu0 0
        %2264 = vmatpush1.bf16.msra.mxu0 0
        %2265 = vmatprep.mubr.bf16.mxu0 0
        %2266 = vmatmul.mubr.bf16.gmra.mrb[0].mxu0 %v2059
        %v2267 = vpop.f32.mrb[0].mxu0
        %v2268 = vadd.f32 %v1853, %v2267
        %v2269 = vpop.f32.mrb[0].mxu0
        %v2270 = vadd.f32 %v1857, %v2269
        %v2271 = vpop.f32.mrb[0].mxu0
        %v2272 = vadd.f32 %v1853, %v2271
        %v2273 = vpop.f32.mrb[0].mxu0
        %v2274 = vadd.f32 %v1857, %v2273
        %2275 = vdwg.mxu0
        %2276 = vmatprep.subr.bf16.mxu0 %v2005
        %2277 = vmatpush1.bf16.msra.mxu0 %v2004
        %2278 = vmatprep.subr.bf16.mxu0 %v2021
        %2279 = vmatpush1.bf16.msra.mxu0 %v2020
        %2280 = vmatprep.subr.bf16.mxu0 0
        %2281 = vmatpush1.bf16.msra.mxu0 0
        %2282 = vmatprep.subr.bf16.mxu0 0
        %2283 = vmatpush1.bf16.msra.mxu0 0
        %2284 = vmatprep.subr.bf16.mxu0 0
        %2285 = vmatpush1.bf16.msra.mxu0 0
        %2286 = vmatprep.subr.bf16.mxu0 0
        %2287 = vmatpush1.bf16.msra.mxu0 0
        %2288 = vmatprep.subr.bf16.mxu0 0
        %2289 = vmatpush1.bf16.msra.mxu0 0
        %2290 = vmatprep.subr.bf16.mxu0 0
        %2291 = vmatpush1.bf16.msra.mxu0 0
        %2292 = vmatprep.subr.bf16.mxu0 0
        %2293 = vmatpush1.bf16.msra.mxu0 0
        %2294 = vmatprep.subr.bf16.mxu0 0
        %2295 = vmatpush1.bf16.msra.mxu0 0
        %2296 = vmatprep.subr.bf16.mxu0 0
        %2297 = vmatpush1.bf16.msra.mxu0 0
        %2298 = vmatprep.subr.bf16.mxu0 0
        %2299 = vmatpush1.bf16.msra.mxu0 0
        %2300 = vmatprep.subr.bf16.mxu0 0
        %2301 = vmatpush1.bf16.msra.mxu0 0
        %2302 = vmatprep.subr.bf16.mxu0 0
        %2303 = vmatpush1.bf16.msra.mxu0 0
        %2304 = vmatprep.subr.bf16.mxu0 0
        %2305 = vmatpush1.bf16.msra.mxu0 0
        %2306 = vmatprep.subr.bf16.mxu0 0
        %2307 = vmatpush1.bf16.msra.mxu0 0
        %2308 = vmatprep.mubr.bf16.mxu0 0
        %2309 = vmatmul.mubr.bf16.gmra.mrb[0].mxu0 %v2059
        %v2310 = vpop.f32.mrb[0].mxu0
        %v2311 = vadd.f32 %v1861, %v2310
        %v2312 = vpop.f32.mrb[0].mxu0
        %v2313 = vadd.f32 %v1865, %v2312
        %v2314 = vpop.f32.mrb[0].mxu0
        %v2315 = vadd.f32 %v1861, %v2314
        %v2316 = vpop.f32.mrb[0].mxu0
        %v2317 = vadd.f32 %v1865, %v2316
        %2318 = vdwg.mxu0
        %2319 = vmatprep.subr.bf16.mxu0 %v2007
        %2320 = vmatpush1.bf16.msra.mxu0 %v2006
        %2321 = vmatprep.subr.bf16.mxu0 %v2023
        %2322 = vmatpush1.bf16.msra.mxu0 %v2022
        %2323 = vmatprep.subr.bf16.mxu0 0
        %2324 = vmatpush1.bf16.msra.mxu0 0
        %2325 = vmatprep.subr.bf16.mxu0 0
        %2326 = vmatpush1.bf16.msra.mxu0 0
        %2327 = vmatprep.subr.bf16.mxu0 0
        %2328 = vmatpush1.bf16.msra.mxu0 0
        %2329 = vmatprep.subr.bf16.mxu0 0
        %2330 = vmatpush1.bf16.msra.mxu0 0
        %2331 = vmatprep.subr.bf16.mxu0 0
        %2332 = vmatpush1.bf16.msra.mxu0 0
        %2333 = vmatprep.subr.bf16.mxu0 0
        %2334 = vmatpush1.bf16.msra.mxu0 0
        %2335 = vmatprep.subr.bf16.mxu0 0
        %2336 = vmatpush1.bf16.msra.mxu0 0
        %2337 = vmatprep.subr.bf16.mxu0 0
        %2338 = vmatpush1.bf16.msra.mxu0 0
        %2339 = vmatprep.subr.bf16.mxu0 0
        %2340 = vmatpush1.bf16.msra.mxu0 0
        %2341 = vmatprep.subr.bf16.mxu0 0
        %2342 = vmatpush1.bf16.msra.mxu0 0
        %2343 = vmatprep.subr.bf16.mxu0 0
        %2344 = vmatpush1.bf16.msra.mxu0 0
        %2345 = vmatprep.subr.bf16.mxu0 0
        %2346 = vmatpush1.bf16.msra.mxu0 0
        %2347 = vmatprep.subr.bf16.mxu0 0
        %2348 = vmatpush1.bf16.msra.mxu0 0
        %2349 = vmatprep.subr.bf16.mxu0 0
        %2350 = vmatpush1.bf16.msra.mxu0 0
        %2351 = vmatprep.mubr.bf16.mxu0 0
        %2352 = vmatmul.mubr.bf16.gmra.mrb[0].mxu0 %v2059
        %v2353 = vpop.f32.mrb[0].mxu0
        %v2354 = vadd.f32 %v1869, %v2353
        %v2355 = vpop.f32.mrb[0].mxu0
        %v2356 = vadd.f32 %v1873, %v2355
        %v2357 = vpop.f32.mrb[0].mxu0
        %v2358 = vadd.f32 %v1869, %v2357
        %v2359 = vpop.f32.mrb[0].mxu0
        %v2360 = vadd.f32 %v1873, %v2359
        %2361 = vdwg.mxu0
        %2362 = vmatprep.subr.bf16.mxu0 %v2009
        %2363 = vmatpush1.bf16.msra.mxu0 %v2008
        %2364 = vmatprep.subr.bf16.mxu0 %v2025
        %2365 = vmatpush1.bf16.msra.mxu0 %v2024
        %2366 = vmatprep.subr.bf16.mxu0 0
        %2367 = vmatpush1.bf16.msra.mxu0 0
        %2368 = vmatprep.subr.bf16.mxu0 0
        %2369 = vmatpush1.bf16.msra.mxu0 0
        %2370 = vmatprep.subr.bf16.mxu0 0
        %2371 = vmatpush1.bf16.msra.mxu0 0
        %2372 = vmatprep.subr.bf16.mxu0 0
        %2373 = vmatpush1.bf16.msra.mxu0 0
        %2374 = vmatprep.subr.bf16.mxu0 0
        %2375 = vmatpush1.bf16.msra.mxu0 0
        %2376 = vmatprep.subr.bf16.mxu0 0
        %2377 = vmatpush1.bf16.msra.mxu0 0
        %2378 = vmatprep.subr.bf16.mxu0 0
        %2379 = vmatpush1.bf16.msra.mxu0 0
        %2380 = vmatprep.subr.bf16.mxu0 0
        %2381 = vmatpush1.bf16.msra.mxu0 0
        %2382 = vmatprep.subr.bf16.mxu0 0
        %2383 = vmatpush1.bf16.msra.mxu0 0
        %2384 = vmatprep.subr.bf16.mxu0 0
        %2385 = vmatpush1.bf16.msra.mxu0 0
        %2386 = vmatprep.subr.bf16.mxu0 0
        %2387 = vmatpush1.bf16.msra.mxu0 0
        %2388 = vmatprep.subr.bf16.mxu0 0
        %2389 = vmatpush1.bf16.msra.mxu0 0
        %2390 = vmatprep.subr.bf16.mxu0 0
        %2391 = vmatpush1.bf16.msra.mxu0 0
        %2392 = vmatprep.subr.bf16.mxu0 0
        %2393 = vmatpush1.bf16.msra.mxu0 0
        %2394 = vmatprep.mubr.bf16.mxu0 0
        %2395 = vmatmul.mubr.bf16.gmra.mrb[0].mxu0 %v2059
        %v2396 = vpop.f32.mrb[0].mxu0
        %v2397 = vadd.f32 %v1877, %v2396
        %v2398 = vpop.f32.mrb[0].mxu0
        %v2399 = vadd.f32 %v1881, %v2398
        %v2400 = vpop.f32.mrb[0].mxu0
        %v2401 = vadd.f32 %v1877, %v2400
        %v2402 = vpop.f32.mrb[0].mxu0
        %v2403 = vadd.f32 %v1881, %v2402
        %2404 = vdwg.mxu0
        %v2405 = vmax.f32 %v2096, 0.0
        %v2406 = vmax.f32 %v2098, 0.0
        %v2407 = vmax.f32 %v2139, 0.0
        %v2408 = vmax.f32 %v2141, 0.0
        %v2409 = vmax.f32 %v2182, 0.0
        %v2410 = vmax.f32 %v2184, 0.0
        %v2411 = vmax.f32 %v2225, 0.0
        %v2412 = vmax.f32 %v2227, 0.0
        %v2413 = vmax.f32 %v2268, 0.0
        %v2414 = vmax.f32 %v2270, 0.0
        %v2415 = vmax.f32 %v2311, 0.0
        %v2416 = vmax.f32 %v2313, 0.0
        %v2417 = vmax.f32 %v2354, 0.0
        %v2418 = vmax.f32 %v2356, 0.0
        %v2419 = vmax.f32 %v2397, 0.0
        %v2420 = vmax.f32 %v2399, 0.0
        %v2421 = vmax.f32 %v2100, 0.0
        %v2422 = vmax.f32 %v2102, 0.0
        %v2423 = vmax.f32 %v2143, 0.0
        %v2424 = vmax.f32 %v2145, 0.0
        %v2425 = vmax.f32 %v2186, 0.0
        %v2426 = vmax.f32 %v2188, 0.0
        %v2427 = vmax.f32 %v2229, 0.0
        %v2428 = vmax.f32 %v2231, 0.0
        %v2429 = vmax.f32 %v2272, 0.0
        %v2430 = vmax.f32 %v2274, 0.0
        %v2431 = vmax.f32 %v2315, 0.0
        %v2432 = vmax.f32 %v2317, 0.0
        %v2433 = vmax.f32 %v2358, 0.0
        %v2434 = vmax.f32 %v2360, 0.0
        %v2435 = vmax.f32 %v2401, 0.0
        %v2436 = vmax.f32 %v2403, 0.0
        %v2437 = vld [vmem:[#allocation23] sm:$0xf]
        %v2438 = vld [vmem:[#allocation23 + $0x4] sm:$0xf]
        %v2439 = vld [vmem:[#allocation23 + $0x8] sm:$0xf]
        %v2440 = vld [vmem:[#allocation23 + $0xc] sm:$0xf]
        %v2441 = vld [vmem:[#allocation23 + $0x10] sm:$0xf]
        %v2442 = vld [vmem:[#allocation23 + $0x14] sm:$0xf]
        %v2443 = vld [vmem:[#allocation23 + $0x18] sm:$0xf]
        %v2444 = vld [vmem:[#allocation23 + $0x1c] sm:$0xf]
        %v2445 = vld [vmem:[#allocation23 + $0x20] sm:$0xf]
        %v2446 = vld [vmem:[#allocation23 + $0x24] sm:$0xf]
        %v2447 = vld [vmem:[#allocation23 + $0x28] sm:$0xf]
        %v2448 = vld [vmem:[#allocation23 + $0x2c] sm:$0xf]
        %v2449 = vld [vmem:[#allocation23 + $0x30] sm:$0xf]
        %v2450 = vld [vmem:[#allocation23 + $0x34] sm:$0xf]
        %v2451 = vld [vmem:[#allocation23 + $0x38] sm:$0xf]
        %v2452 = vld [vmem:[#allocation23 + $0x3c] sm:$0xf]
        %v2453 = vld [vmem:[#allocation23 + $0x40] sm:$0xf]
        %v2454 = vld [vmem:[#allocation23 + $0x44] sm:$0xf]
        %v2455 = vld [vmem:[#allocation23 + $0x48] sm:$0xf]
        %v2456 = vld [vmem:[#allocation23 + $0x4c] sm:$0xf]
        %v2457 = vld [vmem:[#allocation23 + $0x50] sm:$0xf]
        %v2458 = vld [vmem:[#allocation23 + $0x54] sm:$0xf]
        %v2459 = vld [vmem:[#allocation23 + $0x58] sm:$0xf]
        %v2460 = vld [vmem:[#allocation23 + $0x5c] sm:$0xf]
        %v2461 = vld [vmem:[#allocation23 + $0x60] sm:$0xf]
        %v2462 = vld [vmem:[#allocation23 + $0x64] sm:$0xf]
        %v2463 = vld [vmem:[#allocation23 + $0x68] sm:$0xf]
        %v2464 = vld [vmem:[#allocation23 + $0x6c] sm:$0xf]
        %v2465 = vld [vmem:[#allocation23 + $0x70] sm:$0xf]
        %v2466 = vld [vmem:[#allocation23 + $0x74] sm:$0xf]
        %v2467 = vld [vmem:[#allocation23 + $0x78] sm:$0xf]
        %v2468 = vld [vmem:[#allocation23 + $0x7c] sm:$0xf]
        %v2469 = vld [vmem:[#allocation23 + $0x80] sm:$0xf]
        %v2470 = vld [vmem:[#allocation23 + $0x84] sm:$0xf]
        %v2471 = vld [vmem:[#allocation23 + $0x88] sm:$0xf]
        %v2472 = vld [vmem:[#allocation23 + $0x8c] sm:$0xf]
        %v2473 = vld [vmem:[#allocation23 + $0x90] sm:$0xf]
        %v2474 = vld [vmem:[#allocation23 + $0x94] sm:$0xf]
        %v2475 = vld [vmem:[#allocation23 + $0x98] sm:$0xf]
        %v2476 = vld [vmem:[#allocation23 + $0x9c] sm:$0xf]
        %v2477 = vld [vmem:[#allocation23 + $0xa0] sm:$0xf]
        %v2478 = vld [vmem:[#allocation23 + $0xa4] sm:$0xf]
        %v2479 = vld [vmem:[#allocation23 + $0xa8] sm:$0xf]
        %v2480 = vld [vmem:[#allocation23 + $0xac] sm:$0xf]
        %v2481 = vld [vmem:[#allocation23 + $0xb0] sm:$0xf]
        %v2482 = vld [vmem:[#allocation23 + $0xb4] sm:$0xf]
        %v2483 = vld [vmem:[#allocation23 + $0xb8] sm:$0xf]
        %v2484 = vld [vmem:[#allocation23 + $0xbc] sm:$0xf]
        %v2485 = vld [vmem:[#allocation23 + $0xc0] sm:$0xf]
        %v2486 = vld [vmem:[#allocation23 + $0xc4] sm:$0xf]
        %v2487 = vld [vmem:[#allocation23 + $0xc8] sm:$0xf]
        %v2488 = vld [vmem:[#allocation23 + $0xcc] sm:$0xf]
        %v2489 = vld [vmem:[#allocation23 + $0xd0] sm:$0xf]
        %v2490 = vld [vmem:[#allocation23 + $0xd4] sm:$0xf]
        %v2491 = vld [vmem:[#allocation23 + $0xd8] sm:$0xf]
        %v2492 = vld [vmem:[#allocation23 + $0xdc] sm:$0xf]
        %v2493 = vld [vmem:[#allocation23 + $0xe0] sm:$0xf]
        %v2494 = vld [vmem:[#allocation23 + $0xe4] sm:$0xf]
        %v2495 = vld [vmem:[#allocation23 + $0xe8] sm:$0xf]
        %v2496 = vld [vmem:[#allocation23 + $0xec] sm:$0xf]
        %v2497 = vld [vmem:[#allocation23 + $0xf0] sm:$0xf]
        %v2498 = vld [vmem:[#allocation23 + $0xf4] sm:$0xf]
        %v2499 = vld [vmem:[#allocation23 + $0xf8] sm:$0xf]
        %v2500 = vld [vmem:[#allocation23 + $0xfc] sm:$0xf]
        %v2501 = vld [vmem:[#allocation23 + $0x100] sm:$0xf]
        %v2502 = vld [vmem:[#allocation23 + $0x104] sm:$0xf]
        %v2503 = vld [vmem:[#allocation23 + $0x108] sm:$0xf]
        %v2504 = vld [vmem:[#allocation23 + $0x10c] sm:$0xf]
        %v2505 = vld [vmem:[#allocation23 + $0x110] sm:$0xf]
        %v2506 = vld [vmem:[#allocation23 + $0x114] sm:$0xf]
        %v2507 = vld [vmem:[#allocation23 + $0x118] sm:$0xf]
        %v2508 = vld [vmem:[#allocation23 + $0x11c] sm:$0xf]
        %v2509 = vld [vmem:[#allocation23 + $0x120] sm:$0xf]
        %v2510 = vld [vmem:[#allocation23 + $0x124] sm:$0xf]
        %v2511 = vld [vmem:[#allocation23 + $0x128] sm:$0xf]
        %v2512 = vld [vmem:[#allocation23 + $0x12c] sm:$0xf]
        %v2513 = vld [vmem:[#allocation23 + $0x130] sm:$0xf]
        %v2514 = vld [vmem:[#allocation23 + $0x134] sm:$0xf]
        %v2515 = vld [vmem:[#allocation23 + $0x138] sm:$0xf]
        %v2516 = vld [vmem:[#allocation23 + $0x13c] sm:$0xf]
        %v2517 = vld [vmem:[#allocation23 + $0x140] sm:$0xf]
        %v2518 = vld [vmem:[#allocation23 + $0x144] sm:$0xf]
        %v2519 = vld [vmem:[#allocation23 + $0x148] sm:$0xf]
        %v2520 = vld [vmem:[#allocation23 + $0x14c] sm:$0xf]
        %v2521 = vld [vmem:[#allocation23 + $0x150] sm:$0xf]
        %v2522 = vld [vmem:[#allocation23 + $0x154] sm:$0xf]
        %v2523 = vld [vmem:[#allocation23 + $0x158] sm:$0xf]
        %v2524 = vld [vmem:[#allocation23 + $0x15c] sm:$0xf]
        %v2525 = vld [vmem:[#allocation23 + $0x160] sm:$0xf]
        %v2526 = vld [vmem:[#allocation23 + $0x164] sm:$0xf]
        %v2527 = vld [vmem:[#allocation23 + $0x168] sm:$0xf]
        %v2528 = vld [vmem:[#allocation23 + $0x16c] sm:$0xf]
        %v2529 = vld [vmem:[#allocation23 + $0x170] sm:$0xf]
        %v2530 = vld [vmem:[#allocation23 + $0x174] sm:$0xf]
        %v2531 = vld [vmem:[#allocation23 + $0x178] sm:$0xf]
        %v2532 = vld [vmem:[#allocation23 + $0x17c] sm:$0xf]
        %v2533 = vld [vmem:[#allocation23 + $0x180] sm:$0xf]
        %v2534 = vld [vmem:[#allocation23 + $0x184] sm:$0xf]
        %v2535 = vld [vmem:[#allocation23 + $0x188] sm:$0xf]
        %v2536 = vld [vmem:[#allocation23 + $0x18c] sm:$0xf]
        %v2537 = vld [vmem:[#allocation23 + $0x190] sm:$0xf]
        %v2538 = vld [vmem:[#allocation23 + $0x194] sm:$0xf]
        %v2539 = vld [vmem:[#allocation23 + $0x198] sm:$0xf]
        %v2540 = vld [vmem:[#allocation23 + $0x19c] sm:$0xf]
        %v2541 = vld [vmem:[#allocation23 + $0x1a0] sm:$0xf]
        %v2542 = vld [vmem:[#allocation23 + $0x1a4] sm:$0xf]
        %v2543 = vld [vmem:[#allocation23 + $0x1a8] sm:$0xf]
        %v2544 = vld [vmem:[#allocation23 + $0x1ac] sm:$0xf]
        %v2545 = vld [vmem:[#allocation23 + $0x1b0] sm:$0xf]
        %v2546 = vld [vmem:[#allocation23 + $0x1b4] sm:$0xf]
        %v2547 = vld [vmem:[#allocation23 + $0x1b8] sm:$0xf]
        %v2548 = vld [vmem:[#allocation23 + $0x1bc] sm:$0xf]
        %v2549 = vld [vmem:[#allocation23 + $0x1c0] sm:$0xf]
        %v2550 = vld [vmem:[#allocation23 + $0x1c4] sm:$0xf]
        %v2551 = vld [vmem:[#allocation23 + $0x1c8] sm:$0xf]
        %v2552 = vld [vmem:[#allocation23 + $0x1cc] sm:$0xf]
        %v2553 = vld [vmem:[#allocation23 + $0x1d0] sm:$0xf]
        %v2554 = vld [vmem:[#allocation23 + $0x1d4] sm:$0xf]
        %v2555 = vld [vmem:[#allocation23 + $0x1d8] sm:$0xf]
        %v2556 = vld [vmem:[#allocation23 + $0x1dc] sm:$0xf]
        %v2557 = vld [vmem:[#allocation23 + $0x1e0] sm:$0xf]
        %v2558 = vld [vmem:[#allocation23 + $0x1e4] sm:$0xf]
        %v2559 = vld [vmem:[#allocation23 + $0x1e8] sm:$0xf]
        %v2560 = vld [vmem:[#allocation23 + $0x1ec] sm:$0xf]
        %v2561 = vld [vmem:[#allocation23 + $0x1f0] sm:$0xf]
        %v2562 = vld [vmem:[#allocation23 + $0x1f4] sm:$0xf]
        %v2563 = vld [vmem:[#allocation23 + $0x1f8] sm:$0xf]
        %v2564 = vld [vmem:[#allocation23 + $0x1fc] sm:$0xf]
        %v2565 = vld [vmem:[#allocation23 + $0x200] sm:$0xf]
        %v2566 = vld [vmem:[#allocation23 + $0x204] sm:$0xf]
        %v2567 = vld [vmem:[#allocation23 + $0x208] sm:$0xf]
        %v2568 = vld [vmem:[#allocation23 + $0x20c] sm:$0xf]
        %v2569 = vld [vmem:[#allocation23 + $0x210] sm:$0xf]
        %v2570 = vld [vmem:[#allocation23 + $0x214] sm:$0xf]
        %v2571 = vld [vmem:[#allocation23 + $0x218] sm:$0xf]
        %v2572 = vld [vmem:[#allocation23 + $0x21c] sm:$0xf]
        %v2573 = vld [vmem:[#allocation23 + $0x220] sm:$0xf]
        %v2574 = vld [vmem:[#allocation23 + $0x224] sm:$0xf]
        %v2575 = vld [vmem:[#allocation23 + $0x228] sm:$0xf]
        %v2576 = vld [vmem:[#allocation23 + $0x22c] sm:$0xf]
        %v2577 = vld [vmem:[#allocation23 + $0x230] sm:$0xf]
        %v2578 = vld [vmem:[#allocation23 + $0x234] sm:$0xf]
        %v2579 = vld [vmem:[#allocation23 + $0x238] sm:$0xf]
        %v2580 = vld [vmem:[#allocation23 + $0x23c] sm:$0xf]
        %v2581 = vld [vmem:[#allocation23 + $0x240] sm:$0xf]
        %v2582 = vld [vmem:[#allocation23 + $0x244] sm:$0xf]
        %v2583 = vld [vmem:[#allocation23 + $0x248] sm:$0xf]
        %v2584 = vld [vmem:[#allocation23 + $0x24c] sm:$0xf]
        %v2585 = vld [vmem:[#allocation23 + $0x250] sm:$0xf]
        %v2586 = vld [vmem:[#allocation23 + $0x254] sm:$0xf]
        %v2587 = vld [vmem:[#allocation23 + $0x258] sm:$0xf]
        %v2588 = vld [vmem:[#allocation23 + $0x25c] sm:$0xf]
        %v2589 = vld [vmem:[#allocation23 + $0x260] sm:$0xf]
        %v2590 = vld [vmem:[#allocation23 + $0x264] sm:$0xf]
        %v2591 = vld [vmem:[#allocation23 + $0x268] sm:$0xf]
        %v2592 = vld [vmem:[#allocation23 + $0x26c] sm:$0xf]
        %v2593 = vld [vmem:[#allocation23 + $0x270] sm:$0xf]
        %v2594 = vld [vmem:[#allocation23 + $0x274] sm:$0xf]
        %v2595 = vld [vmem:[#allocation23 + $0x278] sm:$0xf]
        %v2596 = vld [vmem:[#allocation23 + $0x27c] sm:$0xf]
        %v2597 = vld [vmem:[#allocation23 + $0x280] sm:$0xf]
        %v2598 = vld [vmem:[#allocation23 + $0x284] sm:$0xf]
        %v2599 = vld [vmem:[#allocation23 + $0x288] sm:$0xf]
        %v2600 = vld [vmem:[#allocation23 + $0x28c] sm:$0xf]
        %v2601 = vld [vmem:[#allocation23 + $0x290] sm:$0xf]
        %v2602 = vld [vmem:[#allocation23 + $0x294] sm:$0xf]
        %v2603 = vld [vmem:[#allocation23 + $0x298] sm:$0xf]
        %v2604 = vld [vmem:[#allocation23 + $0x29c] sm:$0xf]
        %v2605 = vld [vmem:[#allocation23 + $0x2a0] sm:$0xf]
        %v2606 = vld [vmem:[#allocation23 + $0x2a4] sm:$0xf]
        %v2607 = vld [vmem:[#allocation23 + $0x2a8] sm:$0xf]
        %v2608 = vld [vmem:[#allocation23 + $0x2ac] sm:$0xf]
        %v2609 = vld [vmem:[#allocation23 + $0x2b0] sm:$0xf]
        %v2610 = vld [vmem:[#allocation23 + $0x2b4] sm:$0xf]
        %v2611 = vld [vmem:[#allocation23 + $0x2b8] sm:$0xf]
        %v2612 = vld [vmem:[#allocation23 + $0x2bc] sm:$0xf]
        %v2613 = vld [vmem:[#allocation23 + $0x2c0] sm:$0xf]
        %v2614 = vld [vmem:[#allocation23 + $0x2c4] sm:$0xf]
        %v2615 = vld [vmem:[#allocation23 + $0x2c8] sm:$0xf]
        %v2616 = vld [vmem:[#allocation23 + $0x2cc] sm:$0xf]
        %v2617 = vld [vmem:[#allocation23 + $0x2d0] sm:$0xf]
        %v2618 = vld [vmem:[#allocation23 + $0x2d4] sm:$0xf]
        %v2619 = vld [vmem:[#allocation23 + $0x2d8] sm:$0xf]
        %v2620 = vld [vmem:[#allocation23 + $0x2dc] sm:$0xf]
        %v2621 = vld [vmem:[#allocation23 + $0x2e0] sm:$0xf]
        %v2622 = vld [vmem:[#allocation23 + $0x2e4] sm:$0xf]
        %v2623 = vld [vmem:[#allocation23 + $0x2e8] sm:$0xf]
        %v2624 = vld [vmem:[#allocation23 + $0x2ec] sm:$0xf]
        %v2625 = vld [vmem:[#allocation23 + $0x2f0] sm:$0xf]
        %v2626 = vld [vmem:[#allocation23 + $0x2f4] sm:$0xf]
        %v2627 = vld [vmem:[#allocation23 + $0x2f8] sm:$0xf]
        %v2628 = vld [vmem:[#allocation23 + $0x2fc] sm:$0xf]
        %v2629 = vld [vmem:[#allocation23 + $0x300] sm:$0xf]
        %v2630 = vld [vmem:[#allocation23 + $0x304] sm:$0xf]
        %v2631 = vld [vmem:[#allocation23 + $0x308] sm:$0xf]
        %v2632 = vld [vmem:[#allocation23 + $0x30c] sm:$0xf]
        %v2633 = vld [vmem:[#allocation23 + $0x310] sm:$0xf]
        %v2634 = vld [vmem:[#allocation23 + $0x314] sm:$0xf]
        %v2635 = vld [vmem:[#allocation23 + $0x318] sm:$0xf]
        %v2636 = vld [vmem:[#allocation23 + $0x31c] sm:$0xf]
        %v2637 = vld [vmem:[#allocation23 + $0x320] sm:$0xf]
        %v2638 = vld [vmem:[#allocation23 + $0x324] sm:$0xf]
        %v2639 = vld [vmem:[#allocation23 + $0x328] sm:$0xf]
        %v2640 = vld [vmem:[#allocation23 + $0x32c] sm:$0xf]
        %v2641 = vld [vmem:[#allocation23 + $0x330] sm:$0xf]
        %v2642 = vld [vmem:[#allocation23 + $0x334] sm:$0xf]
        %v2643 = vld [vmem:[#allocation23 + $0x338] sm:$0xf]
        %v2644 = vld [vmem:[#allocation23 + $0x33c] sm:$0xf]
        %v2645 = vld [vmem:[#allocation23 + $0x340] sm:$0xf]
        %v2646 = vld [vmem:[#allocation23 + $0x344] sm:$0xf]
        %v2647 = vld [vmem:[#allocation23 + $0x348] sm:$0xf]
        %v2648 = vld [vmem:[#allocation23 + $0x34c] sm:$0xf]
        %v2649 = vld [vmem:[#allocation23 + $0x350] sm:$0xf]
        %v2650 = vld [vmem:[#allocation23 + $0x354] sm:$0xf]
        %v2651 = vld [vmem:[#allocation23 + $0x358] sm:$0xf]
        %v2652 = vld [vmem:[#allocation23 + $0x35c] sm:$0xf]
        %v2653 = vld [vmem:[#allocation23 + $0x360] sm:$0xf]
        %v2654 = vld [vmem:[#allocation23 + $0x364] sm:$0xf]
        %v2655 = vld [vmem:[#allocation23 + $0x368] sm:$0xf]
        %v2656 = vld [vmem:[#allocation23 + $0x36c] sm:$0xf]
        %v2657 = vld [vmem:[#allocation23 + $0x370] sm:$0xf]
        %v2658 = vld [vmem:[#allocation23 + $0x374] sm:$0xf]
        %v2659 = vld [vmem:[#allocation23 + $0x378] sm:$0xf]
        %v2660 = vld [vmem:[#allocation23 + $0x37c] sm:$0xf]
        %v2661 = vld [vmem:[#allocation23 + $0x380] sm:$0xf]
        %v2662 = vld [vmem:[#allocation23 + $0x384] sm:$0xf]
        %v2663 = vld [vmem:[#allocation23 + $0x388] sm:$0xf]
        %v2664 = vld [vmem:[#allocation23 + $0x38c] sm:$0xf]
        %v2665 = vld [vmem:[#allocation23 + $0x390] sm:$0xf]
        %v2666 = vld [vmem:[#allocation23 + $0x394] sm:$0xf]
        %v2667 = vld [vmem:[#allocation23 + $0x398] sm:$0xf]
        %v2668 = vld [vmem:[#allocation23 + $0x39c] sm:$0xf]
        %v2669 = vld [vmem:[#allocation23 + $0x3a0] sm:$0xf]
        %v2670 = vld [vmem:[#allocation23 + $0x3a4] sm:$0xf]
        %v2671 = vld [vmem:[#allocation23 + $0x3a8] sm:$0xf]
        %v2672 = vld [vmem:[#allocation23 + $0x3ac] sm:$0xf]
        %v2673 = vld [vmem:[#allocation23 + $0x3b0] sm:$0xf]
        %v2674 = vld [vmem:[#allocation23 + $0x3b4] sm:$0xf]
        %v2675 = vld [vmem:[#allocation23 + $0x3b8] sm:$0xf]
        %v2676 = vld [vmem:[#allocation23 + $0x3bc] sm:$0xf]
        %v2677 = vld [vmem:[#allocation23 + $0x3c0] sm:$0xf]
        %v2678 = vld [vmem:[#allocation23 + $0x3c4] sm:$0xf]
        %v2679 = vld [vmem:[#allocation23 + $0x3c8] sm:$0xf]
        %v2680 = vld [vmem:[#allocation23 + $0x3cc] sm:$0xf]
        %v2681 = vld [vmem:[#allocation23 + $0x3d0] sm:$0xf]
        %v2682 = vld [vmem:[#allocation23 + $0x3d4] sm:$0xf]
        %v2683 = vld [vmem:[#allocation23 + $0x3d8] sm:$0xf]
        %v2684 = vld [vmem:[#allocation23 + $0x3dc] sm:$0xf]
        %v2685 = vld [vmem:[#allocation23 + $0x3e0] sm:$0xf]
        %v2686 = vld [vmem:[#allocation23 + $0x3e4] sm:$0xf]
        %v2687 = vld [vmem:[#allocation23 + $0x3e8] sm:$0xf]
        %v2688 = vld [vmem:[#allocation23 + $0x3ec] sm:$0xf]
        %v2689 = vld [vmem:[#allocation23 + $0x3f0] sm:$0xf]
        %v2690 = vld [vmem:[#allocation23 + $0x3f4] sm:$0xf]
        %v2691 = vld [vmem:[#allocation23 + $0x3f8] sm:$0xf]
        %v2692 = vld [vmem:[#allocation23 + $0x3fc] sm:$0xf]
        %v2693 = vpack.c.bf16 %v2421, %v2405
        %v2694 = vpack.c.bf16 %v2422, %v2406
        %v2695 = vpack.c.bf16 %v2423, %v2407
        %v2696 = vpack.c.bf16 %v2424, %v2408
        %v2697 = vpack.c.bf16 %v2425, %v2409
        %v2698 = vpack.c.bf16 %v2426, %v2410
        %v2699 = vpack.c.bf16 %v2427, %v2411
        %v2700 = vpack.c.bf16 %v2428, %v2412
        %v2701 = vpack.c.bf16 %v2429, %v2413
        %v2702 = vpack.c.bf16 %v2430, %v2414
        %v2703 = vpack.c.bf16 %v2431, %v2415
        %v2704 = vpack.c.bf16 %v2432, %v2416
        %v2705 = vpack.c.bf16 %v2433, %v2417
        %v2706 = vpack.c.bf16 %v2434, %v2418
        %v2707 = vpack.c.bf16 %v2435, %v2419
        %v2708 = vpack.c.bf16 %v2436, %v2420
        %v2709 = vld [vmem:[#allocation25] sm:$0x1]
        %v2711 = vlaneseq
        %v2712 = vshrl.u32 %v2711, 7
        %v2713 = vsub.s32 0, %v2712
        %v2714 = vrot.slane %v2709, %v2713
        %v2972 = vunpack.c.l.b16 %v2437
        %v2973 = vunpack.c.l.b16 %v2438
        %v2974 = vunpack.c.l.b16 %v2439
        %v2975 = vunpack.c.l.b16 %v2440
        %v2976 = vunpack.c.l.b16 %v2441
        %v2977 = vunpack.c.l.b16 %v2442
        %v2978 = vunpack.c.l.b16 %v2443
        %v2979 = vunpack.c.l.b16 %v2444
        %v2980 = vunpack.c.l.b16 %v2445
        %v2981 = vunpack.c.l.b16 %v2446
        %v2982 = vunpack.c.l.b16 %v2447
        %v2983 = vunpack.c.l.b16 %v2448
        %v2984 = vunpack.c.l.b16 %v2449
        %v2985 = vunpack.c.l.b16 %v2450
        %v2986 = vunpack.c.l.b16 %v2451
        %v2987 = vunpack.c.l.b16 %v2452
        %v2988 = vunpack.c.l.b16 %v2453
        %v2989 = vunpack.c.l.b16 %v2454
        %v2990 = vunpack.c.l.b16 %v2455
        %v2991 = vunpack.c.l.b16 %v2456
        %v2992 = vunpack.c.l.b16 %v2457
        %v2993 = vunpack.c.l.b16 %v2458
        %v2994 = vunpack.c.l.b16 %v2459
        %v2995 = vunpack.c.l.b16 %v2460
        %v2996 = vunpack.c.l.b16 %v2461
        %v2997 = vunpack.c.l.b16 %v2462
        %v2998 = vunpack.c.l.b16 %v2463
        %v2999 = vunpack.c.l.b16 %v2464
        %v3000 = vunpack.c.l.b16 %v2465
        %v3001 = vunpack.c.l.b16 %v2466
        %v3002 = vunpack.c.l.b16 %v2467
        %v3003 = vunpack.c.l.b16 %v2468
        %v3004 = vunpack.c.l.b16 %v2469
        %v3005 = vunpack.c.l.b16 %v2470
        %v3006 = vunpack.c.l.b16 %v2471
        %v3007 = vunpack.c.l.b16 %v2472
        %v3008 = vunpack.c.l.b16 %v2473
        %v3009 = vunpack.c.l.b16 %v2474
        %v3010 = vunpack.c.l.b16 %v2475
        %v3011 = vunpack.c.l.b16 %v2476
        %v3012 = vunpack.c.l.b16 %v2477
        %v3013 = vunpack.c.l.b16 %v2478
        %v3014 = vunpack.c.l.b16 %v2479
        %v3015 = vunpack.c.l.b16 %v2480
        %v3016 = vunpack.c.l.b16 %v2481
        %v3017 = vunpack.c.l.b16 %v2482
        %v3018 = vunpack.c.l.b16 %v2483
        %v3019 = vunpack.c.l.b16 %v2484
        %v3020 = vunpack.c.l.b16 %v2485
        %v3021 = vunpack.c.l.b16 %v2486
        %v3022 = vunpack.c.l.b16 %v2487
        %v3023 = vunpack.c.l.b16 %v2488
        %v3024 = vunpack.c.l.b16 %v2489
        %v3025 = vunpack.c.l.b16 %v2490
        %v3026 = vunpack.c.l.b16 %v2491
        %v3027 = vunpack.c.l.b16 %v2492
        %v3028 = vunpack.c.l.b16 %v2493
        %v3029 = vunpack.c.l.b16 %v2494
        %v3030 = vunpack.c.l.b16 %v2495
        %v3031 = vunpack.c.l.b16 %v2496
        %v3032 = vunpack.c.l.b16 %v2497
        %v3033 = vunpack.c.l.b16 %v2498
        %v3034 = vunpack.c.l.b16 %v2499
        %v3035 = vunpack.c.l.b16 %v2500
        %v3036 = vunpack.c.l.b16 %v2501
        %v3037 = vunpack.c.l.b16 %v2502
        %v3038 = vunpack.c.l.b16 %v2503
        %v3039 = vunpack.c.l.b16 %v2504
        %v3040 = vunpack.c.l.b16 %v2505
        %v3041 = vunpack.c.l.b16 %v2506
        %v3042 = vunpack.c.l.b16 %v2507
        %v3043 = vunpack.c.l.b16 %v2508
        %v3044 = vunpack.c.l.b16 %v2509
        %v3045 = vunpack.c.l.b16 %v2510
        %v3046 = vunpack.c.l.b16 %v2511
        %v3047 = vunpack.c.l.b16 %v2512
        %v3048 = vunpack.c.l.b16 %v2513
        %v3049 = vunpack.c.l.b16 %v2514
        %v3050 = vunpack.c.l.b16 %v2515
        %v3051 = vunpack.c.l.b16 %v2516
        %v3052 = vunpack.c.l.b16 %v2517
        %v3053 = vunpack.c.l.b16 %v2518
        %v3054 = vunpack.c.l.b16 %v2519
        %v3055 = vunpack.c.l.b16 %v2520
        %v3056 = vunpack.c.l.b16 %v2521
        %v3057 = vunpack.c.l.b16 %v2522
        %v3058 = vunpack.c.l.b16 %v2523
        %v3059 = vunpack.c.l.b16 %v2524
        %v3060 = vunpack.c.l.b16 %v2525
        %v3061 = vunpack.c.l.b16 %v2526
        %v3062 = vunpack.c.l.b16 %v2527
        %v3063 = vunpack.c.l.b16 %v2528
        %v3064 = vunpack.c.l.b16 %v2529
        %v3065 = vunpack.c.l.b16 %v2530
        %v3066 = vunpack.c.l.b16 %v2531
        %v3067 = vunpack.c.l.b16 %v2532
        %v3068 = vunpack.c.l.b16 %v2533
        %v3069 = vunpack.c.l.b16 %v2534
        %v3070 = vunpack.c.l.b16 %v2535
        %v3071 = vunpack.c.l.b16 %v2536
        %v3072 = vunpack.c.l.b16 %v2537
        %v3073 = vunpack.c.l.b16 %v2538
        %v3074 = vunpack.c.l.b16 %v2539
        %v3075 = vunpack.c.l.b16 %v2540
        %v3076 = vunpack.c.l.b16 %v2541
        %v3077 = vunpack.c.l.b16 %v2542
        %v3078 = vunpack.c.l.b16 %v2543
        %v3079 = vunpack.c.l.b16 %v2544
        %v3080 = vunpack.c.l.b16 %v2545
        %v3081 = vunpack.c.l.b16 %v2546
        %v3082 = vunpack.c.l.b16 %v2547
        %v3083 = vunpack.c.l.b16 %v2548
        %v3084 = vunpack.c.l.b16 %v2549
        %v3085 = vunpack.c.l.b16 %v2550
        %v3086 = vunpack.c.l.b16 %v2551
        %v3087 = vunpack.c.l.b16 %v2552
        %v3088 = vunpack.c.l.b16 %v2553
        %v3089 = vunpack.c.l.b16 %v2554
        %v3090 = vunpack.c.l.b16 %v2555
        %v3091 = vunpack.c.l.b16 %v2556
        %v3092 = vunpack.c.l.b16 %v2557
        %v3093 = vunpack.c.l.b16 %v2558
        %v3094 = vunpack.c.l.b16 %v2559
        %v3095 = vunpack.c.l.b16 %v2560
        %v3096 = vunpack.c.l.b16 %v2561
        %v3097 = vunpack.c.l.b16 %v2562
        %v3098 = vunpack.c.l.b16 %v2563
        %v3099 = vunpack.c.l.b16 %v2564
        %v3100 = vunpack.c.l.b16 %v2565
        %v3101 = vunpack.c.l.b16 %v2566
        %v3102 = vunpack.c.l.b16 %v2567
        %v3103 = vunpack.c.l.b16 %v2568
        %v3104 = vunpack.c.l.b16 %v2569
        %v3105 = vunpack.c.l.b16 %v2570
        %v3106 = vunpack.c.l.b16 %v2571
        %v3107 = vunpack.c.l.b16 %v2572
        %v3108 = vunpack.c.l.b16 %v2573
        %v3109 = vunpack.c.l.b16 %v2574
        %v3110 = vunpack.c.l.b16 %v2575
        %v3111 = vunpack.c.l.b16 %v2576
        %v3112 = vunpack.c.l.b16 %v2577
        %v3113 = vunpack.c.l.b16 %v2578
        %v3114 = vunpack.c.l.b16 %v2579
        %v3115 = vunpack.c.l.b16 %v2580
        %v3116 = vunpack.c.l.b16 %v2581
        %v3117 = vunpack.c.l.b16 %v2582
        %v3118 = vunpack.c.l.b16 %v2583
        %v3119 = vunpack.c.l.b16 %v2584
        %v3120 = vunpack.c.l.b16 %v2585
        %v3121 = vunpack.c.l.b16 %v2586
        %v3122 = vunpack.c.l.b16 %v2587
        %v3123 = vunpack.c.l.b16 %v2588
        %v3124 = vunpack.c.l.b16 %v2589
        %v3125 = vunpack.c.l.b16 %v2590
        %v3126 = vunpack.c.l.b16 %v2591
        %v3127 = vunpack.c.l.b16 %v2592
        %v3128 = vunpack.c.l.b16 %v2593
        %v3129 = vunpack.c.l.b16 %v2594
        %v3130 = vunpack.c.l.b16 %v2595
        %v3131 = vunpack.c.l.b16 %v2596
        %v3132 = vunpack.c.l.b16 %v2597
        %v3133 = vunpack.c.l.b16 %v2598
        %v3134 = vunpack.c.l.b16 %v2599
        %v3135 = vunpack.c.l.b16 %v2600
        %v3136 = vunpack.c.l.b16 %v2601
        %v3137 = vunpack.c.l.b16 %v2602
        %v3138 = vunpack.c.l.b16 %v2603
        %v3139 = vunpack.c.l.b16 %v2604
        %v3140 = vunpack.c.l.b16 %v2605
        %v3141 = vunpack.c.l.b16 %v2606
        %v3142 = vunpack.c.l.b16 %v2607
        %v3143 = vunpack.c.l.b16 %v2608
        %v3144 = vunpack.c.l.b16 %v2609
        %v3145 = vunpack.c.l.b16 %v2610
        %v3146 = vunpack.c.l.b16 %v2611
        %v3147 = vunpack.c.l.b16 %v2612
        %v3148 = vunpack.c.l.b16 %v2613
        %v3149 = vunpack.c.l.b16 %v2614
        %v3150 = vunpack.c.l.b16 %v2615
        %v3151 = vunpack.c.l.b16 %v2616
        %v3152 = vunpack.c.l.b16 %v2617
        %v3153 = vunpack.c.l.b16 %v2618
        %v3154 = vunpack.c.l.b16 %v2619
        %v3155 = vunpack.c.l.b16 %v2620
        %v3156 = vunpack.c.l.b16 %v2621
        %v3157 = vunpack.c.l.b16 %v2622
        %v3158 = vunpack.c.l.b16 %v2623
        %v3159 = vunpack.c.l.b16 %v2624
        %v3160 = vunpack.c.l.b16 %v2625
        %v3161 = vunpack.c.l.b16 %v2626
        %v3162 = vunpack.c.l.b16 %v2627
        %v3163 = vunpack.c.l.b16 %v2628
        %v3164 = vunpack.c.l.b16 %v2629
        %v3165 = vunpack.c.l.b16 %v2630
        %v3166 = vunpack.c.l.b16 %v2631
        %v3167 = vunpack.c.l.b16 %v2632
        %v3168 = vunpack.c.l.b16 %v2633
        %v3169 = vunpack.c.l.b16 %v2634
        %v3170 = vunpack.c.l.b16 %v2635
        %v3171 = vunpack.c.l.b16 %v2636
        %v3172 = vunpack.c.l.b16 %v2637
        %v3173 = vunpack.c.l.b16 %v2638
        %v3174 = vunpack.c.l.b16 %v2639
        %v3175 = vunpack.c.l.b16 %v2640
        %v3176 = vunpack.c.l.b16 %v2641
        %v3177 = vunpack.c.l.b16 %v2642
        %v3178 = vunpack.c.l.b16 %v2643
        %v3179 = vunpack.c.l.b16 %v2644
        %v3180 = vunpack.c.l.b16 %v2645
        %v3181 = vunpack.c.l.b16 %v2646
        %v3182 = vunpack.c.l.b16 %v2647
        %v3183 = vunpack.c.l.b16 %v2648
        %v3184 = vunpack.c.l.b16 %v2649
        %v3185 = vunpack.c.l.b16 %v2650
        %v3186 = vunpack.c.l.b16 %v2651
        %v3187 = vunpack.c.l.b16 %v2652
        %v3188 = vunpack.c.l.b16 %v2653
        %v3189 = vunpack.c.l.b16 %v2654
        %v3190 = vunpack.c.l.b16 %v2655
        %v3191 = vunpack.c.l.b16 %v2656
        %v3192 = vunpack.c.l.b16 %v2657
        %v3193 = vunpack.c.l.b16 %v2658
        %v3194 = vunpack.c.l.b16 %v2659
        %v3195 = vunpack.c.l.b16 %v2660
        %v3196 = vunpack.c.l.b16 %v2661
        %v3197 = vunpack.c.l.b16 %v2662
        %v3198 = vunpack.c.l.b16 %v2663
        %v3199 = vunpack.c.l.b16 %v2664
        %v3200 = vunpack.c.l.b16 %v2665
        %v3201 = vunpack.c.l.b16 %v2666
        %v3202 = vunpack.c.l.b16 %v2667
        %v3203 = vunpack.c.l.b16 %v2668
        %v3204 = vunpack.c.l.b16 %v2669
        %v3205 = vunpack.c.l.b16 %v2670
        %v3206 = vunpack.c.l.b16 %v2671
        %v3207 = vunpack.c.l.b16 %v2672
        %v3208 = vunpack.c.l.b16 %v2673
        %v3209 = vunpack.c.l.b16 %v2674
        %v3210 = vunpack.c.l.b16 %v2675
        %v3211 = vunpack.c.l.b16 %v2676
        %v3212 = vunpack.c.l.b16 %v2677
        %v3213 = vunpack.c.l.b16 %v2678
        %v3214 = vunpack.c.l.b16 %v2679
        %v3215 = vunpack.c.l.b16 %v2680
        %v3216 = vunpack.c.l.b16 %v2681
        %v3217 = vunpack.c.l.b16 %v2682
        %v3218 = vunpack.c.l.b16 %v2683
        %v3219 = vunpack.c.l.b16 %v2684
        %v3220 = vunpack.c.l.b16 %v2685
        %v3221 = vunpack.c.l.b16 %v2686
        %v3222 = vunpack.c.l.b16 %v2687
        %v3223 = vunpack.c.l.b16 %v2688
        %v3224 = vunpack.c.l.b16 %v2689
        %v3225 = vunpack.c.l.b16 %v2690
        %v3226 = vunpack.c.l.b16 %v2691
        %v3227 = vunpack.c.l.b16 %v2692
        %v3228 = vpack.c.b16 %v2973, %v2972
        %v3229 = vpack.c.b16 %v2975, %v2974
        %v3230 = vpack.c.b16 %v2977, %v2976
        %v3231 = vpack.c.b16 %v2979, %v2978
        %v3232 = vpack.c.b16 %v2981, %v2980
        %v3233 = vpack.c.b16 %v2983, %v2982
        %v3234 = vpack.c.b16 %v2985, %v2984
        %v3235 = vpack.c.b16 %v2987, %v2986
        %v3236 = vpack.c.b16 %v2989, %v2988
        %v3237 = vpack.c.b16 %v2991, %v2990
        %v3238 = vpack.c.b16 %v2993, %v2992
        %v3239 = vpack.c.b16 %v2995, %v2994
        %v3240 = vpack.c.b16 %v2997, %v2996
        %v3241 = vpack.c.b16 %v2999, %v2998
        %v3242 = vpack.c.b16 %v3001, %v3000
        %v3243 = vpack.c.b16 %v3003, %v3002
        %v3244 = vpack.c.b16 %v3005, %v3004
        %v3245 = vpack.c.b16 %v3007, %v3006
        %v3246 = vpack.c.b16 %v3009, %v3008
        %v3247 = vpack.c.b16 %v3011, %v3010
        %v3248 = vpack.c.b16 %v3013, %v3012
        %v3249 = vpack.c.b16 %v3015, %v3014
        %v3250 = vpack.c.b16 %v3017, %v3016
        %v3251 = vpack.c.b16 %v3019, %v3018
        %v3252 = vpack.c.b16 %v3021, %v3020
        %v3253 = vpack.c.b16 %v3023, %v3022
        %v3254 = vpack.c.b16 %v3025, %v3024
        %v3255 = vpack.c.b16 %v3027, %v3026
        %v3256 = vpack.c.b16 %v3029, %v3028
        %v3257 = vpack.c.b16 %v3031, %v3030
        %v3258 = vpack.c.b16 %v3033, %v3032
        %v3259 = vpack.c.b16 %v3035, %v3034
        %v3260 = vpack.c.b16 %v3037, %v3036
        %v3261 = vpack.c.b16 %v3039, %v3038
        %v3262 = vpack.c.b16 %v3041, %v3040
        %v3263 = vpack.c.b16 %v3043, %v3042
        %v3264 = vpack.c.b16 %v3045, %v3044
        %v3265 = vpack.c.b16 %v3047, %v3046
        %v3266 = vpack.c.b16 %v3049, %v3048
        %v3267 = vpack.c.b16 %v3051, %v3050
        %v3268 = vpack.c.b16 %v3053, %v3052
        %v3269 = vpack.c.b16 %v3055, %v3054
        %v3270 = vpack.c.b16 %v3057, %v3056
        %v3271 = vpack.c.b16 %v3059, %v3058
        %v3272 = vpack.c.b16 %v3061, %v3060
        %v3273 = vpack.c.b16 %v3063, %v3062
        %v3274 = vpack.c.b16 %v3065, %v3064
        %v3275 = vpack.c.b16 %v3067, %v3066
        %v3276 = vpack.c.b16 %v3069, %v3068
        %v3277 = vpack.c.b16 %v3071, %v3070
        %v3278 = vpack.c.b16 %v3073, %v3072
        %v3279 = vpack.c.b16 %v3075, %v3074
        %v3280 = vpack.c.b16 %v3077, %v3076
        %v3281 = vpack.c.b16 %v3079, %v3078
        %v3282 = vpack.c.b16 %v3081, %v3080
        %v3283 = vpack.c.b16 %v3083, %v3082
        %v3284 = vpack.c.b16 %v3085, %v3084
        %v3285 = vpack.c.b16 %v3087, %v3086
        %v3286 = vpack.c.b16 %v3089, %v3088
        %v3287 = vpack.c.b16 %v3091, %v3090
        %v3288 = vpack.c.b16 %v3093, %v3092
        %v3289 = vpack.c.b16 %v3095, %v3094
        %v3290 = vpack.c.b16 %v3097, %v3096
        %v3291 = vpack.c.b16 %v3099, %v3098
        %v3292 = vpack.c.b16 %v3101, %v3100
        %v3293 = vpack.c.b16 %v3103, %v3102
        %v3294 = vpack.c.b16 %v3105, %v3104
        %v3295 = vpack.c.b16 %v3107, %v3106
        %v3296 = vpack.c.b16 %v3109, %v3108
        %v3297 = vpack.c.b16 %v3111, %v3110
        %v3298 = vpack.c.b16 %v3113, %v3112
        %v3299 = vpack.c.b16 %v3115, %v3114
        %v3300 = vpack.c.b16 %v3117, %v3116
        %v3301 = vpack.c.b16 %v3119, %v3118
        %v3302 = vpack.c.b16 %v3121, %v3120
        %v3303 = vpack.c.b16 %v3123, %v3122
        %v3304 = vpack.c.b16 %v3125, %v3124
        %v3305 = vpack.c.b16 %v3127, %v3126
        %v3306 = vpack.c.b16 %v3129, %v3128
        %v3307 = vpack.c.b16 %v3131, %v3130
        %v3308 = vpack.c.b16 %v3133, %v3132
        %v3309 = vpack.c.b16 %v3135, %v3134
        %v3310 = vpack.c.b16 %v3137, %v3136
        %v3311 = vpack.c.b16 %v3139, %v3138
        %v3312 = vpack.c.b16 %v3141, %v3140
        %v3313 = vpack.c.b16 %v3143, %v3142
        %v3314 = vpack.c.b16 %v3145, %v3144
        %v3315 = vpack.c.b16 %v3147, %v3146
        %v3316 = vpack.c.b16 %v3149, %v3148
        %v3317 = vpack.c.b16 %v3151, %v3150
        %v3318 = vpack.c.b16 %v3153, %v3152
        %v3319 = vpack.c.b16 %v3155, %v3154
        %v3320 = vpack.c.b16 %v3157, %v3156
        %v3321 = vpack.c.b16 %v3159, %v3158
        %v3322 = vpack.c.b16 %v3161, %v3160
        %v3323 = vpack.c.b16 %v3163, %v3162
        %v3324 = vpack.c.b16 %v3165, %v3164
        %v3325 = vpack.c.b16 %v3167, %v3166
        %v3326 = vpack.c.b16 %v3169, %v3168
        %v3327 = vpack.c.b16 %v3171, %v3170
        %v3328 = vpack.c.b16 %v3173, %v3172
        %v3329 = vpack.c.b16 %v3175, %v3174
        %v3330 = vpack.c.b16 %v3177, %v3176
        %v3331 = vpack.c.b16 %v3179, %v3178
        %v3332 = vpack.c.b16 %v3181, %v3180
        %v3333 = vpack.c.b16 %v3183, %v3182
        %v3334 = vpack.c.b16 %v3185, %v3184
        %v3335 = vpack.c.b16 %v3187, %v3186
        %v3336 = vpack.c.b16 %v3189, %v3188
        %v3337 = vpack.c.b16 %v3191, %v3190
        %v3338 = vpack.c.b16 %v3193, %v3192
        %v3339 = vpack.c.b16 %v3195, %v3194
        %v3340 = vpack.c.b16 %v3197, %v3196
        %v3341 = vpack.c.b16 %v3199, %v3198
        %v3342 = vpack.c.b16 %v3201, %v3200
        %v3343 = vpack.c.b16 %v3203, %v3202
        %v3344 = vpack.c.b16 %v3205, %v3204
        %v3345 = vpack.c.b16 %v3207, %v3206
        %v3346 = vpack.c.b16 %v3209, %v3208
        %v3347 = vpack.c.b16 %v3211, %v3210
        %v3348 = vpack.c.b16 %v3213, %v3212
        %v3349 = vpack.c.b16 %v3215, %v3214
        %v3350 = vpack.c.b16 %v3217, %v3216
        %v3351 = vpack.c.b16 %v3219, %v3218
        %v3352 = vpack.c.b16 %v3221, %v3220
        %v3353 = vpack.c.b16 %v3223, %v3222
        %v3354 = vpack.c.b16 %v3225, %v3224
        %v3355 = vpack.c.b16 %v3227, %v3226
        %3484 = vmatprep.subr.bf16.mxu0 0
        %3485 = vmatpush1.bf16.msra.mxu0 %v3228
        %3486 = vmatprep.subr.bf16.mxu0 0
        %3487 = vmatpush1.bf16.msra.mxu0 %v3229
        %3488 = vmatprep.subr.bf16.mxu0 0
        %3489 = vmatpush1.bf16.msra.mxu0 %v3230
        %3490 = vmatprep.subr.bf16.mxu0 0
        %3491 = vmatpush1.bf16.msra.mxu0 %v3231
        %3492 = vmatprep.subr.bf16.mxu0 0
        %3493 = vmatpush1.bf16.msra.mxu0 %v3232
        %3494 = vmatprep.subr.bf16.mxu0 0
        %3495 = vmatpush1.bf16.msra.mxu0 %v3233
        %3496 = vmatprep.subr.bf16.mxu0 0
        %3497 = vmatpush1.bf16.msra.mxu0 %v3234
        %3498 = vmatprep.subr.bf16.mxu0 0
        %3499 = vmatpush1.bf16.msra.mxu0 %v3235
        %3500 = vmatprep.subr.bf16.mxu0 0
        %3501 = vmatpush1.bf16.msra.mxu0 %v3236
        %3502 = vmatprep.subr.bf16.mxu0 0
        %3503 = vmatpush1.bf16.msra.mxu0 %v3237
        %3504 = vmatprep.subr.bf16.mxu0 0
        %3505 = vmatpush1.bf16.msra.mxu0 %v3238
        %3506 = vmatprep.subr.bf16.mxu0 0
        %3507 = vmatpush1.bf16.msra.mxu0 %v3239
        %3508 = vmatprep.subr.bf16.mxu0 0
        %3509 = vmatpush1.bf16.msra.mxu0 %v3240
        %3510 = vmatprep.subr.bf16.mxu0 0
        %3511 = vmatpush1.bf16.msra.mxu0 %v3241
        %3512 = vmatprep.subr.bf16.mxu0 0
        %3513 = vmatpush1.bf16.msra.mxu0 %v3242
        %3514 = vmatprep.subr.bf16.mxu0 0
        %3515 = vmatpush1.bf16.msra.mxu0 %v3243
        %3516 = vmatprep.mubr.bf16.mxu0 %v2694
        %3517 = vmatmul.mubr.bf16.gmra.mrb[0].mxu0 %v2693
        %v3518 = vpop.f32.mrb[0].mxu0
        %v3519 = vadd.f32 %v2714, %v3518
        %v3520 = vpop.f32.mrb[0].mxu0
        %v3521 = vpop.f32.mrb[0].mxu0
        %v3522 = vadd.f32 %v2714, %v3521
        %v3523 = vpop.f32.mrb[0].mxu0
        %3524 = vdwg.mxu0
        %3525 = vmatprep.subr.bf16.mxu0 0
        %3526 = vmatpush1.bf16.msra.mxu0 %v3244
        %3527 = vmatprep.subr.bf16.mxu0 0
        %3528 = vmatpush1.bf16.msra.mxu0 %v3245
        %3529 = vmatprep.subr.bf16.mxu0 0
        %3530 = vmatpush1.bf16.msra.mxu0 %v3246
        %3531 = vmatprep.subr.bf16.mxu0 0
        %3532 = vmatpush1.bf16.msra.mxu0 %v3247
        %3533 = vmatprep.subr.bf16.mxu0 0
        %3534 = vmatpush1.bf16.msra.mxu0 %v3248
        %3535 = vmatprep.subr.bf16.mxu0 0
        %3536 = vmatpush1.bf16.msra.mxu0 %v3249
        %3537 = vmatprep.subr.bf16.mxu0 0
        %3538 = vmatpush1.bf16.msra.mxu0 %v3250
        %3539 = vmatprep.subr.bf16.mxu0 0
        %3540 = vmatpush1.bf16.msra.mxu0 %v3251
        %3541 = vmatprep.subr.bf16.mxu0 0
        %3542 = vmatpush1.bf16.msra.mxu0 %v3252
        %3543 = vmatprep.subr.bf16.mxu0 0
        %3544 = vmatpush1.bf16.msra.mxu0 %v3253
        %3545 = vmatprep.subr.bf16.mxu0 0
        %3546 = vmatpush1.bf16.msra.mxu0 %v3254
        %3547 = vmatprep.subr.bf16.mxu0 0
        %3548 = vmatpush1.bf16.msra.mxu0 %v3255
        %3549 = vmatprep.subr.bf16.mxu0 0
        %3550 = vmatpush1.bf16.msra.mxu0 %v3256
        %3551 = vmatprep.subr.bf16.mxu0 0
        %3552 = vmatpush1.bf16.msra.mxu0 %v3257
        %3553 = vmatprep.subr.bf16.mxu0 0
        %3554 = vmatpush1.bf16.msra.mxu0 %v3258
        %3555 = vmatprep.subr.bf16.mxu0 0
        %3556 = vmatpush1.bf16.msra.mxu0 %v3259
        %3557 = vmatprep.mubr.bf16.mxu0 %v2696
        %3558 = vmatmul.mubr.bf16.gmra.mrb[0].mxu0 %v2695
        %v3559 = vpop.f32.mrb[0].mxu0
        %v3560 = vadd.f32 %v3519, %v3559
        %v3561 = vpop.f32.mrb[0].mxu0
        %v3562 = vpop.f32.mrb[0].mxu0
        %v3563 = vadd.f32 %v3522, %v3562
        %v3564 = vpop.f32.mrb[0].mxu0
        %3565 = vdwg.mxu0
        %3566 = vmatprep.subr.bf16.mxu0 0
        %3567 = vmatpush1.bf16.msra.mxu0 %v3260
        %3568 = vmatprep.subr.bf16.mxu0 0
        %3569 = vmatpush1.bf16.msra.mxu0 %v3261
        %3570 = vmatprep.subr.bf16.mxu0 0
        %3571 = vmatpush1.bf16.msra.mxu0 %v3262
        %3572 = vmatprep.subr.bf16.mxu0 0
        %3573 = vmatpush1.bf16.msra.mxu0 %v3263
        %3574 = vmatprep.subr.bf16.mxu0 0
        %3575 = vmatpush1.bf16.msra.mxu0 %v3264
        %3576 = vmatprep.subr.bf16.mxu0 0
        %3577 = vmatpush1.bf16.msra.mxu0 %v3265
        %3578 = vmatprep.subr.bf16.mxu0 0
        %3579 = vmatpush1.bf16.msra.mxu0 %v3266
        %3580 = vmatprep.subr.bf16.mxu0 0
        %3581 = vmatpush1.bf16.msra.mxu0 %v3267
        %3582 = vmatprep.subr.bf16.mxu0 0
        %3583 = vmatpush1.bf16.msra.mxu0 %v3268
        %3584 = vmatprep.subr.bf16.mxu0 0
        %3585 = vmatpush1.bf16.msra.mxu0 %v3269
        %3586 = vmatprep.subr.bf16.mxu0 0
        %3587 = vmatpush1.bf16.msra.mxu0 %v3270
        %3588 = vmatprep.subr.bf16.mxu0 0
        %3589 = vmatpush1.bf16.msra.mxu0 %v3271
        %3590 = vmatprep.subr.bf16.mxu0 0
        %3591 = vmatpush1.bf16.msra.mxu0 %v3272
        %3592 = vmatprep.subr.bf16.mxu0 0
        %3593 = vmatpush1.bf16.msra.mxu0 %v3273
        %3594 = vmatprep.subr.bf16.mxu0 0
        %3595 = vmatpush1.bf16.msra.mxu0 %v3274
        %3596 = vmatprep.subr.bf16.mxu0 0
        %3597 = vmatpush1.bf16.msra.mxu0 %v3275
        %3598 = vmatprep.mubr.bf16.mxu0 %v2698
        %3599 = vmatmul.mubr.bf16.gmra.mrb[0].mxu0 %v2697
        %v3600 = vpop.f32.mrb[0].mxu0
        %v3601 = vadd.f32 %v3560, %v3600
        %v3602 = vpop.f32.mrb[0].mxu0
        %v3603 = vpop.f32.mrb[0].mxu0
        %v3604 = vadd.f32 %v3563, %v3603
        %v3605 = vpop.f32.mrb[0].mxu0
        %3606 = vdwg.mxu0
        %3607 = vmatprep.subr.bf16.mxu0 0
        %3608 = vmatpush1.bf16.msra.mxu0 %v3276
        %3609 = vmatprep.subr.bf16.mxu0 0
        %3610 = vmatpush1.bf16.msra.mxu0 %v3277
        %3611 = vmatprep.subr.bf16.mxu0 0
        %3612 = vmatpush1.bf16.msra.mxu0 %v3278
        %3613 = vmatprep.subr.bf16.mxu0 0
        %3614 = vmatpush1.bf16.msra.mxu0 %v3279
        %3615 = vmatprep.subr.bf16.mxu0 0
        %3616 = vmatpush1.bf16.msra.mxu0 %v3280
        %3617 = vmatprep.subr.bf16.mxu0 0
        %3618 = vmatpush1.bf16.msra.mxu0 %v3281
        %3619 = vmatprep.subr.bf16.mxu0 0
        %3620 = vmatpush1.bf16.msra.mxu0 %v3282
        %3621 = vmatprep.subr.bf16.mxu0 0
        %3622 = vmatpush1.bf16.msra.mxu0 %v3283
        %3623 = vmatprep.subr.bf16.mxu0 0
        %3624 = vmatpush1.bf16.msra.mxu0 %v3284
        %3625 = vmatprep.subr.bf16.mxu0 0
        %3626 = vmatpush1.bf16.msra.mxu0 %v3285
        %3627 = vmatprep.subr.bf16.mxu0 0
        %3628 = vmatpush1.bf16.msra.mxu0 %v3286
        %3629 = vmatprep.subr.bf16.mxu0 0
        %3630 = vmatpush1.bf16.msra.mxu0 %v3287
        %3631 = vmatprep.subr.bf16.mxu0 0
        %3632 = vmatpush1.bf16.msra.mxu0 %v3288
        %3633 = vmatprep.subr.bf16.mxu0 0
        %3634 = vmatpush1.bf16.msra.mxu0 %v3289
        %3635 = vmatprep.subr.bf16.mxu0 0
        %3636 = vmatpush1.bf16.msra.mxu0 %v3290
        %3637 = vmatprep.subr.bf16.mxu0 0
        %3638 = vmatpush1.bf16.msra.mxu0 %v3291
        %3639 = vmatprep.mubr.bf16.mxu0 %v2700
        %3640 = vmatmul.mubr.bf16.gmra.mrb[0].mxu0 %v2699
        %v3641 = vpop.f32.mrb[0].mxu0
        %v3642 = vadd.f32 %v3601, %v3641
        %v3643 = vpop.f32.mrb[0].mxu0
        %v3644 = vpop.f32.mrb[0].mxu0
        %v3645 = vadd.f32 %v3604, %v3644
        %v3646 = vpop.f32.mrb[0].mxu0
        %3647 = vdwg.mxu0
        %3648 = vmatprep.subr.bf16.mxu0 0
        %3649 = vmatpush1.bf16.msra.mxu0 %v3292
        %3650 = vmatprep.subr.bf16.mxu0 0
        %3651 = vmatpush1.bf16.msra.mxu0 %v3293
        %3652 = vmatprep.subr.bf16.mxu0 0
        %3653 = vmatpush1.bf16.msra.mxu0 %v3294
        %3654 = vmatprep.subr.bf16.mxu0 0
        %3655 = vmatpush1.bf16.msra.mxu0 %v3295
        %3656 = vmatprep.subr.bf16.mxu0 0
        %3657 = vmatpush1.bf16.msra.mxu0 %v3296
        %3658 = vmatprep.subr.bf16.mxu0 0
        %3659 = vmatpush1.bf16.msra.mxu0 %v3297
        %3660 = vmatprep.subr.bf16.mxu0 0
        %3661 = vmatpush1.bf16.msra.mxu0 %v3298
        %3662 = vmatprep.subr.bf16.mxu0 0
        %3663 = vmatpush1.bf16.msra.mxu0 %v3299
        %3664 = vmatprep.subr.bf16.mxu0 0
        %3665 = vmatpush1.bf16.msra.mxu0 %v3300
        %3666 = vmatprep.subr.bf16.mxu0 0
        %3667 = vmatpush1.bf16.msra.mxu0 %v3301
        %3668 = vmatprep.subr.bf16.mxu0 0
        %3669 = vmatpush1.bf16.msra.mxu0 %v3302
        %3670 = vmatprep.subr.bf16.mxu0 0
        %3671 = vmatpush1.bf16.msra.mxu0 %v3303
        %3672 = vmatprep.subr.bf16.mxu0 0
        %3673 = vmatpush1.bf16.msra.mxu0 %v3304
        %3674 = vmatprep.subr.bf16.mxu0 0
        %3675 = vmatpush1.bf16.msra.mxu0 %v3305
        %3676 = vmatprep.subr.bf16.mxu0 0
        %3677 = vmatpush1.bf16.msra.mxu0 %v3306
        %3678 = vmatprep.subr.bf16.mxu0 0
        %3679 = vmatpush1.bf16.msra.mxu0 %v3307
        %3680 = vmatprep.mubr.bf16.mxu0 %v2702
        %3681 = vmatmul.mubr.bf16.gmra.mrb[0].mxu0 %v2701
        %v3682 = vpop.f32.mrb[0].mxu0
        %v3683 = vadd.f32 %v3642, %v3682
        %v3684 = vpop.f32.mrb[0].mxu0
        %v3685 = vpop.f32.mrb[0].mxu0
        %v3686 = vadd.f32 %v3645, %v3685
        %v3687 = vpop.f32.mrb[0].mxu0
        %3688 = vdwg.mxu0
        %3689 = vmatprep.subr.bf16.mxu0 0
        %3690 = vmatpush1.bf16.msra.mxu0 %v3308
        %3691 = vmatprep.subr.bf16.mxu0 0
        %3692 = vmatpush1.bf16.msra.mxu0 %v3309
        %3693 = vmatprep.subr.bf16.mxu0 0
        %3694 = vmatpush1.bf16.msra.mxu0 %v3310
        %3695 = vmatprep.subr.bf16.mxu0 0
        %3696 = vmatpush1.bf16.msra.mxu0 %v3311
        %3697 = vmatprep.subr.bf16.mxu0 0
        %3698 = vmatpush1.bf16.msra.mxu0 %v3312
        %3699 = vmatprep.subr.bf16.mxu0 0
        %3700 = vmatpush1.bf16.msra.mxu0 %v3313
        %3701 = vmatprep.subr.bf16.mxu0 0
        %3702 = vmatpush1.bf16.msra.mxu0 %v3314
        %3703 = vmatprep.subr.bf16.mxu0 0
        %3704 = vmatpush1.bf16.msra.mxu0 %v3315
        %3705 = vmatprep.subr.bf16.mxu0 0
        %3706 = vmatpush1.bf16.msra.mxu0 %v3316
        %3707 = vmatprep.subr.bf16.mxu0 0
        %3708 = vmatpush1.bf16.msra.mxu0 %v3317
        %3709 = vmatprep.subr.bf16.mxu0 0
        %3710 = vmatpush1.bf16.msra.mxu0 %v3318
        %3711 = vmatprep.subr.bf16.mxu0 0
        %3712 = vmatpush1.bf16.msra.mxu0 %v3319
        %3713 = vmatprep.subr.bf16.mxu0 0
        %3714 = vmatpush1.bf16.msra.mxu0 %v3320
        %3715 = vmatprep.subr.bf16.mxu0 0
        %3716 = vmatpush1.bf16.msra.mxu0 %v3321
        %3717 = vmatprep.subr.bf16.mxu0 0
        %3718 = vmatpush1.bf16.msra.mxu0 %v3322
        %3719 = vmatprep.subr.bf16.mxu0 0
        %3720 = vmatpush1.bf16.msra.mxu0 %v3323
        %3721 = vmatprep.mubr.bf16.mxu0 %v2704
        %3722 = vmatmul.mubr.bf16.gmra.mrb[0].mxu0 %v2703
        %v3723 = vpop.f32.mrb[0].mxu0
        %v3724 = vadd.f32 %v3683, %v3723
        %v3725 = vpop.f32.mrb[0].mxu0
        %v3726 = vpop.f32.mrb[0].mxu0
        %v3727 = vadd.f32 %v3686, %v3726
        %v3728 = vpop.f32.mrb[0].mxu0
        %3729 = vdwg.mxu0
        %3730 = vmatprep.subr.bf16.mxu0 0
        %3731 = vmatpush1.bf16.msra.mxu0 %v3324
        %3732 = vmatprep.subr.bf16.mxu0 0
        %3733 = vmatpush1.bf16.msra.mxu0 %v3325
        %3734 = vmatprep.subr.bf16.mxu0 0
        %3735 = vmatpush1.bf16.msra.mxu0 %v3326
        %3736 = vmatprep.subr.bf16.mxu0 0
        %3737 = vmatpush1.bf16.msra.mxu0 %v3327
        %3738 = vmatprep.subr.bf16.mxu0 0
        %3739 = vmatpush1.bf16.msra.mxu0 %v3328
        %3740 = vmatprep.subr.bf16.mxu0 0
        %3741 = vmatpush1.bf16.msra.mxu0 %v3329
        %3742 = vmatprep.subr.bf16.mxu0 0
        %3743 = vmatpush1.bf16.msra.mxu0 %v3330
        %3744 = vmatprep.subr.bf16.mxu0 0
        %3745 = vmatpush1.bf16.msra.mxu0 %v3331
        %3746 = vmatprep.subr.bf16.mxu0 0
        %3747 = vmatpush1.bf16.msra.mxu0 %v3332
        %3748 = vmatprep.subr.bf16.mxu0 0
        %3749 = vmatpush1.bf16.msra.mxu0 %v3333
        %3750 = vmatprep.subr.bf16.mxu0 0
        %3751 = vmatpush1.bf16.msra.mxu0 %v3334
        %3752 = vmatprep.subr.bf16.mxu0 0
        %3753 = vmatpush1.bf16.msra.mxu0 %v3335
        %3754 = vmatprep.subr.bf16.mxu0 0
        %3755 = vmatpush1.bf16.msra.mxu0 %v3336
        %3756 = vmatprep.subr.bf16.mxu0 0
        %3757 = vmatpush1.bf16.msra.mxu0 %v3337
        %3758 = vmatprep.subr.bf16.mxu0 0
        %3759 = vmatpush1.bf16.msra.mxu0 %v3338
        %3760 = vmatprep.subr.bf16.mxu0 0
        %3761 = vmatpush1.bf16.msra.mxu0 %v3339
        %3762 = vmatprep.mubr.bf16.mxu0 %v2706
        %3763 = vmatmul.mubr.bf16.gmra.mrb[0].mxu0 %v2705
        %v3764 = vpop.f32.mrb[0].mxu0
        %v3765 = vadd.f32 %v3724, %v3764
        %v3766 = vpop.f32.mrb[0].mxu0
        %v3767 = vpop.f32.mrb[0].mxu0
        %v3768 = vadd.f32 %v3727, %v3767
        %v3769 = vpop.f32.mrb[0].mxu0
        %3770 = vdwg.mxu0
        %3771 = vmatprep.subr.bf16.mxu0 0
        %3772 = vmatpush1.bf16.msra.mxu0 %v3340
        %3773 = vmatprep.subr.bf16.mxu0 0
        %3774 = vmatpush1.bf16.msra.mxu0 %v3341
        %3775 = vmatprep.subr.bf16.mxu0 0
        %3776 = vmatpush1.bf16.msra.mxu0 %v3342
        %3777 = vmatprep.subr.bf16.mxu0 0
        %3778 = vmatpush1.bf16.msra.mxu0 %v3343
        %3779 = vmatprep.subr.bf16.mxu0 0
        %3780 = vmatpush1.bf16.msra.mxu0 %v3344
        %3781 = vmatprep.subr.bf16.mxu0 0
        %3782 = vmatpush1.bf16.msra.mxu0 %v3345
        %3783 = vmatprep.subr.bf16.mxu0 0
        %3784 = vmatpush1.bf16.msra.mxu0 %v3346
        %3785 = vmatprep.subr.bf16.mxu0 0
        %3786 = vmatpush1.bf16.msra.mxu0 %v3347
        %3787 = vmatprep.subr.bf16.mxu0 0
        %3788 = vmatpush1.bf16.msra.mxu0 %v3348
        %3789 = vmatprep.subr.bf16.mxu0 0
        %3790 = vmatpush1.bf16.msra.mxu0 %v3349
        %3791 = vmatprep.subr.bf16.mxu0 0
        %3792 = vmatpush1.bf16.msra.mxu0 %v3350
        %3793 = vmatprep.subr.bf16.mxu0 0
        %3794 = vmatpush1.bf16.msra.mxu0 %v3351
        %3795 = vmatprep.subr.bf16.mxu0 0
        %3796 = vmatpush1.bf16.msra.mxu0 %v3352
        %3797 = vmatprep.subr.bf16.mxu0 0
        %3798 = vmatpush1.bf16.msra.mxu0 %v3353
        %3799 = vmatprep.subr.bf16.mxu0 0
        %3800 = vmatpush1.bf16.msra.mxu0 %v3354
        %3801 = vmatprep.subr.bf16.mxu0 0
        %3802 = vmatpush1.bf16.msra.mxu0 %v3355
        %3803 = vmatprep.mubr.bf16.mxu0 %v2708
        %3804 = vmatmul.mubr.bf16.gmra.mrb[0].mxu0 %v2707
        %v3805 = vpop.f32.mrb[0].mxu0
        %v3806 = vadd.f32 %v3765, %v3805
        %v3807 = vpop.f32.mrb[0].mxu0
        %v3808 = vpop.f32.mrb[0].mxu0
        %v3809 = vadd.f32 %v3768, %v3808
        %v3810 = vpop.f32.mrb[0].mxu0
        %3811 = vdwg.mxu0
        %v3812 = vadd.f32 %v1779, %v3806
        %v3813 = vadd.f32 %v1780, %v3809
        %v3814 = vld [vmem:[#allocation26] sm:$0x1]
        %v3815 = vld [vmem:[#allocation28] sm:$0x1]
        %v3816 = vsel %vm1085, %v3812, 0.0
        %3817 = vadd.xlane.f32.xlu0 %v3816
        %v3818 = vpop.xlane.xlu0 %3817
        %v3819 = vsel %vm1740, %v3813, 0.0
        %3820 = vadd.xlane.f32.xlu0 %v3819
        %v3821 = vpop.xlane.xlu0 %3820
        %v3822 = vmul.f32 %v3818, %v1744
        %v3823 = vmul.f32 %v3821, %v1744
        %v3824 = vsub.f32 %v3812, %v3822
        %v3825 = vsub.f32 %v3813, %v3823
        %v3826 = vmul.f32 %v3824, %v3824
        %v3827 = vmul.f32 %v3825, %v3825
        %v3828 = vsel %vm1085, %v3826, 0.0
        %3829 = vadd.xlane.f32.xlu0 %v3828
        %v3830 = vpop.xlane.xlu0 %3829
        %v3831 = vsel %vm1740, %v3827, 0.0
        %3832 = vadd.xlane.f32.xlu0 %v3831
        %v3833 = vpop.xlane.xlu0 %3832
        %v3834 = vmul.f32 %v3830, %v1744
        %v3835 = vmul.f32 %v3833, %v1744
        %v3836 = vadd.f32 %v3834, 1e-05
        %v3837 = vadd.f32 %v3835, 1e-05
        %v3838 = vrsqrt.pop %v3836
        %v3839 = vrsqrt.pop %v3837
        %v3840 = vmul.f32 %v3824, %v3838
        %v3841 = vmul.f32 %v3825, %v3839
        %v3843 = vlaneseq
        %v3844 = vshrl.u32 %v3843, 7
        %v3845 = vsub.s32 0, %v3844
        %v3846 = vrot.slane %v3814, %v3845
        %v3848 = vmul.f32 %v3840, %v3846
        %v3849 = vmul.f32 %v3841, %v3846
        %v3851 = vlaneseq
        %v3852 = vshrl.u32 %v3851, 7
        %v3853 = vsub.s32 0, %v3852
        %v3854 = vrot.slane %v3815, %v3853
        %v3856 = vadd.f32 %v3848, %v3854
        %v3857 = vadd.f32 %v3849, %v3854
        %s3858 = scalar_lea.vmem [#allocation11], 16
        %v3859 = vld [vmem:[%s3858] sm:$0xf]
        %v3860 = vld [vmem:[%s3858 + $0x4] sm:$0xf]
        %v3861 = vld [vmem:[%s3858 + $0x8] sm:$0xf]
        %v3862 = vld [vmem:[%s3858 + $0xc] sm:$0xf]
        %v3863 = vpack.c.bf16 %v3857, %v3856
        %s3864 = scalar_lea.vmem [#allocation13], 1
        %v3865 = vld [vmem:[%s3864] sm:$0x1]
        %v3867 = vlaneseq
        %v3868 = vshrl.u32 %v3867, 7
        %v3869 = vsub.s32 0, %v3868
        %v3870 = vrot.slane %v3865, %v3869
        %v3876 = vunpack.c.l.b16 %v3859
        %v3877 = vunpack.c.l.b16 %v3860
        %v3878 = vunpack.c.l.b16 %v3861
        %v3879 = vunpack.c.l.b16 %v3862
        %v3880 = vpack.c.b16 %v3877, %v3876
        %v3881 = vpack.c.b16 %v3879, %v3878
        %v3885 = vsel %vm1085, %v3863, 0
        %3887 = vmatprep.subr.bf16.mxu0 0
        %3888 = vmatpush1.bf16.msra.mxu0 %v3880
        %3889 = vmatprep.subr.bf16.mxu0 0
        %3890 = vmatpush1.bf16.msra.mxu0 %v3881
        %3891 = vmatprep.subr.bf16.mxu0 0
        %3892 = vmatpush1.bf16.msra.mxu0 0
        %3893 = vmatprep.subr.bf16.mxu0 0
        %3894 = vmatpush1.bf16.msra.mxu0 0
        %3895 = vmatprep.subr.bf16.mxu0 0
        %3896 = vmatpush1.bf16.msra.mxu0 0
        %3897 = vmatprep.subr.bf16.mxu0 0
        %3898 = vmatpush1.bf16.msra.mxu0 0
        %3899 = vmatprep.subr.bf16.mxu0 0
        %3900 = vmatpush1.bf16.msra.mxu0 0
        %3901 = vmatprep.subr.bf16.mxu0 0
        %3902 = vmatpush1.bf16.msra.mxu0 0
        %3903 = vmatprep.subr.bf16.mxu0 0
        %3904 = vmatpush1.bf16.msra.mxu0 0
        %3905 = vmatprep.subr.bf16.mxu0 0
        %3906 = vmatpush1.bf16.msra.mxu0 0
        %3907 = vmatprep.subr.bf16.mxu0 0
        %3908 = vmatpush1.bf16.msra.mxu0 0
        %3909 = vmatprep.subr.bf16.mxu0 0
        %3910 = vmatpush1.bf16.msra.mxu0 0
        %3911 = vmatprep.subr.bf16.mxu0 0
        %3912 = vmatpush1.bf16.msra.mxu0 0
        %3913 = vmatprep.subr.bf16.mxu0 0
        %3914 = vmatpush1.bf16.msra.mxu0 0
        %3915 = vmatprep.subr.bf16.mxu0 0
        %3916 = vmatpush1.bf16.msra.mxu0 0
        %3917 = vmatprep.subr.bf16.mxu0 0
        %3918 = vmatpush1.bf16.msra.mxu0 0
        %3919 = vmatprep.mubr.bf16.mxu0 0
        %3920 = vmatmul.mubr.bf16.gmra.mrb[0].mxu0 %v3885
        %v3921 = vpop.f32.mrb[0].mxu0
        %v3922 = vadd.f32 %v3870, %v3921
        %v3923 = vpop.f32.mrb[0].mxu0
        %v3924 = vpop.f32.mrb[0].mxu0
        %v3925 = vadd.f32 %v3870, %v3924
        %v3926 = vpop.f32.mrb[0].mxu0
        %3927 = vdwg.mxu0
        %v3928 = vmul.f32 %v3922, 0.35355338
        %v3929 = vmul.f32 %v3925, 0.35355338
        %v3930 = vpack.c.bf16 %v3929, %v3928
        %v3931 = vpack.c.bf16 %v3925, %v3922
        %3933 = vrot.lane.b32.xlu0 %v3931, 96
        %v3934 = vpop.permute.xlu0 %3933
        %v3936 = vsel %vm1137, %v3930, 0
        %v3939 = vsel %vm1137, %v3934, 0
        %3941 = vmatprep.subr.bf16.mxu0 0
        %3942 = vmatpush1.bf16.xpose.msra.mxu0 %v3939
        %3943 = vmatprep.subr.bf16.mxu0 0
        %3944 = vmatpush1.bf16.xpose.msra.mxu0 0
        %3945 = vmatprep.subr.bf16.mxu0 0
        %3946 = vmatpush1.bf16.xpose.msra.mxu0 0
        %3947 = vmatprep.subr.bf16.mxu0 0
        %3948 = vmatpush1.bf16.xpose.msra.mxu0 0
        %3949 = vmatprep.subr.bf16.mxu0 0
        %3950 = vmatpush1.bf16.xpose.msra.mxu0 0
        %3951 = vmatprep.subr.bf16.mxu0 0
        %3952 = vmatpush1.bf16.xpose.msra.mxu0 0
        %3953 = vmatprep.subr.bf16.mxu0 0
        %3954 = vmatpush1.bf16.xpose.msra.mxu0 0
        %3955 = vmatprep.subr.bf16.mxu0 0
        %3956 = vmatpush1.bf16.xpose.msra.mxu0 0
        %3957 = vmatprep.subr.bf16.mxu0 0
        %3958 = vmatpush1.bf16.xpose.msra.mxu0 0
        %3959 = vmatprep.subr.bf16.mxu0 0
        %3960 = vmatpush1.bf16.xpose.msra.mxu0 0
        %3961 = vmatprep.subr.bf16.mxu0 0
        %3962 = vmatpush1.bf16.xpose.msra.mxu0 0
        %3963 = vmatprep.subr.bf16.mxu0 0
        %3964 = vmatpush1.bf16.xpose.msra.mxu0 0
        %3965 = vmatprep.subr.bf16.mxu0 0
        %3966 = vmatpush1.bf16.xpose.msra.mxu0 0
        %3967 = vmatprep.subr.bf16.mxu0 0
        %3968 = vmatpush1.bf16.xpose.msra.mxu0 0
        %3969 = vmatprep.subr.bf16.mxu0 0
        %3970 = vmatpush1.bf16.xpose.msra.mxu0 0
        %3971 = vmatprep.subr.bf16.mxu0 0
        %3972 = vmatpush1.bf16.xpose.msra.mxu0 0
        %3973 = vmatprep.mubr.bf16.mxu0 0
        %3974 = vmatmul.mubr.bf16.gmra.mrb[0].mxu0 %v3936
        %v3975 = vpop.f32.mrb[0].mxu0
        %v3976 = vadd.f32 0.0, %v3975
        %v3977 = vpop.f32.mrb[0].mxu0
        %v3978 = vpop.f32.mrb[0].mxu0
        %v3979 = vadd.f32 0.0, %v3978
        %v3980 = vpop.f32.mrb[0].mxu0
        %3981 = vdwg.mxu0
        %v3982 = vsel %vm1185, %v3976, -inf
        %3983 = vmax.xlane.f32.xlu0 %v3982
        %v3984 = vpop.xlane.xlu0 %3983
        %v3985 = vsel %vm1189, %v3979, -inf
        %3986 = vmax.xlane.f32.xlu0 %v3985
        %v3987 = vpop.xlane.xlu0 %3986
        %v3988 = vsub.f32 %v3976, %v3984
        %v3989 = vsub.f32 %v3979, %v3987
        %v3990 = vmul.f32 %v3988, 1.442695
        %v3991 = vpow.pop %v3990
        %v3992 = vmul.f32 %v3989, 1.442695
        %v3993 = vpow.pop %v3992
        %v3994 = vsel %vm1185, %v3991, 0.0
        %3995 = vadd.xlane.f32.xlu0 %v3994
        %v3996 = vpop.xlane.xlu0 %3995
        %v3997 = vsel %vm1189, %v3993, 0.0
        %3998 = vadd.xlane.f32.xlu0 %v3997
        %v3999 = vpop.xlane.xlu0 %3998
        %v4000 = vrcp.pop %v3996
        %v4001 = vrcp.pop %v3999
        %v4002 = vmul.f32 %v3991, %v4000
        %v4003 = vmul.f32 %v3993, %v4001
        %v4004 = vpack.c.bf16 %v4003, %v4002
        %4005 = vrot.lane.b32.xlu0 %v3931, 64
        %v4006 = vpop.permute.xlu0 %4005
        %v4008 = vsel %vm1185, %v4004, 0
        %v4011 = vand.u32 %v4006, %v1218
        %4013 = vmatprep.subr.bf16.mxu0 0
        %4014 = vmatpush1.bf16.msra.mxu0 %v4011
        %4015 = vmatprep.subr.bf16.mxu0 0
        %4016 = vmatpush1.bf16.msra.mxu0 0
        %4017 = vmatprep.subr.bf16.mxu0 0
        %4018 = vmatpush1.bf16.msra.mxu0 0
        %4019 = vmatprep.subr.bf16.mxu0 0
        %4020 = vmatpush1.bf16.msra.mxu0 0
        %4021 = vmatprep.subr.bf16.mxu0 0
        %4022 = vmatpush1.bf16.msra.mxu0 0
        %4023 = vmatprep.subr.bf16.mxu0 0
        %4024 = vmatpush1.bf16.msra.mxu0 0
        %4025 = vmatprep.subr.bf16.mxu0 0
        %4026 = vmatpush1.bf16.msra.mxu0 0
        %4027 = vmatprep.subr.bf16.mxu0 0
        %4028 = vmatpush1.bf16.msra.mxu0 0
        %4029 = vmatprep.subr.bf16.mxu0 0
        %4030 = vmatpush1.bf16.msra.mxu0 0
        %4031 = vmatprep.subr.bf16.mxu0 0
        %4032 = vmatpush1.bf16.msra.mxu0 0
        %4033 = vmatprep.subr.bf16.mxu0 0
        %4034 = vmatpush1.bf16.msra.mxu0 0
        %4035 = vmatprep.subr.bf16.mxu0 0
        %4036 = vmatpush1.bf16.msra.mxu0 0
        %4037 = vmatprep.subr.bf16.mxu0 0
        %4038 = vmatpush1.bf16.msra.mxu0 0
        %4039 = vmatprep.subr.bf16.mxu0 0
        %4040 = vmatpush1.bf16.msra.mxu0 0
        %4041 = vmatprep.subr.bf16.mxu0 0
        %4042 = vmatpush1.bf16.msra.mxu0 0
        %4043 = vmatprep.subr.bf16.mxu0 0
        %4044 = vmatpush1.bf16.msra.mxu0 0
        %4045 = vmatprep.mubr.bf16.mxu0 0
        %4046 = vmatmul.mubr.bf16.gmra.mrb[0].mxu0 %v4008
        %v4047 = vpop.f32.mrb[0].mxu0
        %v4048 = vadd.f32 0.0, %v4047
        %v4049 = vpop.f32.mrb[0].mxu0
        %v4050 = vpop.f32.mrb[0].mxu0
        %v4051 = vadd.f32 0.0, %v4050
        %v4052 = vpop.f32.mrb[0].mxu0
        %4053 = vdwg.mxu0
        %4055 = vrot.lane.b32.xlu0 %v3930, 120
        %v4056 = vpop.permute.xlu0 %4055
        %4057 = vrot.lane.b32.xlu0 %v3931, 88
        %v4058 = vpop.permute.xlu0 %4057
        %v4060 = vsel %vm1137, %v4056, 0
        %v4063 = vsel %vm1137, %v4058, 0
        %4065 = vmatprep.subr.bf16.mxu0 0
        %4066 = vmatpush1.bf16.xpose.msra.mxu0 %v4063
        %4067 = vmatprep.subr.bf16.mxu0 0
        %4068 = vmatpush1.bf16.xpose.msra.mxu0 0
        %4069 = vmatprep.subr.bf16.mxu0 0
        %4070 = vmatpush1.bf16.xpose.msra.mxu0 0
        %4071 = vmatprep.subr.bf16.mxu0 0
        %4072 = vmatpush1.bf16.xpose.msra.mxu0 0
        %4073 = vmatprep.subr.bf16.mxu0 0
        %4074 = vmatpush1.bf16.xpose.msra.mxu0 0
        %4075 = vmatprep.subr.bf16.mxu0 0
        %4076 = vmatpush1.bf16.xpose.msra.mxu0 0
        %4077 = vmatprep.subr.bf16.mxu0 0
        %4078 = vmatpush1.bf16.xpose.msra.mxu0 0
        %4079 = vmatprep.subr.bf16.mxu0 0
        %4080 = vmatpush1.bf16.xpose.msra.mxu0 0
        %4081 = vmatprep.subr.bf16.mxu0 0
        %4082 = vmatpush1.bf16.xpose.msra.mxu0 0
        %4083 = vmatprep.subr.bf16.mxu0 0
        %4084 = vmatpush1.bf16.xpose.msra.mxu0 0
        %4085 = vmatprep.subr.bf16.mxu0 0
        %4086 = vmatpush1.bf16.xpose.msra.mxu0 0
        %4087 = vmatprep.subr.bf16.mxu0 0
        %4088 = vmatpush1.bf16.xpose.msra.mxu0 0
        %4089 = vmatprep.subr.bf16.mxu0 0
        %4090 = vmatpush1.bf16.xpose.msra.mxu0 0
        %4091 = vmatprep.subr.bf16.mxu0 0
        %4092 = vmatpush1.bf16.xpose.msra.mxu0 0
        %4093 = vmatprep.subr.bf16.mxu0 0
        %4094 = vmatpush1.bf16.xpose.msra.mxu0 0
        %4095 = vmatprep.subr.bf16.mxu0 0
        %4096 = vmatpush1.bf16.xpose.msra.mxu0 0
        %4097 = vmatprep.mubr.bf16.mxu0 0
        %4098 = vmatmul.mubr.bf16.gmra.mrb[0].mxu0 %v4060
        %v4099 = vpop.f32.mrb[0].mxu0
        %v4100 = vadd.f32 0.0, %v4099
        %v4101 = vpop.f32.mrb[0].mxu0
        %v4102 = vpop.f32.mrb[0].mxu0
        %v4103 = vadd.f32 0.0, %v4102
        %v4104 = vpop.f32.mrb[0].mxu0
        %4105 = vdwg.mxu0
        %v4106 = vsel %vm1185, %v4100, -inf
        %4107 = vmax.xlane.f32.xlu0 %v4106
        %v4108 = vpop.xlane.xlu0 %4107
        %v4109 = vsel %vm1189, %v4103, -inf
        %4110 = vmax.xlane.f32.xlu0 %v4109
        %v4111 = vpop.xlane.xlu0 %4110
        %v4112 = vsub.f32 %v4100, %v4108
        %v4113 = vsub.f32 %v4103, %v4111
        %v4114 = vmul.f32 %v4112, 1.442695
        %v4115 = vpow.pop %v4114
        %v4116 = vmul.f32 %v4113, 1.442695
        %v4117 = vpow.pop %v4116
        %v4118 = vsel %vm1185, %v4115, 0.0
        %4119 = vadd.xlane.f32.xlu0 %v4118
        %v4120 = vpop.xlane.xlu0 %4119
        %v4121 = vsel %vm1189, %v4117, 0.0
        %4122 = vadd.xlane.f32.xlu0 %v4121
        %v4123 = vpop.xlane.xlu0 %4122
        %v4124 = vrcp.pop %v4120
        %v4125 = vrcp.pop %v4123
        %v4126 = vmul.f32 %v4115, %v4124
        %v4127 = vmul.f32 %v4117, %v4125
        %v4128 = vpack.c.bf16 %v4127, %v4126
        %4129 = vrot.lane.b32.xlu0 %v3931, 56
        %v4130 = vpop.permute.xlu0 %4129
        %v4132 = vsel %vm1185, %v4128, 0
        %v4135 = vand.u32 %v4130, %v1218
        %4137 = vmatprep.subr.bf16.mxu0 0
        %4138 = vmatpush1.bf16.msra.mxu0 %v4135
        %4139 = vmatprep.subr.bf16.mxu0 0
        %4140 = vmatpush1.bf16.msra.mxu0 0
        %4141 = vmatprep.subr.bf16.mxu0 0
        %4142 = vmatpush1.bf16.msra.mxu0 0
        %4143 = vmatprep.subr.bf16.mxu0 0
        %4144 = vmatpush1.bf16.msra.mxu0 0
        %4145 = vmatprep.subr.bf16.mxu0 0
        %4146 = vmatpush1.bf16.msra.mxu0 0
        %4147 = vmatprep.subr.bf16.mxu0 0
        %4148 = vmatpush1.bf16.msra.mxu0 0
        %4149 = vmatprep.subr.bf16.mxu0 0
        %4150 = vmatpush1.bf16.msra.mxu0 0
        %4151 = vmatprep.subr.bf16.mxu0 0
        %4152 = vmatpush1.bf16.msra.mxu0 0
        %4153 = vmatprep.subr.bf16.mxu0 0
        %4154 = vmatpush1.bf16.msra.mxu0 0
        %4155 = vmatprep.subr.bf16.mxu0 0
        %4156 = vmatpush1.bf16.msra.mxu0 0
        %4157 = vmatprep.subr.bf16.mxu0 0
        %4158 = vmatpush1.bf16.msra.mxu0 0
        %4159 = vmatprep.subr.bf16.mxu0 0
        %4160 = vmatpush1.bf16.msra.mxu0 0
        %4161 = vmatprep.subr.bf16.mxu0 0
        %4162 = vmatpush1.bf16.msra.mxu0 0
        %4163 = vmatprep.subr.bf16.mxu0 0
        %4164 = vmatpush1.bf16.msra.mxu0 0
        %4165 = vmatprep.subr.bf16.mxu0 0
        %4166 = vmatpush1.bf16.msra.mxu0 0
        %4167 = vmatprep.subr.bf16.mxu0 0
        %4168 = vmatpush1.bf16.msra.mxu0 0
        %4169 = vmatprep.mubr.bf16.mxu0 0
        %4170 = vmatmul.mubr.bf16.gmra.mrb[0].mxu0 %v4132
        %v4171 = vpop.f32.mrb[0].mxu0
        %v4172 = vadd.f32 0.0, %v4171
        %v4173 = vpop.f32.mrb[0].mxu0
        %v4174 = vpop.f32.mrb[0].mxu0
        %v4175 = vadd.f32 0.0, %v4174
        %v4176 = vpop.f32.mrb[0].mxu0
        %4177 = vdwg.mxu0
        %4178 = vrot.lane.b32.xlu0 %v3930, 112
        %v4179 = vpop.permute.xlu0 %4178
        %4180 = vrot.lane.b32.xlu0 %v3931, 80
        %v4181 = vpop.permute.xlu0 %4180
        %v4183 = vsel %vm1137, %v4179, 0
        %v4186 = vsel %vm1137, %v4181, 0
        %4188 = vmatprep.subr.bf16.mxu0 0
        %4189 = vmatpush1.bf16.xpose.msra.mxu0 %v4186
        %4190 = vmatprep.subr.bf16.mxu0 0
        %4191 = vmatpush1.bf16.xpose.msra.mxu0 0
        %4192 = vmatprep.subr.bf16.mxu0 0
        %4193 = vmatpush1.bf16.xpose.msra.mxu0 0
        %4194 = vmatprep.subr.bf16.mxu0 0
        %4195 = vmatpush1.bf16.xpose.msra.mxu0 0
        %4196 = vmatprep.subr.bf16.mxu0 0
        %4197 = vmatpush1.bf16.xpose.msra.mxu0 0
        %4198 = vmatprep.subr.bf16.mxu0 0
        %4199 = vmatpush1.bf16.xpose.msra.mxu0 0
        %4200 = vmatprep.subr.bf16.mxu0 0
        %4201 = vmatpush1.bf16.xpose.msra.mxu0 0
        %4202 = vmatprep.subr.bf16.mxu0 0
        %4203 = vmatpush1.bf16.xpose.msra.mxu0 0
        %4204 = vmatprep.subr.bf16.mxu0 0
        %4205 = vmatpush1.bf16.xpose.msra.mxu0 0
        %4206 = vmatprep.subr.bf16.mxu0 0
        %4207 = vmatpush1.bf16.xpose.msra.mxu0 0
        %4208 = vmatprep.subr.bf16.mxu0 0
        %4209 = vmatpush1.bf16.xpose.msra.mxu0 0
        %4210 = vmatprep.subr.bf16.mxu0 0
        %4211 = vmatpush1.bf16.xpose.msra.mxu0 0
        %4212 = vmatprep.subr.bf16.mxu0 0
        %4213 = vmatpush1.bf16.xpose.msra.mxu0 0
        %4214 = vmatprep.subr.bf16.mxu0 0
        %4215 = vmatpush1.bf16.xpose.msra.mxu0 0
        %4216 = vmatprep.subr.bf16.mxu0 0
        %4217 = vmatpush1.bf16.xpose.msra.mxu0 0
        %4218 = vmatprep.subr.bf16.mxu0 0
        %4219 = vmatpush1.bf16.xpose.msra.mxu0 0
        %4220 = vmatprep.mubr.bf16.mxu0 0
        %4221 = vmatmul.mubr.bf16.gmra.mrb[0].mxu0 %v4183
        %v4222 = vpop.f32.mrb[0].mxu0
        %v4223 = vadd.f32 0.0, %v4222
        %v4224 = vpop.f32.mrb[0].mxu0
        %v4225 = vpop.f32.mrb[0].mxu0
        %v4226 = vadd.f32 0.0, %v4225
        %v4227 = vpop.f32.mrb[0].mxu0
        %4228 = vdwg.mxu0
        %v4229 = vsel %vm1185, %v4223, -inf
        %4230 = vmax.xlane.f32.xlu0 %v4229
        %v4231 = vpop.xlane.xlu0 %4230
        %v4232 = vsel %vm1189, %v4226, -inf
        %4233 = vmax.xlane.f32.xlu0 %v4232
        %v4234 = vpop.xlane.xlu0 %4233
        %v4235 = vsub.f32 %v4223, %v4231
        %v4236 = vsub.f32 %v4226, %v4234
        %v4237 = vmul.f32 %v4235, 1.442695
        %v4238 = vpow.pop %v4237
        %v4239 = vmul.f32 %v4236, 1.442695
        %v4240 = vpow.pop %v4239
        %v4241 = vsel %vm1185, %v4238, 0.0
        %4242 = vadd.xlane.f32.xlu0 %v4241
        %v4243 = vpop.xlane.xlu0 %4242
        %v4244 = vsel %vm1189, %v4240, 0.0
        %4245 = vadd.xlane.f32.xlu0 %v4244
        %v4246 = vpop.xlane.xlu0 %4245
        %v4247 = vrcp.pop %v4243
        %v4248 = vrcp.pop %v4246
        %v4249 = vmul.f32 %v4238, %v4247
        %v4250 = vmul.f32 %v4240, %v4248
        %v4251 = vpack.c.bf16 %v4250, %v4249
        %4252 = vrot.lane.b32.xlu0 %v3931, 48
        %v4253 = vpop.permute.xlu0 %4252
        %v4255 = vsel %vm1185, %v4251, 0
        %v4258 = vand.u32 %v4253, %v1218
        %4260 = vmatprep.subr.bf16.mxu0 0
        %4261 = vmatpush1.bf16.msra.mxu0 %v4258
        %4262 = vmatprep.subr.bf16.mxu0 0
        %4263 = vmatpush1.bf16.msra.mxu0 0
        %4264 = vmatprep.subr.bf16.mxu0 0
        %4265 = vmatpush1.bf16.msra.mxu0 0
        %4266 = vmatprep.subr.bf16.mxu0 0
        %4267 = vmatpush1.bf16.msra.mxu0 0
        %4268 = vmatprep.subr.bf16.mxu0 0
        %4269 = vmatpush1.bf16.msra.mxu0 0
        %4270 = vmatprep.subr.bf16.mxu0 0
        %4271 = vmatpush1.bf16.msra.mxu0 0
        %4272 = vmatprep.subr.bf16.mxu0 0
        %4273 = vmatpush1.bf16.msra.mxu0 0
        %4274 = vmatprep.subr.bf16.mxu0 0
        %4275 = vmatpush1.bf16.msra.mxu0 0
        %4276 = vmatprep.subr.bf16.mxu0 0
        %4277 = vmatpush1.bf16.msra.mxu0 0
        %4278 = vmatprep.subr.bf16.mxu0 0
        %4279 = vmatpush1.bf16.msra.mxu0 0
        %4280 = vmatprep.subr.bf16.mxu0 0
        %4281 = vmatpush1.bf16.msra.mxu0 0
        %4282 = vmatprep.subr.bf16.mxu0 0
        %4283 = vmatpush1.bf16.msra.mxu0 0
        %4284 = vmatprep.subr.bf16.mxu0 0
        %4285 = vmatpush1.bf16.msra.mxu0 0
        %4286 = vmatprep.subr.bf16.mxu0 0
        %4287 = vmatpush1.bf16.msra.mxu0 0
        %4288 = vmatprep.subr.bf16.mxu0 0
        %4289 = vmatpush1.bf16.msra.mxu0 0
        %4290 = vmatprep.subr.bf16.mxu0 0
        %4291 = vmatpush1.bf16.msra.mxu0 0
        %4292 = vmatprep.mubr.bf16.mxu0 0
        %4293 = vmatmul.mubr.bf16.gmra.mrb[0].mxu0 %v4255
        %v4294 = vpop.f32.mrb[0].mxu0
        %v4295 = vadd.f32 0.0, %v4294
        %v4296 = vpop.f32.mrb[0].mxu0
        %v4297 = vpop.f32.mrb[0].mxu0
        %v4298 = vadd.f32 0.0, %v4297
        %v4299 = vpop.f32.mrb[0].mxu0
        %4300 = vdwg.mxu0
        %4301 = vrot.lane.b32.xlu0 %v3930, 104
        %v4302 = vpop.permute.xlu0 %4301
        %4303 = vrot.lane.b32.xlu0 %v3931, 72
        %v4304 = vpop.permute.xlu0 %4303
        %v4306 = vsel %vm1137, %v4302, 0
        %v4309 = vsel %vm1137, %v4304, 0
        %4311 = vmatprep.subr.bf16.mxu0 0
        %4312 = vmatpush1.bf16.xpose.msra.mxu0 %v4309
        %4313 = vmatprep.subr.bf16.mxu0 0
        %4314 = vmatpush1.bf16.xpose.msra.mxu0 0
        %4315 = vmatprep.subr.bf16.mxu0 0
        %4316 = vmatpush1.bf16.xpose.msra.mxu0 0
        %4317 = vmatprep.subr.bf16.mxu0 0
        %4318 = vmatpush1.bf16.xpose.msra.mxu0 0
        %4319 = vmatprep.subr.bf16.mxu0 0
        %4320 = vmatpush1.bf16.xpose.msra.mxu0 0
        %4321 = vmatprep.subr.bf16.mxu0 0
        %4322 = vmatpush1.bf16.xpose.msra.mxu0 0
        %4323 = vmatprep.subr.bf16.mxu0 0
        %4324 = vmatpush1.bf16.xpose.msra.mxu0 0
        %4325 = vmatprep.subr.bf16.mxu0 0
        %4326 = vmatpush1.bf16.xpose.msra.mxu0 0
        %4327 = vmatprep.subr.bf16.mxu0 0
        %4328 = vmatpush1.bf16.xpose.msra.mxu0 0
        %4329 = vmatprep.subr.bf16.mxu0 0
        %4330 = vmatpush1.bf16.xpose.msra.mxu0 0
        %4331 = vmatprep.subr.bf16.mxu0 0
        %4332 = vmatpush1.bf16.xpose.msra.mxu0 0
        %4333 = vmatprep.subr.bf16.mxu0 0
        %4334 = vmatpush1.bf16.xpose.msra.mxu0 0
        %4335 = vmatprep.subr.bf16.mxu0 0
        %4336 = vmatpush1.bf16.xpose.msra.mxu0 0
        %4337 = vmatprep.subr.bf16.mxu0 0
        %4338 = vmatpush1.bf16.xpose.msra.mxu0 0
        %4339 = vmatprep.subr.bf16.mxu0 0
        %4340 = vmatpush1.bf16.xpose.msra.mxu0 0
        %4341 = vmatprep.subr.bf16.mxu0 0
        %4342 = vmatpush1.bf16.xpose.msra.mxu0 0
        %4343 = vmatprep.mubr.bf16.mxu0 0
        %4344 = vmatmul.mubr.bf16.gmra.mrb[0].mxu0 %v4306
        %v4345 = vpop.f32.mrb[0].mxu0
        %v4346 = vadd.f32 0.0, %v4345
        %v4347 = vpop.f32.mrb[0].mxu0
        %v4348 = vpop.f32.mrb[0].mxu0
        %v4349 = vadd.f32 0.0, %v4348
        %v4350 = vpop.f32.mrb[0].mxu0
        %4351 = vdwg.mxu0
        %v4352 = vsel %vm1185, %v4346, -inf
        %4353 = vmax.xlane.f32.xlu0 %v4352
        %v4354 = vpop.xlane.xlu0 %4353
        %v4355 = vsel %vm1189, %v4349, -inf
        %4356 = vmax.xlane.f32.xlu0 %v4355
        %v4357 = vpop.xlane.xlu0 %4356
        %v4358 = vsub.f32 %v4346, %v4354
        %v4359 = vsub.f32 %v4349, %v4357
        %v4360 = vmul.f32 %v4358, 1.442695
        %v4361 = vpow.pop %v4360
        %v4362 = vmul.f32 %v4359, 1.442695
        %v4363 = vpow.pop %v4362
        %v4364 = vsel %vm1185, %v4361, 0.0
        %4365 = vadd.xlane.f32.xlu0 %v4364
        %v4366 = vpop.xlane.xlu0 %4365
        %v4367 = vsel %vm1189, %v4363, 0.0
        %4368 = vadd.xlane.f32.xlu0 %v4367
        %v4369 = vpop.xlane.xlu0 %4368
        %v4370 = vrcp.pop %v4366
        %v4371 = vrcp.pop %v4369
        %v4372 = vmul.f32 %v4361, %v4370
        %v4373 = vmul.f32 %v4363, %v4371
        %v4374 = vpack.c.bf16 %v4373, %v4372
        %4375 = vrot.lane.b32.xlu0 %v3931, 40
        %v4376 = vpop.permute.xlu0 %4375
        %v4378 = vsel %vm1185, %v4374, 0
        %v4381 = vand.u32 %v4376, %v1218
        %4383 = vmatprep.subr.bf16.mxu0 0
        %4384 = vmatpush1.bf16.msra.mxu0 %v4381
        %4385 = vmatprep.subr.bf16.mxu0 0
        %4386 = vmatpush1.bf16.msra.mxu0 0
        %4387 = vmatprep.subr.bf16.mxu0 0
        %4388 = vmatpush1.bf16.msra.mxu0 0
        %4389 = vmatprep.subr.bf16.mxu0 0
        %4390 = vmatpush1.bf16.msra.mxu0 0
        %4391 = vmatprep.subr.bf16.mxu0 0
        %4392 = vmatpush1.bf16.msra.mxu0 0
        %4393 = vmatprep.subr.bf16.mxu0 0
        %4394 = vmatpush1.bf16.msra.mxu0 0
        %4395 = vmatprep.subr.bf16.mxu0 0
        %4396 = vmatpush1.bf16.msra.mxu0 0
        %4397 = vmatprep.subr.bf16.mxu0 0
        %4398 = vmatpush1.bf16.msra.mxu0 0
        %4399 = vmatprep.subr.bf16.mxu0 0
        %4400 = vmatpush1.bf16.msra.mxu0 0
        %4401 = vmatprep.subr.bf16.mxu0 0
        %4402 = vmatpush1.bf16.msra.mxu0 0
        %4403 = vmatprep.subr.bf16.mxu0 0
        %4404 = vmatpush1.bf16.msra.mxu0 0
        %4405 = vmatprep.subr.bf16.mxu0 0
        %4406 = vmatpush1.bf16.msra.mxu0 0
        %4407 = vmatprep.subr.bf16.mxu0 0
        %4408 = vmatpush1.bf16.msra.mxu0 0
        %4409 = vmatprep.subr.bf16.mxu0 0
        %4410 = vmatpush1.bf16.msra.mxu0 0
        %4411 = vmatprep.subr.bf16.mxu0 0
        %4412 = vmatpush1.bf16.msra.mxu0 0
        %4413 = vmatprep.subr.bf16.mxu0 0
        %4414 = vmatpush1.bf16.msra.mxu0 0
        %4415 = vmatprep.mubr.bf16.mxu0 0
        %4416 = vmatmul.mubr.bf16.gmra.mrb[0].mxu0 %v4378
        %v4417 = vpop.f32.mrb[0].mxu0
        %v4418 = vadd.f32 0.0, %v4417
        %v4419 = vpop.f32.mrb[0].mxu0
        %v4420 = vpop.f32.mrb[0].mxu0
        %v4421 = vadd.f32 0.0, %v4420
        %v4422 = vpop.f32.mrb[0].mxu0
        %4423 = vdwg.mxu0
        %4426 = vrot.lane.b32.xlu0 %v4172, 8
        %v4427 = vpop.permute.xlu0 %4426
        %4428 = vrot.lane.b32.xlu0 %v4175, 8
        %v4429 = vpop.permute.xlu0 %4428
        %4434 = vrot.lane.b32.xlu0 %v4295, 16
        %v4435 = vpop.permute.xlu0 %4434
        %4436 = vrot.lane.b32.xlu0 %v4298, 16
        %v4437 = vpop.permute.xlu0 %4436
        %4442 = vrot.lane.b32.xlu0 %v4418, 24
        %v4443 = vpop.permute.xlu0 %4442
        %4444 = vrot.lane.b32.xlu0 %v4421, 24
        %v4445 = vpop.permute.xlu0 %4444
        %v4448 = vsel %vm1137, %v4048, %v4427
        %v4449 = vsel %vm1137, %v4051, %v4429
        %v4450 = vsel %vm1659, %v4448, %v4435
        %v4451 = vsel %vm1659, %v4449, %v4437
        %v4452 = vsel %vm1662, %v4450, %v4443
        %v4453 = vsel %vm1662, %v4451, %v4445
        %s4454 = scalar_lea.vmem [#allocation14], 16
        %v4455 = vld [vmem:[%s4454] sm:$0xf]
        %v4456 = vld [vmem:[%s4454 + $0x4] sm:$0xf]
        %v4457 = vld [vmem:[%s4454 + $0x8] sm:$0xf]
        %v4458 = vld [vmem:[%s4454 + $0xc] sm:$0xf]
        %v4459 = vpack.c.bf16 %v4453, %v4452
        %s4460 = scalar_lea.vmem [#allocation16], 1
        %v4461 = vld [vmem:[%s4460] sm:$0x1]
        %v4463 = vlaneseq
        %v4464 = vshrl.u32 %v4463, 7
        %v4465 = vsub.s32 0, %v4464
        %v4466 = vrot.slane %v4461, %v4465
        %v4472 = vunpack.c.l.b16 %v4455
        %v4473 = vunpack.c.l.b16 %v4456
        %v4474 = vunpack.c.l.b16 %v4457
        %v4475 = vunpack.c.l.b16 %v4458
        %v4476 = vpack.c.b16 %v4473, %v4472
        %v4477 = vpack.c.b16 %v4475, %v4474
        %v4481 = vsel %vm1085, %v4459, 0
        %4483 = vmatprep.subr.bf16.mxu0 0
        %4484 = vmatpush1.bf16.msra.mxu0 %v4476
        %4485 = vmatprep.subr.bf16.mxu0 0
        %4486 = vmatpush1.bf16.msra.mxu0 %v4477
        %4487 = vmatprep.subr.bf16.mxu0 0
        %4488 = vmatpush1.bf16.msra.mxu0 0
        %4489 = vmatprep.subr.bf16.mxu0 0
        %4490 = vmatpush1.bf16.msra.mxu0 0
        %4491 = vmatprep.subr.bf16.mxu0 0
        %4492 = vmatpush1.bf16.msra.mxu0 0
        %4493 = vmatprep.subr.bf16.mxu0 0
        %4494 = vmatpush1.bf16.msra.mxu0 0
        %4495 = vmatprep.subr.bf16.mxu0 0
        %4496 = vmatpush1.bf16.msra.mxu0 0
        %4497 = vmatprep.subr.bf16.mxu0 0
        %4498 = vmatpush1.bf16.msra.mxu0 0
        %4499 = vmatprep.subr.bf16.mxu0 0
        %4500 = vmatpush1.bf16.msra.mxu0 0
        %4501 = vmatprep.subr.bf16.mxu0 0
        %4502 = vmatpush1.bf16.msra.mxu0 0
        %4503 = vmatprep.subr.bf16.mxu0 0
        %4504 = vmatpush1.bf16.msra.mxu0 0
        %4505 = vmatprep.subr.bf16.mxu0 0
        %4506 = vmatpush1.bf16.msra.mxu0 0
        %4507 = vmatprep.subr.bf16.mxu0 0
        %4508 = vmatpush1.bf16.msra.mxu0 0
        %4509 = vmatprep.subr.bf16.mxu0 0
        %4510 = vmatpush1.bf16.msra.mxu0 0
        %4511 = vmatprep.subr.bf16.mxu0 0
        %4512 = vmatpush1.bf16.msra.mxu0 0
        %4513 = vmatprep.subr.bf16.mxu0 0
        %4514 = vmatpush1.bf16.msra.mxu0 0
        %4515 = vmatprep.mubr.bf16.mxu0 0
        %4516 = vmatmul.mubr.bf16.gmra.mrb[0].mxu0 %v4481
        %v4517 = vpop.f32.mrb[0].mxu0
        %v4518 = vadd.f32 %v4466, %v4517
        %v4519 = vpop.f32.mrb[0].mxu0
        %v4520 = vpop.f32.mrb[0].mxu0
        %v4521 = vadd.f32 %v4466, %v4520
        %v4522 = vpop.f32.mrb[0].mxu0
        %4523 = vdwg.mxu0
        %v4524 = vadd.f32 %v3856, %v4518
        %v4525 = vadd.f32 %v3857, %v4521
        %s4526 = scalar_lea.vmem [#allocation17], 1
        %v4527 = vld [vmem:[%s4526] sm:$0x1]
        %s4528 = scalar_lea.vmem [#allocation19], 1
        %v4529 = vld [vmem:[%s4528] sm:$0x1]
        %v4530 = vsel %vm1085, %v4524, 0.0
        %4531 = vadd.xlane.f32.xlu0 %v4530
        %v4532 = vpop.xlane.xlu0 %4531
        %v4533 = vsel %vm1740, %v4525, 0.0
        %4534 = vadd.xlane.f32.xlu0 %v4533
        %v4535 = vpop.xlane.xlu0 %4534
        %v4536 = vmul.f32 %v4532, %v1744
        %v4537 = vmul.f32 %v4535, %v1744
        %v4538 = vsub.f32 %v4524, %v4536
        %v4539 = vsub.f32 %v4525, %v4537
        %v4540 = vmul.f32 %v4538, %v4538
        %v4541 = vmul.f32 %v4539, %v4539
        %v4542 = vsel %vm1085, %v4540, 0.0
        %4543 = vadd.xlane.f32.xlu0 %v4542
        %v4544 = vpop.xlane.xlu0 %4543
        %v4545 = vsel %vm1740, %v4541, 0.0
        %4546 = vadd.xlane.f32.xlu0 %v4545
        %v4547 = vpop.xlane.xlu0 %4546
        %v4548 = vmul.f32 %v4544, %v1744
        %v4549 = vmul.f32 %v4547, %v1744
        %v4550 = vadd.f32 %v4548, 1e-05
        %v4551 = vadd.f32 %v4549, 1e-05
        %v4552 = vrsqrt.pop %v4550
        %v4553 = vrsqrt.pop %v4551
        %v4554 = vmul.f32 %v4538, %v4552
        %v4555 = vmul.f32 %v4539, %v4553
        %v4557 = vlaneseq
        %v4558 = vshrl.u32 %v4557, 7
        %v4559 = vsub.s32 0, %v4558
        %v4560 = vrot.slane %v4527, %v4559
        %v4562 = vmul.f32 %v4554, %v4560
        %v4563 = vmul.f32 %v4555, %v4560
        %v4565 = vlaneseq
        %v4566 = vshrl.u32 %v4565, 7
        %v4567 = vsub.s32 0, %v4566
        %v4568 = vrot.slane %v4529, %v4567
        %v4570 = vadd.f32 %v4562, %v4568
        %v4571 = vadd.f32 %v4563, %v4568
        %s4572 = scalar_lea.vmem [#allocation20], 256
        %v4573 = vld [vmem:[%s4572] sm:$0xff]
        %v4574 = vld [vmem:[%s4572 + $0x8] sm:$0xff]
        %v4575 = vld [vmem:[%s4572 + $0x10] sm:$0xff]
        %v4576 = vld [vmem:[%s4572 + $0x18] sm:$0xff]
        %v4577 = vld [vmem:[%s4572 + $0x20] sm:$0xff]
        %v4578 = vld [vmem:[%s4572 + $0x28] sm:$0xff]
        %v4579 = vld [vmem:[%s4572 + $0x30] sm:$0xff]
        %v4580 = vld [vmem:[%s4572 + $0x38] sm:$0xff]
        %v4581 = vld [vmem:[%s4572 + $0x40] sm:$0xff]
        %v4582 = vld [vmem:[%s4572 + $0x48] sm:$0xff]
        %v4583 = vld [vmem:[%s4572 + $0x50] sm:$0xff]
        %v4584 = vld [vmem:[%s4572 + $0x58] sm:$0xff]
        %v4585 = vld [vmem:[%s4572 + $0x60] sm:$0xff]
        %v4586 = vld [vmem:[%s4572 + $0x68] sm:$0xff]
        %v4587 = vld [vmem:[%s4572 + $0x70] sm:$0xff]
        %v4588 = vld [vmem:[%s4572 + $0x78] sm:$0xff]
        %v4589 = vld [vmem:[%s4572 + $0x80] sm:$0xff]
        %v4590 = vld [vmem:[%s4572 + $0x88] sm:$0xff]
        %v4591 = vld [vmem:[%s4572 + $0x90] sm:$0xff]
        %v4592 = vld [vmem:[%s4572 + $0x98] sm:$0xff]
        %v4593 = vld [vmem:[%s4572 + $0xa0] sm:$0xff]
        %v4594 = vld [vmem:[%s4572 + $0xa8] sm:$0xff]
        %v4595 = vld [vmem:[%s4572 + $0xb0] sm:$0xff]
        %v4596 = vld [vmem:[%s4572 + $0xb8] sm:$0xff]
        %v4597 = vld [vmem:[%s4572 + $0xc0] sm:$0xff]
        %v4598 = vld [vmem:[%s4572 + $0xc8] sm:$0xff]
        %v4599 = vld [vmem:[%s4572 + $0xd0] sm:$0xff]
        %v4600 = vld [vmem:[%s4572 + $0xd8] sm:$0xff]
        %v4601 = vld [vmem:[%s4572 + $0xe0] sm:$0xff]
        %v4602 = vld [vmem:[%s4572 + $0xe8] sm:$0xff]
        %v4603 = vld [vmem:[%s4572 + $0xf0] sm:$0xff]
        %v4604 = vld [vmem:[%s4572 + $0xf8] sm:$0xff]
        %v4605 = vpack.c.bf16 %v4571, %v4570
        %s4606 = scalar_lea.vmem [#allocation22], 16
        %v4607 = vld [vmem:[%s4606] sm:$0xff]
        %v4608 = vld [vmem:[%s4606 + $0x8] sm:$0xff]
        %v4611 = vlaneseq
        %v4612 = vshrl.u32 %v4611, 7
        %v4613 = vsub.s32 0, %v4612
        %v4614 = vrot.slane %v4607, %v4613
        %v4615 = vlaneseq
        %v4616 = vshrl.u32 %v4615, 7
        %v4617 = vsub.s32 1, %v4616
        %v4618 = vrot.slane %v4607, %v4617
        %v4619 = vlaneseq
        %v4620 = vshrl.u32 %v4619, 7
        %v4621 = vsub.s32 2, %v4620
        %v4622 = vrot.slane %v4607, %v4621
        %v4623 = vlaneseq
        %v4624 = vshrl.u32 %v4623, 7
        %v4625 = vsub.s32 3, %v4624
        %v4626 = vrot.slane %v4607, %v4625
        %v4627 = vlaneseq
        %v4628 = vshrl.u32 %v4627, 7
        %v4629 = vsub.s32 4, %v4628
        %v4630 = vrot.slane %v4607, %v4629
        %v4631 = vlaneseq
        %v4632 = vshrl.u32 %v4631, 7
        %v4633 = vsub.s32 5, %v4632
        %v4634 = vrot.slane %v4607, %v4633
        %v4635 = vlaneseq
        %v4636 = vshrl.u32 %v4635, 7
        %v4637 = vsub.s32 6, %v4636
        %v4638 = vrot.slane %v4607, %v4637
        %v4639 = vlaneseq
        %v4640 = vshrl.u32 %v4639, 7
        %v4641 = vsub.s32 7, %v4640
        %v4642 = vrot.slane %v4607, %v4641
        %v4643 = vlaneseq
        %v4644 = vshrl.u32 %v4643, 7
        %v4645 = vsub.s32 0, %v4644
        %v4646 = vrot.slane %v4608, %v4645
        %v4647 = vlaneseq
        %v4648 = vshrl.u32 %v4647, 7
        %v4649 = vsub.s32 1, %v4648
        %v4650 = vrot.slane %v4608, %v4649
        %v4651 = vlaneseq
        %v4652 = vshrl.u32 %v4651, 7
        %v4653 = vsub.s32 2, %v4652
        %v4654 = vrot.slane %v4608, %v4653
        %v4655 = vlaneseq
        %v4656 = vshrl.u32 %v4655, 7
        %v4657 = vsub.s32 3, %v4656
        %v4658 = vrot.slane %v4608, %v4657
        %v4659 = vlaneseq
        %v4660 = vshrl.u32 %v4659, 7
        %v4661 = vsub.s32 4, %v4660
        %v4662 = vrot.slane %v4608, %v4661
        %v4663 = vlaneseq
        %v4664 = vshrl.u32 %v4663, 7
        %v4665 = vsub.s32 5, %v4664
        %v4666 = vrot.slane %v4608, %v4665
        %v4667 = vlaneseq
        %v4668 = vshrl.u32 %v4667, 7
        %v4669 = vsub.s32 6, %v4668
        %v4670 = vrot.slane %v4608, %v4669
        %v4671 = vlaneseq
        %v4672 = vshrl.u32 %v4671, 7
        %v4673 = vsub.s32 7, %v4672
        %v4674 = vrot.slane %v4608, %v4673
        %v4723 = vunpack.c.l.b16 %v4573
        %v4724 = vunpack.c.h.b16 %v4573
        %v4725 = vunpack.c.l.b16 %v4574
        %v4726 = vunpack.c.h.b16 %v4574
        %v4727 = vunpack.c.l.b16 %v4575
        %v4728 = vunpack.c.h.b16 %v4575
        %v4729 = vunpack.c.l.b16 %v4576
        %v4730 = vunpack.c.h.b16 %v4576
        %v4731 = vunpack.c.l.b16 %v4577
        %v4732 = vunpack.c.h.b16 %v4577
        %v4733 = vunpack.c.l.b16 %v4578
        %v4734 = vunpack.c.h.b16 %v4578
        %v4735 = vunpack.c.l.b16 %v4579
        %v4736 = vunpack.c.h.b16 %v4579
        %v4737 = vunpack.c.l.b16 %v4580
        %v4738 = vunpack.c.h.b16 %v4580
        %v4739 = vunpack.c.l.b16 %v4581
        %v4740 = vunpack.c.h.b16 %v4581
        %v4741 = vunpack.c.l.b16 %v4582
        %v4742 = vunpack.c.h.b16 %v4582
        %v4743 = vunpack.c.l.b16 %v4583
        %v4744 = vunpack.c.h.b16 %v4583
        %v4745 = vunpack.c.l.b16 %v4584
        %v4746 = vunpack.c.h.b16 %v4584
        %v4747 = vunpack.c.l.b16 %v4585
        %v4748 = vunpack.c.h.b16 %v4585
        %v4749 = vunpack.c.l.b16 %v4586
        %v4750 = vunpack.c.h.b16 %v4586
        %v4751 = vunpack.c.l.b16 %v4587
        %v4752 = vunpack.c.h.b16 %v4587
        %v4753 = vunpack.c.l.b16 %v4588
        %v4754 = vunpack.c.h.b16 %v4588
        %v4755 = vunpack.c.l.b16 %v4589
        %v4756 = vunpack.c.h.b16 %v4589
        %v4757 = vunpack.c.l.b16 %v4590
        %v4758 = vunpack.c.h.b16 %v4590
        %v4759 = vunpack.c.l.b16 %v4591
        %v4760 = vunpack.c.h.b16 %v4591
        %v4761 = vunpack.c.l.b16 %v4592
        %v4762 = vunpack.c.h.b16 %v4592
        %v4763 = vunpack.c.l.b16 %v4593
        %v4764 = vunpack.c.h.b16 %v4593
        %v4765 = vunpack.c.l.b16 %v4594
        %v4766 = vunpack.c.h.b16 %v4594
        %v4767 = vunpack.c.l.b16 %v4595
        %v4768 = vunpack.c.h.b16 %v4595
        %v4769 = vunpack.c.l.b16 %v4596
        %v4770 = vunpack.c.h.b16 %v4596
        %v4771 = vunpack.c.l.b16 %v4597
        %v4772 = vunpack.c.h.b16 %v4597
        %v4773 = vunpack.c.l.b16 %v4598
        %v4774 = vunpack.c.h.b16 %v4598
        %v4775 = vunpack.c.l.b16 %v4599
        %v4776 = vunpack.c.h.b16 %v4599
        %v4777 = vunpack.c.l.b16 %v4600
        %v4778 = vunpack.c.h.b16 %v4600
        %v4779 = vunpack.c.l.b16 %v4601
        %v4780 = vunpack.c.h.b16 %v4601
        %v4781 = vunpack.c.l.b16 %v4602
        %v4782 = vunpack.c.h.b16 %v4602
        %v4783 = vunpack.c.l.b16 %v4603
        %v4784 = vunpack.c.h.b16 %v4603
        %v4785 = vunpack.c.l.b16 %v4604
        %v4786 = vunpack.c.h.b16 %v4604
        %v4787 = vpack.c.b16 %v4739, %v4723
        %v4788 = vpack.c.b16 %v4740, %v4724
        %v4789 = vpack.c.b16 %v4741, %v4725
        %v4790 = vpack.c.b16 %v4742, %v4726
        %v4791 = vpack.c.b16 %v4743, %v4727
        %v4792 = vpack.c.b16 %v4744, %v4728
        %v4793 = vpack.c.b16 %v4745, %v4729
        %v4794 = vpack.c.b16 %v4746, %v4730
        %v4795 = vpack.c.b16 %v4747, %v4731
        %v4796 = vpack.c.b16 %v4748, %v4732
        %v4797 = vpack.c.b16 %v4749, %v4733
        %v4798 = vpack.c.b16 %v4750, %v4734
        %v4799 = vpack.c.b16 %v4751, %v4735
        %v4800 = vpack.c.b16 %v4752, %v4736
        %v4801 = vpack.c.b16 %v4753, %v4737
        %v4802 = vpack.c.b16 %v4754, %v4738
        %v4803 = vpack.c.b16 %v4771, %v4755
        %v4804 = vpack.c.b16 %v4772, %v4756
        %v4805 = vpack.c.b16 %v4773, %v4757
        %v4806 = vpack.c.b16 %v4774, %v4758
        %v4807 = vpack.c.b16 %v4775, %v4759
        %v4808 = vpack.c.b16 %v4776, %v4760
        %v4809 = vpack.c.b16 %v4777, %v4761
        %v4810 = vpack.c.b16 %v4778, %v4762
        %v4811 = vpack.c.b16 %v4779, %v4763
        %v4812 = vpack.c.b16 %v4780, %v4764
        %v4813 = vpack.c.b16 %v4781, %v4765
        %v4814 = vpack.c.b16 %v4782, %v4766
        %v4815 = vpack.c.b16 %v4783, %v4767
        %v4816 = vpack.c.b16 %v4784, %v4768
        %v4817 = vpack.c.b16 %v4785, %v4769
        %v4818 = vpack.c.b16 %v4786, %v4770
        %v4852 = vsel %vm1085, %v4605, 0
        %4854 = vmatprep.subr.bf16.mxu0 %v4788
        %4855 = vmatpush1.bf16.msra.mxu0 %v4787
        %4856 = vmatprep.subr.bf16.mxu0 %v4804
        %4857 = vmatpush1.bf16.msra.mxu0 %v4803
        %4858 = vmatprep.subr.bf16.mxu0 0
        %4859 = vmatpush1.bf16.msra.mxu0 0
        %4860 = vmatprep.subr.bf16.mxu0 0
        %4861 = vmatpush1.bf16.msra.mxu0 0
        %4862 = vmatprep.subr.bf16.mxu0 0
        %4863 = vmatpush1.bf16.msra.mxu0 0
        %4864 = vmatprep.subr.bf16.mxu0 0
        %4865 = vmatpush1.bf16.msra.mxu0 0
        %4866 = vmatprep.subr.bf16.mxu0 0
        %4867 = vmatpush1.bf16.msra.mxu0 0
        %4868 = vmatprep.subr.bf16.mxu0 0
        %4869 = vmatpush1.bf16.msra.mxu0 0
        %4870 = vmatprep.subr.bf16.mxu0 0
        %4871 = vmatpush1.bf16.msra.mxu0 0
        %4872 = vmatprep.subr.bf16.mxu0 0
        %4873 = vmatpush1.bf16.msra.mxu0 0
        %4874 = vmatprep.subr.bf16.mxu0 0
        %4875 = vmatpush1.bf16.msra.mxu0 0
        %4876 = vmatprep.subr.bf16.mxu0 0
        %4877 = vmatpush1.bf16.msra.mxu0 0
        %4878 = vmatprep.subr.bf16.mxu0 0
        %4879 = vmatpush1.bf16.msra.mxu0 0
        %4880 = vmatprep.subr.bf16.mxu0 0
        %4881 = vmatpush1.bf16.msra.mxu0 0
        %4882 = vmatprep.subr.bf16.mxu0 0
        %4883 = vmatpush1.bf16.msra.mxu0 0
        %4884 = vmatprep.subr.bf16.mxu0 0
        %4885 = vmatpush1.bf16.msra.mxu0 0
        %4886 = vmatprep.mubr.bf16.mxu0 0
        %4887 = vmatmul.mubr.bf16.gmra.mrb[0].mxu0 %v4852
        %v4888 = vpop.f32.mrb[0].mxu0
        %v4889 = vadd.f32 %v4614, %v4888
        %v4890 = vpop.f32.mrb[0].mxu0
        %v4891 = vadd.f32 %v4618, %v4890
        %v4892 = vpop.f32.mrb[0].mxu0
        %v4893 = vadd.f32 %v4614, %v4892
        %v4894 = vpop.f32.mrb[0].mxu0
        %v4895 = vadd.f32 %v4618, %v4894
        %4896 = vdwg.mxu0
        %4897 = vmatprep.subr.bf16.mxu0 %v4790
        %4898 = vmatpush1.bf16.msra.mxu0 %v4789
        %4899 = vmatprep.subr.bf16.mxu0 %v4806
        %4900 = vmatpush1.bf16.msra.mxu0 %v4805
        %4901 = vmatprep.subr.bf16.mxu0 0
        %4902 = vmatpush1.bf16.msra.mxu0 0
        %4903 = vmatprep.subr.bf16.mxu0 0
        %4904 = vmatpush1.bf16.msra.mxu0 0
        %4905 = vmatprep.subr.bf16.mxu0 0
        %4906 = vmatpush1.bf16.msra.mxu0 0
        %4907 = vmatprep.subr.bf16.mxu0 0
        %4908 = vmatpush1.bf16.msra.mxu0 0
        %4909 = vmatprep.subr.bf16.mxu0 0
        %4910 = vmatpush1.bf16.msra.mxu0 0
        %4911 = vmatprep.subr.bf16.mxu0 0
        %4912 = vmatpush1.bf16.msra.mxu0 0
        %4913 = vmatprep.subr.bf16.mxu0 0
        %4914 = vmatpush1.bf16.msra.mxu0 0
        %4915 = vmatprep.subr.bf16.mxu0 0
        %4916 = vmatpush1.bf16.msra.mxu0 0
        %4917 = vmatprep.subr.bf16.mxu0 0
        %4918 = vmatpush1.bf16.msra.mxu0 0
        %4919 = vmatprep.subr.bf16.mxu0 0
        %4920 = vmatpush1.bf16.msra.mxu0 0
        %4921 = vmatprep.subr.bf16.mxu0 0
        %4922 = vmatpush1.bf16.msra.mxu0 0
        %4923 = vmatprep.subr.bf16.mxu0 0
        %4924 = vmatpush1.bf16.msra.mxu0 0
        %4925 = vmatprep.subr.bf16.mxu0 0
        %4926 = vmatpush1.bf16.msra.mxu0 0
        %4927 = vmatprep.subr.bf16.mxu0 0
        %4928 = vmatpush1.bf16.msra.mxu0 0
        %4929 = vmatprep.mubr.bf16.mxu0 0
        %4930 = vmatmul.mubr.bf16.gmra.mrb[0].mxu0 %v4852
        %v4931 = vpop.f32.mrb[0].mxu0
        %v4932 = vadd.f32 %v4622, %v4931
        %v4933 = vpop.f32.mrb[0].mxu0
        %v4934 = vadd.f32 %v4626, %v4933
        %v4935 = vpop.f32.mrb[0].mxu0
        %v4936 = vadd.f32 %v4622, %v4935
        %v4937 = vpop.f32.mrb[0].mxu0
        %v4938 = vadd.f32 %v4626, %v4937
        %4939 = vdwg.mxu0
        %4940 = vmatprep.subr.bf16.mxu0 %v4792
        %4941 = vmatpush1.bf16.msra.mxu0 %v4791
        %4942 = vmatprep.subr.bf16.mxu0 %v4808
        %4943 = vmatpush1.bf16.msra.mxu0 %v4807
        %4944 = vmatprep.subr.bf16.mxu0 0
        %4945 = vmatpush1.bf16.msra.mxu0 0
        %4946 = vmatprep.subr.bf16.mxu0 0
        %4947 = vmatpush1.bf16.msra.mxu0 0
        %4948 = vmatprep.subr.bf16.mxu0 0
        %4949 = vmatpush1.bf16.msra.mxu0 0
        %4950 = vmatprep.subr.bf16.mxu0 0
        %4951 = vmatpush1.bf16.msra.mxu0 0
        %4952 = vmatprep.subr.bf16.mxu0 0
        %4953 = vmatpush1.bf16.msra.mxu0 0
        %4954 = vmatprep.subr.bf16.mxu0 0
        %4955 = vmatpush1.bf16.msra.mxu0 0
        %4956 = vmatprep.subr.bf16.mxu0 0
        %4957 = vmatpush1.bf16.msra.mxu0 0
        %4958 = vmatprep.subr.bf16.mxu0 0
        %4959 = vmatpush1.bf16.msra.mxu0 0
        %4960 = vmatprep.subr.bf16.mxu0 0
        %4961 = vmatpush1.bf16.msra.mxu0 0
        %4962 = vmatprep.subr.bf16.mxu0 0
        %4963 = vmatpush1.bf16.msra.mxu0 0
        %4964 = vmatprep.subr.bf16.mxu0 0
        %4965 = vmatpush1.bf16.msra.mxu0 0
        %4966 = vmatprep.subr.bf16.mxu0 0
        %4967 = vmatpush1.bf16.msra.mxu0 0
        %4968 = vmatprep.subr.bf16.mxu0 0
        %4969 = vmatpush1.bf16.msra.mxu0 0
        %4970 = vmatprep.subr.bf16.mxu0 0
        %4971 = vmatpush1.bf16.msra.mxu0 0
        %4972 = vmatprep.mubr.bf16.mxu0 0
        %4973 = vmatmul.mubr.bf16.gmra.mrb[0].mxu0 %v4852
        %v4974 = vpop.f32.mrb[0].mxu0
        %v4975 = vadd.f32 %v4630, %v4974
        %v4976 = vpop.f32.mrb[0].mxu0
        %v4977 = vadd.f32 %v4634, %v4976
        %v4978 = vpop.f32.mrb[0].mxu0
        %v4979 = vadd.f32 %v4630, %v4978
        %v4980 = vpop.f32.mrb[0].mxu0
        %v4981 = vadd.f32 %v4634, %v4980
        %4982 = vdwg.mxu0
        %4983 = vmatprep.subr.bf16.mxu0 %v4794
        %4984 = vmatpush1.bf16.msra.mxu0 %v4793
        %4985 = vmatprep.subr.bf16.mxu0 %v4810
        %4986 = vmatpush1.bf16.msra.mxu0 %v4809
        %4987 = vmatprep.subr.bf16.mxu0 0
        %4988 = vmatpush1.bf16.msra.mxu0 0
        %4989 = vmatprep.subr.bf16.mxu0 0
        %4990 = vmatpush1.bf16.msra.mxu0 0
        %4991 = vmatprep.subr.bf16.mxu0 0
        %4992 = vmatpush1.bf16.msra.mxu0 0
        %4993 = vmatprep.subr.bf16.mxu0 0
        %4994 = vmatpush1.bf16.msra.mxu0 0
        %4995 = vmatprep.subr.bf16.mxu0 0
        %4996 = vmatpush1.bf16.msra.mxu0 0
        %4997 = vmatprep.subr.bf16.mxu0 0
        %4998 = vmatpush1.bf16.msra.mxu0 0
        %4999 = vmatprep.subr.bf16.mxu0 0
        %5000 = vmatpush1.bf16.msra.mxu0 0
        %5001 = vmatprep.subr.bf16.mxu0 0
        %5002 = vmatpush1.bf16.msra.mxu0 0
        %5003 = vmatprep.subr.bf16.mxu0 0
        %5004 = vmatpush1.bf16.msra.mxu0 0
        %5005 = vmatprep.subr.bf16.mxu0 0
        %5006 = vmatpush1.bf16.msra.mxu0 0
        %5007 = vmatprep.subr.bf16.mxu0 0
        %5008 = vmatpush1.bf16.msra.mxu0 0
        %5009 = vmatprep.subr.bf16.mxu0 0
        %5010 = vmatpush1.bf16.msra.mxu0 0
        %5011 = vmatprep.subr.bf16.mxu0 0
        %5012 = vmatpush1.bf16.msra.mxu0 0
        %5013 = vmatprep.subr.bf16.mxu0 0
        %5014 = vmatpush1.bf16.msra.mxu0 0
        %5015 = vmatprep.mubr.bf16.mxu0 0
        %5016 = vmatmul.mubr.bf16.gmra.mrb[0].mxu0 %v4852
        %v5017 = vpop.f32.mrb[0].mxu0
        %v5018 = vadd.f32 %v4638, %v5017
        %v5019 = vpop.f32.mrb[0].mxu0
        %v5020 = vadd.f32 %v4642, %v5019
        %v5021 = vpop.f32.mrb[0].mxu0
        %v5022 = vadd.f32 %v4638, %v5021
        %v5023 = vpop.f32.mrb[0].mxu0
        %v5024 = vadd.f32 %v4642, %v5023
        %5025 = vdwg.mxu0
        %5026 = vmatprep.subr.bf16.mxu0 %v4796
        %5027 = vmatpush1.bf16.msra.mxu0 %v4795
        %5028 = vmatprep.subr.bf16.mxu0 %v4812
        %5029 = vmatpush1.bf16.msra.mxu0 %v4811
        %5030 = vmatprep.subr.bf16.mxu0 0
        %5031 = vmatpush1.bf16.msra.mxu0 0
        %5032 = vmatprep.subr.bf16.mxu0 0
        %5033 = vmatpush1.bf16.msra.mxu0 0
        %5034 = vmatprep.subr.bf16.mxu0 0
        %5035 = vmatpush1.bf16.msra.mxu0 0
        %5036 = vmatprep.subr.bf16.mxu0 0
        %5037 = vmatpush1.bf16.msra.mxu0 0
        %5038 = vmatprep.subr.bf16.mxu0 0
        %5039 = vmatpush1.bf16.msra.mxu0 0
        %5040 = vmatprep.subr.bf16.mxu0 0
        %5041 = vmatpush1.bf16.msra.mxu0 0
        %5042 = vmatprep.subr.bf16.mxu0 0
        %5043 = vmatpush1.bf16.msra.mxu0 0
        %5044 = vmatprep.subr.bf16.mxu0 0
        %5045 = vmatpush1.bf16.msra.mxu0 0
        %5046 = vmatprep.subr.bf16.mxu0 0
        %5047 = vmatpush1.bf16.msra.mxu0 0
        %5048 = vmatprep.subr.bf16.mxu0 0
        %5049 = vmatpush1.bf16.msra.mxu0 0
        %5050 = vmatprep.subr.bf16.mxu0 0
        %5051 = vmatpush1.bf16.msra.mxu0 0
        %5052 = vmatprep.subr.bf16.mxu0 0
        %5053 = vmatpush1.bf16.msra.mxu0 0
        %5054 = vmatprep.subr.bf16.mxu0 0
        %5055 = vmatpush1.bf16.msra.mxu0 0
        %5056 = vmatprep.subr.bf16.mxu0 0
        %5057 = vmatpush1.bf16.msra.mxu0 0
        %5058 = vmatprep.mubr.bf16.mxu0 0
        %5059 = vmatmul.mubr.bf16.gmra.mrb[0].mxu0 %v4852
        %v5060 = vpop.f32.mrb[0].mxu0
        %v5061 = vadd.f32 %v4646, %v5060
        %v5062 = vpop.f32.mrb[0].mxu0
        %v5063 = vadd.f32 %v4650, %v5062
        %v5064 = vpop.f32.mrb[0].mxu0
        %v5065 = vadd.f32 %v4646, %v5064
        %v5066 = vpop.f32.mrb[0].mxu0
        %v5067 = vadd.f32 %v4650, %v5066
        %5068 = vdwg.mxu0
        %5069 = vmatprep.subr.bf16.mxu0 %v4798
        %5070 = vmatpush1.bf16.msra.mxu0 %v4797
        %5071 = vmatprep.subr.bf16.mxu0 %v4814
        %5072 = vmatpush1.bf16.msra.mxu0 %v4813
        %5073 = vmatprep.subr.bf16.mxu0 0
        %5074 = vmatpush1.bf16.msra.mxu0 0
        %5075 = vmatprep.subr.bf16.mxu0 0
        %5076 = vmatpush1.bf16.msra.mxu0 0
        %5077 = vmatprep.subr.bf16.mxu0 0
        %5078 = vmatpush1.bf16.msra.mxu0 0
        %5079 = vmatprep.subr.bf16.mxu0 0
        %5080 = vmatpush1.bf16.msra.mxu0 0
        %5081 = vmatprep.subr.bf16.mxu0 0
        %5082 = vmatpush1.bf16.msra.mxu0 0
        %5083 = vmatprep.subr.bf16.mxu0 0
        %5084 = vmatpush1.bf16.msra.mxu0 0
        %5085 = vmatprep.subr.bf16.mxu0 0
        %5086 = vmatpush1.bf16.msra.mxu0 0
        %5087 = vmatprep.subr.bf16.mxu0 0
        %5088 = vmatpush1.bf16.msra.mxu0 0
        %5089 = vmatprep.subr.bf16.mxu0 0
        %5090 = vmatpush1.bf16.msra.mxu0 0
        %5091 = vmatprep.subr.bf16.mxu0 0
        %5092 = vmatpush1.bf16.msra.mxu0 0
        %5093 = vmatprep.subr.bf16.mxu0 0
        %5094 = vmatpush1.bf16.msra.mxu0 0
        %5095 = vmatprep.subr.bf16.mxu0 0
        %5096 = vmatpush1.bf16.msra.mxu0 0
        %5097 = vmatprep.subr.bf16.mxu0 0
        %5098 = vmatpush1.bf16.msra.mxu0 0
        %5099 = vmatprep.subr.bf16.mxu0 0
        %5100 = vmatpush1.bf16.msra.mxu0 0
        %5101 = vmatprep.mubr.bf16.mxu0 0
        %5102 = vmatmul.mubr.bf16.gmra.mrb[0].mxu0 %v4852
        %v5103 = vpop.f32.mrb[0].mxu0
        %v5104 = vadd.f32 %v4654, %v5103
        %v5105 = vpop.f32.mrb[0].mxu0
        %v5106 = vadd.f32 %v4658, %v5105
        %v5107 = vpop.f32.mrb[0].mxu0
        %v5108 = vadd.f32 %v4654, %v5107
        %v5109 = vpop.f32.mrb[0].mxu0
        %v5110 = vadd.f32 %v4658, %v5109
        %5111 = vdwg.mxu0
        %5112 = vmatprep.subr.bf16.mxu0 %v4800
        %5113 = vmatpush1.bf16.msra.mxu0 %v4799
        %5114 = vmatprep.subr.bf16.mxu0 %v4816
        %5115 = vmatpush1.bf16.msra.mxu0 %v4815
        %5116 = vmatprep.subr.bf16.mxu0 0
        %5117 = vmatpush1.bf16.msra.mxu0 0
        %5118 = vmatprep.subr.bf16.mxu0 0
        %5119 = vmatpush1.bf16.msra.mxu0 0
        %5120 = vmatprep.subr.bf16.mxu0 0
        %5121 = vmatpush1.bf16.msra.mxu0 0
        %5122 = vmatprep.subr.bf16.mxu0 0
        %5123 = vmatpush1.bf16.msra.mxu0 0
        %5124 = vmatprep.subr.bf16.mxu0 0
        %5125 = vmatpush1.bf16.msra.mxu0 0
        %5126 = vmatprep.subr.bf16.mxu0 0
        %5127 = vmatpush1.bf16.msra.mxu0 0
        %5128 = vmatprep.subr.bf16.mxu0 0
        %5129 = vmatpush1.bf16.msra.mxu0 0
        %5130 = vmatprep.subr.bf16.mxu0 0
        %5131 = vmatpush1.bf16.msra.mxu0 0
        %5132 = vmatprep.subr.bf16.mxu0 0
        %5133 = vmatpush1.bf16.msra.mxu0 0
        %5134 = vmatprep.subr.bf16.mxu0 0
        %5135 = vmatpush1.bf16.msra.mxu0 0
        %5136 = vmatprep.subr.bf16.mxu0 0
        %5137 = vmatpush1.bf16.msra.mxu0 0
        %5138 = vmatprep.subr.bf16.mxu0 0
        %5139 = vmatpush1.bf16.msra.mxu0 0
        %5140 = vmatprep.subr.bf16.mxu0 0
        %5141 = vmatpush1.bf16.msra.mxu0 0
        %5142 = vmatprep.subr.bf16.mxu0 0
        %5143 = vmatpush1.bf16.msra.mxu0 0
        %5144 = vmatprep.mubr.bf16.mxu0 0
        %5145 = vmatmul.mubr.bf16.gmra.mrb[0].mxu0 %v4852
        %v5146 = vpop.f32.mrb[0].mxu0
        %v5147 = vadd.f32 %v4662, %v5146
        %v5148 = vpop.f32.mrb[0].mxu0
        %v5149 = vadd.f32 %v4666, %v5148
        %v5150 = vpop.f32.mrb[0].mxu0
        %v5151 = vadd.f32 %v4662, %v5150
        %v5152 = vpop.f32.mrb[0].mxu0
        %v5153 = vadd.f32 %v4666, %v5152
        %5154 = vdwg.mxu0
        %5155 = vmatprep.subr.bf16.mxu0 %v4802
        %5156 = vmatpush1.bf16.msra.mxu0 %v4801
        %5157 = vmatprep.subr.bf16.mxu0 %v4818
        %5158 = vmatpush1.bf16.msra.mxu0 %v4817
        %5159 = vmatprep.subr.bf16.mxu0 0
        %5160 = vmatpush1.bf16.msra.mxu0 0
        %5161 = vmatprep.subr.bf16.mxu0 0
        %5162 = vmatpush1.bf16.msra.mxu0 0
        %5163 = vmatprep.subr.bf16.mxu0 0
        %5164 = vmatpush1.bf16.msra.mxu0 0
        %5165 = vmatprep.subr.bf16.mxu0 0
        %5166 = vmatpush1.bf16.msra.mxu0 0
        %5167 = vmatprep.subr.bf16.mxu0 0
        %5168 = vmatpush1.bf16.msra.mxu0 0
        %5169 = vmatprep.subr.bf16.mxu0 0
        %5170 = vmatpush1.bf16.msra.mxu0 0
        %5171 = vmatprep.subr.bf16.mxu0 0
        %5172 = vmatpush1.bf16.msra.mxu0 0
        %5173 = vmatprep.subr.bf16.mxu0 0
        %5174 = vmatpush1.bf16.msra.mxu0 0
        %5175 = vmatprep.subr.bf16.mxu0 0
        %5176 = vmatpush1.bf16.msra.mxu0 0
        %5177 = vmatprep.subr.bf16.mxu0 0
        %5178 = vmatpush1.bf16.msra.mxu0 0
        %5179 = vmatprep.subr.bf16.mxu0 0
        %5180 = vmatpush1.bf16.msra.mxu0 0
        %5181 = vmatprep.subr.bf16.mxu0 0
        %5182 = vmatpush1.bf16.msra.mxu0 0
        %5183 = vmatprep.subr.bf16.mxu0 0
        %5184 = vmatpush1.bf16.msra.mxu0 0
        %5185 = vmatprep.subr.bf16.mxu0 0
        %5186 = vmatpush1.bf16.msra.mxu0 0
        %5187 = vmatprep.mubr.bf16.mxu0 0
        %5188 = vmatmul.mubr.bf16.gmra.mrb[0].mxu0 %v4852
        %v5189 = vpop.f32.mrb[0].mxu0
        %v5190 = vadd.f32 %v4670, %v5189
        %v5191 = vpop.f32.mrb[0].mxu0
        %v5192 = vadd.f32 %v4674, %v5191
        %v5193 = vpop.f32.mrb[0].mxu0
        %v5194 = vadd.f32 %v4670, %v5193
        %v5195 = vpop.f32.mrb[0].mxu0
        %v5196 = vadd.f32 %v4674, %v5195
        %5197 = vdwg.mxu0
        %v5198 = vmax.f32 %v4889, 0.0
        %v5199 = vmax.f32 %v4891, 0.0
        %v5200 = vmax.f32 %v4932, 0.0
        %v5201 = vmax.f32 %v4934, 0.0
        %v5202 = vmax.f32 %v4975, 0.0
        %v5203 = vmax.f32 %v4977, 0.0
        %v5204 = vmax.f32 %v5018, 0.0
        %v5205 = vmax.f32 %v5020, 0.0
        %v5206 = vmax.f32 %v5061, 0.0
        %v5207 = vmax.f32 %v5063, 0.0
        %v5208 = vmax.f32 %v5104, 0.0
        %v5209 = vmax.f32 %v5106, 0.0
        %v5210 = vmax.f32 %v5147, 0.0
        %v5211 = vmax.f32 %v5149, 0.0
        %v5212 = vmax.f32 %v5190, 0.0
        %v5213 = vmax.f32 %v5192, 0.0
        %v5214 = vmax.f32 %v4893, 0.0
        %v5215 = vmax.f32 %v4895, 0.0
        %v5216 = vmax.f32 %v4936, 0.0
        %v5217 = vmax.f32 %v4938, 0.0
        %v5218 = vmax.f32 %v4979, 0.0
        %v5219 = vmax.f32 %v4981, 0.0
        %v5220 = vmax.f32 %v5022, 0.0
        %v5221 = vmax.f32 %v5024, 0.0
        %v5222 = vmax.f32 %v5065, 0.0
        %v5223 = vmax.f32 %v5067, 0.0
        %v5224 = vmax.f32 %v5108, 0.0
        %v5225 = vmax.f32 %v5110, 0.0
        %v5226 = vmax.f32 %v5151, 0.0
        %v5227 = vmax.f32 %v5153, 0.0
        %v5228 = vmax.f32 %v5194, 0.0
        %v5229 = vmax.f32 %v5196, 0.0
        %s5230 = scalar_lea.vmem [#allocation23], 1024
        %v5231 = vld [vmem:[%s5230] sm:$0xf]
        %v5232 = vld [vmem:[%s5230 + $0x4] sm:$0xf]
        %v5233 = vld [vmem:[%s5230 + $0x8] sm:$0xf]
        %v5234 = vld [vmem:[%s5230 + $0xc] sm:$0xf]
        %v5235 = vld [vmem:[%s5230 + $0x10] sm:$0xf]
        %v5236 = vld [vmem:[%s5230 + $0x14] sm:$0xf]
        %v5237 = vld [vmem:[%s5230 + $0x18] sm:$0xf]
        %v5238 = vld [vmem:[%s5230 + $0x1c] sm:$0xf]
        %v5239 = vld [vmem:[%s5230 + $0x20] sm:$0xf]
        %v5240 = vld [vmem:[%s5230 + $0x24] sm:$0xf]
        %v5241 = vld [vmem:[%s5230 + $0x28] sm:$0xf]
        %v5242 = vld [vmem:[%s5230 + $0x2c] sm:$0xf]
        %v5243 = vld [vmem:[%s5230 + $0x30] sm:$0xf]
        %v5244 = vld [vmem:[%s5230 + $0x34] sm:$0xf]
        %v5245 = vld [vmem:[%s5230 + $0x38] sm:$0xf]
        %v5246 = vld [vmem:[%s5230 + $0x3c] sm:$0xf]
        %v5247 = vld [vmem:[%s5230 + $0x40] sm:$0xf]
        %v5248 = vld [vmem:[%s5230 + $0x44] sm:$0xf]
        %v5249 = vld [vmem:[%s5230 + $0x48] sm:$0xf]
        %v5250 = vld [vmem:[%s5230 + $0x4c] sm:$0xf]
        %v5251 = vld [vmem:[%s5230 + $0x50] sm:$0xf]
        %v5252 = vld [vmem:[%s5230 + $0x54] sm:$0xf]
        %v5253 = vld [vmem:[%s5230 + $0x58] sm:$0xf]
        %v5254 = vld [vmem:[%s5230 + $0x5c] sm:$0xf]
        %v5255 = vld [vmem:[%s5230 + $0x60] sm:$0xf]
        %v5256 = vld [vmem:[%s5230 + $0x64] sm:$0xf]
        %v5257 = vld [vmem:[%s5230 + $0x68] sm:$0xf]
        %v5258 = vld [vmem:[%s5230 + $0x6c] sm:$0xf]
        %v5259 = vld [vmem:[%s5230 + $0x70] sm:$0xf]
        %v5260 = vld [vmem:[%s5230 + $0x74] sm:$0xf]
        %v5261 = vld [vmem:[%s5230 + $0x78] sm:$0xf]
        %v5262 = vld [vmem:[%s5230 + $0x7c] sm:$0xf]
        %v5263 = vld [vmem:[%s5230 + $0x80] sm:$0xf]
        %v5264 = vld [vmem:[%s5230 + $0x84] sm:$0xf]
        %v5265 = vld [vmem:[%s5230 + $0x88] sm:$0xf]
        %v5266 = vld [vmem:[%s5230 + $0x8c] sm:$0xf]
        %v5267 = vld [vmem:[%s5230 + $0x90] sm:$0xf]
        %v5268 = vld [vmem:[%s5230 + $0x94] sm:$0xf]
        %v5269 = vld [vmem:[%s5230 + $0x98] sm:$0xf]
        %v5270 = vld [vmem:[%s5230 + $0x9c] sm:$0xf]
        %v5271 = vld [vmem:[%s5230 + $0xa0] sm:$0xf]
        %v5272 = vld [vmem:[%s5230 + $0xa4] sm:$0xf]
        %v5273 = vld [vmem:[%s5230 + $0xa8] sm:$0xf]
        %v5274 = vld [vmem:[%s5230 + $0xac] sm:$0xf]
        %v5275 = vld [vmem:[%s5230 + $0xb0] sm:$0xf]
        %v5276 = vld [vmem:[%s5230 + $0xb4] sm:$0xf]
        %v5277 = vld [vmem:[%s5230 + $0xb8] sm:$0xf]
        %v5278 = vld [vmem:[%s5230 + $0xbc] sm:$0xf]
        %v5279 = vld [vmem:[%s5230 + $0xc0] sm:$0xf]
        %v5280 = vld [vmem:[%s5230 + $0xc4] sm:$0xf]
        %v5281 = vld [vmem:[%s5230 + $0xc8] sm:$0xf]
        %v5282 = vld [vmem:[%s5230 + $0xcc] sm:$0xf]
        %v5283 = vld [vmem:[%s5230 + $0xd0] sm:$0xf]
        %v5284 = vld [vmem:[%s5230 + $0xd4] sm:$0xf]
        %v5285 = vld [vmem:[%s5230 + $0xd8] sm:$0xf]
        %v5286 = vld [vmem:[%s5230 + $0xdc] sm:$0xf]
        %v5287 = vld [vmem:[%s5230 + $0xe0] sm:$0xf]
        %v5288 = vld [vmem:[%s5230 + $0xe4] sm:$0xf]
        %v5289 = vld [vmem:[%s5230 + $0xe8] sm:$0xf]
        %v5290 = vld [vmem:[%s5230 + $0xec] sm:$0xf]
        %v5291 = vld [vmem:[%s5230 + $0xf0] sm:$0xf]
        %v5292 = vld [vmem:[%s5230 + $0xf4] sm:$0xf]
        %v5293 = vld [vmem:[%s5230 + $0xf8] sm:$0xf]
        %v5294 = vld [vmem:[%s5230 + $0xfc] sm:$0xf]
        %v5295 = vld [vmem:[%s5230 + $0x100] sm:$0xf]
        %v5296 = vld [vmem:[%s5230 + $0x104] sm:$0xf]
        %v5297 = vld [vmem:[%s5230 + $0x108] sm:$0xf]
        %v5298 = vld [vmem:[%s5230 + $0x10c] sm:$0xf]
        %v5299 = vld [vmem:[%s5230 + $0x110] sm:$0xf]
        %v5300 = vld [vmem:[%s5230 + $0x114] sm:$0xf]
        %v5301 = vld [vmem:[%s5230 + $0x118] sm:$0xf]
        %v5302 = vld [vmem:[%s5230 + $0x11c] sm:$0xf]
        %v5303 = vld [vmem:[%s5230 + $0x120] sm:$0xf]
        %v5304 = vld [vmem:[%s5230 + $0x124] sm:$0xf]
        %v5305 = vld [vmem:[%s5230 + $0x128] sm:$0xf]
        %v5306 = vld [vmem:[%s5230 + $0x12c] sm:$0xf]
        %v5307 = vld [vmem:[%s5230 + $0x130] sm:$0xf]
        %v5308 = vld [vmem:[%s5230 + $0x134] sm:$0xf]
        %v5309 = vld [vmem:[%s5230 + $0x138] sm:$0xf]
        %v5310 = vld [vmem:[%s5230 + $0x13c] sm:$0xf]
        %v5311 = vld [vmem:[%s5230 + $0x140] sm:$0xf]
        %v5312 = vld [vmem:[%s5230 + $0x144] sm:$0xf]
        %v5313 = vld [vmem:[%s5230 + $0x148] sm:$0xf]
        %v5314 = vld [vmem:[%s5230 + $0x14c] sm:$0xf]
        %v5315 = vld [vmem:[%s5230 + $0x150] sm:$0xf]
        %v5316 = vld [vmem:[%s5230 + $0x154] sm:$0xf]
        %v5317 = vld [vmem:[%s5230 + $0x158] sm:$0xf]
        %v5318 = vld [vmem:[%s5230 + $0x15c] sm:$0xf]
        %v5319 = vld [vmem:[%s5230 + $0x160] sm:$0xf]
        %v5320 = vld [vmem:[%s5230 + $0x164] sm:$0xf]
        %v5321 = vld [vmem:[%s5230 + $0x168] sm:$0xf]
        %v5322 = vld [vmem:[%s5230 + $0x16c] sm:$0xf]
        %v5323 = vld [vmem:[%s5230 + $0x170] sm:$0xf]
        %v5324 = vld [vmem:[%s5230 + $0x174] sm:$0xf]
        %v5325 = vld [vmem:[%s5230 + $0x178] sm:$0xf]
        %v5326 = vld [vmem:[%s5230 + $0x17c] sm:$0xf]
        %v5327 = vld [vmem:[%s5230 + $0x180] sm:$0xf]
        %v5328 = vld [vmem:[%s5230 + $0x184] sm:$0xf]
        %v5329 = vld [vmem:[%s5230 + $0x188] sm:$0xf]
        %v5330 = vld [vmem:[%s5230 + $0x18c] sm:$0xf]
        %v5331 = vld [vmem:[%s5230 + $0x190] sm:$0xf]
        %v5332 = vld [vmem:[%s5230 + $0x194] sm:$0xf]
        %v5333 = vld [vmem:[%s5230 + $0x198] sm:$0xf]
        %v5334 = vld [vmem:[%s5230 + $0x19c] sm:$0xf]
        %v5335 = vld [vmem:[%s5230 + $0x1a0] sm:$0xf]
        %v5336 = vld [vmem:[%s5230 + $0x1a4] sm:$0xf]
        %v5337 = vld [vmem:[%s5230 + $0x1a8] sm:$0xf]
        %v5338 = vld [vmem:[%s5230 + $0x1ac] sm:$0xf]
        %v5339 = vld [vmem:[%s5230 + $0x1b0] sm:$0xf]
        %v5340 = vld [vmem:[%s5230 + $0x1b4] sm:$0xf]
        %v5341 = vld [vmem:[%s5230 + $0x1b8] sm:$0xf]
        %v5342 = vld [vmem:[%s5230 + $0x1bc] sm:$0xf]
        %v5343 = vld [vmem:[%s5230 + $0x1c0] sm:$0xf]
        %v5344 = vld [vmem:[%s5230 + $0x1c4] sm:$0xf]
        %v5345 = vld [vmem:[%s5230 + $0x1c8] sm:$0xf]
        %v5346 = vld [vmem:[%s5230 + $0x1cc] sm:$0xf]
        %v5347 = vld [vmem:[%s5230 + $0x1d0] sm:$0xf]
        %v5348 = vld [vmem:[%s5230 + $0x1d4] sm:$0xf]
        %v5349 = vld [vmem:[%s5230 + $0x1d8] sm:$0xf]
        %v5350 = vld [vmem:[%s5230 + $0x1dc] sm:$0xf]
        %v5351 = vld [vmem:[%s5230 + $0x1e0] sm:$0xf]
        %v5352 = vld [vmem:[%s5230 + $0x1e4] sm:$0xf]
        %v5353 = vld [vmem:[%s5230 + $0x1e8] sm:$0xf]
        %v5354 = vld [vmem:[%s5230 + $0x1ec] sm:$0xf]
        %v5355 = vld [vmem:[%s5230 + $0x1f0] sm:$0xf]
        %v5356 = vld [vmem:[%s5230 + $0x1f4] sm:$0xf]
        %v5357 = vld [vmem:[%s5230 + $0x1f8] sm:$0xf]
        %v5358 = vld [vmem:[%s5230 + $0x1fc] sm:$0xf]
        %v5359 = vld [vmem:[%s5230 + $0x200] sm:$0xf]
        %v5360 = vld [vmem:[%s5230 + $0x204] sm:$0xf]
        %v5361 = vld [vmem:[%s5230 + $0x208] sm:$0xf]
        %v5362 = vld [vmem:[%s5230 + $0x20c] sm:$0xf]
        %v5363 = vld [vmem:[%s5230 + $0x210] sm:$0xf]
        %v5364 = vld [vmem:[%s5230 + $0x214] sm:$0xf]
        %v5365 = vld [vmem:[%s5230 + $0x218] sm:$0xf]
        %v5366 = vld [vmem:[%s5230 + $0x21c] sm:$0xf]
        %v5367 = vld [vmem:[%s5230 + $0x220] sm:$0xf]
        %v5368 = vld [vmem:[%s5230 + $0x224] sm:$0xf]
        %v5369 = vld [vmem:[%s5230 + $0x228] sm:$0xf]
        %v5370 = vld [vmem:[%s5230 + $0x22c] sm:$0xf]
        %v5371 = vld [vmem:[%s5230 + $0x230] sm:$0xf]
        %v5372 = vld [vmem:[%s5230 + $0x234] sm:$0xf]
        %v5373 = vld [vmem:[%s5230 + $0x238] sm:$0xf]
        %v5374 = vld [vmem:[%s5230 + $0x23c] sm:$0xf]
        %v5375 = vld [vmem:[%s5230 + $0x240] sm:$0xf]
        %v5376 = vld [vmem:[%s5230 + $0x244] sm:$0xf]
        %v5377 = vld [vmem:[%s5230 + $0x248] sm:$0xf]
        %v5378 = vld [vmem:[%s5230 + $0x24c] sm:$0xf]
        %v5379 = vld [vmem:[%s5230 + $0x250] sm:$0xf]
        %v5380 = vld [vmem:[%s5230 + $0x254] sm:$0xf]
        %v5381 = vld [vmem:[%s5230 + $0x258] sm:$0xf]
        %v5382 = vld [vmem:[%s5230 + $0x25c] sm:$0xf]
        %v5383 = vld [vmem:[%s5230 + $0x260] sm:$0xf]
        %v5384 = vld [vmem:[%s5230 + $0x264] sm:$0xf]
        %v5385 = vld [vmem:[%s5230 + $0x268] sm:$0xf]
        %v5386 = vld [vmem:[%s5230 + $0x26c] sm:$0xf]
        %v5387 = vld [vmem:[%s5230 + $0x270] sm:$0xf]
        %v5388 = vld [vmem:[%s5230 + $0x274] sm:$0xf]
        %v5389 = vld [vmem:[%s5230 + $0x278] sm:$0xf]
        %v5390 = vld [vmem:[%s5230 + $0x27c] sm:$0xf]
        %v5391 = vld [vmem:[%s5230 + $0x280] sm:$0xf]
        %v5392 = vld [vmem:[%s5230 + $0x284] sm:$0xf]
        %v5393 = vld [vmem:[%s5230 + $0x288] sm:$0xf]
        %v5394 = vld [vmem:[%s5230 + $0x28c] sm:$0xf]
        %v5395 = vld [vmem:[%s5230 + $0x290] sm:$0xf]
        %v5396 = vld [vmem:[%s5230 + $0x294] sm:$0xf]
        %v5397 = vld [vmem:[%s5230 + $0x298] sm:$0xf]
        %v5398 = vld [vmem:[%s5230 + $0x29c] sm:$0xf]
        %v5399 = vld [vmem:[%s5230 + $0x2a0] sm:$0xf]
        %v5400 = vld [vmem:[%s5230 + $0x2a4] sm:$0xf]
        %v5401 = vld [vmem:[%s5230 + $0x2a8] sm:$0xf]
        %v5402 = vld [vmem:[%s5230 + $0x2ac] sm:$0xf]
        %v5403 = vld [vmem:[%s5230 + $0x2b0] sm:$0xf]
        %v5404 = vld [vmem:[%s5230 + $0x2b4] sm:$0xf]
        %v5405 = vld [vmem:[%s5230 + $0x2b8] sm:$0xf]
        %v5406 = vld [vmem:[%s5230 + $0x2bc] sm:$0xf]
        %v5407 = vld [vmem:[%s5230 + $0x2c0] sm:$0xf]
        %v5408 = vld [vmem:[%s5230 + $0x2c4] sm:$0xf]
        %v5409 = vld [vmem:[%s5230 + $0x2c8] sm:$0xf]
        %v5410 = vld [vmem:[%s5230 + $0x2cc] sm:$0xf]
        %v5411 = vld [vmem:[%s5230 + $0x2d0] sm:$0xf]
        %v5412 = vld [vmem:[%s5230 + $0x2d4] sm:$0xf]
        %v5413 = vld [vmem:[%s5230 + $0x2d8] sm:$0xf]
        %v5414 = vld [vmem:[%s5230 + $0x2dc] sm:$0xf]
        %v5415 = vld [vmem:[%s5230 + $0x2e0] sm:$0xf]
        %v5416 = vld [vmem:[%s5230 + $0x2e4] sm:$0xf]
        %v5417 = vld [vmem:[%s5230 + $0x2e8] sm:$0xf]
        %v5418 = vld [vmem:[%s5230 + $0x2ec] sm:$0xf]
        %v5419 = vld [vmem:[%s5230 + $0x2f0] sm:$0xf]
        %v5420 = vld [vmem:[%s5230 + $0x2f4] sm:$0xf]
        %v5421 = vld [vmem:[%s5230 + $0x2f8] sm:$0xf]
        %v5422 = vld [vmem:[%s5230 + $0x2fc] sm:$0xf]
        %v5423 = vld [vmem:[%s5230 + $0x300] sm:$0xf]
        %v5424 = vld [vmem:[%s5230 + $0x304] sm:$0xf]
        %v5425 = vld [vmem:[%s5230 + $0x308] sm:$0xf]
        %v5426 = vld [vmem:[%s5230 + $0x30c] sm:$0xf]
        %v5427 = vld [vmem:[%s5230 + $0x310] sm:$0xf]
        %v5428 = vld [vmem:[%s5230 + $0x314] sm:$0xf]
        %v5429 = vld [vmem:[%s5230 + $0x318] sm:$0xf]
        %v5430 = vld [vmem:[%s5230 + $0x31c] sm:$0xf]
        %v5431 = vld [vmem:[%s5230 + $0x320] sm:$0xf]
        %v5432 = vld [vmem:[%s5230 + $0x324] sm:$0xf]
        %v5433 = vld [vmem:[%s5230 + $0x328] sm:$0xf]
        %v5434 = vld [vmem:[%s5230 + $0x32c] sm:$0xf]
        %v5435 = vld [vmem:[%s5230 + $0x330] sm:$0xf]
        %v5436 = vld [vmem:[%s5230 + $0x334] sm:$0xf]
        %v5437 = vld [vmem:[%s5230 + $0x338] sm:$0xf]
        %v5438 = vld [vmem:[%s5230 + $0x33c] sm:$0xf]
        %v5439 = vld [vmem:[%s5230 + $0x340] sm:$0xf]
        %v5440 = vld [vmem:[%s5230 + $0x344] sm:$0xf]
        %v5441 = vld [vmem:[%s5230 + $0x348] sm:$0xf]
        %v5442 = vld [vmem:[%s5230 + $0x34c] sm:$0xf]
        %v5443 = vld [vmem:[%s5230 + $0x350] sm:$0xf]
        %v5444 = vld [vmem:[%s5230 + $0x354] sm:$0xf]
        %v5445 = vld [vmem:[%s5230 + $0x358] sm:$0xf]
        %v5446 = vld [vmem:[%s5230 + $0x35c] sm:$0xf]
        %v5447 = vld [vmem:[%s5230 + $0x360] sm:$0xf]
        %v5448 = vld [vmem:[%s5230 + $0x364] sm:$0xf]
        %v5449 = vld [vmem:[%s5230 + $0x368] sm:$0xf]
        %v5450 = vld [vmem:[%s5230 + $0x36c] sm:$0xf]
        %v5451 = vld [vmem:[%s5230 + $0x370] sm:$0xf]
        %v5452 = vld [vmem:[%s5230 + $0x374] sm:$0xf]
        %v5453 = vld [vmem:[%s5230 + $0x378] sm:$0xf]
        %v5454 = vld [vmem:[%s5230 + $0x37c] sm:$0xf]
        %v5455 = vld [vmem:[%s5230 + $0x380] sm:$0xf]
        %v5456 = vld [vmem:[%s5230 + $0x384] sm:$0xf]
        %v5457 = vld [vmem:[%s5230 + $0x388] sm:$0xf]
        %v5458 = vld [vmem:[%s5230 + $0x38c] sm:$0xf]
        %v5459 = vld [vmem:[%s5230 + $0x390] sm:$0xf]
        %v5460 = vld [vmem:[%s5230 + $0x394] sm:$0xf]
        %v5461 = vld [vmem:[%s5230 + $0x398] sm:$0xf]
        %v5462 = vld [vmem:[%s5230 + $0x39c] sm:$0xf]
        %v5463 = vld [vmem:[%s5230 + $0x3a0] sm:$0xf]
        %v5464 = vld [vmem:[%s5230 + $0x3a4] sm:$0xf]
        %v5465 = vld [vmem:[%s5230 + $0x3a8] sm:$0xf]
        %v5466 = vld [vmem:[%s5230 + $0x3ac] sm:$0xf]
        %v5467 = vld [vmem:[%s5230 + $0x3b0] sm:$0xf]
        %v5468 = vld [vmem:[%s5230 + $0x3b4] sm:$0xf]
        %v5469 = vld [vmem:[%s5230 + $0x3b8] sm:$0xf]
        %v5470 = vld [vmem:[%s5230 + $0x3bc] sm:$0xf]
        %v5471 = vld [vmem:[%s5230 + $0x3c0] sm:$0xf]
        %v5472 = vld [vmem:[%s5230 + $0x3c4] sm:$0xf]
        %v5473 = vld [vmem:[%s5230 + $0x3c8] sm:$0xf]
        %v5474 = vld [vmem:[%s5230 + $0x3cc] sm:$0xf]
        %v5475 = vld [vmem:[%s5230 + $0x3d0] sm:$0xf]
        %v5476 = vld [vmem:[%s5230 + $0x3d4] sm:$0xf]
        %v5477 = vld [vmem:[%s5230 + $0x3d8] sm:$0xf]
        %v5478 = vld [vmem:[%s5230 + $0x3dc] sm:$0xf]
        %v5479 = vld [vmem:[%s5230 + $0x3e0] sm:$0xf]
        %v5480 = vld [vmem:[%s5230 + $0x3e4] sm:$0xf]
        %v5481 = vld [vmem:[%s5230 + $0x3e8] sm:$0xf]
        %v5482 = vld [vmem:[%s5230 + $0x3ec] sm:$0xf]
        %v5483 = vld [vmem:[%s5230 + $0x3f0] sm:$0xf]
        %v5484 = vld [vmem:[%s5230 + $0x3f4] sm:$0xf]
        %v5485 = vld [vmem:[%s5230 + $0x3f8] sm:$0xf]
        %v5486 = vld [vmem:[%s5230 + $0x3fc] sm:$0xf]
        %v5487 = vpack.c.bf16 %v5214, %v5198
        %v5488 = vpack.c.bf16 %v5215, %v5199
        %v5489 = vpack.c.bf16 %v5216, %v5200
        %v5490 = vpack.c.bf16 %v5217, %v5201
        %v5491 = vpack.c.bf16 %v5218, %v5202
        %v5492 = vpack.c.bf16 %v5219, %v5203
        %v5493 = vpack.c.bf16 %v5220, %v5204
        %v5494 = vpack.c.bf16 %v5221, %v5205
        %v5495 = vpack.c.bf16 %v5222, %v5206
        %v5496 = vpack.c.bf16 %v5223, %v5207
        %v5497 = vpack.c.bf16 %v5224, %v5208
        %v5498 = vpack.c.bf16 %v5225, %v5209
        %v5499 = vpack.c.bf16 %v5226, %v5210
        %v5500 = vpack.c.bf16 %v5227, %v5211
        %v5501 = vpack.c.bf16 %v5228, %v5212
        %v5502 = vpack.c.bf16 %v5229, %v5213
        %s5503 = scalar_lea.vmem [#allocation25], 1
        %v5504 = vld [vmem:[%s5503] sm:$0x1]
        %v5506 = vlaneseq
        %v5507 = vshrl.u32 %v5506, 7
        %v5508 = vsub.s32 0, %v5507
        %v5509 = vrot.slane %v5504, %v5508
        %v5767 = vunpack.c.l.b16 %v5231
        %v5768 = vunpack.c.l.b16 %v5232
        %v5769 = vunpack.c.l.b16 %v5233
        %v5770 = vunpack.c.l.b16 %v5234
        %v5771 = vunpack.c.l.b16 %v5235
        %v5772 = vunpack.c.l.b16 %v5236
        %v5773 = vunpack.c.l.b16 %v5237
        %v5774 = vunpack.c.l.b16 %v5238
        %v5775 = vunpack.c.l.b16 %v5239
        %v5776 = vunpack.c.l.b16 %v5240
        %v5777 = vunpack.c.l.b16 %v5241
        %v5778 = vunpack.c.l.b16 %v5242
        %v5779 = vunpack.c.l.b16 %v5243
        %v5780 = vunpack.c.l.b16 %v5244
        %v5781 = vunpack.c.l.b16 %v5245
        %v5782 = vunpack.c.l.b16 %v5246
        %v5783 = vunpack.c.l.b16 %v5247
        %v5784 = vunpack.c.l.b16 %v5248
        %v5785 = vunpack.c.l.b16 %v5249
        %v5786 = vunpack.c.l.b16 %v5250
        %v5787 = vunpack.c.l.b16 %v5251
        %v5788 = vunpack.c.l.b16 %v5252
        %v5789 = vunpack.c.l.b16 %v5253
        %v5790 = vunpack.c.l.b16 %v5254
        %v5791 = vunpack.c.l.b16 %v5255
        %v5792 = vunpack.c.l.b16 %v5256
        %v5793 = vunpack.c.l.b16 %v5257
        %v5794 = vunpack.c.l.b16 %v5258
        %v5795 = vunpack.c.l.b16 %v5259
        %v5796 = vunpack.c.l.b16 %v5260
        %v5797 = vunpack.c.l.b16 %v5261
        %v5798 = vunpack.c.l.b16 %v5262
        %v5799 = vunpack.c.l.b16 %v5263
        %v5800 = vunpack.c.l.b16 %v5264
        %v5801 = vunpack.c.l.b16 %v5265
        %v5802 = vunpack.c.l.b16 %v5266
        %v5803 = vunpack.c.l.b16 %v5267
        %v5804 = vunpack.c.l.b16 %v5268
        %v5805 = vunpack.c.l.b16 %v5269
        %v5806 = vunpack.c.l.b16 %v5270
        %v5807 = vunpack.c.l.b16 %v5271
        %v5808 = vunpack.c.l.b16 %v5272
        %v5809 = vunpack.c.l.b16 %v5273
        %v5810 = vunpack.c.l.b16 %v5274
        %v5811 = vunpack.c.l.b16 %v5275
        %v5812 = vunpack.c.l.b16 %v5276
        %v5813 = vunpack.c.l.b16 %v5277
        %v5814 = vunpack.c.l.b16 %v5278
        %v5815 = vunpack.c.l.b16 %v5279
        %v5816 = vunpack.c.l.b16 %v5280
        %v5817 = vunpack.c.l.b16 %v5281
        %v5818 = vunpack.c.l.b16 %v5282
        %v5819 = vunpack.c.l.b16 %v5283
        %v5820 = vunpack.c.l.b16 %v5284
        %v5821 = vunpack.c.l.b16 %v5285
        %v5822 = vunpack.c.l.b16 %v5286
        %v5823 = vunpack.c.l.b16 %v5287
        %v5824 = vunpack.c.l.b16 %v5288
        %v5825 = vunpack.c.l.b16 %v5289
        %v5826 = vunpack.c.l.b16 %v5290
        %v5827 = vunpack.c.l.b16 %v5291
        %v5828 = vunpack.c.l.b16 %v5292
        %v5829 = vunpack.c.l.b16 %v5293
        %v5830 = vunpack.c.l.b16 %v5294
        %v5831 = vunpack.c.l.b16 %v5295
        %v5832 = vunpack.c.l.b16 %v5296
        %v5833 = vunpack.c.l.b16 %v5297
        %v5834 = vunpack.c.l.b16 %v5298
        %v5835 = vunpack.c.l.b16 %v5299
        %v5836 = vunpack.c.l.b16 %v5300
        %v5837 = vunpack.c.l.b16 %v5301
        %v5838 = vunpack.c.l.b16 %v5302
        %v5839 = vunpack.c.l.b16 %v5303
        %v5840 = vunpack.c.l.b16 %v5304
        %v5841 = vunpack.c.l.b16 %v5305
        %v5842 = vunpack.c.l.b16 %v5306
        %v5843 = vunpack.c.l.b16 %v5307
        %v5844 = vunpack.c.l.b16 %v5308
        %v5845 = vunpack.c.l.b16 %v5309
        %v5846 = vunpack.c.l.b16 %v5310
        %v5847 = vunpack.c.l.b16 %v5311
        %v5848 = vunpack.c.l.b16 %v5312
        %v5849 = vunpack.c.l.b16 %v5313
        %v5850 = vunpack.c.l.b16 %v5314
        %v5851 = vunpack.c.l.b16 %v5315
        %v5852 = vunpack.c.l.b16 %v5316
        %v5853 = vunpack.c.l.b16 %v5317
        %v5854 = vunpack.c.l.b16 %v5318
        %v5855 = vunpack.c.l.b16 %v5319
        %v5856 = vunpack.c.l.b16 %v5320
        %v5857 = vunpack.c.l.b16 %v5321
        %v5858 = vunpack.c.l.b16 %v5322
        %v5859 = vunpack.c.l.b16 %v5323
        %v5860 = vunpack.c.l.b16 %v5324
        %v5861 = vunpack.c.l.b16 %v5325
        %v5862 = vunpack.c.l.b16 %v5326
        %v5863 = vunpack.c.l.b16 %v5327
        %v5864 = vunpack.c.l.b16 %v5328
        %v5865 = vunpack.c.l.b16 %v5329
        %v5866 = vunpack.c.l.b16 %v5330
        %v5867 = vunpack.c.l.b16 %v5331
        %v5868 = vunpack.c.l.b16 %v5332
        %v5869 = vunpack.c.l.b16 %v5333
        %v5870 = vunpack.c.l.b16 %v5334
        %v5871 = vunpack.c.l.b16 %v5335
        %v5872 = vunpack.c.l.b16 %v5336
        %v5873 = vunpack.c.l.b16 %v5337
        %v5874 = vunpack.c.l.b16 %v5338
        %v5875 = vunpack.c.l.b16 %v5339
        %v5876 = vunpack.c.l.b16 %v5340
        %v5877 = vunpack.c.l.b16 %v5341
        %v5878 = vunpack.c.l.b16 %v5342
        %v5879 = vunpack.c.l.b16 %v5343
        %v5880 = vunpack.c.l.b16 %v5344
        %v5881 = vunpack.c.l.b16 %v5345
        %v5882 = vunpack.c.l.b16 %v5346
        %v5883 = vunpack.c.l.b16 %v5347
        %v5884 = vunpack.c.l.b16 %v5348
        %v5885 = vunpack.c.l.b16 %v5349
        %v5886 = vunpack.c.l.b16 %v5350
        %v5887 = vunpack.c.l.b16 %v5351
        %v5888 = vunpack.c.l.b16 %v5352
        %v5889 = vunpack.c.l.b16 %v5353
        %v5890 = vunpack.c.l.b16 %v5354
        %v5891 = vunpack.c.l.b16 %v5355
        %v5892 = vunpack.c.l.b16 %v5356
        %v5893 = vunpack.c.l.b16 %v5357
        %v5894 = vunpack.c.l.b16 %v5358
        %v5895 = vunpack.c.l.b16 %v5359
        %v5896 = vunpack.c.l.b16 %v5360
        %v5897 = vunpack.c.l.b16 %v5361
        %v5898 = vunpack.c.l.b16 %v5362
        %v5899 = vunpack.c.l.b16 %v5363
        %v5900 = vunpack.c.l.b16 %v5364
        %v5901 = vunpack.c.l.b16 %v5365
        %v5902 = vunpack.c.l.b16 %v5366
        %v5903 = vunpack.c.l.b16 %v5367
        %v5904 = vunpack.c.l.b16 %v5368
        %v5905 = vunpack.c.l.b16 %v5369
        %v5906 = vunpack.c.l.b16 %v5370
        %v5907 = vunpack.c.l.b16 %v5371
        %v5908 = vunpack.c.l.b16 %v5372
        %v5909 = vunpack.c.l.b16 %v5373
        %v5910 = vunpack.c.l.b16 %v5374
        %v5911 = vunpack.c.l.b16 %v5375
        %v5912 = vunpack.c.l.b16 %v5376
        %v5913 = vunpack.c.l.b16 %v5377
        %v5914 = vunpack.c.l.b16 %v5378
        %v5915 = vunpack.c.l.b16 %v5379
        %v5916 = vunpack.c.l.b16 %v5380
        %v5917 = vunpack.c.l.b16 %v5381
        %v5918 = vunpack.c.l.b16 %v5382
        %v5919 = vunpack.c.l.b16 %v5383
        %v5920 = vunpack.c.l.b16 %v5384
        %v5921 = vunpack.c.l.b16 %v5385
        %v5922 = vunpack.c.l.b16 %v5386
        %v5923 = vunpack.c.l.b16 %v5387
        %v5924 = vunpack.c.l.b16 %v5388
        %v5925 = vunpack.c.l.b16 %v5389
        %v5926 = vunpack.c.l.b16 %v5390
        %v5927 = vunpack.c.l.b16 %v5391
        %v5928 = vunpack.c.l.b16 %v5392
        %v5929 = vunpack.c.l.b16 %v5393
        %v5930 = vunpack.c.l.b16 %v5394
        %v5931 = vunpack.c.l.b16 %v5395
        %v5932 = vunpack.c.l.b16 %v5396
        %v5933 = vunpack.c.l.b16 %v5397
        %v5934 = vunpack.c.l.b16 %v5398
        %v5935 = vunpack.c.l.b16 %v5399
        %v5936 = vunpack.c.l.b16 %v5400
        %v5937 = vunpack.c.l.b16 %v5401
        %v5938 = vunpack.c.l.b16 %v5402
        %v5939 = vunpack.c.l.b16 %v5403
        %v5940 = vunpack.c.l.b16 %v5404
        %v5941 = vunpack.c.l.b16 %v5405
        %v5942 = vunpack.c.l.b16 %v5406
        %v5943 = vunpack.c.l.b16 %v5407
        %v5944 = vunpack.c.l.b16 %v5408
        %v5945 = vunpack.c.l.b16 %v5409
        %v5946 = vunpack.c.l.b16 %v5410
        %v5947 = vunpack.c.l.b16 %v5411
        %v5948 = vunpack.c.l.b16 %v5412
        %v5949 = vunpack.c.l.b16 %v5413
        %v5950 = vunpack.c.l.b16 %v5414
        %v5951 = vunpack.c.l.b16 %v5415
        %v5952 = vunpack.c.l.b16 %v5416
        %v5953 = vunpack.c.l.b16 %v5417
        %v5954 = vunpack.c.l.b16 %v5418
        %v5955 = vunpack.c.l.b16 %v5419
        %v5956 = vunpack.c.l.b16 %v5420
        %v5957 = vunpack.c.l.b16 %v5421
        %v5958 = vunpack.c.l.b16 %v5422
        %v5959 = vunpack.c.l.b16 %v5423
        %v5960 = vunpack.c.l.b16 %v5424
        %v5961 = vunpack.c.l.b16 %v5425
        %v5962 = vunpack.c.l.b16 %v5426
        %v5963 = vunpack.c.l.b16 %v5427
        %v5964 = vunpack.c.l.b16 %v5428
        %v5965 = vunpack.c.l.b16 %v5429
        %v5966 = vunpack.c.l.b16 %v5430
        %v5967 = vunpack.c.l.b16 %v5431
        %v5968 = vunpack.c.l.b16 %v5432
        %v5969 = vunpack.c.l.b16 %v5433
        %v5970 = vunpack.c.l.b16 %v5434
        %v5971 = vunpack.c.l.b16 %v5435
        %v5972 = vunpack.c.l.b16 %v5436
        %v5973 = vunpack.c.l.b16 %v5437
        %v5974 = vunpack.c.l.b16 %v5438
        %v5975 = vunpack.c.l.b16 %v5439
        %v5976 = vunpack.c.l.b16 %v5440
        %v5977 = vunpack.c.l.b16 %v5441
        %v5978 = vunpack.c.l.b16 %v5442
        %v5979 = vunpack.c.l.b16 %v5443
        %v5980 = vunpack.c.l.b16 %v5444
        %v5981 = vunpack.c.l.b16 %v5445
        %v5982 = vunpack.c.l.b16 %v5446
        %v5983 = vunpack.c.l.b16 %v5447
        %v5984 = vunpack.c.l.b16 %v5448
        %v5985 = vunpack.c.l.b16 %v5449
        %v5986 = vunpack.c.l.b16 %v5450
        %v5987 = vunpack.c.l.b16 %v5451
        %v5988 = vunpack.c.l.b16 %v5452
        %v5989 = vunpack.c.l.b16 %v5453
        %v5990 = vunpack.c.l.b16 %v5454
        %v5991 = vunpack.c.l.b16 %v5455
        %v5992 = vunpack.c.l.b16 %v5456
        %v5993 = vunpack.c.l.b16 %v5457
        %v5994 = vunpack.c.l.b16 %v5458
        %v5995 = vunpack.c.l.b16 %v5459
        %v5996 = vunpack.c.l.b16 %v5460
        %v5997 = vunpack.c.l.b16 %v5461
        %v5998 = vunpack.c.l.b16 %v5462
        %v5999 = vunpack.c.l.b16 %v5463
        %v6000 = vunpack.c.l.b16 %v5464
        %v6001 = vunpack.c.l.b16 %v5465
        %v6002 = vunpack.c.l.b16 %v5466
        %v6003 = vunpack.c.l.b16 %v5467
        %v6004 = vunpack.c.l.b16 %v5468
        %v6005 = vunpack.c.l.b16 %v5469
        %v6006 = vunpack.c.l.b16 %v5470
        %v6007 = vunpack.c.l.b16 %v5471
        %v6008 = vunpack.c.l.b16 %v5472
        %v6009 = vunpack.c.l.b16 %v5473
        %v6010 = vunpack.c.l.b16 %v5474
        %v6011 = vunpack.c.l.b16 %v5475
        %v6012 = vunpack.c.l.b16 %v5476
        %v6013 = vunpack.c.l.b16 %v5477
        %v6014 = vunpack.c.l.b16 %v5478
        %v6015 = vunpack.c.l.b16 %v5479
        %v6016 = vunpack.c.l.b16 %v5480
        %v6017 = vunpack.c.l.b16 %v5481
        %v6018 = vunpack.c.l.b16 %v5482
        %v6019 = vunpack.c.l.b16 %v5483
        %v6020 = vunpack.c.l.b16 %v5484
        %v6021 = vunpack.c.l.b16 %v5485
        %v6022 = vunpack.c.l.b16 %v5486
        %v6023 = vpack.c.b16 %v5768, %v5767
        %v6024 = vpack.c.b16 %v5770, %v5769
        %v6025 = vpack.c.b16 %v5772, %v5771
        %v6026 = vpack.c.b16 %v5774, %v5773
        %v6027 = vpack.c.b16 %v5776, %v5775
        %v6028 = vpack.c.b16 %v5778, %v5777
        %v6029 = vpack.c.b16 %v5780, %v5779
        %v6030 = vpack.c.b16 %v5782, %v5781
        %v6031 = vpack.c.b16 %v5784, %v5783
        %v6032 = vpack.c.b16 %v5786, %v5785
        %v6033 = vpack.c.b16 %v5788, %v5787
        %v6034 = vpack.c.b16 %v5790, %v5789
        %v6035 = vpack.c.b16 %v5792, %v5791
        %v6036 = vpack.c.b16 %v5794, %v5793
        %v6037 = vpack.c.b16 %v5796, %v5795
        %v6038 = vpack.c.b16 %v5798, %v5797
        %v6039 = vpack.c.b16 %v5800, %v5799
        %v6040 = vpack.c.b16 %v5802, %v5801
        %v6041 = vpack.c.b16 %v5804, %v5803
        %v6042 = vpack.c.b16 %v5806, %v5805
        %v6043 = vpack.c.b16 %v5808, %v5807
        %v6044 = vpack.c.b16 %v5810, %v5809
        %v6045 = vpack.c.b16 %v5812, %v5811
        %v6046 = vpack.c.b16 %v5814, %v5813
        %v6047 = vpack.c.b16 %v5816, %v5815
        %v6048 = vpack.c.b16 %v5818, %v5817
        %v6049 = vpack.c.b16 %v5820, %v5819
        %v6050 = vpack.c.b16 %v5822, %v5821
        %v6051 = vpack.c.b16 %v5824, %v5823
        %v6052 = vpack.c.b16 %v5826, %v5825
        %v6053 = vpack.c.b16 %v5828, %v5827
        %v6054 = vpack.c.b16 %v5830, %v5829
        %v6055 = vpack.c.b16 %v5832, %v5831
        %v6056 = vpack.c.b16 %v5834, %v5833
        %v6057 = vpack.c.b16 %v5836, %v5835
        %v6058 = vpack.c.b16 %v5838, %v5837
        %v6059 = vpack.c.b16 %v5840, %v5839
        %v6060 = vpack.c.b16 %v5842, %v5841
        %v6061 = vpack.c.b16 %v5844, %v5843
        %v6062 = vpack.c.b16 %v5846, %v5845
        %v6063 = vpack.c.b16 %v5848, %v5847
        %v6064 = vpack.c.b16 %v5850, %v5849
        %v6065 = vpack.c.b16 %v5852, %v5851
        %v6066 = vpack.c.b16 %v5854, %v5853
        %v6067 = vpack.c.b16 %v5856, %v5855
        %v6068 = vpack.c.b16 %v5858, %v5857
        %v6069 = vpack.c.b16 %v5860, %v5859
        %v6070 = vpack.c.b16 %v5862, %v5861
        %v6071 = vpack.c.b16 %v5864, %v5863
        %v6072 = vpack.c.b16 %v5866, %v5865
        %v6073 = vpack.c.b16 %v5868, %v5867
        %v6074 = vpack.c.b16 %v5870, %v5869
        %v6075 = vpack.c.b16 %v5872, %v5871
        %v6076 = vpack.c.b16 %v5874, %v5873
        %v6077 = vpack.c.b16 %v5876, %v5875
        %v6078 = vpack.c.b16 %v5878, %v5877
        %v6079 = vpack.c.b16 %v5880, %v5879
        %v6080 = vpack.c.b16 %v5882, %v5881
        %v6081 = vpack.c.b16 %v5884, %v5883
        %v6082 = vpack.c.b16 %v5886, %v5885
        %v6083 = vpack.c.b16 %v5888, %v5887
        %v6084 = vpack.c.b16 %v5890, %v5889
        %v6085 = vpack.c.b16 %v5892, %v5891
        %v6086 = vpack.c.b16 %v5894, %v5893
        %v6087 = vpack.c.b16 %v5896, %v5895
        %v6088 = vpack.c.b16 %v5898, %v5897
        %v6089 = vpack.c.b16 %v5900, %v5899
        %v6090 = vpack.c.b16 %v5902, %v5901
        %v6091 = vpack.c.b16 %v5904, %v5903
        %v6092 = vpack.c.b16 %v5906, %v5905
        %v6093 = vpack.c.b16 %v5908, %v5907
        %v6094 = vpack.c.b16 %v5910, %v5909
        %v6095 = vpack.c.b16 %v5912, %v5911
        %v6096 = vpack.c.b16 %v5914, %v5913
        %v6097 = vpack.c.b16 %v5916, %v5915
        %v6098 = vpack.c.b16 %v5918, %v5917
        %v6099 = vpack.c.b16 %v5920, %v5919
        %v6100 = vpack.c.b16 %v5922, %v5921
        %v6101 = vpack.c.b16 %v5924, %v5923
        %v6102 = vpack.c.b16 %v5926, %v5925
        %v6103 = vpack.c.b16 %v5928, %v5927
        %v6104 = vpack.c.b16 %v5930, %v5929
        %v6105 = vpack.c.b16 %v5932, %v5931
        %v6106 = vpack.c.b16 %v5934, %v5933
        %v6107 = vpack.c.b16 %v5936, %v5935
        %v6108 = vpack.c.b16 %v5938, %v5937
        %v6109 = vpack.c.b16 %v5940, %v5939
        %v6110 = vpack.c.b16 %v5942, %v5941
        %v6111 = vpack.c.b16 %v5944, %v5943
        %v6112 = vpack.c.b16 %v5946, %v5945
        %v6113 = vpack.c.b16 %v5948, %v5947
        %v6114 = vpack.c.b16 %v5950, %v5949
        %v6115 = vpack.c.b16 %v5952, %v5951
        %v6116 = vpack.c.b16 %v5954, %v5953
        %v6117 = vpack.c.b16 %v5956, %v5955
        %v6118 = vpack.c.b16 %v5958, %v5957
        %v6119 = vpack.c.b16 %v5960, %v5959
        %v6120 = vpack.c.b16 %v5962, %v5961
        %v6121 = vpack.c.b16 %v5964, %v5963
        %v6122 = vpack.c.b16 %v5966, %v5965
        %v6123 = vpack.c.b16 %v5968, %v5967
        %v6124 = vpack.c.b16 %v5970, %v5969
        %v6125 = vpack.c.b16 %v5972, %v5971
        %v6126 = vpack.c.b16 %v5974, %v5973
        %v6127 = vpack.c.b16 %v5976, %v5975
        %v6128 = vpack.c.b16 %v5978, %v5977
        %v6129 = vpack.c.b16 %v5980, %v5979
        %v6130 = vpack.c.b16 %v5982, %v5981
        %v6131 = vpack.c.b16 %v5984, %v5983
        %v6132 = vpack.c.b16 %v5986, %v5985
        %v6133 = vpack.c.b16 %v5988, %v5987
        %v6134 = vpack.c.b16 %v5990, %v5989
        %v6135 = vpack.c.b16 %v5992, %v5991
        %v6136 = vpack.c.b16 %v5994, %v5993
        %v6137 = vpack.c.b16 %v5996, %v5995
        %v6138 = vpack.c.b16 %v5998, %v5997
        %v6139 = vpack.c.b16 %v6000, %v5999
        %v6140 = vpack.c.b16 %v6002, %v6001
        %v6141 = vpack.c.b16 %v6004, %v6003
        %v6142 = vpack.c.b16 %v6006, %v6005
        %v6143 = vpack.c.b16 %v6008, %v6007
        %v6144 = vpack.c.b16 %v6010, %v6009
        %v6145 = vpack.c.b16 %v6012, %v6011
        %v6146 = vpack.c.b16 %v6014, %v6013
        %v6147 = vpack.c.b16 %v6016, %v6015
        %v6148 = vpack.c.b16 %v6018, %v6017
        %v6149 = vpack.c.b16 %v6020, %v6019
        %v6150 = vpack.c.b16 %v6022, %v6021
        %6279 = vmatprep.subr.bf16.mxu0 0
        %6280 = vmatpush1.bf16.msra.mxu0 %v6023
        %6281 = vmatprep.subr.bf16.mxu0 0
        %6282 = vmatpush1.bf16.msra.mxu0 %v6024
        %6283 = vmatprep.subr.bf16.mxu0 0
        %6284 = vmatpush1.bf16.msra.mxu0 %v6025
        %6285 = vmatprep.subr.bf16.mxu0 0
        %6286 = vmatpush1.bf16.msra.mxu0 %v6026
        %6287 = vmatprep.subr.bf16.mxu0 0
        %6288 = vmatpush1.bf16.msra.mxu0 %v6027
        %6289 = vmatprep.subr.bf16.mxu0 0
        %6290 = vmatpush1.bf16.msra.mxu0 %v6028
        %6291 = vmatprep.subr.bf16.mxu0 0
        %6292 = vmatpush1.bf16.msra.mxu0 %v6029
        %6293 = vmatprep.subr.bf16.mxu0 0
        %6294 = vmatpush1.bf16.msra.mxu0 %v6030
        %6295 = vmatprep.subr.bf16.mxu0 0
        %6296 = vmatpush1.bf16.msra.mxu0 %v6031
        %6297 = vmatprep.subr.bf16.mxu0 0
        %6298 = vmatpush1.bf16.msra.mxu0 %v6032
        %6299 = vmatprep.subr.bf16.mxu0 0
        %6300 = vmatpush1.bf16.msra.mxu0 %v6033
        %6301 = vmatprep.subr.bf16.mxu0 0
        %6302 = vmatpush1.bf16.msra.mxu0 %v6034
        %6303 = vmatprep.subr.bf16.mxu0 0
        %6304 = vmatpush1.bf16.msra.mxu0 %v6035
        %6305 = vmatprep.subr.bf16.mxu0 0
        %6306 = vmatpush1.bf16.msra.mxu0 %v6036
        %6307 = vmatprep.subr.bf16.mxu0 0
        %6308 = vmatpush1.bf16.msra.mxu0 %v6037
        %6309 = vmatprep.subr.bf16.mxu0 0
        %6310 = vmatpush1.bf16.msra.mxu0 %v6038
        %6311 = vmatprep.mubr.bf16.mxu0 %v5488
        %6312 = vmatmul.mubr.bf16.gmra.mrb[0].mxu0 %v5487
        %v6313 = vpop.f32.mrb[0].mxu0
        %v6314 = vadd.f32 %v5509, %v6313
        %v6315 = vpop.f32.mrb[0].mxu0
        %v6316 = vpop.f32.mrb[0].mxu0
        %v6317 = vpop.f32.mrb[0].mxu0
        %6318 = vdwg.mxu0
        %6319 = vmatprep.subr.bf16.mxu0 0
        %6320 = vmatpush1.bf16.msra.mxu0 %v6039
        %6321 = vmatprep.subr.bf16.mxu0 0
        %6322 = vmatpush1.bf16.msra.mxu0 %v6040
        %6323 = vmatprep.subr.bf16.mxu0 0
        %6324 = vmatpush1.bf16.msra.mxu0 %v6041
        %6325 = vmatprep.subr.bf16.mxu0 0
        %6326 = vmatpush1.bf16.msra.mxu0 %v6042
        %6327 = vmatprep.subr.bf16.mxu0 0
        %6328 = vmatpush1.bf16.msra.mxu0 %v6043
        %6329 = vmatprep.subr.bf16.mxu0 0
        %6330 = vmatpush1.bf16.msra.mxu0 %v6044
        %6331 = vmatprep.subr.bf16.mxu0 0
        %6332 = vmatpush1.bf16.msra.mxu0 %v6045
        %6333 = vmatprep.subr.bf16.mxu0 0
        %6334 = vmatpush1.bf16.msra.mxu0 %v6046
        %6335 = vmatprep.subr.bf16.mxu0 0
        %6336 = vmatpush1.bf16.msra.mxu0 %v6047
        %6337 = vmatprep.subr.bf16.mxu0 0
        %6338 = vmatpush1.bf16.msra.mxu0 %v6048
        %6339 = vmatprep.subr.bf16.mxu0 0
        %6340 = vmatpush1.bf16.msra.mxu0 %v6049
        %6341 = vmatprep.subr.bf16.mxu0 0
        %6342 = vmatpush1.bf16.msra.mxu0 %v6050
        %6343 = vmatprep.subr.bf16.mxu0 0
        %6344 = vmatpush1.bf16.msra.mxu0 %v6051
        %6345 = vmatprep.subr.bf16.mxu0 0
        %6346 = vmatpush1.bf16.msra.mxu0 %v6052
        %6347 = vmatprep.subr.bf16.mxu0 0
        %6348 = vmatpush1.bf16.msra.mxu0 %v6053
        %6349 = vmatprep.subr.bf16.mxu0 0
        %6350 = vmatpush1.bf16.msra.mxu0 %v6054
        %6351 = vmatprep.mubr.bf16.mxu0 %v5490
        %6352 = vmatmul.mubr.bf16.gmra.mrb[0].mxu0 %v5489
        %v6353 = vpop.f32.mrb[0].mxu0
        %v6354 = vadd.f32 %v6314, %v6353
        %v6355 = vpop.f32.mrb[0].mxu0
        %v6356 = vpop.f32.mrb[0].mxu0
        %v6357 = vpop.f32.mrb[0].mxu0
        %6358 = vdwg.mxu0
        %6359 = vmatprep.subr.bf16.mxu0 0
        %6360 = vmatpush1.bf16.msra.mxu0 %v6055
        %6361 = vmatprep.subr.bf16.mxu0 0
        %6362 = vmatpush1.bf16.msra.mxu0 %v6056
        %6363 = vmatprep.subr.bf16.mxu0 0
        %6364 = vmatpush1.bf16.msra.mxu0 %v6057
        %6365 = vmatprep.subr.bf16.mxu0 0
        %6366 = vmatpush1.bf16.msra.mxu0 %v6058
        %6367 = vmatprep.subr.bf16.mxu0 0
        %6368 = vmatpush1.bf16.msra.mxu0 %v6059
        %6369 = vmatprep.subr.bf16.mxu0 0
        %6370 = vmatpush1.bf16.msra.mxu0 %v6060
        %6371 = vmatprep.subr.bf16.mxu0 0
        %6372 = vmatpush1.bf16.msra.mxu0 %v6061
        %6373 = vmatprep.subr.bf16.mxu0 0
        %6374 = vmatpush1.bf16.msra.mxu0 %v6062
        %6375 = vmatprep.subr.bf16.mxu0 0
        %6376 = vmatpush1.bf16.msra.mxu0 %v6063
        %6377 = vmatprep.subr.bf16.mxu0 0
        %6378 = vmatpush1.bf16.msra.mxu0 %v6064
        %6379 = vmatprep.subr.bf16.mxu0 0
        %6380 = vmatpush1.bf16.msra.mxu0 %v6065
        %6381 = vmatprep.subr.bf16.mxu0 0
        %6382 = vmatpush1.bf16.msra.mxu0 %v6066
        %6383 = vmatprep.subr.bf16.mxu0 0
        %6384 = vmatpush1.bf16.msra.mxu0 %v6067
        %6385 = vmatprep.subr.bf16.mxu0 0
        %6386 = vmatpush1.bf16.msra.mxu0 %v6068
        %6387 = vmatprep.subr.bf16.mxu0 0
        %6388 = vmatpush1.bf16.msra.mxu0 %v6069
        %6389 = vmatprep.subr.bf16.mxu0 0
        %6390 = vmatpush1.bf16.msra.mxu0 %v6070
        %6391 = vmatprep.mubr.bf16.mxu0 %v5492
        %6392 = vmatmul.mubr.bf16.gmra.mrb[0].mxu0 %v5491
        %v6393 = vpop.f32.mrb[0].mxu0
        %v6394 = vadd.f32 %v6354, %v6393
        %v6395 = vpop.f32.mrb[0].mxu0
        %v6396 = vpop.f32.mrb[0].mxu0
        %v6397 = vpop.f32.mrb[0].mxu0
        %6398 = vdwg.mxu0
        %6399 = vmatprep.subr.bf16.mxu0 0
        %6400 = vmatpush1.bf16.msra.mxu0 %v6071
        %6401 = vmatprep.subr.bf16.mxu0 0
        %6402 = vmatpush1.bf16.msra.mxu0 %v6072
        %6403 = vmatprep.subr.bf16.mxu0 0
        %6404 = vmatpush1.bf16.msra.mxu0 %v6073
        %6405 = vmatprep.subr.bf16.mxu0 0
        %6406 = vmatpush1.bf16.msra.mxu0 %v6074
        %6407 = vmatprep.subr.bf16.mxu0 0
        %6408 = vmatpush1.bf16.msra.mxu0 %v6075
        %6409 = vmatprep.subr.bf16.mxu0 0
        %6410 = vmatpush1.bf16.msra.mxu0 %v6076
        %6411 = vmatprep.subr.bf16.mxu0 0
        %6412 = vmatpush1.bf16.msra.mxu0 %v6077
        %6413 = vmatprep.subr.bf16.mxu0 0
        %6414 = vmatpush1.bf16.msra.mxu0 %v6078
        %6415 = vmatprep.subr.bf16.mxu0 0
        %6416 = vmatpush1.bf16.msra.mxu0 %v6079
        %6417 = vmatprep.subr.bf16.mxu0 0
        %6418 = vmatpush1.bf16.msra.mxu0 %v6080
        %6419 = vmatprep.subr.bf16.mxu0 0
        %6420 = vmatpush1.bf16.msra.mxu0 %v6081
        %6421 = vmatprep.subr.bf16.mxu0 0
        %6422 = vmatpush1.bf16.msra.mxu0 %v6082
        %6423 = vmatprep.subr.bf16.mxu0 0
        %6424 = vmatpush1.bf16.msra.mxu0 %v6083
        %6425 = vmatprep.subr.bf16.mxu0 0
        %6426 = vmatpush1.bf16.msra.mxu0 %v6084
        %6427 = vmatprep.subr.bf16.mxu0 0
        %6428 = vmatpush1.bf16.msra.mxu0 %v6085
        %6429 = vmatprep.subr.bf16.mxu0 0
        %6430 = vmatpush1.bf16.msra.mxu0 %v6086
        %6431 = vmatprep.mubr.bf16.mxu0 %v5494
        %6432 = vmatmul.mubr.bf16.gmra.mrb[0].mxu0 %v5493
        %v6433 = vpop.f32.mrb[0].mxu0
        %v6434 = vadd.f32 %v6394, %v6433
        %v6435 = vpop.f32.mrb[0].mxu0
        %v6436 = vpop.f32.mrb[0].mxu0
        %v6437 = vpop.f32.mrb[0].mxu0
        %6438 = vdwg.mxu0
        %6439 = vmatprep.subr.bf16.mxu0 0
        %6440 = vmatpush1.bf16.msra.mxu0 %v6087
        %6441 = vmatprep.subr.bf16.mxu0 0
        %6442 = vmatpush1.bf16.msra.mxu0 %v6088
        %6443 = vmatprep.subr.bf16.mxu0 0
        %6444 = vmatpush1.bf16.msra.mxu0 %v6089
        %6445 = vmatprep.subr.bf16.mxu0 0
        %6446 = vmatpush1.bf16.msra.mxu0 %v6090
        %6447 = vmatprep.subr.bf16.mxu0 0
        %6448 = vmatpush1.bf16.msra.mxu0 %v6091
        %6449 = vmatprep.subr.bf16.mxu0 0
        %6450 = vmatpush1.bf16.msra.mxu0 %v6092
        %6451 = vmatprep.subr.bf16.mxu0 0
        %6452 = vmatpush1.bf16.msra.mxu0 %v6093
        %6453 = vmatprep.subr.bf16.mxu0 0
        %6454 = vmatpush1.bf16.msra.mxu0 %v6094
        %6455 = vmatprep.subr.bf16.mxu0 0
        %6456 = vmatpush1.bf16.msra.mxu0 %v6095
        %6457 = vmatprep.subr.bf16.mxu0 0
        %6458 = vmatpush1.bf16.msra.mxu0 %v6096
        %6459 = vmatprep.subr.bf16.mxu0 0
        %6460 = vmatpush1.bf16.msra.mxu0 %v6097
        %6461 = vmatprep.subr.bf16.mxu0 0
        %6462 = vmatpush1.bf16.msra.mxu0 %v6098
        %6463 = vmatprep.subr.bf16.mxu0 0
        %6464 = vmatpush1.bf16.msra.mxu0 %v6099
        %6465 = vmatprep.subr.bf16.mxu0 0
        %6466 = vmatpush1.bf16.msra.mxu0 %v6100
        %6467 = vmatprep.subr.bf16.mxu0 0
        %6468 = vmatpush1.bf16.msra.mxu0 %v6101
        %6469 = vmatprep.subr.bf16.mxu0 0
        %6470 = vmatpush1.bf16.msra.mxu0 %v6102
        %6471 = vmatprep.mubr.bf16.mxu0 %v5496
        %6472 = vmatmul.mubr.bf16.gmra.mrb[0].mxu0 %v5495
        %v6473 = vpop.f32.mrb[0].mxu0
        %v6474 = vadd.f32 %v6434, %v6473
        %v6475 = vpop.f32.mrb[0].mxu0
        %v6476 = vpop.f32.mrb[0].mxu0
        %v6477 = vpop.f32.mrb[0].mxu0
        %6478 = vdwg.mxu0
        %6479 = vmatprep.subr.bf16.mxu0 0
        %6480 = vmatpush1.bf16.msra.mxu0 %v6103
        %6481 = vmatprep.subr.bf16.mxu0 0
        %6482 = vmatpush1.bf16.msra.mxu0 %v6104
        %6483 = vmatprep.subr.bf16.mxu0 0
        %6484 = vmatpush1.bf16.msra.mxu0 %v6105
        %6485 = vmatprep.subr.bf16.mxu0 0
        %6486 = vmatpush1.bf16.msra.mxu0 %v6106
        %6487 = vmatprep.subr.bf16.mxu0 0
        %6488 = vmatpush1.bf16.msra.mxu0 %v6107
        %6489 = vmatprep.subr.bf16.mxu0 0
        %6490 = vmatpush1.bf16.msra.mxu0 %v6108
        %6491 = vmatprep.subr.bf16.mxu0 0
        %6492 = vmatpush1.bf16.msra.mxu0 %v6109
        %6493 = vmatprep.subr.bf16.mxu0 0
        %6494 = vmatpush1.bf16.msra.mxu0 %v6110
        %6495 = vmatprep.subr.bf16.mxu0 0
        %6496 = vmatpush1.bf16.msra.mxu0 %v6111
        %6497 = vmatprep.subr.bf16.mxu0 0
        %6498 = vmatpush1.bf16.msra.mxu0 %v6112
        %6499 = vmatprep.subr.bf16.mxu0 0
        %6500 = vmatpush1.bf16.msra.mxu0 %v6113
        %6501 = vmatprep.subr.bf16.mxu0 0
        %6502 = vmatpush1.bf16.msra.mxu0 %v6114
        %6503 = vmatprep.subr.bf16.mxu0 0
        %6504 = vmatpush1.bf16.msra.mxu0 %v6115
        %6505 = vmatprep.subr.bf16.mxu0 0
        %6506 = vmatpush1.bf16.msra.mxu0 %v6116
        %6507 = vmatprep.subr.bf16.mxu0 0
        %6508 = vmatpush1.bf16.msra.mxu0 %v6117
        %6509 = vmatprep.subr.bf16.mxu0 0
        %6510 = vmatpush1.bf16.msra.mxu0 %v6118
        %6511 = vmatprep.mubr.bf16.mxu0 %v5498
        %6512 = vmatmul.mubr.bf16.gmra.mrb[0].mxu0 %v5497
        %v6513 = vpop.f32.mrb[0].mxu0
        %v6514 = vadd.f32 %v6474, %v6513
        %v6515 = vpop.f32.mrb[0].mxu0
        %v6516 = vpop.f32.mrb[0].mxu0
        %v6517 = vpop.f32.mrb[0].mxu0
        %6518 = vdwg.mxu0
        %6519 = vmatprep.subr.bf16.mxu0 0
        %6520 = vmatpush1.bf16.msra.mxu0 %v6119
        %6521 = vmatprep.subr.bf16.mxu0 0
        %6522 = vmatpush1.bf16.msra.mxu0 %v6120
        %6523 = vmatprep.subr.bf16.mxu0 0
        %6524 = vmatpush1.bf16.msra.mxu0 %v6121
        %6525 = vmatprep.subr.bf16.mxu0 0
        %6526 = vmatpush1.bf16.msra.mxu0 %v6122
        %6527 = vmatprep.subr.bf16.mxu0 0
        %6528 = vmatpush1.bf16.msra.mxu0 %v6123
        %6529 = vmatprep.subr.bf16.mxu0 0
        %6530 = vmatpush1.bf16.msra.mxu0 %v6124
        %6531 = vmatprep.subr.bf16.mxu0 0
        %6532 = vmatpush1.bf16.msra.mxu0 %v6125
        %6533 = vmatprep.subr.bf16.mxu0 0
        %6534 = vmatpush1.bf16.msra.mxu0 %v6126
        %6535 = vmatprep.subr.bf16.mxu0 0
        %6536 = vmatpush1.bf16.msra.mxu0 %v6127
        %6537 = vmatprep.subr.bf16.mxu0 0
        %6538 = vmatpush1.bf16.msra.mxu0 %v6128
        %6539 = vmatprep.subr.bf16.mxu0 0
        %6540 = vmatpush1.bf16.msra.mxu0 %v6129
        %6541 = vmatprep.subr.bf16.mxu0 0
        %6542 = vmatpush1.bf16.msra.mxu0 %v6130
        %6543 = vmatprep.subr.bf16.mxu0 0
        %6544 = vmatpush1.bf16.msra.mxu0 %v6131
        %6545 = vmatprep.subr.bf16.mxu0 0
        %6546 = vmatpush1.bf16.msra.mxu0 %v6132
        %6547 = vmatprep.subr.bf16.mxu0 0
        %6548 = vmatpush1.bf16.msra.mxu0 %v6133
        %6549 = vmatprep.subr.bf16.mxu0 0
        %6550 = vmatpush1.bf16.msra.mxu0 %v6134
        %6551 = vmatprep.mubr.bf16.mxu0 %v5500
        %6552 = vmatmul.mubr.bf16.gmra.mrb[0].mxu0 %v5499
        %v6553 = vpop.f32.mrb[0].mxu0
        %v6554 = vadd.f32 %v6514, %v6553
        %v6555 = vpop.f32.mrb[0].mxu0
        %v6556 = vpop.f32.mrb[0].mxu0
        %v6557 = vpop.f32.mrb[0].mxu0
        %6558 = vdwg.mxu0
        %6559 = vmatprep.subr.bf16.mxu0 0
        %6560 = vmatpush1.bf16.msra.mxu0 %v6135
        %6561 = vmatprep.subr.bf16.mxu0 0
        %6562 = vmatpush1.bf16.msra.mxu0 %v6136
        %6563 = vmatprep.subr.bf16.mxu0 0
        %6564 = vmatpush1.bf16.msra.mxu0 %v6137
        %6565 = vmatprep.subr.bf16.mxu0 0
        %6566 = vmatpush1.bf16.msra.mxu0 %v6138
        %6567 = vmatprep.subr.bf16.mxu0 0
        %6568 = vmatpush1.bf16.msra.mxu0 %v6139
        %6569 = vmatprep.subr.bf16.mxu0 0
        %6570 = vmatpush1.bf16.msra.mxu0 %v6140
        %6571 = vmatprep.subr.bf16.mxu0 0
        %6572 = vmatpush1.bf16.msra.mxu0 %v6141
        %6573 = vmatprep.subr.bf16.mxu0 0
        %6574 = vmatpush1.bf16.msra.mxu0 %v6142
        %6575 = vmatprep.subr.bf16.mxu0 0
        %6576 = vmatpush1.bf16.msra.mxu0 %v6143
        %6577 = vmatprep.subr.bf16.mxu0 0
        %6578 = vmatpush1.bf16.msra.mxu0 %v6144
        %6579 = vmatprep.subr.bf16.mxu0 0
        %6580 = vmatpush1.bf16.msra.mxu0 %v6145
        %6581 = vmatprep.subr.bf16.mxu0 0
        %6582 = vmatpush1.bf16.msra.mxu0 %v6146
        %6583 = vmatprep.subr.bf16.mxu0 0
        %6584 = vmatpush1.bf16.msra.mxu0 %v6147
        %6585 = vmatprep.subr.bf16.mxu0 0
        %6586 = vmatpush1.bf16.msra.mxu0 %v6148
        %6587 = vmatprep.subr.bf16.mxu0 0
        %6588 = vmatpush1.bf16.msra.mxu0 %v6149
        %6589 = vmatprep.subr.bf16.mxu0 0
        %6590 = vmatpush1.bf16.msra.mxu0 %v6150
        %6591 = vmatprep.mubr.bf16.mxu0 %v5502
        %6592 = vmatmul.mubr.bf16.gmra.mrb[0].mxu0 %v5501
        %v6593 = vpop.f32.mrb[0].mxu0
        %v6594 = vadd.f32 %v6554, %v6593
        %v6595 = vpop.f32.mrb[0].mxu0
        %v6596 = vpop.f32.mrb[0].mxu0
        %v6597 = vpop.f32.mrb[0].mxu0
        %6598 = vdwg.mxu0
        %v6599 = vadd.f32 %v4570, %v6594
        %s6600 = scalar_lea.vmem [#allocation26], 1
        %v6601 = vld [vmem:[%s6600] sm:$0x1]
        %s6602 = scalar_lea.vmem [#allocation28], 1
        %v6603 = vld [vmem:[%s6602] sm:$0x1]
        %v6604 = vsel %vm1085, %v6599, 0.0
        %6605 = vadd.xlane.f32.xlu0 %v6604
        %v6606 = vpop.xlane.xlu0 %6605
        %v6607 = vmul.f32 %v6606, %v1744
        %v6608 = vsub.f32 %v6599, %v6607
        %v6609 = vmul.f32 %v6608, %v6608
        %v6610 = vsel %vm1085, %v6609, 0.0
        %6611 = vadd.xlane.f32.xlu0 %v6610
        %v6612 = vpop.xlane.xlu0 %6611
        %v6613 = vmul.f32 %v6612, %v1744
        %v6614 = vadd.f32 %v6613, 1e-05
        %v6615 = vrsqrt.pop %v6614
        %v6616 = vmul.f32 %v6608, %v6615
        %v6618 = vlaneseq
        %v6619 = vshrl.u32 %v6618, 7
        %v6620 = vsub.s32 0, %v6619
        %v6621 = vrot.slane %v6601, %v6620
        %v6623 = vmul.f32 %v6616, %v6621
        %v6625 = vlaneseq
        %v6626 = vshrl.u32 %v6625, 7
        %v6627 = vsub.s32 0, %v6626
        %v6628 = vrot.slane %v6603, %v6627
        %v6630 = vadd.f32 %v6623, %v6628
        %v6631 = vld [vmem:[#allocation29] sm:$0xf]
        %v6632 = vld [vmem:[#allocation29 + $0x4] sm:$0xf]
        %v6633 = vld [vmem:[#allocation29 + $0x8] sm:$0xf]
        %v6634 = vld [vmem:[#allocation29 + $0xc] sm:$0xf]
        %v6635 = vpack.c.bf16 %v6630, %v6630
        %v6636 = vld [vmem:[#allocation31] sm:$0x1]
        %v6641 = vunpack.c.l.b16 %v6631
        %v6642 = vunpack.c.l.b16 %v6632
        %v6643 = vunpack.c.l.b16 %v6633
        %v6644 = vunpack.c.l.b16 %v6634
        %v6645 = vpack.c.b16 %v6642, %v6641
        %v6646 = vpack.c.b16 %v6644, %v6643
        %v6650 = vsel %vm1085, %v6635, 0
        %6652 = vmatprep.subr.bf16.mxu0 0
        %6653 = vmatpush1.bf16.msra.mxu0 %v6645
        %6654 = vmatprep.subr.bf16.mxu0 0
        %6655 = vmatpush1.bf16.msra.mxu0 %v6646
        %6656 = vmatprep.subr.bf16.mxu0 0
        %6657 = vmatpush1.bf16.msra.mxu0 0
        %6658 = vmatprep.subr.bf16.mxu0 0
        %6659 = vmatpush1.bf16.msra.mxu0 0
        %6660 = vmatprep.subr.bf16.mxu0 0
        %6661 = vmatpush1.bf16.msra.mxu0 0
        %6662 = vmatprep.subr.bf16.mxu0 0
        %6663 = vmatpush1.bf16.msra.mxu0 0
        %6664 = vmatprep.subr.bf16.mxu0 0
        %6665 = vmatpush1.bf16.msra.mxu0 0
        %6666 = vmatprep.subr.bf16.mxu0 0
        %6667 = vmatpush1.bf16.msra.mxu0 0
        %6668 = vmatprep.subr.bf16.mxu0 0
        %6669 = vmatpush1.bf16.msra.mxu0 0
        %6670 = vmatprep.subr.bf16.mxu0 0
        %6671 = vmatpush1.bf16.msra.mxu0 0
        %6672 = vmatprep.subr.bf16.mxu0 0
        %6673 = vmatpush1.bf16.msra.mxu0 0
        %6674 = vmatprep.subr.bf16.mxu0 0
        %6675 = vmatpush1.bf16.msra.mxu0 0
        %6676 = vmatprep.subr.bf16.mxu0 0
        %6677 = vmatpush1.bf16.msra.mxu0 0
        %6678 = vmatprep.subr.bf16.mxu0 0
        %6679 = vmatpush1.bf16.msra.mxu0 0
        %6680 = vmatprep.subr.bf16.mxu0 0
        %6681 = vmatpush1.bf16.msra.mxu0 0
        %6682 = vmatprep.subr.bf16.mxu0 0
        %6683 = vmatpush1.bf16.msra.mxu0 0
        %6684 = vmatprep.mubr.bf16.mxu0 0
        %6685 = vmatmul.mubr.bf16.gmra.mrb[0].mxu0 %v6650
        %v6686 = vpop.f32.mrb[0].mxu0
        %v6687 = vadd.f32 %v6636, %v6686
        %v6688 = vpop.f32.mrb[0].mxu0
        %v6689 = vpop.f32.mrb[0].mxu0
        %v6690 = vpop.f32.mrb[0].mxu0
        %6691 = vdwg.mxu0
        %v6692 = vmax.f32 %v6687, 0.0
        %v6693 = vld [vmem:[#allocation32] sm:$0xf]
        %v6694 = vld [vmem:[#allocation32 + $0x4] sm:$0xf]
        %v6695 = vld [vmem:[#allocation32 + $0x8] sm:$0xf]
        %v6696 = vld [vmem:[#allocation32 + $0xc] sm:$0xf]
        %v6697 = vld [vmem:[#allocation32 + $0x10] sm:$0xf]
        %v6698 = vld [vmem:[#allocation32 + $0x14] sm:$0xf]
        %v6699 = vld [vmem:[#allocation32 + $0x18] sm:$0xf]
        %v6700 = vld [vmem:[#allocation32 + $0x1c] sm:$0xf]
        %v6701 = vpack.c.bf16 %v6692, %v6692
        %v6702 = vld [vmem:[#allocation34] sm:$0x1]
        %v6711 = vunpack.c.l.b16 %v6693
        %v6712 = vunpack.c.l.b16 %v6694
        %v6713 = vunpack.c.l.b16 %v6695
        %v6714 = vunpack.c.l.b16 %v6696
        %v6715 = vunpack.c.l.b16 %v6697
        %v6716 = vunpack.c.l.b16 %v6698
        %v6717 = vunpack.c.l.b16 %v6699
        %v6718 = vunpack.c.l.b16 %v6700
        %v6719 = vpack.c.b16 %v6712, %v6711
        %v6720 = vpack.c.b16 %v6714, %v6713
        %v6721 = vpack.c.b16 %v6716, %v6715
        %v6722 = vpack.c.b16 %v6718, %v6717
        %vm6727 = vcmask 523264
        %v6729 = vsel %vm6727, %v6701, 0
        %6731 = vmatprep.subr.bf16.mxu0 0
        %6732 = vmatpush1.bf16.msra.mxu0 %v6719
        %6733 = vmatprep.subr.bf16.mxu0 0
        %6734 = vmatpush1.bf16.msra.mxu0 %v6720
        %6735 = vmatprep.subr.bf16.mxu0 0
        %6736 = vmatpush1.bf16.msra.mxu0 %v6721
        %6737 = vmatprep.subr.bf16.mxu0 0
        %6738 = vmatpush1.bf16.msra.mxu0 %v6722
        %6739 = vmatprep.subr.bf16.mxu0 0
        %6740 = vmatpush1.bf16.msra.mxu0 0
        %6741 = vmatprep.subr.bf16.mxu0 0
        %6742 = vmatpush1.bf16.msra.mxu0 0
        %6743 = vmatprep.subr.bf16.mxu0 0
        %6744 = vmatpush1.bf16.msra.mxu0 0
        %6745 = vmatprep.subr.bf16.mxu0 0
        %6746 = vmatpush1.bf16.msra.mxu0 0
        %6747 = vmatprep.subr.bf16.mxu0 0
        %6748 = vmatpush1.bf16.msra.mxu0 0
        %6749 = vmatprep.subr.bf16.mxu0 0
        %6750 = vmatpush1.bf16.msra.mxu0 0
        %6751 = vmatprep.subr.bf16.mxu0 0
        %6752 = vmatpush1.bf16.msra.mxu0 0
        %6753 = vmatprep.subr.bf16.mxu0 0
        %6754 = vmatpush1.bf16.msra.mxu0 0
        %6755 = vmatprep.subr.bf16.mxu0 0
        %6756 = vmatpush1.bf16.msra.mxu0 0
        %6757 = vmatprep.subr.bf16.mxu0 0
        %6758 = vmatpush1.bf16.msra.mxu0 0
        %6759 = vmatprep.subr.bf16.mxu0 0
        %6760 = vmatpush1.bf16.msra.mxu0 0
        %6761 = vmatprep.subr.bf16.mxu0 0
        %6762 = vmatpush1.bf16.msra.mxu0 0
        %6763 = vmatprep.mubr.bf16.mxu0 0
        %6764 = vmatmul.mubr.bf16.gmra.mrb[0].mxu0 %v6729
        %v6765 = vpop.f32.mrb[0].mxu0
        %v6766 = vadd.f32 %v6702, %v6765
        %v6767 = vpop.f32.mrb[0].mxu0
        %v6768 = vpop.f32.mrb[0].mxu0
        %v6769 = vpop.f32.mrb[0].mxu0
        %6770 = vdwg.mxu0
        %v6771 = vlaneseq
        %v6772 = vand.u32 %v6771, 127
        %vm6773 = vcmp.ge.s32.totalorder %v6772, 6
        %v6774 = vxor.u32 %v6766, 2147483648
        %v6775 = vmul.f32 %v6774, 1.442695
        %v6776 = vpow.pop %v6775
        %v6777 = vadd.f32 %v6776, 1.0
        %v6778 = vrcp.pop %v6777
        %v6779 = vmul.f32 1.0, %v6778
        %v6780 = vsel %vm6773, %v6779, %v6766
        %vm6781 = vcmask 57344
        %6782 = vst.msk [vmem:[%s950] sm:$0x1] %vm6781, %v6780
        %s6783 = sand.u32 %s502, 1
        %s6784 = scalar_lea.sflag [#allocation4], %s6783
        %s6785 = sand.u32 %s502, 1
        %s6786 = scalar_lea.vmem [#allocation35], %s6785
        // Predicated region
        $region189: #{satrot_forward.1} parent=103 // pred_check
          %p6787 = pneg %p512
        $region190: #{satrot_forward.1} parent=103 // pred_check_branch
          %6789 = sbr.rel (%p6787) target = $region192
        $region191: #{satrot_forward.1} parent=103 // pred_region
          %s6791 = ssub.s32 16, 16
          %6792 = vsyncadd %s6784, %s6791
          %s6793 = smul.addr %s48, 16
          %s6794 = scalar_lea.hbm %s21, %s6793
          %s6796 = sshll.u32 %s6786, 4
          %s6797 = int_to_ptr.vmem [resolvable:$true] %s6796
          %6799 = dma.vmem_to_hbm [thread:$0]  %s6797, 16, %s6794, %s6784
        $region192: #{satrot_forward.1} parent=103 // pred_fallthru
          _
      $region104: #{satrot_forward.1} parent=5 // pred_fallthru
        _
      %p6800 = scmp.le.s32.totalorder 2, %s43
      // Predicated region
      $region193: #{satrot_forward.1} parent=5 // pred_check
        %p6801 = pneg %p6800
      $region194: #{satrot_forward.1} parent=5 // pred_check_branch
        %6803 = sbr.rel (%p6801) target = $region196
      $region195: #{satrot_forward.1} parent=5 // pred_region
        %s6804 = ssub.s32 %s43, 2
        // Predicated region
        $region197: #{satrot_forward.1} parent=195 // pred_check
          %p6805 = pneg %p518
        $region198: #{satrot_forward.1} parent=195 // pred_check_branch
          %6807 = sbr.rel (%p6805) target = $region200
        $region199: #{satrot_forward.1} parent=195 // pred_region
          %s6808 = sand.u32 %s503, 1
          %s6809 = scalar_lea.sflag [#allocation4], %s6808
          %s6810 = sand.u32 %s503, 1
          %s6811 = scalar_lea.vmem [#allocation35], %s6810
          %6812 = dma.done %s6809, 16
        $region200: #{satrot_forward.1} parent=195 // pred_fallthru
          _
      $region196: #{satrot_forward.1} parent=5 // pred_fallthru
        _
    $region6: #{satrot_forward.1} parent=1 // loop_footer
      %s47 = sadd.s32 1, %s43
    $region7: #{satrot_forward.1} parent=1 // loop_footer_branch
      %42 = sbr.rel target = $region3
    $region8: #{satrot_forward.1} parent=1 // loop_exit
      _
    %6813 = vsyncpa [#allocation3], 1
    %s6814 = scalar_lea.sflag [#allocation3], 1
    %6815 = vsyncpa %s6814, 1
    %6816 = vsyncpa [#allocation6], 1
    %6817 = vsyncpa [#allocation9], 1
    %6818 = vsyncpa [#allocation12], 1
    %6819 = vsyncpa [#allocation15], 1
    %6820 = vsyncpa [#allocation18], 1
    %6821 = vsyncpa [#allocation21], 1
    %6822 = vsyncpa [#allocation24], 1
    %6823 = vsyncpa [#allocation27], 1
    %6824 = vsyncpa [#allocation30], 1
    %6825 = vsyncpa [#allocation33], 1
    %6826 = vsyncpa [#allocation4], 1
    %s6827 = scalar_lea.sflag [#allocation4], 1
    %6828 = vsyncpa %s6827, 1

</llo_original>
